<compile_context>
chip_gen: v7x
topology: tpu7x:2x2x1
jax: 0.10.0
libtpu: 0.0.40
codegen_flags: <defaults>
</compile_context>

<pallas_src>
import functools
import math

import jax
import jax.numpy as jnp
from jax.experimental import pallas as pl
from jax.experimental.pallas import tpu as pltpu

LEAKY_SLOPE = 0.01   # torch.nn.LeakyReLU default negative_slope
_LPAD = 8            # sublane-aligned left margin of the padded VMEM scratch


# --------------------------------------------------------------------------
# The fused up-block kernel (one grid step == one batch sample).
# --------------------------------------------------------------------------
def _up_block_kernel(skip_ref, xu_ref,
                     w11x_ref, w11s_ref, b11_ref,
                     w12_ref, b12_ref,
                     w21x_ref, w21s_ref, w21x1_ref, b21_ref,
                     w22_ref, b22_ref,
                     out_ref,
                     apad_ref, bpad_ref):
    _, H, W, Cs = skip_ref.shape
    Ci = xu_ref.shape[-1]
    Co = out_ref.shape[-1]
    M = H * W

    # Flatten spatial dims onto the sublane axis; channels stay on lanes.
    sk = skip_ref[...].reshape(M, Cs)
    xu = xu_ref[...].reshape(M, Ci)

    def leaky(v):
        return jnp.where(v >= 0.0, v, LEAKY_SLOPE * v)

    def store_padded(pad_ref, val2d):
        # Zero border once, then a tile-aligned interior store.
        pad_ref[...] = jnp.zeros_like(pad_ref)
        pad_ref[:, 1:H + 1, _LPAD:_LPAD + W, :] = val2d.reshape(1, H, W, Co)

    def conv3x3(pad_ref, w_ref, b_ref):
        # 3x3 / pad=1 conv as 9 accumulating MXU dots over shifted windows
        # of the zero-padded VMEM scratch (no im2col materialisation).
        acc = jnp.zeros((M, Co), jnp.float32)
        for k in range(9):
            dy, dx = divmod(k, 3)
            col0 = _LPAD - 1 + dx
            win = pad_ref[:, dy:dy + H, col0:col0 + W, :]
            acc = acc + jnp.dot(win.reshape(M, Co), w_ref[k],
                                preferred_element_type=jnp.float32)
        return acc + b_ref[...]

    # ---- x1 = LeakyReLU(conv12(conv11([up(x), skip]))) --------------------
    # conv11 (1x1) of the concat, concat never materialised.
    a = (jnp.dot(xu, w11x_ref[...], preferred_element_type=jnp.float32)
         + jnp.dot(sk, w11s_ref[...], preferred_element_type=jnp.float32)
         + b11_ref[...])
    store_padded(apad_ref, a)
    x1 = leaky(conv3x3(apad_ref, w12_ref, b12_ref))

    # ---- out = LeakyReLU(conv22(conv21([up(x), skip, x1]))) ---------------
    p21 = (jnp.dot(xu, w21x_ref[...], preferred_element_type=jnp.float32)
           + jnp.dot(sk, w21s_ref[...], preferred_element_type=jnp.float32)
           + jnp.dot(x1, w21x1_ref[...], preferred_element_type=jnp.float32)
           + b21_ref[...])
    store_padded(bpad_ref, p21)
    out = leaky(conv3x3(bpad_ref, w22_ref, b22_ref))

    out_ref[...] = out.reshape(1, H, W, Co).astype(out_ref.dtype)


# --------------------------------------------------------------------------
# Wrapper: NCHW in / NCHW out, identical semantics to the torch module.
# --------------------------------------------------------------------------
def up_block_concat(params, prev_feature_map, x, *, up_stride=2):
    # NCHW (torch) -> NHWC (TPU lanes = channels).
    skip = jnp.transpose(prev_feature_map, (0, 2, 3, 1)).astype(jnp.float32)
    xs = jnp.transpose(x, (0, 2, 3, 1)).astype(jnp.float32)

    # F.interpolate(mode='nearest', scale_factor=up_stride): tiny XLA glue
    # feeding the single fused kernel.
    xu = jnp.repeat(jnp.repeat(xs, up_stride, axis=1), up_stride, axis=2)

    N, H, W, Cs = skip.shape
    Ci = xu.shape[-1]
    assert xu.shape[:3] == (N, H, W)

    w11, b11 = params["w11"], params["b11"]
    w12, b12 = params["w12"], params["b12"]
    w21, b21 = params["w21"], params["b21"]
    w22, b22 = params["w22"], params["b22"]
    Co = b11.shape[0]

    # Split the 1x1 weights along the (never materialised) concat axis.
    # concat order matches torch: [upsampled x (Ci), skip (Cs), x1 (Co)].
    w11x, w11s = w11[:Ci], w11[Ci:Ci + Cs]
    w21x, w21s, w21x1 = w21[:Ci], w21[Ci:Ci + Cs], w21[Ci + Cs:]
    w12t = w12.reshape(9, Co, Co)          # tap-major: k = dy*3 + dx
    w22t = w22.reshape(9, Co, Co)
    b11r = b11.reshape(1, Co)
    b12r = b12.reshape(1, Co)
    b21r = b21.reshape(1, Co)
    b22r = b22.reshape(1, Co)

    wpad = W + 2 * _LPAD                   # padded scratch width (aligned)

    out_nhwc = pl.pallas_call(
        _up_block_kernel,
        out_shape=jax.ShapeDtypeStruct((N, H, W, Co), jnp.float32),
        grid=(N,),
        in_specs=[
            pl.BlockSpec((1, H, W, Cs), lambda n: (n, 0, 0, 0)),   # skip
            pl.BlockSpec((1, H, W, Ci), lambda n: (n, 0, 0, 0)),   # up(x)
            pl.BlockSpec((Ci, Co), lambda n: (0, 0)),              # w11 (x part)
            pl.BlockSpec((Cs, Co), lambda n: (0, 0)),              # w11 (skip part)
            pl.BlockSpec((1, Co), lambda n: (0, 0)),               # b11
            pl.BlockSpec((9, Co, Co), lambda n: (0, 0, 0)),        # w12 taps
            pl.BlockSpec((1, Co), lambda n: (0, 0)),               # b12
            pl.BlockSpec((Ci, Co), lambda n: (0, 0)),              # w21 (x part)
            pl.BlockSpec((Cs, Co), lambda n: (0, 0)),              # w21 (skip part)
            pl.BlockSpec((Co, Co), lambda n: (0, 0)),              # w21 (x1 part)
            pl.BlockSpec((1, Co), lambda n: (0, 0)),               # b21
            pl.BlockSpec((9, Co, Co), lambda n: (0, 0, 0)),        # w22 taps
            pl.BlockSpec((1, Co), lambda n: (0, 0)),               # b22
        ],
        out_specs=pl.BlockSpec((1, H, W, Co), lambda n: (n, 0, 0, 0)),
        scratch_shapes=[
            pltpu.VMEM((1, H + 2, wpad, Co), jnp.float32),         # padded conv12 input
            pltpu.VMEM((1, H + 2, wpad, Co), jnp.float32),         # padded conv22 input
        ],
        compiler_params=pltpu.CompilerParams(
            dimension_semantics=("parallel",)),
    )(skip, xu, w11x, w11s, b11r, w12t, b12r,
      w21x, w21s, w21x1, b21r, w22t, b22r)

    # NHWC -> NCHW (torch layout).
    return jnp.transpose(out_nhwc, (0, 3, 1, 2))


# --------------------------------------------------------------------------
# Deterministic parameter init (torch Conv2d-like uniform(-1/sqrt(fan_in), ..)).
# Weight layouts: 1x1 -> (Cin, Cout); 3x3 -> (kh, kw, Cin, Cout).
# --------------------------------------------------------------------------
def _init_conv(key, kh, kw, cin, cout):
    kw_key, kb_key = jax.random.split(key)
    bound = 1.0 / math.sqrt(cin * kh * kw)
    if kh == 1 and kw == 1:
        w = jax.random.uniform(kw_key, (cin, cout), jnp.float32, -bound, bound)
    else:
        w = jax.random.uniform(kw_key, (kh, kw, cin, cout), jnp.float32,
                               -bound, bound)
    b = jax.random.uniform(kb_key, (cout,), jnp.float32, -bound, bound)
    return w, b


def init_params(key, skip_channels, input_channels, output_channels):
    k = jax.random.split(key, 4)
    w11, b11 = _init_conv(k[0], 1, 1, skip_channels + input_channels,
                          output_channels)
    w12, b12 = _init_conv(k[1], 3, 3, output_channels, output_channels)
    w21, b21 = _init_conv(k[2], 1, 1,
                          skip_channels + input_channels + output_channels,
                          output_channels)
    w22, b22 = _init_conv(k[3], 3, 3, output_channels, output_channels)
    return dict(w11=w11, b11=b11, w12=w12, b12=b12,
                w21=w21, b21=b21, w22=w22, b22=b22)


# TODO(synk): torch.nn.Dropout layers exist in the module but are inert on the
# default (dropout=False) path, so they are intentionally not implemented.

if __name__ == "__main__":
    key = jax.random.PRNGKey(0)
    kp, ks, kx = jax.random.split(key, 3)

    skip_ch, in_ch, out_ch, up_stride = 32, 32, 32, 2
    N, H, W = 2, 16, 16

    params = init_params(kp, skip_ch, in_ch, out_ch)
    # Torch-layout (NCHW) inputs: skip at full resolution, x at half resolution.
    prev_feature_map = jax.random.normal(ks, (N, skip_ch, H, W), jnp.float32)
    x = jax.random.normal(kx, (N, in_ch, H // up_stride, W // up_stride),
                          jnp.float32)

    fwd = jax.jit(functools.partial(up_block_concat, up_stride=up_stride))
    out = jax.block_until_ready(fwd(params, prev_feature_map, x))

    assert out.shape == (N, out_ch, H, W), out.shape
    assert bool(jnp.all(jnp.isfinite(out)))
    print("KERNEL_OK")
</pallas_src>

<mosaic_0001>
module attributes {stable_mosaic.version = 11 : i64} {
  func.func @_up_block_kernel(%arg0: i32, %arg1: memref<1x16x16x32xf32, #tpu.memory_space<vmem>>, %arg2: memref<1x16x16x32xf32, #tpu.memory_space<vmem>>, %arg3: memref<32x32xf32, #tpu.memory_space<vmem>>, %arg4: memref<32x32xf32, #tpu.memory_space<vmem>>, %arg5: memref<1x32xf32, #tpu.memory_space<vmem>>, %arg6: memref<9x32x32xf32, #tpu.memory_space<vmem>>, %arg7: memref<1x32xf32, #tpu.memory_space<vmem>>, %arg8: memref<32x32xf32, #tpu.memory_space<vmem>>, %arg9: memref<32x32xf32, #tpu.memory_space<vmem>>, %arg10: memref<32x32xf32, #tpu.memory_space<vmem>>, %arg11: memref<1x32xf32, #tpu.memory_space<vmem>>, %arg12: memref<9x32x32xf32, #tpu.memory_space<vmem>>, %arg13: memref<1x32xf32, #tpu.memory_space<vmem>>, %arg14: memref<1x16x16x32xf32, #tpu.memory_space<vmem>>, %arg15: memref<1x18x32x32xf32, #tpu.memory_space<vmem>>, %arg16: memref<1x18x32x32xf32, #tpu.memory_space<vmem>>) attributes {dimension_semantics = [#tpu.dimension_semantics<parallel>], iteration_bounds = array<i64: 2>, scalar_prefetch = 0 : i64, scratch_operands = 2 : i64, tpu.core_type = #tpu.core_type<tc>, window_params = [{transform_indices = @transform_0, window_bounds = array<i64: 1, 16, 16, 32>}, {transform_indices = @transform_1, window_bounds = array<i64: 1, 16, 16, 32>}, {pipeline_mode = #tpu.pipeline_mode<synchronous>, transform_indices = @transform_2, window_bounds = array<i64: 32, 32>}, {pipeline_mode = #tpu.pipeline_mode<synchronous>, transform_indices = @transform_3, window_bounds = array<i64: 32, 32>}, {pipeline_mode = #tpu.pipeline_mode<synchronous>, transform_indices = @transform_4, window_bounds = array<i64: 1, 32>}, {pipeline_mode = #tpu.pipeline_mode<synchronous>, transform_indices = @transform_5, window_bounds = array<i64: 9, 32, 32>}, {pipeline_mode = #tpu.pipeline_mode<synchronous>, transform_indices = @transform_6, window_bounds = array<i64: 1, 32>}, {pipeline_mode = #tpu.pipeline_mode<synchronous>, transform_indices = @transform_7, window_bounds = array<i64: 32, 32>}, {pipeline_mode = #tpu.pipeline_mode<synchronous>, transform_indices = @transform_8, window_bounds = array<i64: 32, 32>}, {pipeline_mode = #tpu.pipeline_mode<synchronous>, transform_indices = @transform_9, window_bounds = array<i64: 32, 32>}, {pipeline_mode = #tpu.pipeline_mode<synchronous>, transform_indices = @transform_10, window_bounds = array<i64: 1, 32>}, {pipeline_mode = #tpu.pipeline_mode<synchronous>, transform_indices = @transform_11, window_bounds = array<i64: 9, 32, 32>}, {pipeline_mode = #tpu.pipeline_mode<synchronous>, transform_indices = @transform_12, window_bounds = array<i64: 1, 32>}, {transform_indices = @transform_13, window_bounds = array<i64: 1, 16, 16, 32>}]} {
    %c0 = arith.constant 0 : index
    %c0_0 = arith.constant 0 : index
    %c0_1 = arith.constant 0 : index
    %c0_2 = arith.constant 0 : index
    %0 = vector.load %arg1[%c0, %c0_0, %c0_1, %c0_2] : memref<1x16x16x32xf32, #tpu.memory_space<vmem>>, vector<1x16x16x32xf32>
    %1 = vector.shape_cast %0 : vector<1x16x16x32xf32> to vector<256x32xf32>
    %c0_3 = arith.constant 0 : index
    %c0_4 = arith.constant 0 : index
    %c0_5 = arith.constant 0 : index
    %c0_6 = arith.constant 0 : index
    %2 = vector.load %arg2[%c0_3, %c0_4, %c0_5, %c0_6] : memref<1x16x16x32xf32, #tpu.memory_space<vmem>>, vector<1x16x16x32xf32>
    %3 = vector.shape_cast %2 : vector<1x16x16x32xf32> to vector<256x32xf32>
    %c0_7 = arith.constant 0 : index
    %c0_8 = arith.constant 0 : index
    %4 = vector.load %arg3[%c0_7, %c0_8] : memref<32x32xf32, #tpu.memory_space<vmem>>, vector<32x32xf32>
    %cst = arith.constant dense<0.000000e+00> : vector<256x32xf32>
    %5 = tpu.matmul %3, %4, %cst {dimension_numbers = #tpu.dot_dimension_numbers<[1], [0], [0], [1], [0, 0, 1, 1], [], []>} : vector<256x32xf32>, vector<32x32xf32>, vector<256x32xf32> -> vector<256x32xf32>
    %c0_9 = arith.constant 0 : index
    %c0_10 = arith.constant 0 : index
    %6 = vector.load %arg4[%c0_9, %c0_10] : memref<32x32xf32, #tpu.memory_space<vmem>>, vector<32x32xf32>
    %cst_11 = arith.constant dense<0.000000e+00> : vector<256x32xf32>
    %7 = tpu.matmul %1, %6, %cst_11 {dimension_numbers = #tpu.dot_dimension_numbers<[1], [0], [0], [1], [0, 0, 1, 1], [], []>} : vector<256x32xf32>, vector<32x32xf32>, vector<256x32xf32> -> vector<256x32xf32>
    %8 = arith.addf %5, %7 : vector<256x32xf32>
    %c0_12 = arith.constant 0 : index
    %c0_13 = arith.constant 0 : index
    %9 = vector.load %arg5[%c0_12, %c0_13] : memref<1x32xf32, #tpu.memory_space<vmem>>, vector<1x32xf32>
    %10 = vector.broadcast %9 : vector<1x32xf32> to vector<256x32xf32>
    %11 = arith.addf %8, %10 : vector<256x32xf32>
    %cst_14 = arith.constant 0.000000e+00 : f32
    %12 = vector.broadcast %cst_14 : f32 to vector<1x18x32x32xf32>
    %c0_15 = arith.constant 0 : index
    %c0_16 = arith.constant 0 : index
    %c0_17 = arith.constant 0 : index
    %c0_18 = arith.constant 0 : index
    %13 = vector.load %arg15[%c0_15, %c0_16, %c0_17, %c0_18] : memref<1x18x32x32xf32, #tpu.memory_space<vmem>>, vector<1x18x32x32xf32>
    tpu.vector_store %arg15[%c0_15, %c0_16, %c0_17, %c0_18], %12 {strides = array<i32>} : memref<1x18x32x32xf32, #tpu.memory_space<vmem>>, vector<1x18x32x32xf32>,
    %14 = vector.shape_cast %11 : vector<256x32xf32> to vector<1x16x16x32xf32>
    %c0_19 = arith.constant 0 : index
    %c1 = arith.constant 1 : index
    %c8 = arith.constant 8 : index
    %c0_20 = arith.constant 0 : index
    %15 = vector.load %arg15[%c0_19, %c1, %c8, %c0_20] : memref<1x18x32x32xf32, #tpu.memory_space<vmem>>, vector<1x16x16x32xf32>
    tpu.vector_store %arg15[%c0_19, %c1, %c8, %c0_20], %14 {strides = array<i32>} : memref<1x18x32x32xf32, #tpu.memory_space<vmem>>, vector<1x16x16x32xf32>,
    %cst_21 = arith.constant 0.000000e+00 : f32
    %16 = vector.broadcast %cst_21 : f32 to vector<256x32xf32>
    %c0_22 = arith.constant 0 : index
    %c0_23 = arith.constant 0 : index
    %c7 = arith.constant 7 : index
    %c0_24 = arith.constant 0 : index
    %17 = vector.load %arg15[%c0_22, %c0_23, %c7, %c0_24] : memref<1x18x32x32xf32, #tpu.memory_space<vmem>>, vector<1x16x16x32xf32>
    %18 = vector.shape_cast %17 : vector<1x16x16x32xf32> to vector<256x32xf32>
    %c0_25 = arith.constant 0 : index
    %c0_26 = arith.constant 0 : index
    %c0_27 = arith.constant 0 : index
    %19 = vector.load %arg6[%c0_25, %c0_26, %c0_27] : memref<9x32x32xf32, #tpu.memory_space<vmem>>, vector<1x32x32xf32>
    %20 = vector.shape_cast %19 : vector<1x32x32xf32> to vector<32x32xf32>
    %cst_28 = arith.constant dense<0.000000e+00> : vector<256x32xf32>
    %21 = tpu.matmul %18, %20, %cst_28 {dimension_numbers = #tpu.dot_dimension_numbers<[1], [0], [0], [1], [0, 0, 1, 1], [], []>} : vector<256x32xf32>, vector<32x32xf32>, vector<256x32xf32> -> vector<256x32xf32>
    %22 = arith.addf %16, %21 : vector<256x32xf32>
    %c0_29 = arith.constant 0 : index
    %c0_30 = arith.constant 0 : index
    %c8_31 = arith.constant 8 : index
    %c0_32 = arith.constant 0 : index
    %23 = vector.load %arg15[%c0_29, %c0_30, %c8_31, %c0_32] : memref<1x18x32x32xf32, #tpu.memory_space<vmem>>, vector<1x16x16x32xf32>
    %24 = vector.shape_cast %23 : vector<1x16x16x32xf32> to vector<256x32xf32>
    %c1_33 = arith.constant 1 : index
    %c0_34 = arith.constant 0 : index
    %c0_35 = arith.constant 0 : index
    %25 = vector.load %arg6[%c1_33, %c0_34, %c0_35] : memref<9x32x32xf32, #tpu.memory_space<vmem>>, vector<1x32x32xf32>
    %26 = vector.shape_cast %25 : vector<1x32x32xf32> to vector<32x32xf32>
    %cst_36 = arith.constant dense<0.000000e+00> : vector<256x32xf32>
    %27 = tpu.matmul %24, %26, %cst_36 {dimension_numbers = #tpu.dot_dimension_numbers<[1], [0], [0], [1], [0, 0, 1, 1], [], []>} : vector<256x32xf32>, vector<32x32xf32>, vector<256x32xf32> -> vector<256x32xf32>
    %28 = arith.addf %22, %27 : vector<256x32xf32>
    %c0_37 = arith.constant 0 : index
    %c0_38 = arith.constant 0 : index
    %c9 = arith.constant 9 : index
    %c0_39 = arith.constant 0 : index
    %29 = vector.load %arg15[%c0_37, %c0_38, %c9, %c0_39] : memref<1x18x32x32xf32, #tpu.memory_space<vmem>>, vector<1x16x16x32xf32>
    %30 = vector.shape_cast %29 : vector<1x16x16x32xf32> to vector<256x32xf32>
    %c2 = arith.constant 2 : index
    %c0_40 = arith.constant 0 : index
    %c0_41 = arith.constant 0 : index
    %31 = vector.load %arg6[%c2, %c0_40, %c0_41] : memref<9x32x32xf32, #tpu.memory_space<vmem>>, vector<1x32x32xf32>
    %32 = vector.shape_cast %31 : vector<1x32x32xf32> to vector<32x32xf32>
    %cst_42 = arith.constant dense<0.000000e+00> : vector<256x32xf32>
    %33 = tpu.matmul %30, %32, %cst_42 {dimension_numbers = #tpu.dot_dimension_numbers<[1], [0], [0], [1], [0, 0, 1, 1], [], []>} : vector<256x32xf32>, vector<32x32xf32>, vector<256x32xf32> -> vector<256x32xf32>
    %34 = arith.addf %28, %33 : vector<256x32xf32>
    %c0_43 = arith.constant 0 : index
    %c1_44 = arith.constant 1 : index
    %c7_45 = arith.constant 7 : index
    %c0_46 = arith.constant 0 : index
    %35 = vector.load %arg15[%c0_43, %c1_44, %c7_45, %c0_46] : memref<1x18x32x32xf32, #tpu.memory_space<vmem>>, vector<1x16x16x32xf32>
    %36 = vector.shape_cast %35 : vector<1x16x16x32xf32> to vector<256x32xf32>
    %c3 = arith.constant 3 : index
    %c0_47 = arith.constant 0 : index
    %c0_48 = arith.constant 0 : index
    %37 = vector.load %arg6[%c3, %c0_47, %c0_48] : memref<9x32x32xf32, #tpu.memory_space<vmem>>, vector<1x32x32xf32>
    %38 = vector.shape_cast %37 : vector<1x32x32xf32> to vector<32x32xf32>
    %cst_49 = arith.constant dense<0.000000e+00> : vector<256x32xf32>
    %39 = tpu.matmul %36, %38, %cst_49 {dimension_numbers = #tpu.dot_dimension_numbers<[1], [0], [0], [1], [0, 0, 1, 1], [], []>} : vector<256x32xf32>, vector<32x32xf32>, vector<256x32xf32> -> vector<256x32xf32>
    %40 = arith.addf %34, %39 : vector<256x32xf32>
    %c0_50 = arith.constant 0 : index
    %c1_51 = arith.constant 1 : index
    %c8_52 = arith.constant 8 : index
    %c0_53 = arith.constant 0 : index
    %41 = vector.load %arg15[%c0_50, %c1_51, %c8_52, %c0_53] : memref<1x18x32x32xf32, #tpu.memory_space<vmem>>, vector<1x16x16x32xf32>
    %42 = vector.shape_cast %41 : vector<1x16x16x32xf32> to vector<256x32xf32>
    %c4 = arith.constant 4 : index
    %c0_54 = arith.constant 0 : index
    %c0_55 = arith.constant 0 : index
    %43 = vector.load %arg6[%c4, %c0_54, %c0_55] : memref<9x32x32xf32, #tpu.memory_space<vmem>>, vector<1x32x32xf32>
    %44 = vector.shape_cast %43 : vector<1x32x32xf32> to vector<32x32xf32>
    %cst_56 = arith.constant dense<0.000000e+00> : vector<256x32xf32>
    %45 = tpu.matmul %42, %44, %cst_56 {dimension_numbers = #tpu.dot_dimension_numbers<[1], [0], [0], [1], [0, 0, 1, 1], [], []>} : vector<256x32xf32>, vector<32x32xf32>, vector<256x32xf32> -> vector<256x32xf32>
    %46 = arith.addf %40, %45 : vector<256x32xf32>
    %c0_57 = arith.constant 0 : index
    %c1_58 = arith.constant 1 : index
    %c9_59 = arith.constant 9 : index
    %c0_60 = arith.constant 0 : index
    %47 = vector.load %arg15[%c0_57, %c1_58, %c9_59, %c0_60] : memref<1x18x32x32xf32, #tpu.memory_space<vmem>>, vector<1x16x16x32xf32>
    %48 = vector.shape_cast %47 : vector<1x16x16x32xf32> to vector<256x32xf32>
    %c5 = arith.constant 5 : index
    %c0_61 = arith.constant 0 : index
    %c0_62 = arith.constant 0 : index
    %49 = vector.load %arg6[%c5, %c0_61, %c0_62] : memref<9x32x32xf32, #tpu.memory_space<vmem>>, vector<1x32x32xf32>
    %50 = vector.shape_cast %49 : vector<1x32x32xf32> to vector<32x32xf32>
    %cst_63 = arith.constant dense<0.000000e+00> : vector<256x32xf32>
    %51 = tpu.matmul %48, %50, %cst_63 {dimension_numbers = #tpu.dot_dimension_numbers<[1], [0], [0], [1], [0, 0, 1, 1], [], []>} : vector<256x32xf32>, vector<32x32xf32>, vector<256x32xf32> -> vector<256x32xf32>
    %52 = arith.addf %46, %51 : vector<256x32xf32>
    %c0_64 = arith.constant 0 : index
    %c2_65 = arith.constant 2 : index
    %c7_66 = arith.constant 7 : index
    %c0_67 = arith.constant 0 : index
    %53 = vector.load %arg15[%c0_64, %c2_65, %c7_66, %c0_67] : memref<1x18x32x32xf32, #tpu.memory_space<vmem>>, vector<1x16x16x32xf32>
    %54 = vector.shape_cast %53 : vector<1x16x16x32xf32> to vector<256x32xf32>
    %c6 = arith.constant 6 : index
    %c0_68 = arith.constant 0 : index
    %c0_69 = arith.constant 0 : index
    %55 = vector.load %arg6[%c6, %c0_68, %c0_69] : memref<9x32x32xf32, #tpu.memory_space<vmem>>, vector<1x32x32xf32>
    %56 = vector.shape_cast %55 : vector<1x32x32xf32> to vector<32x32xf32>
    %cst_70 = arith.constant dense<0.000000e+00> : vector<256x32xf32>
    %57 = tpu.matmul %54, %56, %cst_70 {dimension_numbers = #tpu.dot_dimension_numbers<[1], [0], [0], [1], [0, 0, 1, 1], [], []>} : vector<256x32xf32>, vector<32x32xf32>, vector<256x32xf32> -> vector<256x32xf32>
    %58 = arith.addf %52, %57 : vector<256x32xf32>
    %c0_71 = arith.constant 0 : index
    %c2_72 = arith.constant 2 : index
    %c8_73 = arith.constant 8 : index
    %c0_74 = arith.constant 0 : index
    %59 = vector.load %arg15[%c0_71, %c2_72, %c8_73, %c0_74] : memref<1x18x32x32xf32, #tpu.memory_space<vmem>>, vector<1x16x16x32xf32>
    %60 = vector.shape_cast %59 : vector<1x16x16x32xf32> to vector<256x32xf32>
    %c7_75 = arith.constant 7 : index
    %c0_76 = arith.constant 0 : index
    %c0_77 = arith.constant 0 : index
    %61 = vector.load %arg6[%c7_75, %c0_76, %c0_77] : memref<9x32x32xf32, #tpu.memory_space<vmem>>, vector<1x32x32xf32>
    %62 = vector.shape_cast %61 : vector<1x32x32xf32> to vector<32x32xf32>
    %cst_78 = arith.constant dense<0.000000e+00> : vector<256x32xf32>
    %63 = tpu.matmul %60, %62, %cst_78 {dimension_numbers = #tpu.dot_dimension_numbers<[1], [0], [0], [1], [0, 0, 1, 1], [], []>} : vector<256x32xf32>, vector<32x32xf32>, vector<256x32xf32> -> vector<256x32xf32>
    %64 = arith.addf %58, %63 : vector<256x32xf32>
    %c0_79 = arith.constant 0 : index
    %c2_80 = arith.constant 2 : index
    %c9_81 = arith.constant 9 : index
    %c0_82 = arith.constant 0 : index
    %65 = vector.load %arg15[%c0_79, %c2_80, %c9_81, %c0_82] : memref<1x18x32x32xf32, #tpu.memory_space<vmem>>, vector<1x16x16x32xf32>
    %66 = vector.shape_cast %65 : vector<1x16x16x32xf32> to vector<256x32xf32>
    %c8_83 = arith.constant 8 : index
    %c0_84 = arith.constant 0 : index
    %c0_85 = arith.constant 0 : index
    %67 = vector.load %arg6[%c8_83, %c0_84, %c0_85] : memref<9x32x32xf32, #tpu.memory_space<vmem>>, vector<1x32x32xf32>
    %68 = vector.shape_cast %67 : vector<1x32x32xf32> to vector<32x32xf32>
    %cst_86 = arith.constant dense<0.000000e+00> : vector<256x32xf32>
    %69 = tpu.matmul %66, %68, %cst_86 {dimension_numbers = #tpu.dot_dimension_numbers<[1], [0], [0], [1], [0, 0, 1, 1], [], []>} : vector<256x32xf32>, vector<32x32xf32>, vector<256x32xf32> -> vector<256x32xf32>
    %70 = arith.addf %64, %69 : vector<256x32xf32>
    %c0_87 = arith.constant 0 : index
    %c0_88 = arith.constant 0 : index
    %71 = vector.load %arg7[%c0_87, %c0_88] : memref<1x32xf32, #tpu.memory_space<vmem>>, vector<1x32xf32>
    %72 = vector.broadcast %71 : vector<1x32xf32> to vector<256x32xf32>
    %73 = arith.addf %70, %72 : vector<256x32xf32>
    %cst_89 = arith.constant 0.000000e+00 : f32
    %74 = vector.broadcast %cst_89 : f32 to vector<256x32xf32>
    %75 = arith.cmpf oge, %73, %74 : vector<256x32xf32>
    %cst_90 = arith.constant 0.00999999977 : f32
    %76 = vector.broadcast %cst_90 : f32 to vector<256x32xf32>
    %77 = arith.mulf %76, %73 : vector<256x32xf32>
    %78 = arith.select %75, %73, %77 : vector<256x32xi1>, vector<256x32xf32>
    %c0_91 = arith.constant 0 : index
    %c0_92 = arith.constant 0 : index
    %79 = vector.load %arg8[%c0_91, %c0_92] : memref<32x32xf32, #tpu.memory_space<vmem>>, vector<32x32xf32>
    %cst_93 = arith.constant dense<0.000000e+00> : vector<256x32xf32>
    %80 = tpu.matmul %3, %79, %cst_93 {dimension_numbers = #tpu.dot_dimension_numbers<[1], [0], [0], [1], [0, 0, 1, 1], [], []>} : vector<256x32xf32>, vector<32x32xf32>, vector<256x32xf32> -> vector<256x32xf32>
    %c0_94 = arith.constant 0 : index
    %c0_95 = arith.constant 0 : index
    %81 = vector.load %arg9[%c0_94, %c0_95] : memref<32x32xf32, #tpu.memory_space<vmem>>, vector<32x32xf32>
    %cst_96 = arith.constant dense<0.000000e+00> : vector<256x32xf32>
    %82 = tpu.matmul %1, %81, %cst_96 {dimension_numbers = #tpu.dot_dimension_numbers<[1], [0], [0], [1], [0, 0, 1, 1], [], []>} : vector<256x32xf32>, vector<32x32xf32>, vector<256x32xf32> -> vector<256x32xf32>
    %83 = arith.addf %80, %82 : vector<256x32xf32>
    %c0_97 = arith.constant 0 : index
    %c0_98 = arith.constant 0 : index
    %84 = vector.load %arg10[%c0_97, %c0_98] : memref<32x32xf32, #tpu.memory_space<vmem>>, vector<32x32xf32>
    %cst_99 = arith.constant dense<0.000000e+00> : vector<256x32xf32>
    %85 = tpu.matmul %78, %84, %cst_99 {dimension_numbers = #tpu.dot_dimension_numbers<[1], [0], [0], [1], [0, 0, 1, 1], [], []>} : vector<256x32xf32>, vector<32x32xf32>, vector<256x32xf32> -> vector<256x32xf32>
    %86 = arith.addf %83, %85 : vector<256x32xf32>
    %c0_100 = arith.constant 0 : index
    %c0_101 = arith.constant 0 : index
    %87 = vector.load %arg11[%c0_100, %c0_101] : memref<1x32xf32, #tpu.memory_space<vmem>>, vector<1x32xf32>
    %88 = vector.broadcast %87 : vector<1x32xf32> to vector<256x32xf32>
    %89 = arith.addf %86, %88 : vector<256x32xf32>
    %cst_102 = arith.constant 0.000000e+00 : f32
    %90 = vector.broadcast %cst_102 : f32 to vector<1x18x32x32xf32>
    %c0_103 = arith.constant 0 : index
    %c0_104 = arith.constant 0 : index
    %c0_105 = arith.constant 0 : index
    %c0_106 = arith.constant 0 : index
    %91 = vector.load %arg16[%c0_103, %c0_104, %c0_105, %c0_106] : memref<1x18x32x32xf32, #tpu.memory_space<vmem>>, vector<1x18x32x32xf32>
    tpu.vector_store %arg16[%c0_103, %c0_104, %c0_105, %c0_106], %90 {strides = array<i32>} : memref<1x18x32x32xf32, #tpu.memory_space<vmem>>, vector<1x18x32x32xf32>,
    %92 = vector.shape_cast %89 : vector<256x32xf32> to vector<1x16x16x32xf32>
    %c0_107 = arith.constant 0 : index
    %c1_108 = arith.constant 1 : index
    %c8_109 = arith.constant 8 : index
    %c0_110 = arith.constant 0 : index
    %93 = vector.load %arg16[%c0_107, %c1_108, %c8_109, %c0_110] : memref<1x18x32x32xf32, #tpu.memory_space<vmem>>, vector<1x16x16x32xf32>
    tpu.vector_store %arg16[%c0_107, %c1_108, %c8_109, %c0_110], %92 {strides = array<i32>} : memref<1x18x32x32xf32, #tpu.memory_space<vmem>>, vector<1x16x16x32xf32>,
    %cst_111 = arith.constant 0.000000e+00 : f32
    %94 = vector.broadcast %cst_111 : f32 to vector<256x32xf32>
    %c0_112 = arith.constant 0 : index
    %c0_113 = arith.constant 0 : index
    %c7_114 = arith.constant 7 : index
    %c0_115 = arith.constant 0 : index
    %95 = vector.load %arg16[%c0_112, %c0_113, %c7_114, %c0_115] : memref<1x18x32x32xf32, #tpu.memory_space<vmem>>, vector<1x16x16x32xf32>
    %96 = vector.shape_cast %95 : vector<1x16x16x32xf32> to vector<256x32xf32>
    %c0_116 = arith.constant 0 : index
    %c0_117 = arith.constant 0 : index
    %c0_118 = arith.constant 0 : index
    %97 = vector.load %arg12[%c0_116, %c0_117, %c0_118] : memref<9x32x32xf32, #tpu.memory_space<vmem>>, vector<1x32x32xf32>
    %98 = vector.shape_cast %97 : vector<1x32x32xf32> to vector<32x32xf32>
    %cst_119 = arith.constant dense<0.000000e+00> : vector<256x32xf32>
    %99 = tpu.matmul %96, %98, %cst_119 {dimension_numbers = #tpu.dot_dimension_numbers<[1], [0], [0], [1], [0, 0, 1, 1], [], []>} : vector<256x32xf32>, vector<32x32xf32>, vector<256x32xf32> -> vector<256x32xf32>
    %100 = arith.addf %94, %99 : vector<256x32xf32>
    %c0_120 = arith.constant 0 : index
    %c0_121 = arith.constant 0 : index
    %c8_122 = arith.constant 8 : index
    %c0_123 = arith.constant 0 : index
    %101 = vector.load %arg16[%c0_120, %c0_121, %c8_122, %c0_123] : memref<1x18x32x32xf32, #tpu.memory_space<vmem>>, vector<1x16x16x32xf32>
    %102 = vector.shape_cast %101 : vector<1x16x16x32xf32> to vector<256x32xf32>
    %c1_124 = arith.constant 1 : index
    %c0_125 = arith.constant 0 : index
    %c0_126 = arith.constant 0 : index
    %103 = vector.load %arg12[%c1_124, %c0_125, %c0_126] : memref<9x32x32xf32, #tpu.memory_space<vmem>>, vector<1x32x32xf32>
    %104 = vector.shape_cast %103 : vector<1x32x32xf32> to vector<32x32xf32>
    %cst_127 = arith.constant dense<0.000000e+00> : vector<256x32xf32>
    %105 = tpu.matmul %102, %104, %cst_127 {dimension_numbers = #tpu.dot_dimension_numbers<[1], [0], [0], [1], [0, 0, 1, 1], [], []>} : vector<256x32xf32>, vector<32x32xf32>, vector<256x32xf32> -> vector<256x32xf32>
    %106 = arith.addf %100, %105 : vector<256x32xf32>
    %c0_128 = arith.constant 0 : index
    %c0_129 = arith.constant 0 : index
    %c9_130 = arith.constant 9 : index
    %c0_131 = arith.constant 0 : index
    %107 = vector.load %arg16[%c0_128, %c0_129, %c9_130, %c0_131] : memref<1x18x32x32xf32, #tpu.memory_space<vmem>>, vector<1x16x16x32xf32>
    %108 = vector.shape_cast %107 : vector<1x16x16x32xf32> to vector<256x32xf32>
    %c2_132 = arith.constant 2 : index
    %c0_133 = arith.constant 0 : index
    %c0_134 = arith.constant 0 : index
    %109 = vector.load %arg12[%c2_132, %c0_133, %c0_134] : memref<9x32x32xf32, #tpu.memory_space<vmem>>, vector<1x32x32xf32>
    %110 = vector.shape_cast %109 : vector<1x32x32xf32> to vector<32x32xf32>
    %cst_135 = arith.constant dense<0.000000e+00> : vector<256x32xf32>
    %111 = tpu.matmul %108, %110, %cst_135 {dimension_numbers = #tpu.dot_dimension_numbers<[1], [0], [0], [1], [0, 0, 1, 1], [], []>} : vector<256x32xf32>, vector<32x32xf32>, vector<256x32xf32> -> vector<256x32xf32>
    %112 = arith.addf %106, %111 : vector<256x32xf32>
    %c0_136 = arith.constant 0 : index
    %c1_137 = arith.constant 1 : index
    %c7_138 = arith.constant 7 : index
    %c0_139 = arith.constant 0 : index
    %113 = vector.load %arg16[%c0_136, %c1_137, %c7_138, %c0_139] : memref<1x18x32x32xf32, #tpu.memory_space<vmem>>, vector<1x16x16x32xf32>
    %114 = vector.shape_cast %113 : vector<1x16x16x32xf32> to vector<256x32xf32>
    %c3_140 = arith.constant 3 : index
    %c0_141 = arith.constant 0 : index
    %c0_142 = arith.constant 0 : index
    %115 = vector.load %arg12[%c3_140, %c0_141, %c0_142] : memref<9x32x32xf32, #tpu.memory_space<vmem>>, vector<1x32x32xf32>
    %116 = vector.shape_cast %115 : vector<1x32x32xf32> to vector<32x32xf32>
    %cst_143 = arith.constant dense<0.000000e+00> : vector<256x32xf32>
    %117 = tpu.matmul %114, %116, %cst_143 {dimension_numbers = #tpu.dot_dimension_numbers<[1], [0], [0], [1], [0, 0, 1, 1], [], []>} : vector<256x32xf32>, vector<32x32xf32>, vector<256x32xf32> -> vector<256x32xf32>
    %118 = arith.addf %112, %117 : vector<256x32xf32>
    %c0_144 = arith.constant 0 : index
    %c1_145 = arith.constant 1 : index
    %c8_146 = arith.constant 8 : index
    %c0_147 = arith.constant 0 : index
    %119 = vector.load %arg16[%c0_144, %c1_145, %c8_146, %c0_147] : memref<1x18x32x32xf32, #tpu.memory_space<vmem>>, vector<1x16x16x32xf32>
    %120 = vector.shape_cast %119 : vector<1x16x16x32xf32> to vector<256x32xf32>
    %c4_148 = arith.constant 4 : index
    %c0_149 = arith.constant 0 : index
    %c0_150 = arith.constant 0 : index
    %121 = vector.load %arg12[%c4_148, %c0_149, %c0_150] : memref<9x32x32xf32, #tpu.memory_space<vmem>>, vector<1x32x32xf32>
    %122 = vector.shape_cast %121 : vector<1x32x32xf32> to vector<32x32xf32>
    %cst_151 = arith.constant dense<0.000000e+00> : vector<256x32xf32>
    %123 = tpu.matmul %120, %122, %cst_151 {dimension_numbers = #tpu.dot_dimension_numbers<[1], [0], [0], [1], [0, 0, 1, 1], [], []>} : vector<256x32xf32>, vector<32x32xf32>, vector<256x32xf32> -> vector<256x32xf32>
    %124 = arith.addf %118, %123 : vector<256x32xf32>
    %c0_152 = arith.constant 0 : index
    %c1_153 = arith.constant 1 : index
    %c9_154 = arith.constant 9 : index
    %c0_155 = arith.constant 0 : index
    %125 = vector.load %arg16[%c0_152, %c1_153, %c9_154, %c0_155] : memref<1x18x32x32xf32, #tpu.memory_space<vmem>>, vector<1x16x16x32xf32>
    %126 = vector.shape_cast %125 : vector<1x16x16x32xf32> to vector<256x32xf32>
    %c5_156 = arith.constant 5 : index
    %c0_157 = arith.constant 0 : index
    %c0_158 = arith.constant 0 : index
    %127 = vector.load %arg12[%c5_156, %c0_157, %c0_158] : memref<9x32x32xf32, #tpu.memory_space<vmem>>, vector<1x32x32xf32>
    %128 = vector.shape_cast %127 : vector<1x32x32xf32> to vector<32x32xf32>
    %cst_159 = arith.constant dense<0.000000e+00> : vector<256x32xf32>
    %129 = tpu.matmul %126, %128, %cst_159 {dimension_numbers = #tpu.dot_dimension_numbers<[1], [0], [0], [1], [0, 0, 1, 1], [], []>} : vector<256x32xf32>, vector<32x32xf32>, vector<256x32xf32> -> vector<256x32xf32>
    %130 = arith.addf %124, %129 : vector<256x32xf32>
    %c0_160 = arith.constant 0 : index
    %c2_161 = arith.constant 2 : index
    %c7_162 = arith.constant 7 : index
    %c0_163 = arith.constant 0 : index
    %131 = vector.load %arg16[%c0_160, %c2_161, %c7_162, %c0_163] : memref<1x18x32x32xf32, #tpu.memory_space<vmem>>, vector<1x16x16x32xf32>
    %132 = vector.shape_cast %131 : vector<1x16x16x32xf32> to vector<256x32xf32>
    %c6_164 = arith.constant 6 : index
    %c0_165 = arith.constant 0 : index
    %c0_166 = arith.constant 0 : index
    %133 = vector.load %arg12[%c6_164, %c0_165, %c0_166] : memref<9x32x32xf32, #tpu.memory_space<vmem>>, vector<1x32x32xf32>
    %134 = vector.shape_cast %133 : vector<1x32x32xf32> to vector<32x32xf32>
    %cst_167 = arith.constant dense<0.000000e+00> : vector<256x32xf32>
    %135 = tpu.matmul %132, %134, %cst_167 {dimension_numbers = #tpu.dot_dimension_numbers<[1], [0], [0], [1], [0, 0, 1, 1], [], []>} : vector<256x32xf32>, vector<32x32xf32>, vector<256x32xf32> -> vector<256x32xf32>
    %136 = arith.addf %130, %135 : vector<256x32xf32>
    %c0_168 = arith.constant 0 : index
    %c2_169 = arith.constant 2 : index
    %c8_170 = arith.constant 8 : index
    %c0_171 = arith.constant 0 : index
    %137 = vector.load %arg16[%c0_168, %c2_169, %c8_170, %c0_171] : memref<1x18x32x32xf32, #tpu.memory_space<vmem>>, vector<1x16x16x32xf32>
    %138 = vector.shape_cast %137 : vector<1x16x16x32xf32> to vector<256x32xf32>
    %c7_172 = arith.constant 7 : index
    %c0_173 = arith.constant 0 : index
    %c0_174 = arith.constant 0 : index
    %139 = vector.load %arg12[%c7_172, %c0_173, %c0_174] : memref<9x32x32xf32, #tpu.memory_space<vmem>>, vector<1x32x32xf32>
    %140 = vector.shape_cast %139 : vector<1x32x32xf32> to vector<32x32xf32>
    %cst_175 = arith.constant dense<0.000000e+00> : vector<256x32xf32>
    %141 = tpu.matmul %138, %140, %cst_175 {dimension_numbers = #tpu.dot_dimension_numbers<[1], [0], [0], [1], [0, 0, 1, 1], [], []>} : vector<256x32xf32>, vector<32x32xf32>, vector<256x32xf32> -> vector<256x32xf32>
    %142 = arith.addf %136, %141 : vector<256x32xf32>
    %c0_176 = arith.constant 0 : index
    %c2_177 = arith.constant 2 : index
    %c9_178 = arith.constant 9 : index
    %c0_179 = arith.constant 0 : index
    %143 = vector.load %arg16[%c0_176, %c2_177, %c9_178, %c0_179] : memref<1x18x32x32xf32, #tpu.memory_space<vmem>>, vector<1x16x16x32xf32>
    %144 = vector.shape_cast %143 : vector<1x16x16x32xf32> to vector<256x32xf32>
    %c8_180 = arith.constant 8 : index
    %c0_181 = arith.constant 0 : index
    %c0_182 = arith.constant 0 : index
    %145 = vector.load %arg12[%c8_180, %c0_181, %c0_182] : memref<9x32x32xf32, #tpu.memory_space<vmem>>, vector<1x32x32xf32>
    %146 = vector.shape_cast %145 : vector<1x32x32xf32> to vector<32x32xf32>
    %cst_183 = arith.constant dense<0.000000e+00> : vector<256x32xf32>
    %147 = tpu.matmul %144, %146, %cst_183 {dimension_numbers = #tpu.dot_dimension_numbers<[1], [0], [0], [1], [0, 0, 1, 1], [], []>} : vector<256x32xf32>, vector<32x32xf32>, vector<256x32xf32> -> vector<256x32xf32>
    %148 = arith.addf %142, %147 : vector<256x32xf32>
    %c0_184 = arith.constant 0 : index
    %c0_185 = arith.constant 0 : index
    %149 = vector.load %arg13[%c0_184, %c0_185] : memref<1x32xf32, #tpu.memory_space<vmem>>, vector<1x32xf32>
    %150 = vector.broadcast %149 : vector<1x32xf32> to vector<256x32xf32>
    %151 = arith.addf %148, %150 : vector<256x32xf32>
    %cst_186 = arith.constant 0.000000e+00 : f32
    %152 = vector.broadcast %cst_186 : f32 to vector<256x32xf32>
    %153 = arith.cmpf oge, %151, %152 : vector<256x32xf32>
    %cst_187 = arith.constant 0.00999999977 : f32
    %154 = vector.broadcast %cst_187 : f32 to vector<256x32xf32>
    %155 = arith.mulf %154, %151 : vector<256x32xf32>
    %156 = arith.select %153, %151, %155 : vector<256x32xi1>, vector<256x32xf32>
    %157 = vector.shape_cast %156 : vector<256x32xf32> to vector<1x16x16x32xf32>
    %c0_188 = arith.constant 0 : index
    %c0_189 = arith.constant 0 : index
    %c0_190 = arith.constant 0 : index
    %c0_191 = arith.constant 0 : index
    %158 = vector.load %arg14[%c0_188, %c0_189, %c0_190, %c0_191] : memref<1x16x16x32xf32, #tpu.memory_space<vmem>>, vector<1x16x16x32xf32>
    tpu.vector_store %arg14[%c0_188, %c0_189, %c0_190, %c0_191], %157 {strides = array<i32>} : memref<1x16x16x32xf32, #tpu.memory_space<vmem>>, vector<1x16x16x32xf32>,
    return
  }
  func.func @transform_0(%arg0: i32) -> (i32, i32, i32, i32) {
    %c0_i32 = arith.constant 0 : i32
    %c0_i32_0 = arith.constant 0 : i32
    %c0_i32_1 = arith.constant 0 : i32
    %c0_i32_2 = arith.constant 0 : i32
    return %arg0, %c0_i32, %c0_i32_0, %c0_i32_1 : i32, i32, i32, i32
  }
  func.func @transform_1(%arg0: i32) -> (i32, i32, i32, i32) {
    %c0_i32 = arith.constant 0 : i32
    %c0_i32_0 = arith.constant 0 : i32
    %c0_i32_1 = arith.constant 0 : i32
    %c0_i32_2 = arith.constant 0 : i32
    return %arg0, %c0_i32, %c0_i32_0, %c0_i32_1 : i32, i32, i32, i32
  }
  func.func @transform_2(%arg0: i32) -> (i32, i32) {
    %c0_i32 = arith.constant 0 : i32
    %c0_i32_0 = arith.constant 0 : i32
    %c0_i32_1 = arith.constant 0 : i32
    return %c0_i32, %c0_i32_0 : i32, i32
  }
  func.func @transform_3(%arg0: i32) -> (i32, i32) {
    %c0_i32 = arith.constant 0 : i32
    %c0_i32_0 = arith.constant 0 : i32
    %c0_i32_1 = arith.constant 0 : i32
    return %c0_i32, %c0_i32_0 : i32, i32
  }
  func.func @transform_4(%arg0: i32) -> (i32, i32) {
    %c0_i32 = arith.constant 0 : i32
    %c0_i32_0 = arith.constant 0 : i32
    %c0_i32_1 = arith.constant 0 : i32
    return %c0_i32, %c0_i32_0 : i32, i32
  }
  func.func @transform_5(%arg0: i32) -> (i32, i32, i32) {
    %c0_i32 = arith.constant 0 : i32
    %c0_i32_0 = arith.constant 0 : i32
    %c0_i32_1 = arith.constant 0 : i32
    %c0_i32_2 = arith.constant 0 : i32
    return %c0_i32, %c0_i32_0, %c0_i32_1 : i32, i32, i32
  }
  func.func @transform_6(%arg0: i32) -> (i32, i32) {
    %c0_i32 = arith.constant 0 : i32
    %c0_i32_0 = arith.constant 0 : i32
    %c0_i32_1 = arith.constant 0 : i32
    return %c0_i32, %c0_i32_0 : i32, i32
  }
  func.func @transform_7(%arg0: i32) -> (i32, i32) {
    %c0_i32 = arith.constant 0 : i32
    %c0_i32_0 = arith.constant 0 : i32
    %c0_i32_1 = arith.constant 0 : i32
    return %c0_i32, %c0_i32_0 : i32, i32
  }
  func.func @transform_8(%arg0: i32) -> (i32, i32) {
    %c0_i32 = arith.constant 0 : i32
    %c0_i32_0 = arith.constant 0 : i32
    %c0_i32_1 = arith.constant 0 : i32
    return %c0_i32, %c0_i32_0 : i32, i32
  }
  func.func @transform_9(%arg0: i32) -> (i32, i32) {
    %c0_i32 = arith.constant 0 : i32
    %c0_i32_0 = arith.constant 0 : i32
    %c0_i32_1 = arith.constant 0 : i32
    return %c0_i32, %c0_i32_0 : i32, i32
  }
  func.func @transform_10(%arg0: i32) -> (i32, i32) {
    %c0_i32 = arith.constant 0 : i32
    %c0_i32_0 = arith.constant 0 : i32
    %c0_i32_1 = arith.constant 0 : i32
    return %c0_i32, %c0_i32_0 : i32, i32
  }
  func.func @transform_11(%arg0: i32) -> (i32, i32, i32) {
    %c0_i32 = arith.constant 0 : i32
    %c0_i32_0 = arith.constant 0 : i32
    %c0_i32_1 = arith.constant 0 : i32
    %c0_i32_2 = arith.constant 0 : i32
    return %c0_i32, %c0_i32_0, %c0_i32_1 : i32, i32, i32
  }
  func.func @transform_12(%arg0: i32) -> (i32, i32) {
    %c0_i32 = arith.constant 0 : i32
    %c0_i32_0 = arith.constant 0 : i32
    %c0_i32_1 = arith.constant 0 : i32
    return %c0_i32, %c0_i32_0 : i32, i32
  }
  func.func @transform_13(%arg0: i32) -> (i32, i32, i32, i32) {
    %c0_i32 = arith.constant 0 : i32
    %c0_i32_0 = arith.constant 0 : i32
    %c0_i32_1 = arith.constant 0 : i32
    %c0_i32_2 = arith.constant 0 : i32
    return %arg0, %c0_i32, %c0_i32_0, %c0_i32_1 : i32, i32, i32, i32
  }
}

</mosaic_0001>

<llo_original>
// kernel: up_block_concat.1
$region0: #{up_block_concat.1}
  #allocation0 [shape = 'u32[]', space=smem, size = 0x4, offset = 0x4, fixed_abs, tag = 'smem constant byte address 0x4 - core index']
  #allocation1 [shape = 'u32[144,128]{1,0:T(1,128)}', space=vmem, size = 0x12000, scoped, tag = 'internal scratch']
  #allocation2 [shape = 'f32[1,18,32,32]{3,2,1,0:T(8,128)}', space=vmem, size = 0x48000, scoped, tag = 'scratch operand']
  #allocation3 [shape = 'f32[1,18,32,32]{3,2,1,0:T(8,128)}', space=vmem, size = 0x48000, scoped, tag = 'scratch operand']
  %s0 = inlined_call_operand.vmem [shape: f32[2,16,16,32], index: 0, kind: input, shape index: {}]
  %s1 = inlined_call_operand.vmem [shape: f32[2,16,16,32], index: 1, kind: input, shape index: {}]
  %s2 = inlined_call_operand.vmem [shape: f32[32,32], index: 2, kind: input, shape index: {}]
  %s3 = inlined_call_operand.vmem [shape: f32[32,32], index: 3, kind: input, shape index: {}]
  %s4 = inlined_call_operand.vmem [shape: f32[1,32], index: 4, kind: input, shape index: {}]
  %s5 = inlined_call_operand.vmem [shape: f32[9,32,32], index: 5, kind: input, shape index: {}]
  %s6 = inlined_call_operand.vmem [shape: f32[1,32], index: 6, kind: input, shape index: {}]
  %s7 = inlined_call_operand.vmem [shape: f32[32,32], index: 7, kind: input, shape index: {}]
  %s8 = inlined_call_operand.vmem [shape: f32[32,32], index: 8, kind: input, shape index: {}]
  %s9 = inlined_call_operand.vmem [shape: f32[32,32], index: 9, kind: input, shape index: {}]
  %s10 = inlined_call_operand.vmem [shape: f32[1,32], index: 10, kind: input, shape index: {}]
  %s11 = inlined_call_operand.vmem [shape: f32[9,32,32], index: 11, kind: input, shape index: {}]
  %s12 = inlined_call_operand.vmem [shape: f32[1,32], index: 12, kind: input, shape index: {}]
  %s13 = inlined_call_operand.hbm [shape: f32[2,16,16,32], index: 13, kind: output, shape index: {}]
  %s14 = sld [smem:[#allocation0]]
  $region85: #{up_block_concat.1} parent=0
    _
  %s16 = ssub.s32 1, %s14
  %s17 = scalar_select 0, %s16, %s14
  $region1: #{up_block_concat.1} parent=0
    #allocation4 [shape = 'u8[262144]{0}', space=vmem, size = 0x40000, scoped, tag = 'output window, operand 0']
    #allocation5 [shape = 's32[2]{0}', space=sflag, size = 0x8, scoped, tag = 'scoped memory for up_block_concat.1']
    %18 = vsyncpa [#allocation5], 0
    %s19 = scalar_lea.sflag [#allocation5], 1
    %20 = vsyncpa %s19, 0
    loop: start=0, step=1, limit=4
    $region2: #{up_block_concat.1} parent=1 // loop_pre_header
      _
    $region3: #{up_block_concat.1} parent=1 // loop_header
      %s22 = sphi 0, %s26
      %p23 = scmp.ge.s32.totalorder %s22, 4
      %s32 = sphi 0, %s34
      %s35 = sphi 0, %s32
      %s36 = sphi 0, %s35
      %s52 = sphi 0, %s36
      %s58 = sphi 0, %s60
      %s61 = sphi 0, %s58
      %s62 = sphi 0, %s61
      %s78 = sphi 0, %s62
      %s82 = sphi 0, %s82
      %s84 = sphi 0, %s82
      %s85 = sphi 0, %s84
      %s99 = sphi 0, %s85
      %s103 = sphi 0, %s103
      %s105 = sphi 0, %s103
      %s106 = sphi 0, %s105
      %s120 = sphi 0, %s106
      %s124 = sphi 0, %s124
      %s126 = sphi 0, %s124
      %s127 = sphi 0, %s126
      %s141 = sphi 0, %s127
      %s145 = sphi 0, %s145
      %s147 = sphi 0, %s145
      %s148 = sphi 0, %s147
      %s162 = sphi 0, %s148
      %s166 = sphi 0, %s166
      %s168 = sphi 0, %s166
      %s169 = sphi 0, %s168
      %s183 = sphi 0, %s169
      %s187 = sphi 0, %s187
      %s189 = sphi 0, %s187
      %s190 = sphi 0, %s189
      %s204 = sphi 0, %s190
      %s208 = sphi 0, %s208
      %s210 = sphi 0, %s208
      %s211 = sphi 0, %s210
      %s225 = sphi 0, %s211
      %s229 = sphi 0, %s229
      %s231 = sphi 0, %s229
      %s232 = sphi 0, %s231
      %s246 = sphi 0, %s232
      %s250 = sphi 0, %s250
      %s252 = sphi 0, %s250
      %s253 = sphi 0, %s252
      %s267 = sphi 0, %s253
      %s271 = sphi 0, %s271
      %s273 = sphi 0, %s271
      %s274 = sphi 0, %s273
      %s288 = sphi 0, %s274
      %s292 = sphi 0, %s292
      %s294 = sphi 0, %s292
      %s295 = sphi 0, %s294
      %s309 = sphi 0, %s295
      %s315 = sphi 0, %s317
      %s318 = sphi 0, %s315
      %s319 = sphi 0, %s318
      %s335 = sphi 0, %s319
    $region4: #{up_block_concat.1} parent=1 // loop_header_branch
      %25 = sbr.rel (%p23) target = $region8
    $region5: #{up_block_concat.1} parent=1 // loop_body
      %s27 = ssub.s32 %s22, 1
      %s28 = ssub.s32 %s22, 2
      %s29 = sadd.s32 %s22, 1
      %s30 = ssub.s32 %s22, %s29
      %p31 = scmp.eq.s32.totalorder %s30, 0
      %s33 = sadd.s32 %s32, 1
      %s34 = scalar_select %p31, %s32, %s33
      %p37 = pneg %p31
      %p38 = scmp.eq.s32.totalorder %s22, 1
      %p39 = por %p37, %p38
      %p40 = scmp.ne.s32.totalorder %s32, %s35
      %p41 = scmp.eq.s32.totalorder %s22, 0
      %p42 = por %p40, %p41
      %p43 = scmp.ne.s32.totalorder %s32, %s35
      %p44 = scmp.eq.s32.totalorder %s27, 1
      %p45 = por %p43, %p44
      %p46 = scmp.ne.s32.totalorder %s35, %s36
      %p47 = scmp.eq.s32.totalorder %s27, 0
      %p48 = por %p46, %p47
      %p49 = scmp.ne.s32.totalorder %s35, %s36
      %p50 = scmp.eq.s32.totalorder %s28, 1
      %p51 = por %p49, %p50
      %p53 = scmp.ne.s32.totalorder %s36, %s52
      %p54 = scmp.eq.s32.totalorder %s28, 0
      %p55 = por %p53, %p54
      %s56 = ssub.s32 %s22, %s29
      %p57 = scmp.eq.s32.totalorder %s56, 0
      %s59 = sadd.s32 %s58, 1
      %s60 = scalar_select %p57, %s58, %s59
      %p63 = pneg %p57
      %p64 = scmp.eq.s32.totalorder %s22, 1
      %p65 = por %p63, %p64
      %p66 = scmp.ne.s32.totalorder %s58, %s61
      %p67 = scmp.eq.s32.totalorder %s22, 0
      %p68 = por %p66, %p67
      %p69 = scmp.ne.s32.totalorder %s58, %s61
      %p70 = scmp.eq.s32.totalorder %s27, 1
      %p71 = por %p69, %p70
      %p72 = scmp.ne.s32.totalorder %s61, %s62
      %p73 = scmp.eq.s32.totalorder %s27, 0
      %p74 = por %p72, %p73
      %p75 = scmp.ne.s32.totalorder %s61, %s62
      %p76 = scmp.eq.s32.totalorder %s28, 1
      %p77 = por %p75, %p76
      %p79 = scmp.ne.s32.totalorder %s62, %s78
      %p80 = scmp.eq.s32.totalorder %s28, 0
      %p81 = por %p79, %p80
      %s83 = sadd.s32 %s82, 1
      %p86 = scmp.eq.s32.totalorder %s22, 1
      %p87 = scmp.ne.s32.totalorder %s82, %s84
      %p88 = scmp.eq.s32.totalorder %s22, 0
      %p89 = por %p87, %p88
      %p90 = scmp.ne.s32.totalorder %s82, %s84
      %p91 = scmp.eq.s32.totalorder %s27, 1
      %p92 = por %p90, %p91
      %p93 = scmp.ne.s32.totalorder %s84, %s85
      %p94 = scmp.eq.s32.totalorder %s27, 0
      %p95 = por %p93, %p94
      %p96 = scmp.ne.s32.totalorder %s84, %s85
      %p97 = scmp.eq.s32.totalorder %s28, 1
      %p98 = por %p96, %p97
      %p100 = scmp.ne.s32.totalorder %s85, %s99
      %p101 = scmp.eq.s32.totalorder %s28, 0
      %p102 = por %p100, %p101
      %s104 = sadd.s32 %s103, 1
      %p107 = scmp.eq.s32.totalorder %s22, 1
      %p108 = scmp.ne.s32.totalorder %s103, %s105
      %p109 = scmp.eq.s32.totalorder %s22, 0
      %p110 = por %p108, %p109
      %p111 = scmp.ne.s32.totalorder %s103, %s105
      %p112 = scmp.eq.s32.totalorder %s27, 1
      %p113 = por %p111, %p112
      %p114 = scmp.ne.s32.totalorder %s105, %s106
      %p115 = scmp.eq.s32.totalorder %s27, 0
      %p116 = por %p114, %p115
      %p117 = scmp.ne.s32.totalorder %s105, %s106
      %p118 = scmp.eq.s32.totalorder %s28, 1
      %p119 = por %p117, %p118
      %p121 = scmp.ne.s32.totalorder %s106, %s120
      %p122 = scmp.eq.s32.totalorder %s28, 0
      %p123 = por %p121, %p122
      %s125 = sadd.s32 %s124, 1
      %p128 = scmp.eq.s32.totalorder %s22, 1
      %p129 = scmp.ne.s32.totalorder %s124, %s126
      %p130 = scmp.eq.s32.totalorder %s22, 0
      %p131 = por %p129, %p130
      %p132 = scmp.ne.s32.totalorder %s124, %s126
      %p133 = scmp.eq.s32.totalorder %s27, 1
      %p134 = por %p132, %p133
      %p135 = scmp.ne.s32.totalorder %s126, %s127
      %p136 = scmp.eq.s32.totalorder %s27, 0
      %p137 = por %p135, %p136
      %p138 = scmp.ne.s32.totalorder %s126, %s127
      %p139 = scmp.eq.s32.totalorder %s28, 1
      %p140 = por %p138, %p139
      %p142 = scmp.ne.s32.totalorder %s127, %s141
      %p143 = scmp.eq.s32.totalorder %s28, 0
      %p144 = por %p142, %p143
      %s146 = sadd.s32 %s145, 1
      %p149 = scmp.eq.s32.totalorder %s22, 1
      %p150 = scmp.ne.s32.totalorder %s145, %s147
      %p151 = scmp.eq.s32.totalorder %s22, 0
      %p152 = por %p150, %p151
      %p153 = scmp.ne.s32.totalorder %s145, %s147
      %p154 = scmp.eq.s32.totalorder %s27, 1
      %p155 = por %p153, %p154
      %p156 = scmp.ne.s32.totalorder %s147, %s148
      %p157 = scmp.eq.s32.totalorder %s27, 0
      %p158 = por %p156, %p157
      %p159 = scmp.ne.s32.totalorder %s147, %s148
      %p160 = scmp.eq.s32.totalorder %s28, 1
      %p161 = por %p159, %p160
      %p163 = scmp.ne.s32.totalorder %s148, %s162
      %p164 = scmp.eq.s32.totalorder %s28, 0
      %p165 = por %p163, %p164
      %s167 = sadd.s32 %s166, 1
      %p170 = scmp.eq.s32.totalorder %s22, 1
      %p171 = scmp.ne.s32.totalorder %s166, %s168
      %p172 = scmp.eq.s32.totalorder %s22, 0
      %p173 = por %p171, %p172
      %p174 = scmp.ne.s32.totalorder %s166, %s168
      %p175 = scmp.eq.s32.totalorder %s27, 1
      %p176 = por %p174, %p175
      %p177 = scmp.ne.s32.totalorder %s168, %s169
      %p178 = scmp.eq.s32.totalorder %s27, 0
      %p179 = por %p177, %p178
      %p180 = scmp.ne.s32.totalorder %s168, %s169
      %p181 = scmp.eq.s32.totalorder %s28, 1
      %p182 = por %p180, %p181
      %p184 = scmp.ne.s32.totalorder %s169, %s183
      %p185 = scmp.eq.s32.totalorder %s28, 0
      %p186 = por %p184, %p185
      %s188 = sadd.s32 %s187, 1
      %p191 = scmp.eq.s32.totalorder %s22, 1
      %p192 = scmp.ne.s32.totalorder %s187, %s189
      %p193 = scmp.eq.s32.totalorder %s22, 0
      %p194 = por %p192, %p193
      %p195 = scmp.ne.s32.totalorder %s187, %s189
      %p196 = scmp.eq.s32.totalorder %s27, 1
      %p197 = por %p195, %p196
      %p198 = scmp.ne.s32.totalorder %s189, %s190
      %p199 = scmp.eq.s32.totalorder %s27, 0
      %p200 = por %p198, %p199
      %p201 = scmp.ne.s32.totalorder %s189, %s190
      %p202 = scmp.eq.s32.totalorder %s28, 1
      %p203 = por %p201, %p202
      %p205 = scmp.ne.s32.totalorder %s190, %s204
      %p206 = scmp.eq.s32.totalorder %s28, 0
      %p207 = por %p205, %p206
      %s209 = sadd.s32 %s208, 1
      %p212 = scmp.eq.s32.totalorder %s22, 1
      %p213 = scmp.ne.s32.totalorder %s208, %s210
      %p214 = scmp.eq.s32.totalorder %s22, 0
      %p215 = por %p213, %p214
      %p216 = scmp.ne.s32.totalorder %s208, %s210
      %p217 = scmp.eq.s32.totalorder %s27, 1
      %p218 = por %p216, %p217
      %p219 = scmp.ne.s32.totalorder %s210, %s211
      %p220 = scmp.eq.s32.totalorder %s27, 0
      %p221 = por %p219, %p220
      %p222 = scmp.ne.s32.totalorder %s210, %s211
      %p223 = scmp.eq.s32.totalorder %s28, 1
      %p224 = por %p222, %p223
      %p226 = scmp.ne.s32.totalorder %s211, %s225
      %p227 = scmp.eq.s32.totalorder %s28, 0
      %p228 = por %p226, %p227
      %s230 = sadd.s32 %s229, 1
      %p233 = scmp.eq.s32.totalorder %s22, 1
      %p234 = scmp.ne.s32.totalorder %s229, %s231
      %p235 = scmp.eq.s32.totalorder %s22, 0
      %p236 = por %p234, %p235
      %p237 = scmp.ne.s32.totalorder %s229, %s231
      %p238 = scmp.eq.s32.totalorder %s27, 1
      %p239 = por %p237, %p238
      %p240 = scmp.ne.s32.totalorder %s231, %s232
      %p241 = scmp.eq.s32.totalorder %s27, 0
      %p242 = por %p240, %p241
      %p243 = scmp.ne.s32.totalorder %s231, %s232
      %p244 = scmp.eq.s32.totalorder %s28, 1
      %p245 = por %p243, %p244
      %p247 = scmp.ne.s32.totalorder %s232, %s246
      %p248 = scmp.eq.s32.totalorder %s28, 0
      %p249 = por %p247, %p248
      %s251 = sadd.s32 %s250, 1
      %p254 = scmp.eq.s32.totalorder %s22, 1
      %p255 = scmp.ne.s32.totalorder %s250, %s252
      %p256 = scmp.eq.s32.totalorder %s22, 0
      %p257 = por %p255, %p256
      %p258 = scmp.ne.s32.totalorder %s250, %s252
      %p259 = scmp.eq.s32.totalorder %s27, 1
      %p260 = por %p258, %p259
      %p261 = scmp.ne.s32.totalorder %s252, %s253
      %p262 = scmp.eq.s32.totalorder %s27, 0
      %p263 = por %p261, %p262
      %p264 = scmp.ne.s32.totalorder %s252, %s253
      %p265 = scmp.eq.s32.totalorder %s28, 1
      %p266 = por %p264, %p265
      %p268 = scmp.ne.s32.totalorder %s253, %s267
      %p269 = scmp.eq.s32.totalorder %s28, 0
      %p270 = por %p268, %p269
      %s272 = sadd.s32 %s271, 1
      %p275 = scmp.eq.s32.totalorder %s22, 1
      %p276 = scmp.ne.s32.totalorder %s271, %s273
      %p277 = scmp.eq.s32.totalorder %s22, 0
      %p278 = por %p276, %p277
      %p279 = scmp.ne.s32.totalorder %s271, %s273
      %p280 = scmp.eq.s32.totalorder %s27, 1
      %p281 = por %p279, %p280
      %p282 = scmp.ne.s32.totalorder %s273, %s274
      %p283 = scmp.eq.s32.totalorder %s27, 0
      %p284 = por %p282, %p283
      %p285 = scmp.ne.s32.totalorder %s273, %s274
      %p286 = scmp.eq.s32.totalorder %s28, 1
      %p287 = por %p285, %p286
      %p289 = scmp.ne.s32.totalorder %s274, %s288
      %p290 = scmp.eq.s32.totalorder %s28, 0
      %p291 = por %p289, %p290
      %s293 = sadd.s32 %s292, 1
      %p296 = scmp.eq.s32.totalorder %s22, 1
      %p297 = scmp.ne.s32.totalorder %s292, %s294
      %p298 = scmp.eq.s32.totalorder %s22, 0
      %p299 = por %p297, %p298
      %p300 = scmp.ne.s32.totalorder %s292, %s294
      %p301 = scmp.eq.s32.totalorder %s27, 1
      %p302 = por %p300, %p301
      %p303 = scmp.ne.s32.totalorder %s294, %s295
      %p304 = scmp.eq.s32.totalorder %s27, 0
      %p305 = por %p303, %p304
      %p306 = scmp.ne.s32.totalorder %s294, %s295
      %p307 = scmp.eq.s32.totalorder %s28, 1
      %p308 = por %p306, %p307
      %p310 = scmp.ne.s32.totalorder %s295, %s309
      %p311 = scmp.eq.s32.totalorder %s28, 0
      %p312 = por %p310, %p311
      %s313 = ssub.s32 %s22, %s29
      %p314 = scmp.eq.s32.totalorder %s313, 0
      %s316 = sadd.s32 %s315, 1
      %s317 = scalar_select %p314, %s315, %s316
      %p320 = pneg %p314
      %p321 = scmp.eq.s32.totalorder %s22, 1
      %p322 = por %p320, %p321
      %p323 = scmp.ne.s32.totalorder %s315, %s318
      %p324 = scmp.eq.s32.totalorder %s22, 0
      %p325 = por %p323, %p324
      %p326 = scmp.ne.s32.totalorder %s315, %s318
      %p327 = scmp.eq.s32.totalorder %s27, 1
      %p328 = por %p326, %p327
      %p329 = scmp.ne.s32.totalorder %s318, %s319
      %p330 = scmp.eq.s32.totalorder %s27, 0
      %p331 = por %p329, %p330
      %p332 = scmp.ne.s32.totalorder %s318, %s319
      %p333 = scmp.eq.s32.totalorder %s28, 1
      %p334 = por %p332, %p333
      %p336 = scmp.ne.s32.totalorder %s319, %s335
      %p337 = scmp.eq.s32.totalorder %s28, 0
      %p338 = por %p336, %p337
      %p339 = scmp.le.s32.totalorder 1, %s22
      %p340 = scmp.lt.s32.totalorder %s22, 3
      %p341 = pnand %p339, %p340
      %p342 = pneg %p341
      // Predicated region
      $region9: #{up_block_concat.1} parent=5 // pred_check
        _
      $region10: #{up_block_concat.1} parent=5 // pred_check_branch
        %344 = sbr.rel (%p341) target = $region12
      $region11: #{up_block_concat.1} parent=5 // pred_region
        %s345 = ssub.s32 %s22, 1
        // Predicated region
        $region13: #{up_block_concat.1} parent=11 // pred_check
          %p346 = pneg %p95
        $region14: #{up_block_concat.1} parent=11 // pred_check_branch
          %348 = sbr.rel (%p346) target = $region16
        $region15: #{up_block_concat.1} parent=11 // pred_region
          _
        $region16: #{up_block_concat.1} parent=11 // pred_fallthru
          _
        // Predicated region
        $region17: #{up_block_concat.1} parent=11 // pred_check
          %p349 = pneg %p116
        $region18: #{up_block_concat.1} parent=11 // pred_check_branch
          %351 = sbr.rel (%p349) target = $region20
        $region19: #{up_block_concat.1} parent=11 // pred_region
          _
        $region20: #{up_block_concat.1} parent=11 // pred_fallthru
          _
        // Predicated region
        $region21: #{up_block_concat.1} parent=11 // pred_check
          %p352 = pneg %p137
        $region22: #{up_block_concat.1} parent=11 // pred_check_branch
          %354 = sbr.rel (%p352) target = $region24
        $region23: #{up_block_concat.1} parent=11 // pred_region
          _
        $region24: #{up_block_concat.1} parent=11 // pred_fallthru
          _
        // Predicated region
        $region25: #{up_block_concat.1} parent=11 // pred_check
          %p355 = pneg %p158
        $region26: #{up_block_concat.1} parent=11 // pred_check_branch
          %357 = sbr.rel (%p355) target = $region28
        $region27: #{up_block_concat.1} parent=11 // pred_region
          _
        $region28: #{up_block_concat.1} parent=11 // pred_fallthru
          _
        // Predicated region
        $region29: #{up_block_concat.1} parent=11 // pred_check
          %p358 = pneg %p179
        $region30: #{up_block_concat.1} parent=11 // pred_check_branch
          %360 = sbr.rel (%p358) target = $region32
        $region31: #{up_block_concat.1} parent=11 // pred_region
          _
        $region32: #{up_block_concat.1} parent=11 // pred_fallthru
          _
        // Predicated region
        $region33: #{up_block_concat.1} parent=11 // pred_check
          %p361 = pneg %p200
        $region34: #{up_block_concat.1} parent=11 // pred_check_branch
          %363 = sbr.rel (%p361) target = $region36
        $region35: #{up_block_concat.1} parent=11 // pred_region
          _
        $region36: #{up_block_concat.1} parent=11 // pred_fallthru
          _
        // Predicated region
        $region37: #{up_block_concat.1} parent=11 // pred_check
          %p364 = pneg %p221
        $region38: #{up_block_concat.1} parent=11 // pred_check_branch
          %366 = sbr.rel (%p364) target = $region40
        $region39: #{up_block_concat.1} parent=11 // pred_region
          _
        $region40: #{up_block_concat.1} parent=11 // pred_fallthru
          _
        // Predicated region
        $region41: #{up_block_concat.1} parent=11 // pred_check
          %p367 = pneg %p242
        $region42: #{up_block_concat.1} parent=11 // pred_check_branch
          %369 = sbr.rel (%p367) target = $region44
        $region43: #{up_block_concat.1} parent=11 // pred_region
          _
        $region44: #{up_block_concat.1} parent=11 // pred_fallthru
          _
        // Predicated region
        $region45: #{up_block_concat.1} parent=11 // pred_check
          %p370 = pneg %p263
        $region46: #{up_block_concat.1} parent=11 // pred_check_branch
          %372 = sbr.rel (%p370) target = $region48
        $region47: #{up_block_concat.1} parent=11 // pred_region
          _
        $region48: #{up_block_concat.1} parent=11 // pred_fallthru
          _
        // Predicated region
        $region49: #{up_block_concat.1} parent=11 // pred_check
          %p373 = pneg %p284
        $region50: #{up_block_concat.1} parent=11 // pred_check_branch
          %375 = sbr.rel (%p373) target = $region52
        $region51: #{up_block_concat.1} parent=11 // pred_region
          _
        $region52: #{up_block_concat.1} parent=11 // pred_fallthru
          _
        // Predicated region
        $region53: #{up_block_concat.1} parent=11 // pred_check
          %p376 = pneg %p305
        $region54: #{up_block_concat.1} parent=11 // pred_check_branch
          %378 = sbr.rel (%p376) target = $region56
        $region55: #{up_block_concat.1} parent=11 // pred_region
          _
        $region56: #{up_block_concat.1} parent=11 // pred_fallthru
          _
      $region12: #{up_block_concat.1} parent=5 // pred_fallthru
        _
      %p379 = scmp.lt.s32.totalorder %s22, 2
      // Predicated region
      $region57: #{up_block_concat.1} parent=5 // pred_check
        %p380 = pneg %p379
      $region58: #{up_block_concat.1} parent=5 // pred_check_branch
        %382 = sbr.rel (%p380) target = $region60
      $region59: #{up_block_concat.1} parent=5 // pred_region
        // Predicated region
        $region61: #{up_block_concat.1} parent=59 // pred_check
          %p383 = pneg %p42
        $region62: #{up_block_concat.1} parent=59 // pred_check_branch
          %385 = sbr.rel (%p383) target = $region64
        $region63: #{up_block_concat.1} parent=59 // pred_region
          %p386 = scmp.lt.s32.totalorder %s22, 1
          %s387 = scalar_select %p386, %s22, 1
          %s388 = smul.addr %s387, 32
          %s389 = smul.addr %s388, 8
          %s390 = scalar_lea.vmem %s0, %s389
        $region64: #{up_block_concat.1} parent=59 // pred_fallthru
          _
        // Predicated region
        $region65: #{up_block_concat.1} parent=59 // pred_check
          %p391 = pneg %p68
        $region66: #{up_block_concat.1} parent=59 // pred_check_branch
          %393 = sbr.rel (%p391) target = $region68
        $region67: #{up_block_concat.1} parent=59 // pred_region
          %p394 = scmp.lt.s32.totalorder %s22, 1
          %s395 = scalar_select %p394, %s22, 1
          %s396 = smul.addr %s395, 32
          %s397 = smul.addr %s396, 8
          %s398 = scalar_lea.vmem %s1, %s397
        $region68: #{up_block_concat.1} parent=59 // pred_fallthru
          _
      $region60: #{up_block_concat.1} parent=5 // pred_fallthru
        _
      %p399 = scmp.le.s32.totalorder 1, %s22
      %p400 = scmp.lt.s32.totalorder %s22, 3
      %p401 = pnand %p399, %p400
      %p402 = pneg %p401
      // Predicated region
      $region69: #{up_block_concat.1} parent=5 // pred_check
        _
      $region70: #{up_block_concat.1} parent=5 // pred_check_branch
        %404 = sbr.rel (%p401) target = $region72
      $region71: #{up_block_concat.1} parent=5 // pred_region
        %s405 = ssub.s32 %s22, 1
        %p406 = scmp.lt.s32.totalorder %s27, 1
        %s407 = scalar_select %p406, %s27, 1
        %s408 = smul.addr %s407, 32
        %s409 = smul.addr %s408, 8
        %s410 = scalar_lea.vmem %s0, %s409
        %p411 = pneg %p48
        %p412 = pneg %p45
        %p413 = scmp.lt.s32.totalorder %s27, 1
        %s414 = scalar_select %p413, %s27, 1
        %s415 = smul.addr %s414, 32
        %s416 = smul.addr %s415, 8
        %s417 = scalar_lea.vmem %s1, %s416
        %p418 = pneg %p74
        %p419 = pneg %p71
        %p420 = pneg %p95
        %p421 = pneg %p92
        %p422 = pneg %p116
        %p423 = pneg %p113
        %p424 = pneg %p137
        %p425 = pneg %p134
        %p426 = pneg %p158
        %p427 = pneg %p155
        %p428 = pneg %p179
        %p429 = pneg %p176
        %p430 = pneg %p200
        %p431 = pneg %p197
        %p432 = pneg %p221
        %p433 = pneg %p218
        %p434 = pneg %p242
        %p435 = pneg %p239
        %p436 = pneg %p263
        %p437 = pneg %p260
        %p438 = pneg %p284
        %p439 = pneg %p281
        %p440 = pneg %p305
        %p441 = pneg %p302
        %p442 = pneg %p331
        %p443 = pneg %p328
        %s444 = sand.u32 %s318, 1
        %s445 = scalar_lea.sflag [#allocation5], %s444
        %s446 = sand.u32 %s318, 1
        %s447 = smul.addr %s446, 256
        %s448 = scalar_lea.vmem [#allocation4], %s447
        %p449 = scmp.lt.s32.totalorder %s27, 1
        %s450 = scalar_select %p449, %s27, 1
        %s451 = smul.addr %s450, 32
        %s452 = smul.addr %s451, 8
        %s453 = scalar_lea.vmem %s0, %s452
        %p454 = scmp.lt.s32.totalorder %s27, 1
        %s455 = scalar_select %p454, %s27, 1
        %s456 = smul.addr %s455, 32
        %s457 = smul.addr %s456, 8
        %s458 = scalar_lea.vmem %s1, %s457
        %v459 = vld [vmem:[%s453] sm:$0xff]
        %v460 = vld [vmem:[%s453 + $0x8] sm:$0xff]
        %v461 = vld [vmem:[%s453 + $0x10] sm:$0xff]
        %v462 = vld [vmem:[%s453 + $0x18] sm:$0xff]
        %v463 = vld [vmem:[%s453 + $0x20] sm:$0xff]
        %v464 = vld [vmem:[%s453 + $0x28] sm:$0xff]
        %v465 = vld [vmem:[%s453 + $0x30] sm:$0xff]
        %v466 = vld [vmem:[%s453 + $0x38] sm:$0xff]
        %v467 = vld [vmem:[%s453 + $0x40] sm:$0xff]
        %v468 = vld [vmem:[%s453 + $0x48] sm:$0xff]
        %v469 = vld [vmem:[%s453 + $0x50] sm:$0xff]
        %v470 = vld [vmem:[%s453 + $0x58] sm:$0xff]
        %v471 = vld [vmem:[%s453 + $0x60] sm:$0xff]
        %v472 = vld [vmem:[%s453 + $0x68] sm:$0xff]
        %v473 = vld [vmem:[%s453 + $0x70] sm:$0xff]
        %v474 = vld [vmem:[%s453 + $0x78] sm:$0xff]
        %v475 = vld [vmem:[%s453 + $0x80] sm:$0xff]
        %v476 = vld [vmem:[%s453 + $0x88] sm:$0xff]
        %v477 = vld [vmem:[%s453 + $0x90] sm:$0xff]
        %v478 = vld [vmem:[%s453 + $0x98] sm:$0xff]
        %v479 = vld [vmem:[%s453 + $0xa0] sm:$0xff]
        %v480 = vld [vmem:[%s453 + $0xa8] sm:$0xff]
        %v481 = vld [vmem:[%s453 + $0xb0] sm:$0xff]
        %v482 = vld [vmem:[%s453 + $0xb8] sm:$0xff]
        %v483 = vld [vmem:[%s453 + $0xc0] sm:$0xff]
        %v484 = vld [vmem:[%s453 + $0xc8] sm:$0xff]
        %v485 = vld [vmem:[%s453 + $0xd0] sm:$0xff]
        %v486 = vld [vmem:[%s453 + $0xd8] sm:$0xff]
        %v487 = vld [vmem:[%s453 + $0xe0] sm:$0xff]
        %v488 = vld [vmem:[%s453 + $0xe8] sm:$0xff]
        %v489 = vld [vmem:[%s453 + $0xf0] sm:$0xff]
        %v490 = vld [vmem:[%s453 + $0xf8] sm:$0xff]
        %v491 = vld [vmem:[%s458] sm:$0xff]
        %v492 = vld [vmem:[%s458 + $0x8] sm:$0xff]
        %v493 = vld [vmem:[%s458 + $0x10] sm:$0xff]
        %v494 = vld [vmem:[%s458 + $0x18] sm:$0xff]
        %v495 = vld [vmem:[%s458 + $0x20] sm:$0xff]
        %v496 = vld [vmem:[%s458 + $0x28] sm:$0xff]
        %v497 = vld [vmem:[%s458 + $0x30] sm:$0xff]
        %v498 = vld [vmem:[%s458 + $0x38] sm:$0xff]
        %v499 = vld [vmem:[%s458 + $0x40] sm:$0xff]
        %v500 = vld [vmem:[%s458 + $0x48] sm:$0xff]
        %v501 = vld [vmem:[%s458 + $0x50] sm:$0xff]
        %v502 = vld [vmem:[%s458 + $0x58] sm:$0xff]
        %v503 = vld [vmem:[%s458 + $0x60] sm:$0xff]
        %v504 = vld [vmem:[%s458 + $0x68] sm:$0xff]
        %v505 = vld [vmem:[%s458 + $0x70] sm:$0xff]
        %v506 = vld [vmem:[%s458 + $0x78] sm:$0xff]
        %v507 = vld [vmem:[%s458 + $0x80] sm:$0xff]
        %v508 = vld [vmem:[%s458 + $0x88] sm:$0xff]
        %v509 = vld [vmem:[%s458 + $0x90] sm:$0xff]
        %v510 = vld [vmem:[%s458 + $0x98] sm:$0xff]
        %v511 = vld [vmem:[%s458 + $0xa0] sm:$0xff]
        %v512 = vld [vmem:[%s458 + $0xa8] sm:$0xff]
        %v513 = vld [vmem:[%s458 + $0xb0] sm:$0xff]
        %v514 = vld [vmem:[%s458 + $0xb8] sm:$0xff]
        %v515 = vld [vmem:[%s458 + $0xc0] sm:$0xff]
        %v516 = vld [vmem:[%s458 + $0xc8] sm:$0xff]
        %v517 = vld [vmem:[%s458 + $0xd0] sm:$0xff]
        %v518 = vld [vmem:[%s458 + $0xd8] sm:$0xff]
        %v519 = vld [vmem:[%s458 + $0xe0] sm:$0xff]
        %v520 = vld [vmem:[%s458 + $0xe8] sm:$0xff]
        %v521 = vld [vmem:[%s458 + $0xf0] sm:$0xff]
        %v522 = vld [vmem:[%s458 + $0xf8] sm:$0xff]
        %v523 = vld [vmem:[%s2] sm:$0xff]
        %v524 = vld [vmem:[%s2 + $0x8] sm:$0xff]
        %v525 = vld [vmem:[%s2 + $0x10] sm:$0xff]
        %v526 = vld [vmem:[%s2 + $0x18] sm:$0xff]
        %v527 = vld [vmem:[%s3] sm:$0xff]
        %v528 = vld [vmem:[%s3 + $0x8] sm:$0xff]
        %v529 = vld [vmem:[%s3 + $0x10] sm:$0xff]
        %v530 = vld [vmem:[%s3 + $0x18] sm:$0xff]
        %vm531 = vcmask 261120
        %v533 = vsel %vm531, %v459, 0
        %v536 = vsel %vm531, %v460, 0
        %v539 = vsel %vm531, %v461, 0
        %v542 = vsel %vm531, %v462, 0
        %v545 = vsel %vm531, %v463, 0
        %v548 = vsel %vm531, %v464, 0
        %v551 = vsel %vm531, %v465, 0
        %v554 = vsel %vm531, %v466, 0
        %v557 = vsel %vm531, %v467, 0
        %v560 = vsel %vm531, %v468, 0
        %v563 = vsel %vm531, %v469, 0
        %v566 = vsel %vm531, %v470, 0
        %v569 = vsel %vm531, %v471, 0
        %v572 = vsel %vm531, %v472, 0
        %v575 = vsel %vm531, %v473, 0
        %v578 = vsel %vm531, %v474, 0
        %v581 = vsel %vm531, %v475, 0
        %v584 = vsel %vm531, %v476, 0
        %v587 = vsel %vm531, %v477, 0
        %v590 = vsel %vm531, %v478, 0
        %v593 = vsel %vm531, %v479, 0
        %v596 = vsel %vm531, %v480, 0
        %v599 = vsel %vm531, %v481, 0
        %v602 = vsel %vm531, %v482, 0
        %v605 = vsel %vm531, %v483, 0
        %v608 = vsel %vm531, %v484, 0
        %v611 = vsel %vm531, %v485, 0
        %v614 = vsel %vm531, %v486, 0
        %v617 = vsel %vm531, %v487, 0
        %v620 = vsel %vm531, %v488, 0
        %v623 = vsel %vm531, %v489, 0
        %v626 = vsel %vm531, %v490, 0
        %628 = vmatprep.subr.mxu0 0.0
        %629 = vmatpush1.msra.mxu0 %v527
        %630 = vmatprep.subr.mxu0 0.0
        %631 = vmatpush1.msra.mxu0 %v528
        %632 = vmatprep.subr.mxu0 0.0
        %633 = vmatpush1.msra.mxu0 %v529
        %634 = vmatprep.subr.mxu0 0.0
        %635 = vmatpush1.msra.mxu0 %v530
        %636 = vmatprep.subr.mxu0 0.0
        %637 = vmatpush1.msra.mxu0 0.0
        %638 = vmatprep.subr.mxu0 0.0
        %639 = vmatpush1.msra.mxu0 0.0
        %640 = vmatprep.subr.mxu0 0.0
        %641 = vmatpush1.msra.mxu0 0.0
        %642 = vmatprep.subr.mxu0 0.0
        %643 = vmatpush1.msra.mxu0 0.0
        %644 = vmatprep.subr.mxu0 0.0
        %645 = vmatpush1.msra.mxu0 0.0
        %646 = vmatprep.subr.mxu0 0.0
        %647 = vmatpush1.msra.mxu0 0.0
        %648 = vmatprep.subr.mxu0 0.0
        %649 = vmatpush1.msra.mxu0 0.0
        %650 = vmatprep.subr.mxu0 0.0
        %651 = vmatpush1.msra.mxu0 0.0
        %652 = vmatprep.subr.mxu0 0.0
        %653 = vmatpush1.msra.mxu0 0.0
        %654 = vmatprep.subr.mxu0 0.0
        %655 = vmatpush1.msra.mxu0 0.0
        %656 = vmatprep.subr.mxu0 0.0
        %657 = vmatpush1.msra.mxu0 0.0
        %658 = vmatprep.subr.mxu0 0.0
        %659 = vmatpush1.msra.mxu0 0.0
        %660 = vmatprep.subr.mxu0 0.0
        %661 = vmatpush1.msra.mxu0 0.0
        %662 = vmatprep.subr.mxu0 0.0
        %663 = vmatpush1.msra.mxu0 0.0
        %664 = vmatprep.subr.mxu0 0.0
        %665 = vmatpush1.msra.mxu0 0.0
        %666 = vmatprep.subr.mxu0 0.0
        %667 = vmatpush1.msra.mxu0 0.0
        %668 = vmatprep.subr.mxu0 0.0
        %669 = vmatpush1.msra.mxu0 0.0
        %670 = vmatprep.subr.mxu0 0.0
        %671 = vmatpush1.msra.mxu0 0.0
        %672 = vmatprep.subr.mxu0 0.0
        %673 = vmatpush1.msra.mxu0 0.0
        %674 = vmatprep.subr.mxu0 0.0
        %675 = vmatpush1.msra.mxu0 0.0
        %676 = vmatprep.subr.mxu0 0.0
        %677 = vmatpush1.msra.mxu0 0.0
        %678 = vmatprep.subr.mxu0 0.0
        %679 = vmatpush1.msra.mxu0 0.0
        %680 = vmatprep.subr.mxu0 0.0
        %681 = vmatpush1.msra.mxu0 0.0
        %682 = vmatprep.subr.mxu0 0.0
        %683 = vmatpush1.msra.mxu0 0.0
        %684 = vmatprep.subr.mxu0 0.0
        %685 = vmatpush1.msra.mxu0 0.0
        %686 = vmatprep.subr.mxu0 0.0
        %687 = vmatpush1.msra.mxu0 0.0
        %688 = vmatprep.subr.mxu0 0.0
        %689 = vmatpush1.msra.mxu0 0.0
        %690 = vmatprep.subr.mxu0 0.0
        %691 = vmatpush1.msra.mxu0 0.0
        %692 = vmatprep.mubr.f32.mxu0 0.0
        %693 = vmatmul.mubr.f32.gmra.mrb[0].mxu0 %v533
        %v694 = vpop.f32.mrb[0].mxu0
        %v695 = vadd.f32 0.0, %v694
        %v696 = vpop.f32.mrb[0].mxu0
        %697 = vmatprep.mubr.f32.mxu0 0.0
        %698 = vmatmul.mubr.f32.gmra.mrb[0].mxu0 %v536
        %v699 = vpop.f32.mrb[0].mxu0
        %v700 = vadd.f32 0.0, %v699
        %v701 = vpop.f32.mrb[0].mxu0
        %702 = vmatprep.mubr.f32.mxu0 0.0
        %703 = vmatmul.mubr.f32.gmra.mrb[0].mxu0 %v539
        %v704 = vpop.f32.mrb[0].mxu0
        %v705 = vadd.f32 0.0, %v704
        %v706 = vpop.f32.mrb[0].mxu0
        %707 = vmatprep.mubr.f32.mxu0 0.0
        %708 = vmatmul.mubr.f32.gmra.mrb[0].mxu0 %v542
        %v709 = vpop.f32.mrb[0].mxu0
        %v710 = vadd.f32 0.0, %v709
        %v711 = vpop.f32.mrb[0].mxu0
        %712 = vmatprep.mubr.f32.mxu0 0.0
        %713 = vmatmul.mubr.f32.gmra.mrb[0].mxu0 %v545
        %v714 = vpop.f32.mrb[0].mxu0
        %v715 = vadd.f32 0.0, %v714
        %v716 = vpop.f32.mrb[0].mxu0
        %717 = vmatprep.mubr.f32.mxu0 0.0
        %718 = vmatmul.mubr.f32.gmra.mrb[0].mxu0 %v548
        %v719 = vpop.f32.mrb[0].mxu0
        %v720 = vadd.f32 0.0, %v719
        %v721 = vpop.f32.mrb[0].mxu0
        %722 = vmatprep.mubr.f32.mxu0 0.0
        %723 = vmatmul.mubr.f32.gmra.mrb[0].mxu0 %v551
        %v724 = vpop.f32.mrb[0].mxu0
        %v725 = vadd.f32 0.0, %v724
        %v726 = vpop.f32.mrb[0].mxu0
        %727 = vmatprep.mubr.f32.mxu0 0.0
        %728 = vmatmul.mubr.f32.gmra.mrb[0].mxu0 %v554
        %v729 = vpop.f32.mrb[0].mxu0
        %v730 = vadd.f32 0.0, %v729
        %v731 = vpop.f32.mrb[0].mxu0
        %732 = vmatprep.mubr.f32.mxu0 0.0
        %733 = vmatmul.mubr.f32.gmra.mrb[0].mxu0 %v557
        %v734 = vpop.f32.mrb[0].mxu0
        %v735 = vadd.f32 0.0, %v734
        %v736 = vpop.f32.mrb[0].mxu0
        %737 = vmatprep.mubr.f32.mxu0 0.0
        %738 = vmatmul.mubr.f32.gmra.mrb[0].mxu0 %v560
        %v739 = vpop.f32.mrb[0].mxu0
        %v740 = vadd.f32 0.0, %v739
        %v741 = vpop.f32.mrb[0].mxu0
        %742 = vmatprep.mubr.f32.mxu0 0.0
        %743 = vmatmul.mubr.f32.gmra.mrb[0].mxu0 %v563
        %v744 = vpop.f32.mrb[0].mxu0
        %v745 = vadd.f32 0.0, %v744
        %v746 = vpop.f32.mrb[0].mxu0
        %747 = vmatprep.mubr.f32.mxu0 0.0
        %748 = vmatmul.mubr.f32.gmra.mrb[0].mxu0 %v566
        %v749 = vpop.f32.mrb[0].mxu0
        %v750 = vadd.f32 0.0, %v749
        %v751 = vpop.f32.mrb[0].mxu0
        %752 = vmatprep.mubr.f32.mxu0 0.0
        %753 = vmatmul.mubr.f32.gmra.mrb[0].mxu0 %v569
        %v754 = vpop.f32.mrb[0].mxu0
        %v755 = vadd.f32 0.0, %v754
        %v756 = vpop.f32.mrb[0].mxu0
        %757 = vmatprep.mubr.f32.mxu0 0.0
        %758 = vmatmul.mubr.f32.gmra.mrb[0].mxu0 %v572
        %v759 = vpop.f32.mrb[0].mxu0
        %v760 = vadd.f32 0.0, %v759
        %v761 = vpop.f32.mrb[0].mxu0
        %762 = vmatprep.mubr.f32.mxu0 0.0
        %763 = vmatmul.mubr.f32.gmra.mrb[0].mxu0 %v575
        %v764 = vpop.f32.mrb[0].mxu0
        %v765 = vadd.f32 0.0, %v764
        %v766 = vpop.f32.mrb[0].mxu0
        %767 = vmatprep.mubr.f32.mxu0 0.0
        %768 = vmatmul.mubr.f32.gmra.mrb[0].mxu0 %v578
        %v769 = vpop.f32.mrb[0].mxu0
        %v770 = vadd.f32 0.0, %v769
        %v771 = vpop.f32.mrb[0].mxu0
        %772 = vmatprep.mubr.f32.mxu0 0.0
        %773 = vmatmul.mubr.f32.gmra.mrb[0].mxu0 %v581
        %v774 = vpop.f32.mrb[0].mxu0
        %v775 = vadd.f32 0.0, %v774
        %v776 = vpop.f32.mrb[0].mxu0
        %777 = vmatprep.mubr.f32.mxu0 0.0
        %778 = vmatmul.mubr.f32.gmra.mrb[0].mxu0 %v584
        %v779 = vpop.f32.mrb[0].mxu0
        %v780 = vadd.f32 0.0, %v779
        %v781 = vpop.f32.mrb[0].mxu0
        %782 = vmatprep.mubr.f32.mxu0 0.0
        %783 = vmatmul.mubr.f32.gmra.mrb[0].mxu0 %v587
        %v784 = vpop.f32.mrb[0].mxu0
        %v785 = vadd.f32 0.0, %v784
        %v786 = vpop.f32.mrb[0].mxu0
        %787 = vmatprep.mubr.f32.mxu0 0.0
        %788 = vmatmul.mubr.f32.gmra.mrb[0].mxu0 %v590
        %v789 = vpop.f32.mrb[0].mxu0
        %v790 = vadd.f32 0.0, %v789
        %v791 = vpop.f32.mrb[0].mxu0
        %792 = vmatprep.mubr.f32.mxu0 0.0
        %793 = vmatmul.mubr.f32.gmra.mrb[0].mxu0 %v593
        %v794 = vpop.f32.mrb[0].mxu0
        %v795 = vadd.f32 0.0, %v794
        %v796 = vpop.f32.mrb[0].mxu0
        %797 = vmatprep.mubr.f32.mxu0 0.0
        %798 = vmatmul.mubr.f32.gmra.mrb[0].mxu0 %v596
        %v799 = vpop.f32.mrb[0].mxu0
        %v800 = vadd.f32 0.0, %v799
        %v801 = vpop.f32.mrb[0].mxu0
        %802 = vmatprep.mubr.f32.mxu0 0.0
        %803 = vmatmul.mubr.f32.gmra.mrb[0].mxu0 %v599
        %v804 = vpop.f32.mrb[0].mxu0
        %v805 = vadd.f32 0.0, %v804
        %v806 = vpop.f32.mrb[0].mxu0
        %807 = vmatprep.mubr.f32.mxu0 0.0
        %808 = vmatmul.mubr.f32.gmra.mrb[0].mxu0 %v602
        %v809 = vpop.f32.mrb[0].mxu0
        %v810 = vadd.f32 0.0, %v809
        %v811 = vpop.f32.mrb[0].mxu0
        %812 = vmatprep.mubr.f32.mxu0 0.0
        %813 = vmatmul.mubr.f32.gmra.mrb[0].mxu0 %v605
        %v814 = vpop.f32.mrb[0].mxu0
        %v815 = vadd.f32 0.0, %v814
        %v816 = vpop.f32.mrb[0].mxu0
        %817 = vmatprep.mubr.f32.mxu0 0.0
        %818 = vmatmul.mubr.f32.gmra.mrb[0].mxu0 %v608
        %v819 = vpop.f32.mrb[0].mxu0
        %v820 = vadd.f32 0.0, %v819
        %v821 = vpop.f32.mrb[0].mxu0
        %822 = vmatprep.mubr.f32.mxu0 0.0
        %823 = vmatmul.mubr.f32.gmra.mrb[0].mxu0 %v611
        %v824 = vpop.f32.mrb[0].mxu0
        %v825 = vadd.f32 0.0, %v824
        %v826 = vpop.f32.mrb[0].mxu0
        %827 = vmatprep.mubr.f32.mxu0 0.0
        %828 = vmatmul.mubr.f32.gmra.mrb[0].mxu0 %v614
        %v829 = vpop.f32.mrb[0].mxu0
        %v830 = vadd.f32 0.0, %v829
        %v831 = vpop.f32.mrb[0].mxu0
        %832 = vmatprep.mubr.f32.mxu0 0.0
        %833 = vmatmul.mubr.f32.gmra.mrb[0].mxu0 %v617
        %v834 = vpop.f32.mrb[0].mxu0
        %v835 = vadd.f32 0.0, %v834
        %v836 = vpop.f32.mrb[0].mxu0
        %837 = vmatprep.mubr.f32.mxu0 0.0
        %838 = vmatmul.mubr.f32.gmra.mrb[0].mxu0 %v620
        %v839 = vpop.f32.mrb[0].mxu0
        %v840 = vadd.f32 0.0, %v839
        %v841 = vpop.f32.mrb[0].mxu0
        %842 = vmatprep.mubr.f32.mxu0 0.0
        %843 = vmatmul.mubr.f32.gmra.mrb[0].mxu0 %v623
        %v844 = vpop.f32.mrb[0].mxu0
        %v845 = vadd.f32 0.0, %v844
        %v846 = vpop.f32.mrb[0].mxu0
        %847 = vmatprep.mubr.f32.mxu0 0.0
        %848 = vmatmul.mubr.f32.gmra.mrb[0].mxu0 %v626
        %v849 = vpop.f32.mrb[0].mxu0
        %v850 = vadd.f32 0.0, %v849
        %v851 = vpop.f32.mrb[0].mxu0
        %852 = vdwg.mxu0
        %v854 = vsel %vm531, %v491, 0
        %v857 = vsel %vm531, %v492, 0
        %v860 = vsel %vm531, %v493, 0
        %v863 = vsel %vm531, %v494, 0
        %v866 = vsel %vm531, %v495, 0
        %v869 = vsel %vm531, %v496, 0
        %v872 = vsel %vm531, %v497, 0
        %v875 = vsel %vm531, %v498, 0
        %v878 = vsel %vm531, %v499, 0
        %v881 = vsel %vm531, %v500, 0
        %v884 = vsel %vm531, %v501, 0
        %v887 = vsel %vm531, %v502, 0
        %v890 = vsel %vm531, %v503, 0
        %v893 = vsel %vm531, %v504, 0
        %v896 = vsel %vm531, %v505, 0
        %v899 = vsel %vm531, %v506, 0
        %v902 = vsel %vm531, %v507, 0
        %v905 = vsel %vm531, %v508, 0
        %v908 = vsel %vm531, %v509, 0
        %v911 = vsel %vm531, %v510, 0
        %v914 = vsel %vm531, %v511, 0
        %v917 = vsel %vm531, %v512, 0
        %v920 = vsel %vm531, %v513, 0
        %v923 = vsel %vm531, %v514, 0
        %v926 = vsel %vm531, %v515, 0
        %v929 = vsel %vm531, %v516, 0
        %v932 = vsel %vm531, %v517, 0
        %v935 = vsel %vm531, %v518, 0
        %v938 = vsel %vm531, %v519, 0
        %v941 = vsel %vm531, %v520, 0
        %v944 = vsel %vm531, %v521, 0
        %v947 = vsel %vm531, %v522, 0
        %949 = vmatprep.subr.mxu0 0.0
        %950 = vmatpush1.msra.mxu0 %v523
        %951 = vmatprep.subr.mxu0 0.0
        %952 = vmatpush1.msra.mxu0 %v524
        %953 = vmatprep.subr.mxu0 0.0
        %954 = vmatpush1.msra.mxu0 %v525
        %955 = vmatprep.subr.mxu0 0.0
        %956 = vmatpush1.msra.mxu0 %v526
        %957 = vmatprep.subr.mxu0 0.0
        %958 = vmatpush1.msra.mxu0 0.0
        %959 = vmatprep.subr.mxu0 0.0
        %960 = vmatpush1.msra.mxu0 0.0
        %961 = vmatprep.subr.mxu0 0.0
        %962 = vmatpush1.msra.mxu0 0.0
        %963 = vmatprep.subr.mxu0 0.0
        %964 = vmatpush1.msra.mxu0 0.0
        %965 = vmatprep.subr.mxu0 0.0
        %966 = vmatpush1.msra.mxu0 0.0
        %967 = vmatprep.subr.mxu0 0.0
        %968 = vmatpush1.msra.mxu0 0.0
        %969 = vmatprep.subr.mxu0 0.0
        %970 = vmatpush1.msra.mxu0 0.0
        %971 = vmatprep.subr.mxu0 0.0
        %972 = vmatpush1.msra.mxu0 0.0
        %973 = vmatprep.subr.mxu0 0.0
        %974 = vmatpush1.msra.mxu0 0.0
        %975 = vmatprep.subr.mxu0 0.0
        %976 = vmatpush1.msra.mxu0 0.0
        %977 = vmatprep.subr.mxu0 0.0
        %978 = vmatpush1.msra.mxu0 0.0
        %979 = vmatprep.subr.mxu0 0.0
        %980 = vmatpush1.msra.mxu0 0.0
        %981 = vmatprep.subr.mxu0 0.0
        %982 = vmatpush1.msra.mxu0 0.0
        %983 = vmatprep.subr.mxu0 0.0
        %984 = vmatpush1.msra.mxu0 0.0
        %985 = vmatprep.subr.mxu0 0.0
        %986 = vmatpush1.msra.mxu0 0.0
        %987 = vmatprep.subr.mxu0 0.0
        %988 = vmatpush1.msra.mxu0 0.0
        %989 = vmatprep.subr.mxu0 0.0
        %990 = vmatpush1.msra.mxu0 0.0
        %991 = vmatprep.subr.mxu0 0.0
        %992 = vmatpush1.msra.mxu0 0.0
        %993 = vmatprep.subr.mxu0 0.0
        %994 = vmatpush1.msra.mxu0 0.0
        %995 = vmatprep.subr.mxu0 0.0
        %996 = vmatpush1.msra.mxu0 0.0
        %997 = vmatprep.subr.mxu0 0.0
        %998 = vmatpush1.msra.mxu0 0.0
        %999 = vmatprep.subr.mxu0 0.0
        %1000 = vmatpush1.msra.mxu0 0.0
        %1001 = vmatprep.subr.mxu0 0.0
        %1002 = vmatpush1.msra.mxu0 0.0
        %1003 = vmatprep.subr.mxu0 0.0
        %1004 = vmatpush1.msra.mxu0 0.0
        %1005 = vmatprep.subr.mxu0 0.0
        %1006 = vmatpush1.msra.mxu0 0.0
        %1007 = vmatprep.subr.mxu0 0.0
        %1008 = vmatpush1.msra.mxu0 0.0
        %1009 = vmatprep.subr.mxu0 0.0
        %1010 = vmatpush1.msra.mxu0 0.0
        %1011 = vmatprep.subr.mxu0 0.0
        %1012 = vmatpush1.msra.mxu0 0.0
        %1013 = vmatprep.mubr.f32.mxu0 0.0
        %1014 = vmatmul.mubr.f32.gmra.mrb[0].mxu0 %v854
        %v1015 = vpop.f32.mrb[0].mxu0
        %v1016 = vadd.f32 %v695, %v1015
        %v1017 = vpop.f32.mrb[0].mxu0
        %1018 = vmatprep.mubr.f32.mxu0 0.0
        %1019 = vmatmul.mubr.f32.gmra.mrb[0].mxu0 %v857
        %v1020 = vpop.f32.mrb[0].mxu0
        %v1021 = vadd.f32 %v700, %v1020
        %v1022 = vpop.f32.mrb[0].mxu0
        %1023 = vmatprep.mubr.f32.mxu0 0.0
        %1024 = vmatmul.mubr.f32.gmra.mrb[0].mxu0 %v860
        %v1025 = vpop.f32.mrb[0].mxu0
        %v1026 = vadd.f32 %v705, %v1025
        %v1027 = vpop.f32.mrb[0].mxu0
        %1028 = vmatprep.mubr.f32.mxu0 0.0
        %1029 = vmatmul.mubr.f32.gmra.mrb[0].mxu0 %v863
        %v1030 = vpop.f32.mrb[0].mxu0
        %v1031 = vadd.f32 %v710, %v1030
        %v1032 = vpop.f32.mrb[0].mxu0
        %1033 = vmatprep.mubr.f32.mxu0 0.0
        %1034 = vmatmul.mubr.f32.gmra.mrb[0].mxu0 %v866
        %v1035 = vpop.f32.mrb[0].mxu0
        %v1036 = vadd.f32 %v715, %v1035
        %v1037 = vpop.f32.mrb[0].mxu0
        %1038 = vmatprep.mubr.f32.mxu0 0.0
        %1039 = vmatmul.mubr.f32.gmra.mrb[0].mxu0 %v869
        %v1040 = vpop.f32.mrb[0].mxu0
        %v1041 = vadd.f32 %v720, %v1040
        %v1042 = vpop.f32.mrb[0].mxu0
        %1043 = vmatprep.mubr.f32.mxu0 0.0
        %1044 = vmatmul.mubr.f32.gmra.mrb[0].mxu0 %v872
        %v1045 = vpop.f32.mrb[0].mxu0
        %v1046 = vadd.f32 %v725, %v1045
        %v1047 = vpop.f32.mrb[0].mxu0
        %1048 = vmatprep.mubr.f32.mxu0 0.0
        %1049 = vmatmul.mubr.f32.gmra.mrb[0].mxu0 %v875
        %v1050 = vpop.f32.mrb[0].mxu0
        %v1051 = vadd.f32 %v730, %v1050
        %v1052 = vpop.f32.mrb[0].mxu0
        %1053 = vmatprep.mubr.f32.mxu0 0.0
        %1054 = vmatmul.mubr.f32.gmra.mrb[0].mxu0 %v878
        %v1055 = vpop.f32.mrb[0].mxu0
        %v1056 = vadd.f32 %v735, %v1055
        %v1057 = vpop.f32.mrb[0].mxu0
        %1058 = vmatprep.mubr.f32.mxu0 0.0
        %1059 = vmatmul.mubr.f32.gmra.mrb[0].mxu0 %v881
        %v1060 = vpop.f32.mrb[0].mxu0
        %v1061 = vadd.f32 %v740, %v1060
        %v1062 = vpop.f32.mrb[0].mxu0
        %1063 = vmatprep.mubr.f32.mxu0 0.0
        %1064 = vmatmul.mubr.f32.gmra.mrb[0].mxu0 %v884
        %v1065 = vpop.f32.mrb[0].mxu0
        %v1066 = vadd.f32 %v745, %v1065
        %v1067 = vpop.f32.mrb[0].mxu0
        %1068 = vmatprep.mubr.f32.mxu0 0.0
        %1069 = vmatmul.mubr.f32.gmra.mrb[0].mxu0 %v887
        %v1070 = vpop.f32.mrb[0].mxu0
        %v1071 = vadd.f32 %v750, %v1070
        %v1072 = vpop.f32.mrb[0].mxu0
        %1073 = vmatprep.mubr.f32.mxu0 0.0
        %1074 = vmatmul.mubr.f32.gmra.mrb[0].mxu0 %v890
        %v1075 = vpop.f32.mrb[0].mxu0
        %v1076 = vadd.f32 %v755, %v1075
        %v1077 = vpop.f32.mrb[0].mxu0
        %1078 = vmatprep.mubr.f32.mxu0 0.0
        %1079 = vmatmul.mubr.f32.gmra.mrb[0].mxu0 %v893
        %v1080 = vpop.f32.mrb[0].mxu0
        %v1081 = vadd.f32 %v760, %v1080
        %v1082 = vpop.f32.mrb[0].mxu0
        %1083 = vmatprep.mubr.f32.mxu0 0.0
        %1084 = vmatmul.mubr.f32.gmra.mrb[0].mxu0 %v896
        %v1085 = vpop.f32.mrb[0].mxu0
        %v1086 = vadd.f32 %v765, %v1085
        %v1087 = vpop.f32.mrb[0].mxu0
        %1088 = vmatprep.mubr.f32.mxu0 0.0
        %1089 = vmatmul.mubr.f32.gmra.mrb[0].mxu0 %v899
        %v1090 = vpop.f32.mrb[0].mxu0
        %v1091 = vadd.f32 %v770, %v1090
        %v1092 = vpop.f32.mrb[0].mxu0
        %1093 = vmatprep.mubr.f32.mxu0 0.0
        %1094 = vmatmul.mubr.f32.gmra.mrb[0].mxu0 %v902
        %v1095 = vpop.f32.mrb[0].mxu0
        %v1096 = vadd.f32 %v775, %v1095
        %v1097 = vpop.f32.mrb[0].mxu0
        %1098 = vmatprep.mubr.f32.mxu0 0.0
        %1099 = vmatmul.mubr.f32.gmra.mrb[0].mxu0 %v905
        %v1100 = vpop.f32.mrb[0].mxu0
        %v1101 = vadd.f32 %v780, %v1100
        %v1102 = vpop.f32.mrb[0].mxu0
        %1103 = vmatprep.mubr.f32.mxu0 0.0
        %1104 = vmatmul.mubr.f32.gmra.mrb[0].mxu0 %v908
        %v1105 = vpop.f32.mrb[0].mxu0
        %v1106 = vadd.f32 %v785, %v1105
        %v1107 = vpop.f32.mrb[0].mxu0
        %1108 = vmatprep.mubr.f32.mxu0 0.0
        %1109 = vmatmul.mubr.f32.gmra.mrb[0].mxu0 %v911
        %v1110 = vpop.f32.mrb[0].mxu0
        %v1111 = vadd.f32 %v790, %v1110
        %v1112 = vpop.f32.mrb[0].mxu0
        %1113 = vmatprep.mubr.f32.mxu0 0.0
        %1114 = vmatmul.mubr.f32.gmra.mrb[0].mxu0 %v914
        %v1115 = vpop.f32.mrb[0].mxu0
        %v1116 = vadd.f32 %v795, %v1115
        %v1117 = vpop.f32.mrb[0].mxu0
        %1118 = vmatprep.mubr.f32.mxu0 0.0
        %1119 = vmatmul.mubr.f32.gmra.mrb[0].mxu0 %v917
        %v1120 = vpop.f32.mrb[0].mxu0
        %v1121 = vadd.f32 %v800, %v1120
        %v1122 = vpop.f32.mrb[0].mxu0
        %1123 = vmatprep.mubr.f32.mxu0 0.0
        %1124 = vmatmul.mubr.f32.gmra.mrb[0].mxu0 %v920
        %v1125 = vpop.f32.mrb[0].mxu0
        %v1126 = vadd.f32 %v805, %v1125
        %v1127 = vpop.f32.mrb[0].mxu0
        %1128 = vmatprep.mubr.f32.mxu0 0.0
        %1129 = vmatmul.mubr.f32.gmra.mrb[0].mxu0 %v923
        %v1130 = vpop.f32.mrb[0].mxu0
        %v1131 = vadd.f32 %v810, %v1130
        %v1132 = vpop.f32.mrb[0].mxu0
        %1133 = vmatprep.mubr.f32.mxu0 0.0
        %1134 = vmatmul.mubr.f32.gmra.mrb[0].mxu0 %v926
        %v1135 = vpop.f32.mrb[0].mxu0
        %v1136 = vadd.f32 %v815, %v1135
        %v1137 = vpop.f32.mrb[0].mxu0
        %1138 = vmatprep.mubr.f32.mxu0 0.0
        %1139 = vmatmul.mubr.f32.gmra.mrb[0].mxu0 %v929
        %v1140 = vpop.f32.mrb[0].mxu0
        %v1141 = vadd.f32 %v820, %v1140
        %v1142 = vpop.f32.mrb[0].mxu0
        %1143 = vmatprep.mubr.f32.mxu0 0.0
        %1144 = vmatmul.mubr.f32.gmra.mrb[0].mxu0 %v932
        %v1145 = vpop.f32.mrb[0].mxu0
        %v1146 = vadd.f32 %v825, %v1145
        %v1147 = vpop.f32.mrb[0].mxu0
        %1148 = vmatprep.mubr.f32.mxu0 0.0
        %1149 = vmatmul.mubr.f32.gmra.mrb[0].mxu0 %v935
        %v1150 = vpop.f32.mrb[0].mxu0
        %v1151 = vadd.f32 %v830, %v1150
        %v1152 = vpop.f32.mrb[0].mxu0
        %1153 = vmatprep.mubr.f32.mxu0 0.0
        %1154 = vmatmul.mubr.f32.gmra.mrb[0].mxu0 %v938
        %v1155 = vpop.f32.mrb[0].mxu0
        %v1156 = vadd.f32 %v835, %v1155
        %v1157 = vpop.f32.mrb[0].mxu0
        %1158 = vmatprep.mubr.f32.mxu0 0.0
        %1159 = vmatmul.mubr.f32.gmra.mrb[0].mxu0 %v941
        %v1160 = vpop.f32.mrb[0].mxu0
        %v1161 = vadd.f32 %v840, %v1160
        %v1162 = vpop.f32.mrb[0].mxu0
        %1163 = vmatprep.mubr.f32.mxu0 0.0
        %1164 = vmatmul.mubr.f32.gmra.mrb[0].mxu0 %v944
        %v1165 = vpop.f32.mrb[0].mxu0
        %v1166 = vadd.f32 %v845, %v1165
        %v1167 = vpop.f32.mrb[0].mxu0
        %1168 = vmatprep.mubr.f32.mxu0 0.0
        %1169 = vmatmul.mubr.f32.gmra.mrb[0].mxu0 %v947
        %v1170 = vpop.f32.mrb[0].mxu0
        %v1171 = vadd.f32 %v850, %v1170
        %v1172 = vpop.f32.mrb[0].mxu0
        %1173 = vdwg.mxu0
        %v1174 = vld [vmem:[%s4] sm:$0x1]
        %v1176 = vlaneseq
        %v1177 = vshrl.u32 %v1176, 7
        %v1178 = vsub.s32 0, %v1177
        %v1179 = vrot.slane %v1174, %v1178
        %v1181 = vadd.f32 %v1016, %v1179
        %v1182 = vadd.f32 %v1021, %v1179
        %v1183 = vadd.f32 %v1026, %v1179
        %v1184 = vadd.f32 %v1031, %v1179
        %v1185 = vadd.f32 %v1036, %v1179
        %v1186 = vadd.f32 %v1041, %v1179
        %v1187 = vadd.f32 %v1046, %v1179
        %v1188 = vadd.f32 %v1051, %v1179
        %v1189 = vadd.f32 %v1056, %v1179
        %v1190 = vadd.f32 %v1061, %v1179
        %v1191 = vadd.f32 %v1066, %v1179
        %v1192 = vadd.f32 %v1071, %v1179
        %v1193 = vadd.f32 %v1076, %v1179
        %v1194 = vadd.f32 %v1081, %v1179
        %v1195 = vadd.f32 %v1086, %v1179
        %v1196 = vadd.f32 %v1091, %v1179
        %v1197 = vadd.f32 %v1096, %v1179
        %v1198 = vadd.f32 %v1101, %v1179
        %v1199 = vadd.f32 %v1106, %v1179
        %v1200 = vadd.f32 %v1111, %v1179
        %v1201 = vadd.f32 %v1116, %v1179
        %v1202 = vadd.f32 %v1121, %v1179
        %v1203 = vadd.f32 %v1126, %v1179
        %v1204 = vadd.f32 %v1131, %v1179
        %v1205 = vadd.f32 %v1136, %v1179
        %v1206 = vadd.f32 %v1141, %v1179
        %v1207 = vadd.f32 %v1146, %v1179
        %v1208 = vadd.f32 %v1151, %v1179
        %v1209 = vadd.f32 %v1156, %v1179
        %v1210 = vadd.f32 %v1161, %v1179
        %v1211 = vadd.f32 %v1166, %v1179
        %v1212 = vadd.f32 %v1171, %v1179
        %1213 = vst.msk [vmem:[#allocation2] sm:$0xff] %vm531, 0.0
        %1214 = vst.msk [vmem:[#allocation2 + $0x8] sm:$0xff] %vm531, 0.0
        %1215 = vst.msk [vmem:[#allocation2 + $0x10] sm:$0xff] %vm531, 0.0
        %1216 = vst.msk [vmem:[#allocation2 + $0x18] sm:$0xff] %vm531, 0.0
        %1217 = vst.msk [vmem:[#allocation2 + $0x20] sm:$0xff] %vm531, 0.0
        %1218 = vst.msk [vmem:[#allocation2 + $0x28] sm:$0xff] %vm531, 0.0
        %1219 = vst.msk [vmem:[#allocation2 + $0x30] sm:$0xff] %vm531, 0.0
        %1220 = vst.msk [vmem:[#allocation2 + $0x38] sm:$0xff] %vm531, 0.0
        %1221 = vst.msk [vmem:[#allocation2 + $0x40] sm:$0xff] %vm531, 0.0
        %1222 = vst.msk [vmem:[#allocation2 + $0x48] sm:$0xff] %vm531, 0.0
        %1223 = vst.msk [vmem:[#allocation2 + $0x50] sm:$0xff] %vm531, 0.0
        %1224 = vst.msk [vmem:[#allocation2 + $0x58] sm:$0xff] %vm531, 0.0
        %1225 = vst.msk [vmem:[#allocation2 + $0x60] sm:$0xff] %vm531, 0.0
        %1226 = vst.msk [vmem:[#allocation2 + $0x68] sm:$0xff] %vm531, 0.0
        %1227 = vst.msk [vmem:[#allocation2 + $0x70] sm:$0xff] %vm531, 0.0
        %1228 = vst.msk [vmem:[#allocation2 + $0x78] sm:$0xff] %vm531, 0.0
        %1229 = vst.msk [vmem:[#allocation2 + $0x80] sm:$0xff] %vm531, 0.0
        %1230 = vst.msk [vmem:[#allocation2 + $0x88] sm:$0xff] %vm531, 0.0
        %1231 = vst.msk [vmem:[#allocation2 + $0x90] sm:$0xff] %vm531, 0.0
        %1232 = vst.msk [vmem:[#allocation2 + $0x98] sm:$0xff] %vm531, 0.0
        %1233 = vst.msk [vmem:[#allocation2 + $0xa0] sm:$0xff] %vm531, 0.0
        %1234 = vst.msk [vmem:[#allocation2 + $0xa8] sm:$0xff] %vm531, 0.0
        %1235 = vst.msk [vmem:[#allocation2 + $0xb0] sm:$0xff] %vm531, 0.0
        %1236 = vst.msk [vmem:[#allocation2 + $0xb8] sm:$0xff] %vm531, 0.0
        %1237 = vst.msk [vmem:[#allocation2 + $0xc0] sm:$0xff] %vm531, 0.0
        %1238 = vst.msk [vmem:[#allocation2 + $0xc8] sm:$0xff] %vm531, 0.0
        %1239 = vst.msk [vmem:[#allocation2 + $0xd0] sm:$0xff] %vm531, 0.0
        %1240 = vst.msk [vmem:[#allocation2 + $0xd8] sm:$0xff] %vm531, 0.0
        %1241 = vst.msk [vmem:[#allocation2 + $0xe0] sm:$0xff] %vm531, 0.0
        %1242 = vst.msk [vmem:[#allocation2 + $0xe8] sm:$0xff] %vm531, 0.0
        %1243 = vst.msk [vmem:[#allocation2 + $0xf0] sm:$0xff] %vm531, 0.0
        %1244 = vst.msk [vmem:[#allocation2 + $0xf8] sm:$0xff] %vm531, 0.0
        %1245 = vst.msk [vmem:[#allocation2 + $0x100] sm:$0xff] %vm531, 0.0
        %1246 = vst.msk [vmem:[#allocation2 + $0x108] sm:$0xff] %vm531, 0.0
        %1247 = vst.msk [vmem:[#allocation2 + $0x110] sm:$0xff] %vm531, 0.0
        %1248 = vst.msk [vmem:[#allocation2 + $0x118] sm:$0xff] %vm531, 0.0
        %1249 = vst.msk [vmem:[#allocation2 + $0x120] sm:$0xff] %vm531, 0.0
        %1250 = vst.msk [vmem:[#allocation2 + $0x128] sm:$0xff] %vm531, 0.0
        %1251 = vst.msk [vmem:[#allocation2 + $0x130] sm:$0xff] %vm531, 0.0
        %1252 = vst.msk [vmem:[#allocation2 + $0x138] sm:$0xff] %vm531, 0.0
        %1253 = vst.msk [vmem:[#allocation2 + $0x140] sm:$0xff] %vm531, 0.0
        %1254 = vst.msk [vmem:[#allocation2 + $0x148] sm:$0xff] %vm531, 0.0
        %1255 = vst.msk [vmem:[#allocation2 + $0x150] sm:$0xff] %vm531, 0.0
        %1256 = vst.msk [vmem:[#allocation2 + $0x158] sm:$0xff] %vm531, 0.0
        %1257 = vst.msk [vmem:[#allocation2 + $0x160] sm:$0xff] %vm531, 0.0
        %1258 = vst.msk [vmem:[#allocation2 + $0x168] sm:$0xff] %vm531, 0.0
        %1259 = vst.msk [vmem:[#allocation2 + $0x170] sm:$0xff] %vm531, 0.0
        %1260 = vst.msk [vmem:[#allocation2 + $0x178] sm:$0xff] %vm531, 0.0
        %1261 = vst.msk [vmem:[#allocation2 + $0x180] sm:$0xff] %vm531, 0.0
        %1262 = vst.msk [vmem:[#allocation2 + $0x188] sm:$0xff] %vm531, 0.0
        %1263 = vst.msk [vmem:[#allocation2 + $0x190] sm:$0xff] %vm531, 0.0
        %1264 = vst.msk [vmem:[#allocation2 + $0x198] sm:$0xff] %vm531, 0.0
        %1265 = vst.msk [vmem:[#allocation2 + $0x1a0] sm:$0xff] %vm531, 0.0
        %1266 = vst.msk [vmem:[#allocation2 + $0x1a8] sm:$0xff] %vm531, 0.0
        %1267 = vst.msk [vmem:[#allocation2 + $0x1b0] sm:$0xff] %vm531, 0.0
        %1268 = vst.msk [vmem:[#allocation2 + $0x1b8] sm:$0xff] %vm531, 0.0
        %1269 = vst.msk [vmem:[#allocation2 + $0x1c0] sm:$0xff] %vm531, 0.0
        %1270 = vst.msk [vmem:[#allocation2 + $0x1c8] sm:$0xff] %vm531, 0.0
        %1271 = vst.msk [vmem:[#allocation2 + $0x1d0] sm:$0xff] %vm531, 0.0
        %1272 = vst.msk [vmem:[#allocation2 + $0x1d8] sm:$0xff] %vm531, 0.0
        %1273 = vst.msk [vmem:[#allocation2 + $0x1e0] sm:$0xff] %vm531, 0.0
        %1274 = vst.msk [vmem:[#allocation2 + $0x1e8] sm:$0xff] %vm531, 0.0
        %1275 = vst.msk [vmem:[#allocation2 + $0x1f0] sm:$0xff] %vm531, 0.0
        %1276 = vst.msk [vmem:[#allocation2 + $0x1f8] sm:$0xff] %vm531, 0.0
        %1277 = vst.msk [vmem:[#allocation2 + $0x200] sm:$0xff] %vm531, 0.0
        %1278 = vst.msk [vmem:[#allocation2 + $0x208] sm:$0xff] %vm531, 0.0
        %1279 = vst.msk [vmem:[#allocation2 + $0x210] sm:$0xff] %vm531, 0.0
        %1280 = vst.msk [vmem:[#allocation2 + $0x218] sm:$0xff] %vm531, 0.0
        %1281 = vst.msk [vmem:[#allocation2 + $0x220] sm:$0xff] %vm531, 0.0
        %1282 = vst.msk [vmem:[#allocation2 + $0x228] sm:$0xff] %vm531, 0.0
        %1283 = vst.msk [vmem:[#allocation2 + $0x230] sm:$0xff] %vm531, 0.0
        %1284 = vst.msk [vmem:[#allocation2 + $0x238] sm:$0xff] %vm531, 0.0
        %s1285 = scalar_lea.vmem [#allocation2], 32
        %1286 = vst.msk [vmem:[%s1285 + $0x8] sm:$0xff] %vm531, %v1181
        %1287 = vst.msk [vmem:[%s1285 + $0x10] sm:$0xff] %vm531, %v1182
        %1288 = vst.msk [vmem:[%s1285 + $0x28] sm:$0xff] %vm531, %v1183
        %1289 = vst.msk [vmem:[%s1285 + $0x30] sm:$0xff] %vm531, %v1184
        %1290 = vst.msk [vmem:[%s1285 + $0x48] sm:$0xff] %vm531, %v1185
        %1291 = vst.msk [vmem:[%s1285 + $0x50] sm:$0xff] %vm531, %v1186
        %1292 = vst.msk [vmem:[%s1285 + $0x68] sm:$0xff] %vm531, %v1187
        %1293 = vst.msk [vmem:[%s1285 + $0x70] sm:$0xff] %vm531, %v1188
        %1294 = vst.msk [vmem:[%s1285 + $0x88] sm:$0xff] %vm531, %v1189
        %1295 = vst.msk [vmem:[%s1285 + $0x90] sm:$0xff] %vm531, %v1190
        %1296 = vst.msk [vmem:[%s1285 + $0xa8] sm:$0xff] %vm531, %v1191
        %1297 = vst.msk [vmem:[%s1285 + $0xb0] sm:$0xff] %vm531, %v1192
        %1298 = vst.msk [vmem:[%s1285 + $0xc8] sm:$0xff] %vm531, %v1193
        %1299 = vst.msk [vmem:[%s1285 + $0xd0] sm:$0xff] %vm531, %v1194
        %1300 = vst.msk [vmem:[%s1285 + $0xe8] sm:$0xff] %vm531, %v1195
        %1301 = vst.msk [vmem:[%s1285 + $0xf0] sm:$0xff] %vm531, %v1196
        %1302 = vst.msk [vmem:[%s1285 + $0x108] sm:$0xff] %vm531, %v1197
        %1303 = vst.msk [vmem:[%s1285 + $0x110] sm:$0xff] %vm531, %v1198
        %1304 = vst.msk [vmem:[%s1285 + $0x128] sm:$0xff] %vm531, %v1199
        %1305 = vst.msk [vmem:[%s1285 + $0x130] sm:$0xff] %vm531, %v1200
        %1306 = vst.msk [vmem:[%s1285 + $0x148] sm:$0xff] %vm531, %v1201
        %1307 = vst.msk [vmem:[%s1285 + $0x150] sm:$0xff] %vm531, %v1202
        %1308 = vst.msk [vmem:[%s1285 + $0x168] sm:$0xff] %vm531, %v1203
        %1309 = vst.msk [vmem:[%s1285 + $0x170] sm:$0xff] %vm531, %v1204
        %1310 = vst.msk [vmem:[%s1285 + $0x188] sm:$0xff] %vm531, %v1205
        %1311 = vst.msk [vmem:[%s1285 + $0x190] sm:$0xff] %vm531, %v1206
        %1312 = vst.msk [vmem:[%s1285 + $0x1a8] sm:$0xff] %vm531, %v1207
        %1313 = vst.msk [vmem:[%s1285 + $0x1b0] sm:$0xff] %vm531, %v1208
        %1314 = vst.msk [vmem:[%s1285 + $0x1c8] sm:$0xff] %vm531, %v1209
        %1315 = vst.msk [vmem:[%s1285 + $0x1d0] sm:$0xff] %vm531, %v1210
        %1316 = vst.msk [vmem:[%s1285 + $0x1e8] sm:$0xff] %vm531, %v1211
        %1317 = vst.msk [vmem:[%s1285 + $0x1f0] sm:$0xff] %vm531, %v1212
        %v1318 = vld [vmem:[#allocation2 + $0x7] sm:$0xff]
        %v1319 = vld [vmem:[#allocation2 + $0xf] sm:$0xff]
        %v1320 = vld [vmem:[#allocation2 + $0x27] sm:$0xff]
        %v1321 = vld [vmem:[#allocation2 + $0x2f] sm:$0xff]
        %v1322 = vld [vmem:[#allocation2 + $0x47] sm:$0xff]
        %v1323 = vld [vmem:[#allocation2 + $0x4f] sm:$0xff]
        %v1324 = vld [vmem:[#allocation2 + $0x67] sm:$0xff]
        %v1325 = vld [vmem:[#allocation2 + $0x6f] sm:$0xff]
        %v1326 = vld [vmem:[#allocation2 + $0x87] sm:$0xff]
        %v1327 = vld [vmem:[#allocation2 + $0x8f] sm:$0xff]
        %v1328 = vld [vmem:[#allocation2 + $0xa7] sm:$0xff]
        %v1329 = vld [vmem:[#allocation2 + $0xaf] sm:$0xff]
        %v1330 = vld [vmem:[#allocation2 + $0xc7] sm:$0xff]
        %v1331 = vld [vmem:[#allocation2 + $0xcf] sm:$0xff]
        %v1332 = vld [vmem:[#allocation2 + $0xe7] sm:$0xff]
        %v1333 = vld [vmem:[#allocation2 + $0xef] sm:$0xff]
        %v1334 = vld [vmem:[#allocation2 + $0x107] sm:$0xff]
        %v1335 = vld [vmem:[#allocation2 + $0x10f] sm:$0xff]
        %v1336 = vld [vmem:[#allocation2 + $0x127] sm:$0xff]
        %v1337 = vld [vmem:[#allocation2 + $0x12f] sm:$0xff]
        %v1338 = vld [vmem:[#allocation2 + $0x147] sm:$0xff]
        %v1339 = vld [vmem:[#allocation2 + $0x14f] sm:$0xff]
        %v1340 = vld [vmem:[#allocation2 + $0x167] sm:$0xff]
        %v1341 = vld [vmem:[#allocation2 + $0x16f] sm:$0xff]
        %v1342 = vld [vmem:[#allocation2 + $0x187] sm:$0xff]
        %v1343 = vld [vmem:[#allocation2 + $0x18f] sm:$0xff]
        %v1344 = vld [vmem:[#allocation2 + $0x1a7] sm:$0xff]
        %v1345 = vld [vmem:[#allocation2 + $0x1af] sm:$0xff]
        %v1346 = vld [vmem:[#allocation2 + $0x1c7] sm:$0xff]
        %v1347 = vld [vmem:[#allocation2 + $0x1cf] sm:$0xff]
        %v1348 = vld [vmem:[#allocation2 + $0x1e7] sm:$0xff]
        %v1349 = vld [vmem:[#allocation2 + $0x1ef] sm:$0xff]
        %v1350 = vld [vmem:[%s5] sm:$0xff]
        %v1351 = vld [vmem:[%s5 + $0x8] sm:$0xff]
        %v1352 = vld [vmem:[%s5 + $0x10] sm:$0xff]
        %v1353 = vld [vmem:[%s5 + $0x18] sm:$0xff]
        %v1354 = vld [vmem:[#allocation2 + $0x8] sm:$0xff]
        %v1355 = vld [vmem:[#allocation2 + $0x10] sm:$0xff]
        %v1356 = vld [vmem:[#allocation2 + $0x28] sm:$0xff]
        %v1357 = vld [vmem:[#allocation2 + $0x30] sm:$0xff]
        %v1358 = vld [vmem:[#allocation2 + $0x48] sm:$0xff]
        %v1359 = vld [vmem:[#allocation2 + $0x50] sm:$0xff]
        %v1360 = vld [vmem:[#allocation2 + $0x68] sm:$0xff]
        %v1361 = vld [vmem:[#allocation2 + $0x70] sm:$0xff]
        %v1362 = vld [vmem:[#allocation2 + $0x88] sm:$0xff]
        %v1363 = vld [vmem:[#allocation2 + $0x90] sm:$0xff]
        %v1364 = vld [vmem:[#allocation2 + $0xa8] sm:$0xff]
        %v1365 = vld [vmem:[#allocation2 + $0xb0] sm:$0xff]
        %v1366 = vld [vmem:[#allocation2 + $0xc8] sm:$0xff]
        %v1367 = vld [vmem:[#allocation2 + $0xd0] sm:$0xff]
        %v1368 = vld [vmem:[#allocation2 + $0xe8] sm:$0xff]
        %v1369 = vld [vmem:[#allocation2 + $0xf0] sm:$0xff]
        %v1370 = vld [vmem:[#allocation2 + $0x108] sm:$0xff]
        %v1371 = vld [vmem:[#allocation2 + $0x110] sm:$0xff]
        %v1372 = vld [vmem:[#allocation2 + $0x128] sm:$0xff]
        %v1373 = vld [vmem:[#allocation2 + $0x130] sm:$0xff]
        %v1374 = vld [vmem:[#allocation2 + $0x148] sm:$0xff]
        %v1375 = vld [vmem:[#allocation2 + $0x150] sm:$0xff]
        %v1376 = vld [vmem:[#allocation2 + $0x168] sm:$0xff]
        %v1377 = vld [vmem:[#allocation2 + $0x170] sm:$0xff]
        %v1378 = vld [vmem:[#allocation2 + $0x188] sm:$0xff]
        %v1379 = vld [vmem:[#allocation2 + $0x190] sm:$0xff]
        %v1380 = vld [vmem:[#allocation2 + $0x1a8] sm:$0xff]
        %v1381 = vld [vmem:[#allocation2 + $0x1b0] sm:$0xff]
        %v1382 = vld [vmem:[#allocation2 + $0x1c8] sm:$0xff]
        %v1383 = vld [vmem:[#allocation2 + $0x1d0] sm:$0xff]
        %v1384 = vld [vmem:[#allocation2 + $0x1e8] sm:$0xff]
        %v1385 = vld [vmem:[#allocation2 + $0x1f0] sm:$0xff]
        %s1386 = scalar_lea.vmem %s5, 32
        %v1387 = vld [vmem:[%s1386] sm:$0xff]
        %v1388 = vld [vmem:[%s1386 + $0x8] sm:$0xff]
        %v1389 = vld [vmem:[%s1386 + $0x10] sm:$0xff]
        %v1390 = vld [vmem:[%s1386 + $0x18] sm:$0xff]
        %v1392 = vsel %vm531, %v1354, 0
        %v1395 = vsel %vm531, %v1355, 0
        %v1398 = vsel %vm531, %v1356, 0
        %v1401 = vsel %vm531, %v1357, 0
        %v1404 = vsel %vm531, %v1358, 0
        %v1407 = vsel %vm531, %v1359, 0
        %v1410 = vsel %vm531, %v1360, 0
        %v1413 = vsel %vm531, %v1361, 0
        %v1416 = vsel %vm531, %v1362, 0
        %v1419 = vsel %vm531, %v1363, 0
        %v1422 = vsel %vm531, %v1364, 0
        %v1425 = vsel %vm531, %v1365, 0
        %v1428 = vsel %vm531, %v1366, 0
        %v1431 = vsel %vm531, %v1367, 0
        %v1434 = vsel %vm531, %v1368, 0
        %v1437 = vsel %vm531, %v1369, 0
        %v1440 = vsel %vm531, %v1370, 0
        %v1443 = vsel %vm531, %v1371, 0
        %v1446 = vsel %vm531, %v1372, 0
        %v1449 = vsel %vm531, %v1373, 0
        %v1452 = vsel %vm531, %v1374, 0
        %v1455 = vsel %vm531, %v1375, 0
        %v1458 = vsel %vm531, %v1376, 0
        %v1461 = vsel %vm531, %v1377, 0
        %v1464 = vsel %vm531, %v1378, 0
        %v1467 = vsel %vm531, %v1379, 0
        %v1470 = vsel %vm531, %v1380, 0
        %v1473 = vsel %vm531, %v1381, 0
        %v1476 = vsel %vm531, %v1382, 0
        %v1479 = vsel %vm531, %v1383, 0
        %v1482 = vsel %vm531, %v1384, 0
        %v1485 = vsel %vm531, %v1385, 0
        %1487 = vmatprep.subr.mxu0 0.0
        %1488 = vmatpush1.msra.mxu0 %v1387
        %1489 = vmatprep.subr.mxu0 0.0
        %1490 = vmatpush1.msra.mxu0 %v1388
        %1491 = vmatprep.subr.mxu0 0.0
        %1492 = vmatpush1.msra.mxu0 %v1389
        %1493 = vmatprep.subr.mxu0 0.0
        %1494 = vmatpush1.msra.mxu0 %v1390
        %1495 = vmatprep.subr.mxu0 0.0
        %1496 = vmatpush1.msra.mxu0 0.0
        %1497 = vmatprep.subr.mxu0 0.0
        %1498 = vmatpush1.msra.mxu0 0.0
        %1499 = vmatprep.subr.mxu0 0.0
        %1500 = vmatpush1.msra.mxu0 0.0
        %1501 = vmatprep.subr.mxu0 0.0
        %1502 = vmatpush1.msra.mxu0 0.0
        %1503 = vmatprep.subr.mxu0 0.0
        %1504 = vmatpush1.msra.mxu0 0.0
        %1505 = vmatprep.subr.mxu0 0.0
        %1506 = vmatpush1.msra.mxu0 0.0
        %1507 = vmatprep.subr.mxu0 0.0
        %1508 = vmatpush1.msra.mxu0 0.0
        %1509 = vmatprep.subr.mxu0 0.0
        %1510 = vmatpush1.msra.mxu0 0.0
        %1511 = vmatprep.subr.mxu0 0.0
        %1512 = vmatpush1.msra.mxu0 0.0
        %1513 = vmatprep.subr.mxu0 0.0
        %1514 = vmatpush1.msra.mxu0 0.0
        %1515 = vmatprep.subr.mxu0 0.0
        %1516 = vmatpush1.msra.mxu0 0.0
        %1517 = vmatprep.subr.mxu0 0.0
        %1518 = vmatpush1.msra.mxu0 0.0
        %1519 = vmatprep.subr.mxu0 0.0
        %1520 = vmatpush1.msra.mxu0 0.0
        %1521 = vmatprep.subr.mxu0 0.0
        %1522 = vmatpush1.msra.mxu0 0.0
        %1523 = vmatprep.subr.mxu0 0.0
        %1524 = vmatpush1.msra.mxu0 0.0
        %1525 = vmatprep.subr.mxu0 0.0
        %1526 = vmatpush1.msra.mxu0 0.0
        %1527 = vmatprep.subr.mxu0 0.0
        %1528 = vmatpush1.msra.mxu0 0.0
        %1529 = vmatprep.subr.mxu0 0.0
        %1530 = vmatpush1.msra.mxu0 0.0
        %1531 = vmatprep.subr.mxu0 0.0
        %1532 = vmatpush1.msra.mxu0 0.0
        %1533 = vmatprep.subr.mxu0 0.0
        %1534 = vmatpush1.msra.mxu0 0.0
        %1535 = vmatprep.subr.mxu0 0.0
        %1536 = vmatpush1.msra.mxu0 0.0
        %1537 = vmatprep.subr.mxu0 0.0
        %1538 = vmatpush1.msra.mxu0 0.0
        %1539 = vmatprep.subr.mxu0 0.0
        %1540 = vmatpush1.msra.mxu0 0.0
        %1541 = vmatprep.subr.mxu0 0.0
        %1542 = vmatpush1.msra.mxu0 0.0
        %1543 = vmatprep.subr.mxu0 0.0
        %1544 = vmatpush1.msra.mxu0 0.0
        %1545 = vmatprep.subr.mxu0 0.0
        %1546 = vmatpush1.msra.mxu0 0.0
        %1547 = vmatprep.subr.mxu0 0.0
        %1548 = vmatpush1.msra.mxu0 0.0
        %1549 = vmatprep.subr.mxu0 0.0
        %1550 = vmatpush1.msra.mxu0 0.0
        %1551 = vmatprep.mubr.f32.mxu0 0.0
        %1552 = vmatmul.mubr.f32.gmra.mrb[0].mxu0 %v1392
        %v1553 = vpop.f32.mrb[0].mxu0
        %v1554 = vadd.f32 0.0, %v1553
        %v1555 = vpop.f32.mrb[0].mxu0
        %1556 = vmatprep.mubr.f32.mxu0 0.0
        %1557 = vmatmul.mubr.f32.gmra.mrb[0].mxu0 %v1395
        %v1558 = vpop.f32.mrb[0].mxu0
        %v1559 = vadd.f32 0.0, %v1558
        %v1560 = vpop.f32.mrb[0].mxu0
        %1561 = vmatprep.mubr.f32.mxu0 0.0
        %1562 = vmatmul.mubr.f32.gmra.mrb[0].mxu0 %v1398
        %v1563 = vpop.f32.mrb[0].mxu0
        %v1564 = vadd.f32 0.0, %v1563
        %v1565 = vpop.f32.mrb[0].mxu0
        %1566 = vmatprep.mubr.f32.mxu0 0.0
        %1567 = vmatmul.mubr.f32.gmra.mrb[0].mxu0 %v1401
        %v1568 = vpop.f32.mrb[0].mxu0
        %v1569 = vadd.f32 0.0, %v1568
        %v1570 = vpop.f32.mrb[0].mxu0
        %1571 = vmatprep.mubr.f32.mxu0 0.0
        %1572 = vmatmul.mubr.f32.gmra.mrb[0].mxu0 %v1404
        %v1573 = vpop.f32.mrb[0].mxu0
        %v1574 = vadd.f32 0.0, %v1573
        %v1575 = vpop.f32.mrb[0].mxu0
        %1576 = vmatprep.mubr.f32.mxu0 0.0
        %1577 = vmatmul.mubr.f32.gmra.mrb[0].mxu0 %v1407
        %v1578 = vpop.f32.mrb[0].mxu0
        %v1579 = vadd.f32 0.0, %v1578
        %v1580 = vpop.f32.mrb[0].mxu0
        %1581 = vmatprep.mubr.f32.mxu0 0.0
        %1582 = vmatmul.mubr.f32.gmra.mrb[0].mxu0 %v1410
        %v1583 = vpop.f32.mrb[0].mxu0
        %v1584 = vadd.f32 0.0, %v1583
        %v1585 = vpop.f32.mrb[0].mxu0
        %1586 = vmatprep.mubr.f32.mxu0 0.0
        %1587 = vmatmul.mubr.f32.gmra.mrb[0].mxu0 %v1413
        %v1588 = vpop.f32.mrb[0].mxu0
        %v1589 = vadd.f32 0.0, %v1588
        %v1590 = vpop.f32.mrb[0].mxu0
        %1591 = vmatprep.mubr.f32.mxu0 0.0
        %1592 = vmatmul.mubr.f32.gmra.mrb[0].mxu0 %v1416
        %v1593 = vpop.f32.mrb[0].mxu0
        %v1594 = vadd.f32 0.0, %v1593
        %v1595 = vpop.f32.mrb[0].mxu0
        %1596 = vmatprep.mubr.f32.mxu0 0.0
        %1597 = vmatmul.mubr.f32.gmra.mrb[0].mxu0 %v1419
        %v1598 = vpop.f32.mrb[0].mxu0
        %v1599 = vadd.f32 0.0, %v1598
        %v1600 = vpop.f32.mrb[0].mxu0
        %1601 = vmatprep.mubr.f32.mxu0 0.0
        %1602 = vmatmul.mubr.f32.gmra.mrb[0].mxu0 %v1422
        %v1603 = vpop.f32.mrb[0].mxu0
        %v1604 = vadd.f32 0.0, %v1603
        %v1605 = vpop.f32.mrb[0].mxu0
        %1606 = vmatprep.mubr.f32.mxu0 0.0
        %1607 = vmatmul.mubr.f32.gmra.mrb[0].mxu0 %v1425
        %v1608 = vpop.f32.mrb[0].mxu0
        %v1609 = vadd.f32 0.0, %v1608
        %v1610 = vpop.f32.mrb[0].mxu0
        %1611 = vmatprep.mubr.f32.mxu0 0.0
        %1612 = vmatmul.mubr.f32.gmra.mrb[0].mxu0 %v1428
        %v1613 = vpop.f32.mrb[0].mxu0
        %v1614 = vadd.f32 0.0, %v1613
        %v1615 = vpop.f32.mrb[0].mxu0
        %1616 = vmatprep.mubr.f32.mxu0 0.0
        %1617 = vmatmul.mubr.f32.gmra.mrb[0].mxu0 %v1431
        %v1618 = vpop.f32.mrb[0].mxu0
        %v1619 = vadd.f32 0.0, %v1618
        %v1620 = vpop.f32.mrb[0].mxu0
        %1621 = vmatprep.mubr.f32.mxu0 0.0
        %1622 = vmatmul.mubr.f32.gmra.mrb[0].mxu0 %v1434
        %v1623 = vpop.f32.mrb[0].mxu0
        %v1624 = vadd.f32 0.0, %v1623
        %v1625 = vpop.f32.mrb[0].mxu0
        %1626 = vmatprep.mubr.f32.mxu0 0.0
        %1627 = vmatmul.mubr.f32.gmra.mrb[0].mxu0 %v1437
        %v1628 = vpop.f32.mrb[0].mxu0
        %v1629 = vadd.f32 0.0, %v1628
        %v1630 = vpop.f32.mrb[0].mxu0
        %1631 = vmatprep.mubr.f32.mxu0 0.0
        %1632 = vmatmul.mubr.f32.gmra.mrb[0].mxu0 %v1440
        %v1633 = vpop.f32.mrb[0].mxu0
        %v1634 = vadd.f32 0.0, %v1633
        %v1635 = vpop.f32.mrb[0].mxu0
        %1636 = vmatprep.mubr.f32.mxu0 0.0
        %1637 = vmatmul.mubr.f32.gmra.mrb[0].mxu0 %v1443
        %v1638 = vpop.f32.mrb[0].mxu0
        %v1639 = vadd.f32 0.0, %v1638
        %v1640 = vpop.f32.mrb[0].mxu0
        %1641 = vmatprep.mubr.f32.mxu0 0.0
        %1642 = vmatmul.mubr.f32.gmra.mrb[0].mxu0 %v1446
        %v1643 = vpop.f32.mrb[0].mxu0
        %v1644 = vadd.f32 0.0, %v1643
        %v1645 = vpop.f32.mrb[0].mxu0
        %1646 = vmatprep.mubr.f32.mxu0 0.0
        %1647 = vmatmul.mubr.f32.gmra.mrb[0].mxu0 %v1449
        %v1648 = vpop.f32.mrb[0].mxu0
        %v1649 = vadd.f32 0.0, %v1648
        %v1650 = vpop.f32.mrb[0].mxu0
        %1651 = vmatprep.mubr.f32.mxu0 0.0
        %1652 = vmatmul.mubr.f32.gmra.mrb[0].mxu0 %v1452
        %v1653 = vpop.f32.mrb[0].mxu0
        %v1654 = vadd.f32 0.0, %v1653
        %v1655 = vpop.f32.mrb[0].mxu0
        %1656 = vmatprep.mubr.f32.mxu0 0.0
        %1657 = vmatmul.mubr.f32.gmra.mrb[0].mxu0 %v1455
        %v1658 = vpop.f32.mrb[0].mxu0
        %v1659 = vadd.f32 0.0, %v1658
        %v1660 = vpop.f32.mrb[0].mxu0
        %1661 = vmatprep.mubr.f32.mxu0 0.0
        %1662 = vmatmul.mubr.f32.gmra.mrb[0].mxu0 %v1458
        %v1663 = vpop.f32.mrb[0].mxu0
        %v1664 = vadd.f32 0.0, %v1663
        %v1665 = vpop.f32.mrb[0].mxu0
        %1666 = vmatprep.mubr.f32.mxu0 0.0
        %1667 = vmatmul.mubr.f32.gmra.mrb[0].mxu0 %v1461
        %v1668 = vpop.f32.mrb[0].mxu0
        %v1669 = vadd.f32 0.0, %v1668
        %v1670 = vpop.f32.mrb[0].mxu0
        %1671 = vmatprep.mubr.f32.mxu0 0.0
        %1672 = vmatmul.mubr.f32.gmra.mrb[0].mxu0 %v1464
        %v1673 = vpop.f32.mrb[0].mxu0
        %v1674 = vadd.f32 0.0, %v1673
        %v1675 = vpop.f32.mrb[0].mxu0
        %1676 = vmatprep.mubr.f32.mxu0 0.0
        %1677 = vmatmul.mubr.f32.gmra.mrb[0].mxu0 %v1467
        %v1678 = vpop.f32.mrb[0].mxu0
        %v1679 = vadd.f32 0.0, %v1678
        %v1680 = vpop.f32.mrb[0].mxu0
        %1681 = vmatprep.mubr.f32.mxu0 0.0
        %1682 = vmatmul.mubr.f32.gmra.mrb[0].mxu0 %v1470
        %v1683 = vpop.f32.mrb[0].mxu0
        %v1684 = vadd.f32 0.0, %v1683
        %v1685 = vpop.f32.mrb[0].mxu0
        %1686 = vmatprep.mubr.f32.mxu0 0.0
        %1687 = vmatmul.mubr.f32.gmra.mrb[0].mxu0 %v1473
        %v1688 = vpop.f32.mrb[0].mxu0
        %v1689 = vadd.f32 0.0, %v1688
        %v1690 = vpop.f32.mrb[0].mxu0
        %1691 = vmatprep.mubr.f32.mxu0 0.0
        %1692 = vmatmul.mubr.f32.gmra.mrb[0].mxu0 %v1476
        %v1693 = vpop.f32.mrb[0].mxu0
        %v1694 = vadd.f32 0.0, %v1693
        %v1695 = vpop.f32.mrb[0].mxu0
        %1696 = vmatprep.mubr.f32.mxu0 0.0
        %1697 = vmatmul.mubr.f32.gmra.mrb[0].mxu0 %v1479
        %v1698 = vpop.f32.mrb[0].mxu0
        %v1699 = vadd.f32 0.0, %v1698
        %v1700 = vpop.f32.mrb[0].mxu0
        %1701 = vmatprep.mubr.f32.mxu0 0.0
        %1702 = vmatmul.mubr.f32.gmra.mrb[0].mxu0 %v1482
        %v1703 = vpop.f32.mrb[0].mxu0
        %v1704 = vadd.f32 0.0, %v1703
        %v1705 = vpop.f32.mrb[0].mxu0
        %1706 = vmatprep.mubr.f32.mxu0 0.0
        %1707 = vmatmul.mubr.f32.gmra.mrb[0].mxu0 %v1485
        %v1708 = vpop.f32.mrb[0].mxu0
        %v1709 = vadd.f32 0.0, %v1708
        %v1710 = vpop.f32.mrb[0].mxu0
        %1711 = vdwg.mxu0
        %v1713 = vsel %vm531, %v1318, 0
        %v1716 = vsel %vm531, %v1319, 0
        %v1719 = vsel %vm531, %v1320, 0
        %v1722 = vsel %vm531, %v1321, 0
        %v1725 = vsel %vm531, %v1322, 0
        %v1728 = vsel %vm531, %v1323, 0
        %v1731 = vsel %vm531, %v1324, 0
        %v1734 = vsel %vm531, %v1325, 0
        %v1737 = vsel %vm531, %v1326, 0
        %v1740 = vsel %vm531, %v1327, 0
        %v1743 = vsel %vm531, %v1328, 0
        %v1746 = vsel %vm531, %v1329, 0
        %v1749 = vsel %vm531, %v1330, 0
        %v1752 = vsel %vm531, %v1331, 0
        %v1755 = vsel %vm531, %v1332, 0
        %v1758 = vsel %vm531, %v1333, 0
        %v1761 = vsel %vm531, %v1334, 0
        %v1764 = vsel %vm531, %v1335, 0
        %v1767 = vsel %vm531, %v1336, 0
        %v1770 = vsel %vm531, %v1337, 0
        %v1773 = vsel %vm531, %v1338, 0
        %v1776 = vsel %vm531, %v1339, 0
        %v1779 = vsel %vm531, %v1340, 0
        %v1782 = vsel %vm531, %v1341, 0
        %v1785 = vsel %vm531, %v1342, 0
        %v1788 = vsel %vm531, %v1343, 0
        %v1791 = vsel %vm531, %v1344, 0
        %v1794 = vsel %vm531, %v1345, 0
        %v1797 = vsel %vm531, %v1346, 0
        %v1800 = vsel %vm531, %v1347, 0
        %v1803 = vsel %vm531, %v1348, 0
        %v1806 = vsel %vm531, %v1349, 0
        %1808 = vmatprep.subr.mxu0 0.0
        %1809 = vmatpush1.msra.mxu0 %v1350
        %1810 = vmatprep.subr.mxu0 0.0
        %1811 = vmatpush1.msra.mxu0 %v1351
        %1812 = vmatprep.subr.mxu0 0.0
        %1813 = vmatpush1.msra.mxu0 %v1352
        %1814 = vmatprep.subr.mxu0 0.0
        %1815 = vmatpush1.msra.mxu0 %v1353
        %1816 = vmatprep.subr.mxu0 0.0
        %1817 = vmatpush1.msra.mxu0 0.0
        %1818 = vmatprep.subr.mxu0 0.0
        %1819 = vmatpush1.msra.mxu0 0.0
        %1820 = vmatprep.subr.mxu0 0.0
        %1821 = vmatpush1.msra.mxu0 0.0
        %1822 = vmatprep.subr.mxu0 0.0
        %1823 = vmatpush1.msra.mxu0 0.0
        %1824 = vmatprep.subr.mxu0 0.0
        %1825 = vmatpush1.msra.mxu0 0.0
        %1826 = vmatprep.subr.mxu0 0.0
        %1827 = vmatpush1.msra.mxu0 0.0
        %1828 = vmatprep.subr.mxu0 0.0
        %1829 = vmatpush1.msra.mxu0 0.0
        %1830 = vmatprep.subr.mxu0 0.0
        %1831 = vmatpush1.msra.mxu0 0.0
        %1832 = vmatprep.subr.mxu0 0.0
        %1833 = vmatpush1.msra.mxu0 0.0
        %1834 = vmatprep.subr.mxu0 0.0
        %1835 = vmatpush1.msra.mxu0 0.0
        %1836 = vmatprep.subr.mxu0 0.0
        %1837 = vmatpush1.msra.mxu0 0.0
        %1838 = vmatprep.subr.mxu0 0.0
        %1839 = vmatpush1.msra.mxu0 0.0
        %1840 = vmatprep.subr.mxu0 0.0
        %1841 = vmatpush1.msra.mxu0 0.0
        %1842 = vmatprep.subr.mxu0 0.0
        %1843 = vmatpush1.msra.mxu0 0.0
        %1844 = vmatprep.subr.mxu0 0.0
        %1845 = vmatpush1.msra.mxu0 0.0
        %1846 = vmatprep.subr.mxu0 0.0
        %1847 = vmatpush1.msra.mxu0 0.0
        %1848 = vmatprep.subr.mxu0 0.0
        %1849 = vmatpush1.msra.mxu0 0.0
        %1850 = vmatprep.subr.mxu0 0.0
        %1851 = vmatpush1.msra.mxu0 0.0
        %1852 = vmatprep.subr.mxu0 0.0
        %1853 = vmatpush1.msra.mxu0 0.0
        %1854 = vmatprep.subr.mxu0 0.0
        %1855 = vmatpush1.msra.mxu0 0.0
        %1856 = vmatprep.subr.mxu0 0.0
        %1857 = vmatpush1.msra.mxu0 0.0
        %1858 = vmatprep.subr.mxu0 0.0
        %1859 = vmatpush1.msra.mxu0 0.0
        %1860 = vmatprep.subr.mxu0 0.0
        %1861 = vmatpush1.msra.mxu0 0.0
        %1862 = vmatprep.subr.mxu0 0.0
        %1863 = vmatpush1.msra.mxu0 0.0
        %1864 = vmatprep.subr.mxu0 0.0
        %1865 = vmatpush1.msra.mxu0 0.0
        %1866 = vmatprep.subr.mxu0 0.0
        %1867 = vmatpush1.msra.mxu0 0.0
        %1868 = vmatprep.subr.mxu0 0.0
        %1869 = vmatpush1.msra.mxu0 0.0
        %1870 = vmatprep.subr.mxu0 0.0
        %1871 = vmatpush1.msra.mxu0 0.0
        %1872 = vmatprep.mubr.f32.mxu0 0.0
        %1873 = vmatmul.mubr.f32.gmra.mrb[0].mxu0 %v1713
        %v1874 = vpop.f32.mrb[0].mxu0
        %v1875 = vadd.f32 %v1554, %v1874
        %v1876 = vpop.f32.mrb[0].mxu0
        %1877 = vmatprep.mubr.f32.mxu0 0.0
        %1878 = vmatmul.mubr.f32.gmra.mrb[0].mxu0 %v1716
        %v1879 = vpop.f32.mrb[0].mxu0
        %v1880 = vadd.f32 %v1559, %v1879
        %v1881 = vpop.f32.mrb[0].mxu0
        %1882 = vmatprep.mubr.f32.mxu0 0.0
        %1883 = vmatmul.mubr.f32.gmra.mrb[0].mxu0 %v1719
        %v1884 = vpop.f32.mrb[0].mxu0
        %v1885 = vadd.f32 %v1564, %v1884
        %v1886 = vpop.f32.mrb[0].mxu0
        %1887 = vmatprep.mubr.f32.mxu0 0.0
        %1888 = vmatmul.mubr.f32.gmra.mrb[0].mxu0 %v1722
        %v1889 = vpop.f32.mrb[0].mxu0
        %v1890 = vadd.f32 %v1569, %v1889
        %v1891 = vpop.f32.mrb[0].mxu0
        %1892 = vmatprep.mubr.f32.mxu0 0.0
        %1893 = vmatmul.mubr.f32.gmra.mrb[0].mxu0 %v1725
        %v1894 = vpop.f32.mrb[0].mxu0
        %v1895 = vadd.f32 %v1574, %v1894
        %v1896 = vpop.f32.mrb[0].mxu0
        %1897 = vmatprep.mubr.f32.mxu0 0.0
        %1898 = vmatmul.mubr.f32.gmra.mrb[0].mxu0 %v1728
        %v1899 = vpop.f32.mrb[0].mxu0
        %v1900 = vadd.f32 %v1579, %v1899
        %v1901 = vpop.f32.mrb[0].mxu0
        %1902 = vmatprep.mubr.f32.mxu0 0.0
        %1903 = vmatmul.mubr.f32.gmra.mrb[0].mxu0 %v1731
        %v1904 = vpop.f32.mrb[0].mxu0
        %v1905 = vadd.f32 %v1584, %v1904
        %v1906 = vpop.f32.mrb[0].mxu0
        %1907 = vmatprep.mubr.f32.mxu0 0.0
        %1908 = vmatmul.mubr.f32.gmra.mrb[0].mxu0 %v1734
        %v1909 = vpop.f32.mrb[0].mxu0
        %v1910 = vadd.f32 %v1589, %v1909
        %v1911 = vpop.f32.mrb[0].mxu0
        %1912 = vmatprep.mubr.f32.mxu0 0.0
        %1913 = vmatmul.mubr.f32.gmra.mrb[0].mxu0 %v1737
        %v1914 = vpop.f32.mrb[0].mxu0
        %v1915 = vadd.f32 %v1594, %v1914
        %v1916 = vpop.f32.mrb[0].mxu0
        %1917 = vmatprep.mubr.f32.mxu0 0.0
        %1918 = vmatmul.mubr.f32.gmra.mrb[0].mxu0 %v1740
        %v1919 = vpop.f32.mrb[0].mxu0
        %v1920 = vadd.f32 %v1599, %v1919
        %v1921 = vpop.f32.mrb[0].mxu0
        %1922 = vmatprep.mubr.f32.mxu0 0.0
        %1923 = vmatmul.mubr.f32.gmra.mrb[0].mxu0 %v1743
        %v1924 = vpop.f32.mrb[0].mxu0
        %v1925 = vadd.f32 %v1604, %v1924
        %v1926 = vpop.f32.mrb[0].mxu0
        %1927 = vmatprep.mubr.f32.mxu0 0.0
        %1928 = vmatmul.mubr.f32.gmra.mrb[0].mxu0 %v1746
        %v1929 = vpop.f32.mrb[0].mxu0
        %v1930 = vadd.f32 %v1609, %v1929
        %v1931 = vpop.f32.mrb[0].mxu0
        %1932 = vmatprep.mubr.f32.mxu0 0.0
        %1933 = vmatmul.mubr.f32.gmra.mrb[0].mxu0 %v1749
        %v1934 = vpop.f32.mrb[0].mxu0
        %v1935 = vadd.f32 %v1614, %v1934
        %v1936 = vpop.f32.mrb[0].mxu0
        %1937 = vmatprep.mubr.f32.mxu0 0.0
        %1938 = vmatmul.mubr.f32.gmra.mrb[0].mxu0 %v1752
        %v1939 = vpop.f32.mrb[0].mxu0
        %v1940 = vadd.f32 %v1619, %v1939
        %v1941 = vpop.f32.mrb[0].mxu0
        %1942 = vmatprep.mubr.f32.mxu0 0.0
        %1943 = vmatmul.mubr.f32.gmra.mrb[0].mxu0 %v1755
        %v1944 = vpop.f32.mrb[0].mxu0
        %v1945 = vadd.f32 %v1624, %v1944
        %v1946 = vpop.f32.mrb[0].mxu0
        %1947 = vmatprep.mubr.f32.mxu0 0.0
        %1948 = vmatmul.mubr.f32.gmra.mrb[0].mxu0 %v1758
        %v1949 = vpop.f32.mrb[0].mxu0
        %v1950 = vadd.f32 %v1629, %v1949
        %v1951 = vpop.f32.mrb[0].mxu0
        %1952 = vmatprep.mubr.f32.mxu0 0.0
        %1953 = vmatmul.mubr.f32.gmra.mrb[0].mxu0 %v1761
        %v1954 = vpop.f32.mrb[0].mxu0
        %v1955 = vadd.f32 %v1634, %v1954
        %v1956 = vpop.f32.mrb[0].mxu0
        %1957 = vmatprep.mubr.f32.mxu0 0.0
        %1958 = vmatmul.mubr.f32.gmra.mrb[0].mxu0 %v1764
        %v1959 = vpop.f32.mrb[0].mxu0
        %v1960 = vadd.f32 %v1639, %v1959
        %v1961 = vpop.f32.mrb[0].mxu0
        %1962 = vmatprep.mubr.f32.mxu0 0.0
        %1963 = vmatmul.mubr.f32.gmra.mrb[0].mxu0 %v1767
        %v1964 = vpop.f32.mrb[0].mxu0
        %v1965 = vadd.f32 %v1644, %v1964
        %v1966 = vpop.f32.mrb[0].mxu0
        %1967 = vmatprep.mubr.f32.mxu0 0.0
        %1968 = vmatmul.mubr.f32.gmra.mrb[0].mxu0 %v1770
        %v1969 = vpop.f32.mrb[0].mxu0
        %v1970 = vadd.f32 %v1649, %v1969
        %v1971 = vpop.f32.mrb[0].mxu0
        %1972 = vmatprep.mubr.f32.mxu0 0.0
        %1973 = vmatmul.mubr.f32.gmra.mrb[0].mxu0 %v1773
        %v1974 = vpop.f32.mrb[0].mxu0
        %v1975 = vadd.f32 %v1654, %v1974
        %v1976 = vpop.f32.mrb[0].mxu0
        %1977 = vmatprep.mubr.f32.mxu0 0.0
        %1978 = vmatmul.mubr.f32.gmra.mrb[0].mxu0 %v1776
        %v1979 = vpop.f32.mrb[0].mxu0
        %v1980 = vadd.f32 %v1659, %v1979
        %v1981 = vpop.f32.mrb[0].mxu0
        %1982 = vmatprep.mubr.f32.mxu0 0.0
        %1983 = vmatmul.mubr.f32.gmra.mrb[0].mxu0 %v1779
        %v1984 = vpop.f32.mrb[0].mxu0
        %v1985 = vadd.f32 %v1664, %v1984
        %v1986 = vpop.f32.mrb[0].mxu0
        %1987 = vmatprep.mubr.f32.mxu0 0.0
        %1988 = vmatmul.mubr.f32.gmra.mrb[0].mxu0 %v1782
        %v1989 = vpop.f32.mrb[0].mxu0
        %v1990 = vadd.f32 %v1669, %v1989
        %v1991 = vpop.f32.mrb[0].mxu0
        %1992 = vmatprep.mubr.f32.mxu0 0.0
        %1993 = vmatmul.mubr.f32.gmra.mrb[0].mxu0 %v1785
        %v1994 = vpop.f32.mrb[0].mxu0
        %v1995 = vadd.f32 %v1674, %v1994
        %v1996 = vpop.f32.mrb[0].mxu0
        %1997 = vmatprep.mubr.f32.mxu0 0.0
        %1998 = vmatmul.mubr.f32.gmra.mrb[0].mxu0 %v1788
        %v1999 = vpop.f32.mrb[0].mxu0
        %v2000 = vadd.f32 %v1679, %v1999
        %v2001 = vpop.f32.mrb[0].mxu0
        %2002 = vmatprep.mubr.f32.mxu0 0.0
        %2003 = vmatmul.mubr.f32.gmra.mrb[0].mxu0 %v1791
        %v2004 = vpop.f32.mrb[0].mxu0
        %v2005 = vadd.f32 %v1684, %v2004
        %v2006 = vpop.f32.mrb[0].mxu0
        %2007 = vmatprep.mubr.f32.mxu0 0.0
        %2008 = vmatmul.mubr.f32.gmra.mrb[0].mxu0 %v1794
        %v2009 = vpop.f32.mrb[0].mxu0
        %v2010 = vadd.f32 %v1689, %v2009
        %v2011 = vpop.f32.mrb[0].mxu0
        %2012 = vmatprep.mubr.f32.mxu0 0.0
        %2013 = vmatmul.mubr.f32.gmra.mrb[0].mxu0 %v1797
        %v2014 = vpop.f32.mrb[0].mxu0
        %v2015 = vadd.f32 %v1694, %v2014
        %v2016 = vpop.f32.mrb[0].mxu0
        %2017 = vmatprep.mubr.f32.mxu0 0.0
        %2018 = vmatmul.mubr.f32.gmra.mrb[0].mxu0 %v1800
        %v2019 = vpop.f32.mrb[0].mxu0
        %v2020 = vadd.f32 %v1699, %v2019
        %v2021 = vpop.f32.mrb[0].mxu0
        %2022 = vmatprep.mubr.f32.mxu0 0.0
        %2023 = vmatmul.mubr.f32.gmra.mrb[0].mxu0 %v1803
        %v2024 = vpop.f32.mrb[0].mxu0
        %v2025 = vadd.f32 %v1704, %v2024
        %v2026 = vpop.f32.mrb[0].mxu0
        %2027 = vmatprep.mubr.f32.mxu0 0.0
        %2028 = vmatmul.mubr.f32.gmra.mrb[0].mxu0 %v1806
        %v2029 = vpop.f32.mrb[0].mxu0
        %v2030 = vadd.f32 %v1709, %v2029
        %v2031 = vpop.f32.mrb[0].mxu0
        %2032 = vdwg.mxu0
        %v2033 = vld [vmem:[#allocation2 + $0x9] sm:$0xff]
        %v2034 = vld [vmem:[#allocation2 + $0x11] sm:$0xff]
        %v2035 = vld [vmem:[#allocation2 + $0x29] sm:$0xff]
        %v2036 = vld [vmem:[#allocation2 + $0x31] sm:$0xff]
        %v2037 = vld [vmem:[#allocation2 + $0x49] sm:$0xff]
        %v2038 = vld [vmem:[#allocation2 + $0x51] sm:$0xff]
        %v2039 = vld [vmem:[#allocation2 + $0x69] sm:$0xff]
        %v2040 = vld [vmem:[#allocation2 + $0x71] sm:$0xff]
        %v2041 = vld [vmem:[#allocation2 + $0x89] sm:$0xff]
        %v2042 = vld [vmem:[#allocation2 + $0x91] sm:$0xff]
        %v2043 = vld [vmem:[#allocation2 + $0xa9] sm:$0xff]
        %v2044 = vld [vmem:[#allocation2 + $0xb1] sm:$0xff]
        %v2045 = vld [vmem:[#allocation2 + $0xc9] sm:$0xff]
        %v2046 = vld [vmem:[#allocation2 + $0xd1] sm:$0xff]
        %v2047 = vld [vmem:[#allocation2 + $0xe9] sm:$0xff]
        %v2048 = vld [vmem:[#allocation2 + $0xf1] sm:$0xff]
        %v2049 = vld [vmem:[#allocation2 + $0x109] sm:$0xff]
        %v2050 = vld [vmem:[#allocation2 + $0x111] sm:$0xff]
        %v2051 = vld [vmem:[#allocation2 + $0x129] sm:$0xff]
        %v2052 = vld [vmem:[#allocation2 + $0x131] sm:$0xff]
        %v2053 = vld [vmem:[#allocation2 + $0x149] sm:$0xff]
        %v2054 = vld [vmem:[#allocation2 + $0x151] sm:$0xff]
        %v2055 = vld [vmem:[#allocation2 + $0x169] sm:$0xff]
        %v2056 = vld [vmem:[#allocation2 + $0x171] sm:$0xff]
        %v2057 = vld [vmem:[#allocation2 + $0x189] sm:$0xff]
        %v2058 = vld [vmem:[#allocation2 + $0x191] sm:$0xff]
        %v2059 = vld [vmem:[#allocation2 + $0x1a9] sm:$0xff]
        %v2060 = vld [vmem:[#allocation2 + $0x1b1] sm:$0xff]
        %v2061 = vld [vmem:[#allocation2 + $0x1c9] sm:$0xff]
        %v2062 = vld [vmem:[#allocation2 + $0x1d1] sm:$0xff]
        %v2063 = vld [vmem:[#allocation2 + $0x1e9] sm:$0xff]
        %v2064 = vld [vmem:[#allocation2 + $0x1f1] sm:$0xff]
        %s2065 = scalar_lea.vmem %s5, 64
        %v2066 = vld [vmem:[%s2065] sm:$0xff]
        %v2067 = vld [vmem:[%s2065 + $0x8] sm:$0xff]
        %v2068 = vld [vmem:[%s2065 + $0x10] sm:$0xff]
        %v2069 = vld [vmem:[%s2065 + $0x18] sm:$0xff]
        %v2071 = vsel %vm531, %v2033, 0
        %v2074 = vsel %vm531, %v2034, 0
        %v2077 = vsel %vm531, %v2035, 0
        %v2080 = vsel %vm531, %v2036, 0
        %v2083 = vsel %vm531, %v2037, 0
        %v2086 = vsel %vm531, %v2038, 0
        %v2089 = vsel %vm531, %v2039, 0
        %v2092 = vsel %vm531, %v2040, 0
        %v2095 = vsel %vm531, %v2041, 0
        %v2098 = vsel %vm531, %v2042, 0
        %v2101 = vsel %vm531, %v2043, 0
        %v2104 = vsel %vm531, %v2044, 0
        %v2107 = vsel %vm531, %v2045, 0
        %v2110 = vsel %vm531, %v2046, 0
        %v2113 = vsel %vm531, %v2047, 0
        %v2116 = vsel %vm531, %v2048, 0
        %v2119 = vsel %vm531, %v2049, 0
        %v2122 = vsel %vm531, %v2050, 0
        %v2125 = vsel %vm531, %v2051, 0
        %v2128 = vsel %vm531, %v2052, 0
        %v2131 = vsel %vm531, %v2053, 0
        %v2134 = vsel %vm531, %v2054, 0
        %v2137 = vsel %vm531, %v2055, 0
        %v2140 = vsel %vm531, %v2056, 0
        %v2143 = vsel %vm531, %v2057, 0
        %v2146 = vsel %vm531, %v2058, 0
        %v2149 = vsel %vm531, %v2059, 0
        %v2152 = vsel %vm531, %v2060, 0
        %v2155 = vsel %vm531, %v2061, 0
        %v2158 = vsel %vm531, %v2062, 0
        %v2161 = vsel %vm531, %v2063, 0
        %v2164 = vsel %vm531, %v2064, 0
        %2166 = vmatprep.subr.mxu0 0.0
        %2167 = vmatpush1.msra.mxu0 %v2066
        %2168 = vmatprep.subr.mxu0 0.0
        %2169 = vmatpush1.msra.mxu0 %v2067
        %2170 = vmatprep.subr.mxu0 0.0
        %2171 = vmatpush1.msra.mxu0 %v2068
        %2172 = vmatprep.subr.mxu0 0.0
        %2173 = vmatpush1.msra.mxu0 %v2069
        %2174 = vmatprep.subr.mxu0 0.0
        %2175 = vmatpush1.msra.mxu0 0.0
        %2176 = vmatprep.subr.mxu0 0.0
        %2177 = vmatpush1.msra.mxu0 0.0
        %2178 = vmatprep.subr.mxu0 0.0
        %2179 = vmatpush1.msra.mxu0 0.0
        %2180 = vmatprep.subr.mxu0 0.0
        %2181 = vmatpush1.msra.mxu0 0.0
        %2182 = vmatprep.subr.mxu0 0.0
        %2183 = vmatpush1.msra.mxu0 0.0
        %2184 = vmatprep.subr.mxu0 0.0
        %2185 = vmatpush1.msra.mxu0 0.0
        %2186 = vmatprep.subr.mxu0 0.0
        %2187 = vmatpush1.msra.mxu0 0.0
        %2188 = vmatprep.subr.mxu0 0.0
        %2189 = vmatpush1.msra.mxu0 0.0
        %2190 = vmatprep.subr.mxu0 0.0
        %2191 = vmatpush1.msra.mxu0 0.0
        %2192 = vmatprep.subr.mxu0 0.0
        %2193 = vmatpush1.msra.mxu0 0.0
        %2194 = vmatprep.subr.mxu0 0.0
        %2195 = vmatpush1.msra.mxu0 0.0
        %2196 = vmatprep.subr.mxu0 0.0
        %2197 = vmatpush1.msra.mxu0 0.0
        %2198 = vmatprep.subr.mxu0 0.0
        %2199 = vmatpush1.msra.mxu0 0.0
        %2200 = vmatprep.subr.mxu0 0.0
        %2201 = vmatpush1.msra.mxu0 0.0
        %2202 = vmatprep.subr.mxu0 0.0
        %2203 = vmatpush1.msra.mxu0 0.0
        %2204 = vmatprep.subr.mxu0 0.0
        %2205 = vmatpush1.msra.mxu0 0.0
        %2206 = vmatprep.subr.mxu0 0.0
        %2207 = vmatpush1.msra.mxu0 0.0
        %2208 = vmatprep.subr.mxu0 0.0
        %2209 = vmatpush1.msra.mxu0 0.0
        %2210 = vmatprep.subr.mxu0 0.0
        %2211 = vmatpush1.msra.mxu0 0.0
        %2212 = vmatprep.subr.mxu0 0.0
        %2213 = vmatpush1.msra.mxu0 0.0
        %2214 = vmatprep.subr.mxu0 0.0
        %2215 = vmatpush1.msra.mxu0 0.0
        %2216 = vmatprep.subr.mxu0 0.0
        %2217 = vmatpush1.msra.mxu0 0.0
        %2218 = vmatprep.subr.mxu0 0.0
        %2219 = vmatpush1.msra.mxu0 0.0
        %2220 = vmatprep.subr.mxu0 0.0
        %2221 = vmatpush1.msra.mxu0 0.0
        %2222 = vmatprep.subr.mxu0 0.0
        %2223 = vmatpush1.msra.mxu0 0.0
        %2224 = vmatprep.subr.mxu0 0.0
        %2225 = vmatpush1.msra.mxu0 0.0
        %2226 = vmatprep.subr.mxu0 0.0
        %2227 = vmatpush1.msra.mxu0 0.0
        %2228 = vmatprep.subr.mxu0 0.0
        %2229 = vmatpush1.msra.mxu0 0.0
        %2230 = vmatprep.mubr.f32.mxu0 0.0
        %2231 = vmatmul.mubr.f32.gmra.mrb[0].mxu0 %v2071
        %v2232 = vpop.f32.mrb[0].mxu0
        %v2233 = vadd.f32 0.0, %v2232
        %v2234 = vpop.f32.mrb[0].mxu0
        %2235 = vmatprep.mubr.f32.mxu0 0.0
        %2236 = vmatmul.mubr.f32.gmra.mrb[0].mxu0 %v2074
        %v2237 = vpop.f32.mrb[0].mxu0
        %v2238 = vadd.f32 0.0, %v2237
        %v2239 = vpop.f32.mrb[0].mxu0
        %2240 = vmatprep.mubr.f32.mxu0 0.0
        %2241 = vmatmul.mubr.f32.gmra.mrb[0].mxu0 %v2077
        %v2242 = vpop.f32.mrb[0].mxu0
        %v2243 = vadd.f32 0.0, %v2242
        %v2244 = vpop.f32.mrb[0].mxu0
        %2245 = vmatprep.mubr.f32.mxu0 0.0
        %2246 = vmatmul.mubr.f32.gmra.mrb[0].mxu0 %v2080
        %v2247 = vpop.f32.mrb[0].mxu0
        %v2248 = vadd.f32 0.0, %v2247
        %v2249 = vpop.f32.mrb[0].mxu0
        %2250 = vmatprep.mubr.f32.mxu0 0.0
        %2251 = vmatmul.mubr.f32.gmra.mrb[0].mxu0 %v2083
        %v2252 = vpop.f32.mrb[0].mxu0
        %v2253 = vadd.f32 0.0, %v2252
        %v2254 = vpop.f32.mrb[0].mxu0
        %2255 = vmatprep.mubr.f32.mxu0 0.0
        %2256 = vmatmul.mubr.f32.gmra.mrb[0].mxu0 %v2086
        %v2257 = vpop.f32.mrb[0].mxu0
        %v2258 = vadd.f32 0.0, %v2257
        %v2259 = vpop.f32.mrb[0].mxu0
        %2260 = vmatprep.mubr.f32.mxu0 0.0
        %2261 = vmatmul.mubr.f32.gmra.mrb[0].mxu0 %v2089
        %v2262 = vpop.f32.mrb[0].mxu0
        %v2263 = vadd.f32 0.0, %v2262
        %v2264 = vpop.f32.mrb[0].mxu0
        %2265 = vmatprep.mubr.f32.mxu0 0.0
        %2266 = vmatmul.mubr.f32.gmra.mrb[0].mxu0 %v2092
        %v2267 = vpop.f32.mrb[0].mxu0
        %v2268 = vadd.f32 0.0, %v2267
        %v2269 = vpop.f32.mrb[0].mxu0
        %2270 = vmatprep.mubr.f32.mxu0 0.0
        %2271 = vmatmul.mubr.f32.gmra.mrb[0].mxu0 %v2095
        %v2272 = vpop.f32.mrb[0].mxu0
        %v2273 = vadd.f32 0.0, %v2272
        %v2274 = vpop.f32.mrb[0].mxu0
        %2275 = vmatprep.mubr.f32.mxu0 0.0
        %2276 = vmatmul.mubr.f32.gmra.mrb[0].mxu0 %v2098
        %v2277 = vpop.f32.mrb[0].mxu0
        %v2278 = vadd.f32 0.0, %v2277
        %v2279 = vpop.f32.mrb[0].mxu0
        %2280 = vmatprep.mubr.f32.mxu0 0.0
        %2281 = vmatmul.mubr.f32.gmra.mrb[0].mxu0 %v2101
        %v2282 = vpop.f32.mrb[0].mxu0
        %v2283 = vadd.f32 0.0, %v2282
        %v2284 = vpop.f32.mrb[0].mxu0
        %2285 = vmatprep.mubr.f32.mxu0 0.0
        %2286 = vmatmul.mubr.f32.gmra.mrb[0].mxu0 %v2104
        %v2287 = vpop.f32.mrb[0].mxu0
        %v2288 = vadd.f32 0.0, %v2287
        %v2289 = vpop.f32.mrb[0].mxu0
        %2290 = vmatprep.mubr.f32.mxu0 0.0
        %2291 = vmatmul.mubr.f32.gmra.mrb[0].mxu0 %v2107
        %v2292 = vpop.f32.mrb[0].mxu0
        %v2293 = vadd.f32 0.0, %v2292
        %v2294 = vpop.f32.mrb[0].mxu0
        %2295 = vmatprep.mubr.f32.mxu0 0.0
        %2296 = vmatmul.mubr.f32.gmra.mrb[0].mxu0 %v2110
        %v2297 = vpop.f32.mrb[0].mxu0
        %v2298 = vadd.f32 0.0, %v2297
        %v2299 = vpop.f32.mrb[0].mxu0
        %2300 = vmatprep.mubr.f32.mxu0 0.0
        %2301 = vmatmul.mubr.f32.gmra.mrb[0].mxu0 %v2113
        %v2302 = vpop.f32.mrb[0].mxu0
        %v2303 = vadd.f32 0.0, %v2302
        %v2304 = vpop.f32.mrb[0].mxu0
        %2305 = vmatprep.mubr.f32.mxu0 0.0
        %2306 = vmatmul.mubr.f32.gmra.mrb[0].mxu0 %v2116
        %v2307 = vpop.f32.mrb[0].mxu0
        %v2308 = vadd.f32 0.0, %v2307
        %v2309 = vpop.f32.mrb[0].mxu0
        %2310 = vmatprep.mubr.f32.mxu0 0.0
        %2311 = vmatmul.mubr.f32.gmra.mrb[0].mxu0 %v2119
        %v2312 = vpop.f32.mrb[0].mxu0
        %v2313 = vadd.f32 0.0, %v2312
        %v2314 = vpop.f32.mrb[0].mxu0
        %2315 = vmatprep.mubr.f32.mxu0 0.0
        %2316 = vmatmul.mubr.f32.gmra.mrb[0].mxu0 %v2122
        %v2317 = vpop.f32.mrb[0].mxu0
        %v2318 = vadd.f32 0.0, %v2317
        %v2319 = vpop.f32.mrb[0].mxu0
        %2320 = vmatprep.mubr.f32.mxu0 0.0
        %2321 = vmatmul.mubr.f32.gmra.mrb[0].mxu0 %v2125
        %v2322 = vpop.f32.mrb[0].mxu0
        %v2323 = vadd.f32 0.0, %v2322
        %v2324 = vpop.f32.mrb[0].mxu0
        %2325 = vmatprep.mubr.f32.mxu0 0.0
        %2326 = vmatmul.mubr.f32.gmra.mrb[0].mxu0 %v2128
        %v2327 = vpop.f32.mrb[0].mxu0
        %v2328 = vadd.f32 0.0, %v2327
        %v2329 = vpop.f32.mrb[0].mxu0
        %2330 = vmatprep.mubr.f32.mxu0 0.0
        %2331 = vmatmul.mubr.f32.gmra.mrb[0].mxu0 %v2131
        %v2332 = vpop.f32.mrb[0].mxu0
        %v2333 = vadd.f32 0.0, %v2332
        %v2334 = vpop.f32.mrb[0].mxu0
        %2335 = vmatprep.mubr.f32.mxu0 0.0
        %2336 = vmatmul.mubr.f32.gmra.mrb[0].mxu0 %v2134
        %v2337 = vpop.f32.mrb[0].mxu0
        %v2338 = vadd.f32 0.0, %v2337
        %v2339 = vpop.f32.mrb[0].mxu0
        %2340 = vmatprep.mubr.f32.mxu0 0.0
        %2341 = vmatmul.mubr.f32.gmra.mrb[0].mxu0 %v2137
        %v2342 = vpop.f32.mrb[0].mxu0
        %v2343 = vadd.f32 0.0, %v2342
        %v2344 = vpop.f32.mrb[0].mxu0
        %2345 = vmatprep.mubr.f32.mxu0 0.0
        %2346 = vmatmul.mubr.f32.gmra.mrb[0].mxu0 %v2140
        %v2347 = vpop.f32.mrb[0].mxu0
        %v2348 = vadd.f32 0.0, %v2347
        %v2349 = vpop.f32.mrb[0].mxu0
        %2350 = vmatprep.mubr.f32.mxu0 0.0
        %2351 = vmatmul.mubr.f32.gmra.mrb[0].mxu0 %v2143
        %v2352 = vpop.f32.mrb[0].mxu0
        %v2353 = vadd.f32 0.0, %v2352
        %v2354 = vpop.f32.mrb[0].mxu0
        %2355 = vmatprep.mubr.f32.mxu0 0.0
        %2356 = vmatmul.mubr.f32.gmra.mrb[0].mxu0 %v2146
        %v2357 = vpop.f32.mrb[0].mxu0
        %v2358 = vadd.f32 0.0, %v2357
        %v2359 = vpop.f32.mrb[0].mxu0
        %2360 = vmatprep.mubr.f32.mxu0 0.0
        %2361 = vmatmul.mubr.f32.gmra.mrb[0].mxu0 %v2149
        %v2362 = vpop.f32.mrb[0].mxu0
        %v2363 = vadd.f32 0.0, %v2362
        %v2364 = vpop.f32.mrb[0].mxu0
        %2365 = vmatprep.mubr.f32.mxu0 0.0
        %2366 = vmatmul.mubr.f32.gmra.mrb[0].mxu0 %v2152
        %v2367 = vpop.f32.mrb[0].mxu0
        %v2368 = vadd.f32 0.0, %v2367
        %v2369 = vpop.f32.mrb[0].mxu0
        %2370 = vmatprep.mubr.f32.mxu0 0.0
        %2371 = vmatmul.mubr.f32.gmra.mrb[0].mxu0 %v2155
        %v2372 = vpop.f32.mrb[0].mxu0
        %v2373 = vadd.f32 0.0, %v2372
        %v2374 = vpop.f32.mrb[0].mxu0
        %2375 = vmatprep.mubr.f32.mxu0 0.0
        %2376 = vmatmul.mubr.f32.gmra.mrb[0].mxu0 %v2158
        %v2377 = vpop.f32.mrb[0].mxu0
        %v2378 = vadd.f32 0.0, %v2377
        %v2379 = vpop.f32.mrb[0].mxu0
        %2380 = vmatprep.mubr.f32.mxu0 0.0
        %2381 = vmatmul.mubr.f32.gmra.mrb[0].mxu0 %v2161
        %v2382 = vpop.f32.mrb[0].mxu0
        %v2383 = vadd.f32 0.0, %v2382
        %v2384 = vpop.f32.mrb[0].mxu0
        %2385 = vmatprep.mubr.f32.mxu0 0.0
        %2386 = vmatmul.mubr.f32.gmra.mrb[0].mxu0 %v2164
        %v2387 = vpop.f32.mrb[0].mxu0
        %v2388 = vadd.f32 0.0, %v2387
        %v2389 = vpop.f32.mrb[0].mxu0
        %2390 = vdwg.mxu0
        %v2391 = vadd.f32 %v1875, %v2233
        %v2392 = vadd.f32 %v1880, %v2238
        %v2393 = vadd.f32 %v1885, %v2243
        %v2394 = vadd.f32 %v1890, %v2248
        %v2395 = vadd.f32 %v1895, %v2253
        %v2396 = vadd.f32 %v1900, %v2258
        %v2397 = vadd.f32 %v1905, %v2263
        %v2398 = vadd.f32 %v1910, %v2268
        %v2399 = vadd.f32 %v1915, %v2273
        %v2400 = vadd.f32 %v1920, %v2278
        %v2401 = vadd.f32 %v1925, %v2283
        %v2402 = vadd.f32 %v1930, %v2288
        %v2403 = vadd.f32 %v1935, %v2293
        %v2404 = vadd.f32 %v1940, %v2298
        %v2405 = vadd.f32 %v1945, %v2303
        %v2406 = vadd.f32 %v1950, %v2308
        %v2407 = vadd.f32 %v1955, %v2313
        %v2408 = vadd.f32 %v1960, %v2318
        %v2409 = vadd.f32 %v1965, %v2323
        %v2410 = vadd.f32 %v1970, %v2328
        %v2411 = vadd.f32 %v1975, %v2333
        %v2412 = vadd.f32 %v1980, %v2338
        %v2413 = vadd.f32 %v1985, %v2343
        %v2414 = vadd.f32 %v1990, %v2348
        %v2415 = vadd.f32 %v1995, %v2353
        %v2416 = vadd.f32 %v2000, %v2358
        %v2417 = vadd.f32 %v2005, %v2363
        %v2418 = vadd.f32 %v2010, %v2368
        %v2419 = vadd.f32 %v2015, %v2373
        %v2420 = vadd.f32 %v2020, %v2378
        %v2421 = vadd.f32 %v2025, %v2383
        %v2422 = vadd.f32 %v2030, %v2388
        %v2423 = vld [vmem:[%s1285 + $0x7] sm:$0xff]
        %v2424 = vld [vmem:[%s1285 + $0xf] sm:$0xff]
        %v2425 = vld [vmem:[%s1285 + $0x27] sm:$0xff]
        %v2426 = vld [vmem:[%s1285 + $0x2f] sm:$0xff]
        %v2427 = vld [vmem:[%s1285 + $0x47] sm:$0xff]
        %v2428 = vld [vmem:[%s1285 + $0x4f] sm:$0xff]
        %v2429 = vld [vmem:[%s1285 + $0x67] sm:$0xff]
        %v2430 = vld [vmem:[%s1285 + $0x6f] sm:$0xff]
        %v2431 = vld [vmem:[%s1285 + $0x87] sm:$0xff]
        %v2432 = vld [vmem:[%s1285 + $0x8f] sm:$0xff]
        %v2433 = vld [vmem:[%s1285 + $0xa7] sm:$0xff]
        %v2434 = vld [vmem:[%s1285 + $0xaf] sm:$0xff]
        %v2435 = vld [vmem:[%s1285 + $0xc7] sm:$0xff]
        %v2436 = vld [vmem:[%s1285 + $0xcf] sm:$0xff]
        %v2437 = vld [vmem:[%s1285 + $0xe7] sm:$0xff]
        %v2438 = vld [vmem:[%s1285 + $0xef] sm:$0xff]
        %v2439 = vld [vmem:[%s1285 + $0x107] sm:$0xff]
        %v2440 = vld [vmem:[%s1285 + $0x10f] sm:$0xff]
        %v2441 = vld [vmem:[%s1285 + $0x127] sm:$0xff]
        %v2442 = vld [vmem:[%s1285 + $0x12f] sm:$0xff]
        %v2443 = vld [vmem:[%s1285 + $0x147] sm:$0xff]
        %v2444 = vld [vmem:[%s1285 + $0x14f] sm:$0xff]
        %v2445 = vld [vmem:[%s1285 + $0x167] sm:$0xff]
        %v2446 = vld [vmem:[%s1285 + $0x16f] sm:$0xff]
        %v2447 = vld [vmem:[%s1285 + $0x187] sm:$0xff]
        %v2448 = vld [vmem:[%s1285 + $0x18f] sm:$0xff]
        %v2449 = vld [vmem:[%s1285 + $0x1a7] sm:$0xff]
        %v2450 = vld [vmem:[%s1285 + $0x1af] sm:$0xff]
        %v2451 = vld [vmem:[%s1285 + $0x1c7] sm:$0xff]
        %v2452 = vld [vmem:[%s1285 + $0x1cf] sm:$0xff]
        %v2453 = vld [vmem:[%s1285 + $0x1e7] sm:$0xff]
        %v2454 = vld [vmem:[%s1285 + $0x1ef] sm:$0xff]
        %s2455 = scalar_lea.vmem %s5, 96
        %v2456 = vld [vmem:[%s2455] sm:$0xff]
        %v2457 = vld [vmem:[%s2455 + $0x8] sm:$0xff]
        %v2458 = vld [vmem:[%s2455 + $0x10] sm:$0xff]
        %v2459 = vld [vmem:[%s2455 + $0x18] sm:$0xff]
        %v2461 = vsel %vm531, %v2423, 0
        %v2464 = vsel %vm531, %v2424, 0
        %v2467 = vsel %vm531, %v2425, 0
        %v2470 = vsel %vm531, %v2426, 0
        %v2473 = vsel %vm531, %v2427, 0
        %v2476 = vsel %vm531, %v2428, 0
        %v2479 = vsel %vm531, %v2429, 0
        %v2482 = vsel %vm531, %v2430, 0
        %v2485 = vsel %vm531, %v2431, 0
        %v2488 = vsel %vm531, %v2432, 0
        %v2491 = vsel %vm531, %v2433, 0
        %v2494 = vsel %vm531, %v2434, 0
        %v2497 = vsel %vm531, %v2435, 0
        %v2500 = vsel %vm531, %v2436, 0
        %v2503 = vsel %vm531, %v2437, 0
        %v2506 = vsel %vm531, %v2438, 0
        %v2509 = vsel %vm531, %v2439, 0
        %v2512 = vsel %vm531, %v2440, 0
        %v2515 = vsel %vm531, %v2441, 0
        %v2518 = vsel %vm531, %v2442, 0
        %v2521 = vsel %vm531, %v2443, 0
        %v2524 = vsel %vm531, %v2444, 0
        %v2527 = vsel %vm531, %v2445, 0
        %v2530 = vsel %vm531, %v2446, 0
        %v2533 = vsel %vm531, %v2447, 0
        %v2536 = vsel %vm531, %v2448, 0
        %v2539 = vsel %vm531, %v2449, 0
        %v2542 = vsel %vm531, %v2450, 0
        %v2545 = vsel %vm531, %v2451, 0
        %v2548 = vsel %vm531, %v2452, 0
        %v2551 = vsel %vm531, %v2453, 0
        %v2554 = vsel %vm531, %v2454, 0
        %2556 = vmatprep.subr.mxu0 0.0
        %2557 = vmatpush1.msra.mxu0 %v2456
        %2558 = vmatprep.subr.mxu0 0.0
        %2559 = vmatpush1.msra.mxu0 %v2457
        %2560 = vmatprep.subr.mxu0 0.0
        %2561 = vmatpush1.msra.mxu0 %v2458
        %2562 = vmatprep.subr.mxu0 0.0
        %2563 = vmatpush1.msra.mxu0 %v2459
        %2564 = vmatprep.subr.mxu0 0.0
        %2565 = vmatpush1.msra.mxu0 0.0
        %2566 = vmatprep.subr.mxu0 0.0
        %2567 = vmatpush1.msra.mxu0 0.0
        %2568 = vmatprep.subr.mxu0 0.0
        %2569 = vmatpush1.msra.mxu0 0.0
        %2570 = vmatprep.subr.mxu0 0.0
        %2571 = vmatpush1.msra.mxu0 0.0
        %2572 = vmatprep.subr.mxu0 0.0
        %2573 = vmatpush1.msra.mxu0 0.0
        %2574 = vmatprep.subr.mxu0 0.0
        %2575 = vmatpush1.msra.mxu0 0.0
        %2576 = vmatprep.subr.mxu0 0.0
        %2577 = vmatpush1.msra.mxu0 0.0
        %2578 = vmatprep.subr.mxu0 0.0
        %2579 = vmatpush1.msra.mxu0 0.0
        %2580 = vmatprep.subr.mxu0 0.0
        %2581 = vmatpush1.msra.mxu0 0.0
        %2582 = vmatprep.subr.mxu0 0.0
        %2583 = vmatpush1.msra.mxu0 0.0
        %2584 = vmatprep.subr.mxu0 0.0
        %2585 = vmatpush1.msra.mxu0 0.0
        %2586 = vmatprep.subr.mxu0 0.0
        %2587 = vmatpush1.msra.mxu0 0.0
        %2588 = vmatprep.subr.mxu0 0.0
        %2589 = vmatpush1.msra.mxu0 0.0
        %2590 = vmatprep.subr.mxu0 0.0
        %2591 = vmatpush1.msra.mxu0 0.0
        %2592 = vmatprep.subr.mxu0 0.0
        %2593 = vmatpush1.msra.mxu0 0.0
        %2594 = vmatprep.subr.mxu0 0.0
        %2595 = vmatpush1.msra.mxu0 0.0
        %2596 = vmatprep.subr.mxu0 0.0
        %2597 = vmatpush1.msra.mxu0 0.0
        %2598 = vmatprep.subr.mxu0 0.0
        %2599 = vmatpush1.msra.mxu0 0.0
        %2600 = vmatprep.subr.mxu0 0.0
        %2601 = vmatpush1.msra.mxu0 0.0
        %2602 = vmatprep.subr.mxu0 0.0
        %2603 = vmatpush1.msra.mxu0 0.0
        %2604 = vmatprep.subr.mxu0 0.0
        %2605 = vmatpush1.msra.mxu0 0.0
        %2606 = vmatprep.subr.mxu0 0.0
        %2607 = vmatpush1.msra.mxu0 0.0
        %2608 = vmatprep.subr.mxu0 0.0
        %2609 = vmatpush1.msra.mxu0 0.0
        %2610 = vmatprep.subr.mxu0 0.0
        %2611 = vmatpush1.msra.mxu0 0.0
        %2612 = vmatprep.subr.mxu0 0.0
        %2613 = vmatpush1.msra.mxu0 0.0
        %2614 = vmatprep.subr.mxu0 0.0
        %2615 = vmatpush1.msra.mxu0 0.0
        %2616 = vmatprep.subr.mxu0 0.0
        %2617 = vmatpush1.msra.mxu0 0.0
        %2618 = vmatprep.subr.mxu0 0.0
        %2619 = vmatpush1.msra.mxu0 0.0
        %2620 = vmatprep.mubr.f32.mxu0 0.0
        %2621 = vmatmul.mubr.f32.gmra.mrb[0].mxu0 %v2461
        %v2622 = vpop.f32.mrb[0].mxu0
        %v2623 = vadd.f32 0.0, %v2622
        %v2624 = vpop.f32.mrb[0].mxu0
        %2625 = vmatprep.mubr.f32.mxu0 0.0
        %2626 = vmatmul.mubr.f32.gmra.mrb[0].mxu0 %v2464
        %v2627 = vpop.f32.mrb[0].mxu0
        %v2628 = vadd.f32 0.0, %v2627
        %v2629 = vpop.f32.mrb[0].mxu0
        %2630 = vmatprep.mubr.f32.mxu0 0.0
        %2631 = vmatmul.mubr.f32.gmra.mrb[0].mxu0 %v2467
        %v2632 = vpop.f32.mrb[0].mxu0
        %v2633 = vadd.f32 0.0, %v2632
        %v2634 = vpop.f32.mrb[0].mxu0
        %2635 = vmatprep.mubr.f32.mxu0 0.0
        %2636 = vmatmul.mubr.f32.gmra.mrb[0].mxu0 %v2470
        %v2637 = vpop.f32.mrb[0].mxu0
        %v2638 = vadd.f32 0.0, %v2637
        %v2639 = vpop.f32.mrb[0].mxu0
        %2640 = vmatprep.mubr.f32.mxu0 0.0
        %2641 = vmatmul.mubr.f32.gmra.mrb[0].mxu0 %v2473
        %v2642 = vpop.f32.mrb[0].mxu0
        %v2643 = vadd.f32 0.0, %v2642
        %v2644 = vpop.f32.mrb[0].mxu0
        %2645 = vmatprep.mubr.f32.mxu0 0.0
        %2646 = vmatmul.mubr.f32.gmra.mrb[0].mxu0 %v2476
        %v2647 = vpop.f32.mrb[0].mxu0
        %v2648 = vadd.f32 0.0, %v2647
        %v2649 = vpop.f32.mrb[0].mxu0
        %2650 = vmatprep.mubr.f32.mxu0 0.0
        %2651 = vmatmul.mubr.f32.gmra.mrb[0].mxu0 %v2479
        %v2652 = vpop.f32.mrb[0].mxu0
        %v2653 = vadd.f32 0.0, %v2652
        %v2654 = vpop.f32.mrb[0].mxu0
        %2655 = vmatprep.mubr.f32.mxu0 0.0
        %2656 = vmatmul.mubr.f32.gmra.mrb[0].mxu0 %v2482
        %v2657 = vpop.f32.mrb[0].mxu0
        %v2658 = vadd.f32 0.0, %v2657
        %v2659 = vpop.f32.mrb[0].mxu0
        %2660 = vmatprep.mubr.f32.mxu0 0.0
        %2661 = vmatmul.mubr.f32.gmra.mrb[0].mxu0 %v2485
        %v2662 = vpop.f32.mrb[0].mxu0
        %v2663 = vadd.f32 0.0, %v2662
        %v2664 = vpop.f32.mrb[0].mxu0
        %2665 = vmatprep.mubr.f32.mxu0 0.0
        %2666 = vmatmul.mubr.f32.gmra.mrb[0].mxu0 %v2488
        %v2667 = vpop.f32.mrb[0].mxu0
        %v2668 = vadd.f32 0.0, %v2667
        %v2669 = vpop.f32.mrb[0].mxu0
        %2670 = vmatprep.mubr.f32.mxu0 0.0
        %2671 = vmatmul.mubr.f32.gmra.mrb[0].mxu0 %v2491
        %v2672 = vpop.f32.mrb[0].mxu0
        %v2673 = vadd.f32 0.0, %v2672
        %v2674 = vpop.f32.mrb[0].mxu0
        %2675 = vmatprep.mubr.f32.mxu0 0.0
        %2676 = vmatmul.mubr.f32.gmra.mrb[0].mxu0 %v2494
        %v2677 = vpop.f32.mrb[0].mxu0
        %v2678 = vadd.f32 0.0, %v2677
        %v2679 = vpop.f32.mrb[0].mxu0
        %2680 = vmatprep.mubr.f32.mxu0 0.0
        %2681 = vmatmul.mubr.f32.gmra.mrb[0].mxu0 %v2497
        %v2682 = vpop.f32.mrb[0].mxu0
        %v2683 = vadd.f32 0.0, %v2682
        %v2684 = vpop.f32.mrb[0].mxu0
        %2685 = vmatprep.mubr.f32.mxu0 0.0
        %2686 = vmatmul.mubr.f32.gmra.mrb[0].mxu0 %v2500
        %v2687 = vpop.f32.mrb[0].mxu0
        %v2688 = vadd.f32 0.0, %v2687
        %v2689 = vpop.f32.mrb[0].mxu0
        %2690 = vmatprep.mubr.f32.mxu0 0.0
        %2691 = vmatmul.mubr.f32.gmra.mrb[0].mxu0 %v2503
        %v2692 = vpop.f32.mrb[0].mxu0
        %v2693 = vadd.f32 0.0, %v2692
        %v2694 = vpop.f32.mrb[0].mxu0
        %2695 = vmatprep.mubr.f32.mxu0 0.0
        %2696 = vmatmul.mubr.f32.gmra.mrb[0].mxu0 %v2506
        %v2697 = vpop.f32.mrb[0].mxu0
        %v2698 = vadd.f32 0.0, %v2697
        %v2699 = vpop.f32.mrb[0].mxu0
        %2700 = vmatprep.mubr.f32.mxu0 0.0
        %2701 = vmatmul.mubr.f32.gmra.mrb[0].mxu0 %v2509
        %v2702 = vpop.f32.mrb[0].mxu0
        %v2703 = vadd.f32 0.0, %v2702
        %v2704 = vpop.f32.mrb[0].mxu0
        %2705 = vmatprep.mubr.f32.mxu0 0.0
        %2706 = vmatmul.mubr.f32.gmra.mrb[0].mxu0 %v2512
        %v2707 = vpop.f32.mrb[0].mxu0
        %v2708 = vadd.f32 0.0, %v2707
        %v2709 = vpop.f32.mrb[0].mxu0
        %2710 = vmatprep.mubr.f32.mxu0 0.0
        %2711 = vmatmul.mubr.f32.gmra.mrb[0].mxu0 %v2515
        %v2712 = vpop.f32.mrb[0].mxu0
        %v2713 = vadd.f32 0.0, %v2712
        %v2714 = vpop.f32.mrb[0].mxu0
        %2715 = vmatprep.mubr.f32.mxu0 0.0
        %2716 = vmatmul.mubr.f32.gmra.mrb[0].mxu0 %v2518
        %v2717 = vpop.f32.mrb[0].mxu0
        %v2718 = vadd.f32 0.0, %v2717
        %v2719 = vpop.f32.mrb[0].mxu0
        %2720 = vmatprep.mubr.f32.mxu0 0.0
        %2721 = vmatmul.mubr.f32.gmra.mrb[0].mxu0 %v2521
        %v2722 = vpop.f32.mrb[0].mxu0
        %v2723 = vadd.f32 0.0, %v2722
        %v2724 = vpop.f32.mrb[0].mxu0
        %2725 = vmatprep.mubr.f32.mxu0 0.0
        %2726 = vmatmul.mubr.f32.gmra.mrb[0].mxu0 %v2524
        %v2727 = vpop.f32.mrb[0].mxu0
        %v2728 = vadd.f32 0.0, %v2727
        %v2729 = vpop.f32.mrb[0].mxu0
        %2730 = vmatprep.mubr.f32.mxu0 0.0
        %2731 = vmatmul.mubr.f32.gmra.mrb[0].mxu0 %v2527
        %v2732 = vpop.f32.mrb[0].mxu0
        %v2733 = vadd.f32 0.0, %v2732
        %v2734 = vpop.f32.mrb[0].mxu0
        %2735 = vmatprep.mubr.f32.mxu0 0.0
        %2736 = vmatmul.mubr.f32.gmra.mrb[0].mxu0 %v2530
        %v2737 = vpop.f32.mrb[0].mxu0
        %v2738 = vadd.f32 0.0, %v2737
        %v2739 = vpop.f32.mrb[0].mxu0
        %2740 = vmatprep.mubr.f32.mxu0 0.0
        %2741 = vmatmul.mubr.f32.gmra.mrb[0].mxu0 %v2533
        %v2742 = vpop.f32.mrb[0].mxu0
        %v2743 = vadd.f32 0.0, %v2742
        %v2744 = vpop.f32.mrb[0].mxu0
        %2745 = vmatprep.mubr.f32.mxu0 0.0
        %2746 = vmatmul.mubr.f32.gmra.mrb[0].mxu0 %v2536
        %v2747 = vpop.f32.mrb[0].mxu0
        %v2748 = vadd.f32 0.0, %v2747
        %v2749 = vpop.f32.mrb[0].mxu0
        %2750 = vmatprep.mubr.f32.mxu0 0.0
        %2751 = vmatmul.mubr.f32.gmra.mrb[0].mxu0 %v2539
        %v2752 = vpop.f32.mrb[0].mxu0
        %v2753 = vadd.f32 0.0, %v2752
        %v2754 = vpop.f32.mrb[0].mxu0
        %2755 = vmatprep.mubr.f32.mxu0 0.0
        %2756 = vmatmul.mubr.f32.gmra.mrb[0].mxu0 %v2542
        %v2757 = vpop.f32.mrb[0].mxu0
        %v2758 = vadd.f32 0.0, %v2757
        %v2759 = vpop.f32.mrb[0].mxu0
        %2760 = vmatprep.mubr.f32.mxu0 0.0
        %2761 = vmatmul.mubr.f32.gmra.mrb[0].mxu0 %v2545
        %v2762 = vpop.f32.mrb[0].mxu0
        %v2763 = vadd.f32 0.0, %v2762
        %v2764 = vpop.f32.mrb[0].mxu0
        %2765 = vmatprep.mubr.f32.mxu0 0.0
        %2766 = vmatmul.mubr.f32.gmra.mrb[0].mxu0 %v2548
        %v2767 = vpop.f32.mrb[0].mxu0
        %v2768 = vadd.f32 0.0, %v2767
        %v2769 = vpop.f32.mrb[0].mxu0
        %2770 = vmatprep.mubr.f32.mxu0 0.0
        %2771 = vmatmul.mubr.f32.gmra.mrb[0].mxu0 %v2551
        %v2772 = vpop.f32.mrb[0].mxu0
        %v2773 = vadd.f32 0.0, %v2772
        %v2774 = vpop.f32.mrb[0].mxu0
        %2775 = vmatprep.mubr.f32.mxu0 0.0
        %2776 = vmatmul.mubr.f32.gmra.mrb[0].mxu0 %v2554
        %v2777 = vpop.f32.mrb[0].mxu0
        %v2778 = vadd.f32 0.0, %v2777
        %v2779 = vpop.f32.mrb[0].mxu0
        %2780 = vdwg.mxu0
        %v2781 = vadd.f32 %v2391, %v2623
        %v2782 = vadd.f32 %v2392, %v2628
        %v2783 = vadd.f32 %v2393, %v2633
        %v2784 = vadd.f32 %v2394, %v2638
        %v2785 = vadd.f32 %v2395, %v2643
        %v2786 = vadd.f32 %v2396, %v2648
        %v2787 = vadd.f32 %v2397, %v2653
        %v2788 = vadd.f32 %v2398, %v2658
        %v2789 = vadd.f32 %v2399, %v2663
        %v2790 = vadd.f32 %v2400, %v2668
        %v2791 = vadd.f32 %v2401, %v2673
        %v2792 = vadd.f32 %v2402, %v2678
        %v2793 = vadd.f32 %v2403, %v2683
        %v2794 = vadd.f32 %v2404, %v2688
        %v2795 = vadd.f32 %v2405, %v2693
        %v2796 = vadd.f32 %v2406, %v2698
        %v2797 = vadd.f32 %v2407, %v2703
        %v2798 = vadd.f32 %v2408, %v2708
        %v2799 = vadd.f32 %v2409, %v2713
        %v2800 = vadd.f32 %v2410, %v2718
        %v2801 = vadd.f32 %v2411, %v2723
        %v2802 = vadd.f32 %v2412, %v2728
        %v2803 = vadd.f32 %v2413, %v2733
        %v2804 = vadd.f32 %v2414, %v2738
        %v2805 = vadd.f32 %v2415, %v2743
        %v2806 = vadd.f32 %v2416, %v2748
        %v2807 = vadd.f32 %v2417, %v2753
        %v2808 = vadd.f32 %v2418, %v2758
        %v2809 = vadd.f32 %v2419, %v2763
        %v2810 = vadd.f32 %v2420, %v2768
        %v2811 = vadd.f32 %v2421, %v2773
        %v2812 = vadd.f32 %v2422, %v2778
        %v2813 = vld [vmem:[%s1285 + $0x8] sm:$0xff]
        %v2814 = vld [vmem:[%s1285 + $0x10] sm:$0xff]
        %v2815 = vld [vmem:[%s1285 + $0x28] sm:$0xff]
        %v2816 = vld [vmem:[%s1285 + $0x30] sm:$0xff]
        %v2817 = vld [vmem:[%s1285 + $0x48] sm:$0xff]
        %v2818 = vld [vmem:[%s1285 + $0x50] sm:$0xff]
        %v2819 = vld [vmem:[%s1285 + $0x68] sm:$0xff]
        %v2820 = vld [vmem:[%s1285 + $0x70] sm:$0xff]
        %v2821 = vld [vmem:[%s1285 + $0x88] sm:$0xff]
        %v2822 = vld [vmem:[%s1285 + $0x90] sm:$0xff]
        %v2823 = vld [vmem:[%s1285 + $0xa8] sm:$0xff]
        %v2824 = vld [vmem:[%s1285 + $0xb0] sm:$0xff]
        %v2825 = vld [vmem:[%s1285 + $0xc8] sm:$0xff]
        %v2826 = vld [vmem:[%s1285 + $0xd0] sm:$0xff]
        %v2827 = vld [vmem:[%s1285 + $0xe8] sm:$0xff]
        %v2828 = vld [vmem:[%s1285 + $0xf0] sm:$0xff]
        %v2829 = vld [vmem:[%s1285 + $0x108] sm:$0xff]
        %v2830 = vld [vmem:[%s1285 + $0x110] sm:$0xff]
        %v2831 = vld [vmem:[%s1285 + $0x128] sm:$0xff]
        %v2832 = vld [vmem:[%s1285 + $0x130] sm:$0xff]
        %v2833 = vld [vmem:[%s1285 + $0x148] sm:$0xff]
        %v2834 = vld [vmem:[%s1285 + $0x150] sm:$0xff]
        %v2835 = vld [vmem:[%s1285 + $0x168] sm:$0xff]
        %v2836 = vld [vmem:[%s1285 + $0x170] sm:$0xff]
        %v2837 = vld [vmem:[%s1285 + $0x188] sm:$0xff]
        %v2838 = vld [vmem:[%s1285 + $0x190] sm:$0xff]
        %v2839 = vld [vmem:[%s1285 + $0x1a8] sm:$0xff]
        %v2840 = vld [vmem:[%s1285 + $0x1b0] sm:$0xff]
        %v2841 = vld [vmem:[%s1285 + $0x1c8] sm:$0xff]
        %v2842 = vld [vmem:[%s1285 + $0x1d0] sm:$0xff]
        %v2843 = vld [vmem:[%s1285 + $0x1e8] sm:$0xff]
        %v2844 = vld [vmem:[%s1285 + $0x1f0] sm:$0xff]
        %s2845 = scalar_lea.vmem %s5, 128
        %v2846 = vld [vmem:[%s2845] sm:$0xff]
        %v2847 = vld [vmem:[%s2845 + $0x8] sm:$0xff]
        %v2848 = vld [vmem:[%s2845 + $0x10] sm:$0xff]
        %v2849 = vld [vmem:[%s2845 + $0x18] sm:$0xff]
        %v2851 = vsel %vm531, %v2813, 0
        %v2854 = vsel %vm531, %v2814, 0
        %v2857 = vsel %vm531, %v2815, 0
        %v2860 = vsel %vm531, %v2816, 0
        %v2863 = vsel %vm531, %v2817, 0
        %v2866 = vsel %vm531, %v2818, 0
        %v2869 = vsel %vm531, %v2819, 0
        %v2872 = vsel %vm531, %v2820, 0
        %v2875 = vsel %vm531, %v2821, 0
        %v2878 = vsel %vm531, %v2822, 0
        %v2881 = vsel %vm531, %v2823, 0
        %v2884 = vsel %vm531, %v2824, 0
        %v2887 = vsel %vm531, %v2825, 0
        %v2890 = vsel %vm531, %v2826, 0
        %v2893 = vsel %vm531, %v2827, 0
        %v2896 = vsel %vm531, %v2828, 0
        %v2899 = vsel %vm531, %v2829, 0
        %v2902 = vsel %vm531, %v2830, 0
        %v2905 = vsel %vm531, %v2831, 0
        %v2908 = vsel %vm531, %v2832, 0
        %v2911 = vsel %vm531, %v2833, 0
        %v2914 = vsel %vm531, %v2834, 0
        %v2917 = vsel %vm531, %v2835, 0
        %v2920 = vsel %vm531, %v2836, 0
        %v2923 = vsel %vm531, %v2837, 0
        %v2926 = vsel %vm531, %v2838, 0
        %v2929 = vsel %vm531, %v2839, 0
        %v2932 = vsel %vm531, %v2840, 0
        %v2935 = vsel %vm531, %v2841, 0
        %v2938 = vsel %vm531, %v2842, 0
        %v2941 = vsel %vm531, %v2843, 0
        %v2944 = vsel %vm531, %v2844, 0
        %2946 = vmatprep.subr.mxu0 0.0
        %2947 = vmatpush1.msra.mxu0 %v2846
        %2948 = vmatprep.subr.mxu0 0.0
        %2949 = vmatpush1.msra.mxu0 %v2847
        %2950 = vmatprep.subr.mxu0 0.0
        %2951 = vmatpush1.msra.mxu0 %v2848
        %2952 = vmatprep.subr.mxu0 0.0
        %2953 = vmatpush1.msra.mxu0 %v2849
        %2954 = vmatprep.subr.mxu0 0.0
        %2955 = vmatpush1.msra.mxu0 0.0
        %2956 = vmatprep.subr.mxu0 0.0
        %2957 = vmatpush1.msra.mxu0 0.0
        %2958 = vmatprep.subr.mxu0 0.0
        %2959 = vmatpush1.msra.mxu0 0.0
        %2960 = vmatprep.subr.mxu0 0.0
        %2961 = vmatpush1.msra.mxu0 0.0
        %2962 = vmatprep.subr.mxu0 0.0
        %2963 = vmatpush1.msra.mxu0 0.0
        %2964 = vmatprep.subr.mxu0 0.0
        %2965 = vmatpush1.msra.mxu0 0.0
        %2966 = vmatprep.subr.mxu0 0.0
        %2967 = vmatpush1.msra.mxu0 0.0
        %2968 = vmatprep.subr.mxu0 0.0
        %2969 = vmatpush1.msra.mxu0 0.0
        %2970 = vmatprep.subr.mxu0 0.0
        %2971 = vmatpush1.msra.mxu0 0.0
        %2972 = vmatprep.subr.mxu0 0.0
        %2973 = vmatpush1.msra.mxu0 0.0
        %2974 = vmatprep.subr.mxu0 0.0
        %2975 = vmatpush1.msra.mxu0 0.0
        %2976 = vmatprep.subr.mxu0 0.0
        %2977 = vmatpush1.msra.mxu0 0.0
        %2978 = vmatprep.subr.mxu0 0.0
        %2979 = vmatpush1.msra.mxu0 0.0
        %2980 = vmatprep.subr.mxu0 0.0
        %2981 = vmatpush1.msra.mxu0 0.0
        %2982 = vmatprep.subr.mxu0 0.0
        %2983 = vmatpush1.msra.mxu0 0.0
        %2984 = vmatprep.subr.mxu0 0.0
        %2985 = vmatpush1.msra.mxu0 0.0
        %2986 = vmatprep.subr.mxu0 0.0
        %2987 = vmatpush1.msra.mxu0 0.0
        %2988 = vmatprep.subr.mxu0 0.0
        %2989 = vmatpush1.msra.mxu0 0.0
        %2990 = vmatprep.subr.mxu0 0.0
        %2991 = vmatpush1.msra.mxu0 0.0
        %2992 = vmatprep.subr.mxu0 0.0
        %2993 = vmatpush1.msra.mxu0 0.0
        %2994 = vmatprep.subr.mxu0 0.0
        %2995 = vmatpush1.msra.mxu0 0.0
        %2996 = vmatprep.subr.mxu0 0.0
        %2997 = vmatpush1.msra.mxu0 0.0
        %2998 = vmatprep.subr.mxu0 0.0
        %2999 = vmatpush1.msra.mxu0 0.0
        %3000 = vmatprep.subr.mxu0 0.0
        %3001 = vmatpush1.msra.mxu0 0.0
        %3002 = vmatprep.subr.mxu0 0.0
        %3003 = vmatpush1.msra.mxu0 0.0
        %3004 = vmatprep.subr.mxu0 0.0
        %3005 = vmatpush1.msra.mxu0 0.0
        %3006 = vmatprep.subr.mxu0 0.0
        %3007 = vmatpush1.msra.mxu0 0.0
        %3008 = vmatprep.subr.mxu0 0.0
        %3009 = vmatpush1.msra.mxu0 0.0
        %3010 = vmatprep.mubr.f32.mxu0 0.0
        %3011 = vmatmul.mubr.f32.gmra.mrb[0].mxu0 %v2851
        %v3012 = vpop.f32.mrb[0].mxu0
        %v3013 = vadd.f32 0.0, %v3012
        %v3014 = vpop.f32.mrb[0].mxu0
        %3015 = vmatprep.mubr.f32.mxu0 0.0
        %3016 = vmatmul.mubr.f32.gmra.mrb[0].mxu0 %v2854
        %v3017 = vpop.f32.mrb[0].mxu0
        %v3018 = vadd.f32 0.0, %v3017
        %v3019 = vpop.f32.mrb[0].mxu0
        %3020 = vmatprep.mubr.f32.mxu0 0.0
        %3021 = vmatmul.mubr.f32.gmra.mrb[0].mxu0 %v2857
        %v3022 = vpop.f32.mrb[0].mxu0
        %v3023 = vadd.f32 0.0, %v3022
        %v3024 = vpop.f32.mrb[0].mxu0
        %3025 = vmatprep.mubr.f32.mxu0 0.0
        %3026 = vmatmul.mubr.f32.gmra.mrb[0].mxu0 %v2860
        %v3027 = vpop.f32.mrb[0].mxu0
        %v3028 = vadd.f32 0.0, %v3027
        %v3029 = vpop.f32.mrb[0].mxu0
        %3030 = vmatprep.mubr.f32.mxu0 0.0
        %3031 = vmatmul.mubr.f32.gmra.mrb[0].mxu0 %v2863
        %v3032 = vpop.f32.mrb[0].mxu0
        %v3033 = vadd.f32 0.0, %v3032
        %v3034 = vpop.f32.mrb[0].mxu0
        %3035 = vmatprep.mubr.f32.mxu0 0.0
        %3036 = vmatmul.mubr.f32.gmra.mrb[0].mxu0 %v2866
        %v3037 = vpop.f32.mrb[0].mxu0
        %v3038 = vadd.f32 0.0, %v3037
        %v3039 = vpop.f32.mrb[0].mxu0
        %3040 = vmatprep.mubr.f32.mxu0 0.0
        %3041 = vmatmul.mubr.f32.gmra.mrb[0].mxu0 %v2869
        %v3042 = vpop.f32.mrb[0].mxu0
        %v3043 = vadd.f32 0.0, %v3042
        %v3044 = vpop.f32.mrb[0].mxu0
        %3045 = vmatprep.mubr.f32.mxu0 0.0
        %3046 = vmatmul.mubr.f32.gmra.mrb[0].mxu0 %v2872
        %v3047 = vpop.f32.mrb[0].mxu0
        %v3048 = vadd.f32 0.0, %v3047
        %v3049 = vpop.f32.mrb[0].mxu0
        %3050 = vmatprep.mubr.f32.mxu0 0.0
        %3051 = vmatmul.mubr.f32.gmra.mrb[0].mxu0 %v2875
        %v3052 = vpop.f32.mrb[0].mxu0
        %v3053 = vadd.f32 0.0, %v3052
        %v3054 = vpop.f32.mrb[0].mxu0
        %3055 = vmatprep.mubr.f32.mxu0 0.0
        %3056 = vmatmul.mubr.f32.gmra.mrb[0].mxu0 %v2878
        %v3057 = vpop.f32.mrb[0].mxu0
        %v3058 = vadd.f32 0.0, %v3057
        %v3059 = vpop.f32.mrb[0].mxu0
        %3060 = vmatprep.mubr.f32.mxu0 0.0
        %3061 = vmatmul.mubr.f32.gmra.mrb[0].mxu0 %v2881
        %v3062 = vpop.f32.mrb[0].mxu0
        %v3063 = vadd.f32 0.0, %v3062
        %v3064 = vpop.f32.mrb[0].mxu0
        %3065 = vmatprep.mubr.f32.mxu0 0.0
        %3066 = vmatmul.mubr.f32.gmra.mrb[0].mxu0 %v2884
        %v3067 = vpop.f32.mrb[0].mxu0
        %v3068 = vadd.f32 0.0, %v3067
        %v3069 = vpop.f32.mrb[0].mxu0
        %3070 = vmatprep.mubr.f32.mxu0 0.0
        %3071 = vmatmul.mubr.f32.gmra.mrb[0].mxu0 %v2887
        %v3072 = vpop.f32.mrb[0].mxu0
        %v3073 = vadd.f32 0.0, %v3072
        %v3074 = vpop.f32.mrb[0].mxu0
        %3075 = vmatprep.mubr.f32.mxu0 0.0
        %3076 = vmatmul.mubr.f32.gmra.mrb[0].mxu0 %v2890
        %v3077 = vpop.f32.mrb[0].mxu0
        %v3078 = vadd.f32 0.0, %v3077
        %v3079 = vpop.f32.mrb[0].mxu0
        %3080 = vmatprep.mubr.f32.mxu0 0.0
        %3081 = vmatmul.mubr.f32.gmra.mrb[0].mxu0 %v2893
        %v3082 = vpop.f32.mrb[0].mxu0
        %v3083 = vadd.f32 0.0, %v3082
        %v3084 = vpop.f32.mrb[0].mxu0
        %3085 = vmatprep.mubr.f32.mxu0 0.0
        %3086 = vmatmul.mubr.f32.gmra.mrb[0].mxu0 %v2896
        %v3087 = vpop.f32.mrb[0].mxu0
        %v3088 = vadd.f32 0.0, %v3087
        %v3089 = vpop.f32.mrb[0].mxu0
        %3090 = vmatprep.mubr.f32.mxu0 0.0
        %3091 = vmatmul.mubr.f32.gmra.mrb[0].mxu0 %v2899
        %v3092 = vpop.f32.mrb[0].mxu0
        %v3093 = vadd.f32 0.0, %v3092
        %v3094 = vpop.f32.mrb[0].mxu0
        %3095 = vmatprep.mubr.f32.mxu0 0.0
        %3096 = vmatmul.mubr.f32.gmra.mrb[0].mxu0 %v2902
        %v3097 = vpop.f32.mrb[0].mxu0
        %v3098 = vadd.f32 0.0, %v3097
        %v3099 = vpop.f32.mrb[0].mxu0
        %3100 = vmatprep.mubr.f32.mxu0 0.0
        %3101 = vmatmul.mubr.f32.gmra.mrb[0].mxu0 %v2905
        %v3102 = vpop.f32.mrb[0].mxu0
        %v3103 = vadd.f32 0.0, %v3102
        %v3104 = vpop.f32.mrb[0].mxu0
        %3105 = vmatprep.mubr.f32.mxu0 0.0
        %3106 = vmatmul.mubr.f32.gmra.mrb[0].mxu0 %v2908
        %v3107 = vpop.f32.mrb[0].mxu0
        %v3108 = vadd.f32 0.0, %v3107
        %v3109 = vpop.f32.mrb[0].mxu0
        %3110 = vmatprep.mubr.f32.mxu0 0.0
        %3111 = vmatmul.mubr.f32.gmra.mrb[0].mxu0 %v2911
        %v3112 = vpop.f32.mrb[0].mxu0
        %v3113 = vadd.f32 0.0, %v3112
        %v3114 = vpop.f32.mrb[0].mxu0
        %3115 = vmatprep.mubr.f32.mxu0 0.0
        %3116 = vmatmul.mubr.f32.gmra.mrb[0].mxu0 %v2914
        %v3117 = vpop.f32.mrb[0].mxu0
        %v3118 = vadd.f32 0.0, %v3117
        %v3119 = vpop.f32.mrb[0].mxu0
        %3120 = vmatprep.mubr.f32.mxu0 0.0
        %3121 = vmatmul.mubr.f32.gmra.mrb[0].mxu0 %v2917
        %v3122 = vpop.f32.mrb[0].mxu0
        %v3123 = vadd.f32 0.0, %v3122
        %v3124 = vpop.f32.mrb[0].mxu0
        %3125 = vmatprep.mubr.f32.mxu0 0.0
        %3126 = vmatmul.mubr.f32.gmra.mrb[0].mxu0 %v2920
        %v3127 = vpop.f32.mrb[0].mxu0
        %v3128 = vadd.f32 0.0, %v3127
        %v3129 = vpop.f32.mrb[0].mxu0
        %3130 = vmatprep.mubr.f32.mxu0 0.0
        %3131 = vmatmul.mubr.f32.gmra.mrb[0].mxu0 %v2923
        %v3132 = vpop.f32.mrb[0].mxu0
        %v3133 = vadd.f32 0.0, %v3132
        %v3134 = vpop.f32.mrb[0].mxu0
        %3135 = vmatprep.mubr.f32.mxu0 0.0
        %3136 = vmatmul.mubr.f32.gmra.mrb[0].mxu0 %v2926
        %v3137 = vpop.f32.mrb[0].mxu0
        %v3138 = vadd.f32 0.0, %v3137
        %v3139 = vpop.f32.mrb[0].mxu0
        %3140 = vmatprep.mubr.f32.mxu0 0.0
        %3141 = vmatmul.mubr.f32.gmra.mrb[0].mxu0 %v2929
        %v3142 = vpop.f32.mrb[0].mxu0
        %v3143 = vadd.f32 0.0, %v3142
        %v3144 = vpop.f32.mrb[0].mxu0
        %3145 = vmatprep.mubr.f32.mxu0 0.0
        %3146 = vmatmul.mubr.f32.gmra.mrb[0].mxu0 %v2932
        %v3147 = vpop.f32.mrb[0].mxu0
        %v3148 = vadd.f32 0.0, %v3147
        %v3149 = vpop.f32.mrb[0].mxu0
        %3150 = vmatprep.mubr.f32.mxu0 0.0
        %3151 = vmatmul.mubr.f32.gmra.mrb[0].mxu0 %v2935
        %v3152 = vpop.f32.mrb[0].mxu0
        %v3153 = vadd.f32 0.0, %v3152
        %v3154 = vpop.f32.mrb[0].mxu0
        %3155 = vmatprep.mubr.f32.mxu0 0.0
        %3156 = vmatmul.mubr.f32.gmra.mrb[0].mxu0 %v2938
        %v3157 = vpop.f32.mrb[0].mxu0
        %v3158 = vadd.f32 0.0, %v3157
        %v3159 = vpop.f32.mrb[0].mxu0
        %3160 = vmatprep.mubr.f32.mxu0 0.0
        %3161 = vmatmul.mubr.f32.gmra.mrb[0].mxu0 %v2941
        %v3162 = vpop.f32.mrb[0].mxu0
        %v3163 = vadd.f32 0.0, %v3162
        %v3164 = vpop.f32.mrb[0].mxu0
        %3165 = vmatprep.mubr.f32.mxu0 0.0
        %3166 = vmatmul.mubr.f32.gmra.mrb[0].mxu0 %v2944
        %v3167 = vpop.f32.mrb[0].mxu0
        %v3168 = vadd.f32 0.0, %v3167
        %v3169 = vpop.f32.mrb[0].mxu0
        %3170 = vdwg.mxu0
        %v3171 = vadd.f32 %v2781, %v3013
        %v3172 = vadd.f32 %v2782, %v3018
        %v3173 = vadd.f32 %v2783, %v3023
        %v3174 = vadd.f32 %v2784, %v3028
        %v3175 = vadd.f32 %v2785, %v3033
        %v3176 = vadd.f32 %v2786, %v3038
        %v3177 = vadd.f32 %v2787, %v3043
        %v3178 = vadd.f32 %v2788, %v3048
        %v3179 = vadd.f32 %v2789, %v3053
        %v3180 = vadd.f32 %v2790, %v3058
        %v3181 = vadd.f32 %v2791, %v3063
        %v3182 = vadd.f32 %v2792, %v3068
        %v3183 = vadd.f32 %v2793, %v3073
        %v3184 = vadd.f32 %v2794, %v3078
        %v3185 = vadd.f32 %v2795, %v3083
        %v3186 = vadd.f32 %v2796, %v3088
        %v3187 = vadd.f32 %v2797, %v3093
        %v3188 = vadd.f32 %v2798, %v3098
        %v3189 = vadd.f32 %v2799, %v3103
        %v3190 = vadd.f32 %v2800, %v3108
        %v3191 = vadd.f32 %v2801, %v3113
        %v3192 = vadd.f32 %v2802, %v3118
        %v3193 = vadd.f32 %v2803, %v3123
        %v3194 = vadd.f32 %v2804, %v3128
        %v3195 = vadd.f32 %v2805, %v3133
        %v3196 = vadd.f32 %v2806, %v3138
        %v3197 = vadd.f32 %v2807, %v3143
        %v3198 = vadd.f32 %v2808, %v3148
        %v3199 = vadd.f32 %v2809, %v3153
        %v3200 = vadd.f32 %v2810, %v3158
        %v3201 = vadd.f32 %v2811, %v3163
        %v3202 = vadd.f32 %v2812, %v3168
        %v3203 = vld [vmem:[%s1285 + $0x9] sm:$0xff]
        %v3204 = vld [vmem:[%s1285 + $0x11] sm:$0xff]
        %v3205 = vld [vmem:[%s1285 + $0x29] sm:$0xff]
        %v3206 = vld [vmem:[%s1285 + $0x31] sm:$0xff]
        %v3207 = vld [vmem:[%s1285 + $0x49] sm:$0xff]
        %v3208 = vld [vmem:[%s1285 + $0x51] sm:$0xff]
        %v3209 = vld [vmem:[%s1285 + $0x69] sm:$0xff]
        %v3210 = vld [vmem:[%s1285 + $0x71] sm:$0xff]
        %v3211 = vld [vmem:[%s1285 + $0x89] sm:$0xff]
        %v3212 = vld [vmem:[%s1285 + $0x91] sm:$0xff]
        %v3213 = vld [vmem:[%s1285 + $0xa9] sm:$0xff]
        %v3214 = vld [vmem:[%s1285 + $0xb1] sm:$0xff]
        %v3215 = vld [vmem:[%s1285 + $0xc9] sm:$0xff]
        %v3216 = vld [vmem:[%s1285 + $0xd1] sm:$0xff]
        %v3217 = vld [vmem:[%s1285 + $0xe9] sm:$0xff]
        %v3218 = vld [vmem:[%s1285 + $0xf1] sm:$0xff]
        %v3219 = vld [vmem:[%s1285 + $0x109] sm:$0xff]
        %v3220 = vld [vmem:[%s1285 + $0x111] sm:$0xff]
        %v3221 = vld [vmem:[%s1285 + $0x129] sm:$0xff]
        %v3222 = vld [vmem:[%s1285 + $0x131] sm:$0xff]
        %v3223 = vld [vmem:[%s1285 + $0x149] sm:$0xff]
        %v3224 = vld [vmem:[%s1285 + $0x151] sm:$0xff]
        %v3225 = vld [vmem:[%s1285 + $0x169] sm:$0xff]
        %v3226 = vld [vmem:[%s1285 + $0x171] sm:$0xff]
        %v3227 = vld [vmem:[%s1285 + $0x189] sm:$0xff]
        %v3228 = vld [vmem:[%s1285 + $0x191] sm:$0xff]
        %v3229 = vld [vmem:[%s1285 + $0x1a9] sm:$0xff]
        %v3230 = vld [vmem:[%s1285 + $0x1b1] sm:$0xff]
        %v3231 = vld [vmem:[%s1285 + $0x1c9] sm:$0xff]
        %v3232 = vld [vmem:[%s1285 + $0x1d1] sm:$0xff]
        %v3233 = vld [vmem:[%s1285 + $0x1e9] sm:$0xff]
        %v3234 = vld [vmem:[%s1285 + $0x1f1] sm:$0xff]
        %s3235 = scalar_lea.vmem %s5, 160
        %v3236 = vld [vmem:[%s3235] sm:$0xff]
        %v3237 = vld [vmem:[%s3235 + $0x8] sm:$0xff]
        %v3238 = vld [vmem:[%s3235 + $0x10] sm:$0xff]
        %v3239 = vld [vmem:[%s3235 + $0x18] sm:$0xff]
        %v3241 = vsel %vm531, %v3203, 0
        %v3244 = vsel %vm531, %v3204, 0
        %v3247 = vsel %vm531, %v3205, 0
        %v3250 = vsel %vm531, %v3206, 0
        %v3253 = vsel %vm531, %v3207, 0
        %v3256 = vsel %vm531, %v3208, 0
        %v3259 = vsel %vm531, %v3209, 0
        %v3262 = vsel %vm531, %v3210, 0
        %v3265 = vsel %vm531, %v3211, 0
        %v3268 = vsel %vm531, %v3212, 0
        %v3271 = vsel %vm531, %v3213, 0
        %v3274 = vsel %vm531, %v3214, 0
        %v3277 = vsel %vm531, %v3215, 0
        %v3280 = vsel %vm531, %v3216, 0
        %v3283 = vsel %vm531, %v3217, 0
        %v3286 = vsel %vm531, %v3218, 0
        %v3289 = vsel %vm531, %v3219, 0
        %v3292 = vsel %vm531, %v3220, 0
        %v3295 = vsel %vm531, %v3221, 0
        %v3298 = vsel %vm531, %v3222, 0
        %v3301 = vsel %vm531, %v3223, 0
        %v3304 = vsel %vm531, %v3224, 0
        %v3307 = vsel %vm531, %v3225, 0
        %v3310 = vsel %vm531, %v3226, 0
        %v3313 = vsel %vm531, %v3227, 0
        %v3316 = vsel %vm531, %v3228, 0
        %v3319 = vsel %vm531, %v3229, 0
        %v3322 = vsel %vm531, %v3230, 0
        %v3325 = vsel %vm531, %v3231, 0
        %v3328 = vsel %vm531, %v3232, 0
        %v3331 = vsel %vm531, %v3233, 0
        %v3334 = vsel %vm531, %v3234, 0
        %3336 = vmatprep.subr.mxu0 0.0
        %3337 = vmatpush1.msra.mxu0 %v3236
        %3338 = vmatprep.subr.mxu0 0.0
        %3339 = vmatpush1.msra.mxu0 %v3237
        %3340 = vmatprep.subr.mxu0 0.0
        %3341 = vmatpush1.msra.mxu0 %v3238
        %3342 = vmatprep.subr.mxu0 0.0
        %3343 = vmatpush1.msra.mxu0 %v3239
        %3344 = vmatprep.subr.mxu0 0.0
        %3345 = vmatpush1.msra.mxu0 0.0
        %3346 = vmatprep.subr.mxu0 0.0
        %3347 = vmatpush1.msra.mxu0 0.0
        %3348 = vmatprep.subr.mxu0 0.0
        %3349 = vmatpush1.msra.mxu0 0.0
        %3350 = vmatprep.subr.mxu0 0.0
        %3351 = vmatpush1.msra.mxu0 0.0
        %3352 = vmatprep.subr.mxu0 0.0
        %3353 = vmatpush1.msra.mxu0 0.0
        %3354 = vmatprep.subr.mxu0 0.0
        %3355 = vmatpush1.msra.mxu0 0.0
        %3356 = vmatprep.subr.mxu0 0.0
        %3357 = vmatpush1.msra.mxu0 0.0
        %3358 = vmatprep.subr.mxu0 0.0
        %3359 = vmatpush1.msra.mxu0 0.0
        %3360 = vmatprep.subr.mxu0 0.0
        %3361 = vmatpush1.msra.mxu0 0.0
        %3362 = vmatprep.subr.mxu0 0.0
        %3363 = vmatpush1.msra.mxu0 0.0
        %3364 = vmatprep.subr.mxu0 0.0
        %3365 = vmatpush1.msra.mxu0 0.0
        %3366 = vmatprep.subr.mxu0 0.0
        %3367 = vmatpush1.msra.mxu0 0.0
        %3368 = vmatprep.subr.mxu0 0.0
        %3369 = vmatpush1.msra.mxu0 0.0
        %3370 = vmatprep.subr.mxu0 0.0
        %3371 = vmatpush1.msra.mxu0 0.0
        %3372 = vmatprep.subr.mxu0 0.0
        %3373 = vmatpush1.msra.mxu0 0.0
        %3374 = vmatprep.subr.mxu0 0.0
        %3375 = vmatpush1.msra.mxu0 0.0
        %3376 = vmatprep.subr.mxu0 0.0
        %3377 = vmatpush1.msra.mxu0 0.0
        %3378 = vmatprep.subr.mxu0 0.0
        %3379 = vmatpush1.msra.mxu0 0.0
        %3380 = vmatprep.subr.mxu0 0.0
        %3381 = vmatpush1.msra.mxu0 0.0
        %3382 = vmatprep.subr.mxu0 0.0
        %3383 = vmatpush1.msra.mxu0 0.0
        %3384 = vmatprep.subr.mxu0 0.0
        %3385 = vmatpush1.msra.mxu0 0.0
        %3386 = vmatprep.subr.mxu0 0.0
        %3387 = vmatpush1.msra.mxu0 0.0
        %3388 = vmatprep.subr.mxu0 0.0
        %3389 = vmatpush1.msra.mxu0 0.0
        %3390 = vmatprep.subr.mxu0 0.0
        %3391 = vmatpush1.msra.mxu0 0.0
        %3392 = vmatprep.subr.mxu0 0.0
        %3393 = vmatpush1.msra.mxu0 0.0
        %3394 = vmatprep.subr.mxu0 0.0
        %3395 = vmatpush1.msra.mxu0 0.0
        %3396 = vmatprep.subr.mxu0 0.0
        %3397 = vmatpush1.msra.mxu0 0.0
        %3398 = vmatprep.subr.mxu0 0.0
        %3399 = vmatpush1.msra.mxu0 0.0
        %3400 = vmatprep.mubr.f32.mxu0 0.0
        %3401 = vmatmul.mubr.f32.gmra.mrb[0].mxu0 %v3241
        %v3402 = vpop.f32.mrb[0].mxu0
        %v3403 = vadd.f32 0.0, %v3402
        %v3404 = vpop.f32.mrb[0].mxu0
        %3405 = vmatprep.mubr.f32.mxu0 0.0
        %3406 = vmatmul.mubr.f32.gmra.mrb[0].mxu0 %v3244
        %v3407 = vpop.f32.mrb[0].mxu0
        %v3408 = vadd.f32 0.0, %v3407
        %v3409 = vpop.f32.mrb[0].mxu0
        %3410 = vmatprep.mubr.f32.mxu0 0.0
        %3411 = vmatmul.mubr.f32.gmra.mrb[0].mxu0 %v3247
        %v3412 = vpop.f32.mrb[0].mxu0
        %v3413 = vadd.f32 0.0, %v3412
        %v3414 = vpop.f32.mrb[0].mxu0
        %3415 = vmatprep.mubr.f32.mxu0 0.0
        %3416 = vmatmul.mubr.f32.gmra.mrb[0].mxu0 %v3250
        %v3417 = vpop.f32.mrb[0].mxu0
        %v3418 = vadd.f32 0.0, %v3417
        %v3419 = vpop.f32.mrb[0].mxu0
        %3420 = vmatprep.mubr.f32.mxu0 0.0
        %3421 = vmatmul.mubr.f32.gmra.mrb[0].mxu0 %v3253
        %v3422 = vpop.f32.mrb[0].mxu0
        %v3423 = vadd.f32 0.0, %v3422
        %v3424 = vpop.f32.mrb[0].mxu0
        %3425 = vmatprep.mubr.f32.mxu0 0.0
        %3426 = vmatmul.mubr.f32.gmra.mrb[0].mxu0 %v3256
        %v3427 = vpop.f32.mrb[0].mxu0
        %v3428 = vadd.f32 0.0, %v3427
        %v3429 = vpop.f32.mrb[0].mxu0
        %3430 = vmatprep.mubr.f32.mxu0 0.0
        %3431 = vmatmul.mubr.f32.gmra.mrb[0].mxu0 %v3259
        %v3432 = vpop.f32.mrb[0].mxu0
        %v3433 = vadd.f32 0.0, %v3432
        %v3434 = vpop.f32.mrb[0].mxu0
        %3435 = vmatprep.mubr.f32.mxu0 0.0
        %3436 = vmatmul.mubr.f32.gmra.mrb[0].mxu0 %v3262
        %v3437 = vpop.f32.mrb[0].mxu0
        %v3438 = vadd.f32 0.0, %v3437
        %v3439 = vpop.f32.mrb[0].mxu0
        %3440 = vmatprep.mubr.f32.mxu0 0.0
        %3441 = vmatmul.mubr.f32.gmra.mrb[0].mxu0 %v3265
        %v3442 = vpop.f32.mrb[0].mxu0
        %v3443 = vadd.f32 0.0, %v3442
        %v3444 = vpop.f32.mrb[0].mxu0
        %3445 = vmatprep.mubr.f32.mxu0 0.0
        %3446 = vmatmul.mubr.f32.gmra.mrb[0].mxu0 %v3268
        %v3447 = vpop.f32.mrb[0].mxu0
        %v3448 = vadd.f32 0.0, %v3447
        %v3449 = vpop.f32.mrb[0].mxu0
        %3450 = vmatprep.mubr.f32.mxu0 0.0
        %3451 = vmatmul.mubr.f32.gmra.mrb[0].mxu0 %v3271
        %v3452 = vpop.f32.mrb[0].mxu0
        %v3453 = vadd.f32 0.0, %v3452
        %v3454 = vpop.f32.mrb[0].mxu0
        %3455 = vmatprep.mubr.f32.mxu0 0.0
        %3456 = vmatmul.mubr.f32.gmra.mrb[0].mxu0 %v3274
        %v3457 = vpop.f32.mrb[0].mxu0
        %v3458 = vadd.f32 0.0, %v3457
        %v3459 = vpop.f32.mrb[0].mxu0
        %3460 = vmatprep.mubr.f32.mxu0 0.0
        %3461 = vmatmul.mubr.f32.gmra.mrb[0].mxu0 %v3277
        %v3462 = vpop.f32.mrb[0].mxu0
        %v3463 = vadd.f32 0.0, %v3462
        %v3464 = vpop.f32.mrb[0].mxu0
        %3465 = vmatprep.mubr.f32.mxu0 0.0
        %3466 = vmatmul.mubr.f32.gmra.mrb[0].mxu0 %v3280
        %v3467 = vpop.f32.mrb[0].mxu0
        %v3468 = vadd.f32 0.0, %v3467
        %v3469 = vpop.f32.mrb[0].mxu0
        %3470 = vmatprep.mubr.f32.mxu0 0.0
        %3471 = vmatmul.mubr.f32.gmra.mrb[0].mxu0 %v3283
        %v3472 = vpop.f32.mrb[0].mxu0
        %v3473 = vadd.f32 0.0, %v3472
        %v3474 = vpop.f32.mrb[0].mxu0
        %3475 = vmatprep.mubr.f32.mxu0 0.0
        %3476 = vmatmul.mubr.f32.gmra.mrb[0].mxu0 %v3286
        %v3477 = vpop.f32.mrb[0].mxu0
        %v3478 = vadd.f32 0.0, %v3477
        %v3479 = vpop.f32.mrb[0].mxu0
        %3480 = vmatprep.mubr.f32.mxu0 0.0
        %3481 = vmatmul.mubr.f32.gmra.mrb[0].mxu0 %v3289
        %v3482 = vpop.f32.mrb[0].mxu0
        %v3483 = vadd.f32 0.0, %v3482
        %v3484 = vpop.f32.mrb[0].mxu0
        %3485 = vmatprep.mubr.f32.mxu0 0.0
        %3486 = vmatmul.mubr.f32.gmra.mrb[0].mxu0 %v3292
        %v3487 = vpop.f32.mrb[0].mxu0
        %v3488 = vadd.f32 0.0, %v3487
        %v3489 = vpop.f32.mrb[0].mxu0
        %3490 = vmatprep.mubr.f32.mxu0 0.0
        %3491 = vmatmul.mubr.f32.gmra.mrb[0].mxu0 %v3295
        %v3492 = vpop.f32.mrb[0].mxu0
        %v3493 = vadd.f32 0.0, %v3492
        %v3494 = vpop.f32.mrb[0].mxu0
        %3495 = vmatprep.mubr.f32.mxu0 0.0
        %3496 = vmatmul.mubr.f32.gmra.mrb[0].mxu0 %v3298
        %v3497 = vpop.f32.mrb[0].mxu0
        %v3498 = vadd.f32 0.0, %v3497
        %v3499 = vpop.f32.mrb[0].mxu0
        %3500 = vmatprep.mubr.f32.mxu0 0.0
        %3501 = vmatmul.mubr.f32.gmra.mrb[0].mxu0 %v3301
        %v3502 = vpop.f32.mrb[0].mxu0
        %v3503 = vadd.f32 0.0, %v3502
        %v3504 = vpop.f32.mrb[0].mxu0
        %3505 = vmatprep.mubr.f32.mxu0 0.0
        %3506 = vmatmul.mubr.f32.gmra.mrb[0].mxu0 %v3304
        %v3507 = vpop.f32.mrb[0].mxu0
        %v3508 = vadd.f32 0.0, %v3507
        %v3509 = vpop.f32.mrb[0].mxu0
        %3510 = vmatprep.mubr.f32.mxu0 0.0
        %3511 = vmatmul.mubr.f32.gmra.mrb[0].mxu0 %v3307
        %v3512 = vpop.f32.mrb[0].mxu0
        %v3513 = vadd.f32 0.0, %v3512
        %v3514 = vpop.f32.mrb[0].mxu0
        %3515 = vmatprep.mubr.f32.mxu0 0.0
        %3516 = vmatmul.mubr.f32.gmra.mrb[0].mxu0 %v3310
        %v3517 = vpop.f32.mrb[0].mxu0
        %v3518 = vadd.f32 0.0, %v3517
        %v3519 = vpop.f32.mrb[0].mxu0
        %3520 = vmatprep.mubr.f32.mxu0 0.0
        %3521 = vmatmul.mubr.f32.gmra.mrb[0].mxu0 %v3313
        %v3522 = vpop.f32.mrb[0].mxu0
        %v3523 = vadd.f32 0.0, %v3522
        %v3524 = vpop.f32.mrb[0].mxu0
        %3525 = vmatprep.mubr.f32.mxu0 0.0
        %3526 = vmatmul.mubr.f32.gmra.mrb[0].mxu0 %v3316
        %v3527 = vpop.f32.mrb[0].mxu0
        %v3528 = vadd.f32 0.0, %v3527
        %v3529 = vpop.f32.mrb[0].mxu0
        %3530 = vmatprep.mubr.f32.mxu0 0.0
        %3531 = vmatmul.mubr.f32.gmra.mrb[0].mxu0 %v3319
        %v3532 = vpop.f32.mrb[0].mxu0
        %v3533 = vadd.f32 0.0, %v3532
        %v3534 = vpop.f32.mrb[0].mxu0
        %3535 = vmatprep.mubr.f32.mxu0 0.0
        %3536 = vmatmul.mubr.f32.gmra.mrb[0].mxu0 %v3322
        %v3537 = vpop.f32.mrb[0].mxu0
        %v3538 = vadd.f32 0.0, %v3537
        %v3539 = vpop.f32.mrb[0].mxu0
        %3540 = vmatprep.mubr.f32.mxu0 0.0
        %3541 = vmatmul.mubr.f32.gmra.mrb[0].mxu0 %v3325
        %v3542 = vpop.f32.mrb[0].mxu0
        %v3543 = vadd.f32 0.0, %v3542
        %v3544 = vpop.f32.mrb[0].mxu0
        %3545 = vmatprep.mubr.f32.mxu0 0.0
        %3546 = vmatmul.mubr.f32.gmra.mrb[0].mxu0 %v3328
        %v3547 = vpop.f32.mrb[0].mxu0
        %v3548 = vadd.f32 0.0, %v3547
        %v3549 = vpop.f32.mrb[0].mxu0
        %3550 = vmatprep.mubr.f32.mxu0 0.0
        %3551 = vmatmul.mubr.f32.gmra.mrb[0].mxu0 %v3331
        %v3552 = vpop.f32.mrb[0].mxu0
        %v3553 = vadd.f32 0.0, %v3552
        %v3554 = vpop.f32.mrb[0].mxu0
        %3555 = vmatprep.mubr.f32.mxu0 0.0
        %3556 = vmatmul.mubr.f32.gmra.mrb[0].mxu0 %v3334
        %v3557 = vpop.f32.mrb[0].mxu0
        %v3558 = vadd.f32 0.0, %v3557
        %v3559 = vpop.f32.mrb[0].mxu0
        %3560 = vdwg.mxu0
        %v3561 = vadd.f32 %v3171, %v3403
        %v3562 = vadd.f32 %v3172, %v3408
        %v3563 = vadd.f32 %v3173, %v3413
        %v3564 = vadd.f32 %v3174, %v3418
        %v3565 = vadd.f32 %v3175, %v3423
        %v3566 = vadd.f32 %v3176, %v3428
        %v3567 = vadd.f32 %v3177, %v3433
        %v3568 = vadd.f32 %v3178, %v3438
        %v3569 = vadd.f32 %v3179, %v3443
        %v3570 = vadd.f32 %v3180, %v3448
        %v3571 = vadd.f32 %v3181, %v3453
        %v3572 = vadd.f32 %v3182, %v3458
        %v3573 = vadd.f32 %v3183, %v3463
        %v3574 = vadd.f32 %v3184, %v3468
        %v3575 = vadd.f32 %v3185, %v3473
        %v3576 = vadd.f32 %v3186, %v3478
        %v3577 = vadd.f32 %v3187, %v3483
        %v3578 = vadd.f32 %v3188, %v3488
        %v3579 = vadd.f32 %v3189, %v3493
        %v3580 = vadd.f32 %v3190, %v3498
        %v3581 = vadd.f32 %v3191, %v3503
        %v3582 = vadd.f32 %v3192, %v3508
        %v3583 = vadd.f32 %v3193, %v3513
        %v3584 = vadd.f32 %v3194, %v3518
        %v3585 = vadd.f32 %v3195, %v3523
        %v3586 = vadd.f32 %v3196, %v3528
        %v3587 = vadd.f32 %v3197, %v3533
        %v3588 = vadd.f32 %v3198, %v3538
        %v3589 = vadd.f32 %v3199, %v3543
        %v3590 = vadd.f32 %v3200, %v3548
        %v3591 = vadd.f32 %v3201, %v3553
        %v3592 = vadd.f32 %v3202, %v3558
        %s3593 = scalar_lea.vmem [#allocation2], 64
        %v3594 = vld [vmem:[%s3593 + $0x7] sm:$0xff]
        %v3595 = vld [vmem:[%s3593 + $0xf] sm:$0xff]
        %v3596 = vld [vmem:[%s3593 + $0x27] sm:$0xff]
        %v3597 = vld [vmem:[%s3593 + $0x2f] sm:$0xff]
        %v3598 = vld [vmem:[%s3593 + $0x47] sm:$0xff]
        %v3599 = vld [vmem:[%s3593 + $0x4f] sm:$0xff]
        %v3600 = vld [vmem:[%s3593 + $0x67] sm:$0xff]
        %v3601 = vld [vmem:[%s3593 + $0x6f] sm:$0xff]
        %v3602 = vld [vmem:[%s3593 + $0x87] sm:$0xff]
        %v3603 = vld [vmem:[%s3593 + $0x8f] sm:$0xff]
        %v3604 = vld [vmem:[%s3593 + $0xa7] sm:$0xff]
        %v3605 = vld [vmem:[%s3593 + $0xaf] sm:$0xff]
        %v3606 = vld [vmem:[%s3593 + $0xc7] sm:$0xff]
        %v3607 = vld [vmem:[%s3593 + $0xcf] sm:$0xff]
        %v3608 = vld [vmem:[%s3593 + $0xe7] sm:$0xff]
        %v3609 = vld [vmem:[%s3593 + $0xef] sm:$0xff]
        %v3610 = vld [vmem:[%s3593 + $0x107] sm:$0xff]
        %v3611 = vld [vmem:[%s3593 + $0x10f] sm:$0xff]
        %v3612 = vld [vmem:[%s3593 + $0x127] sm:$0xff]
        %v3613 = vld [vmem:[%s3593 + $0x12f] sm:$0xff]
        %v3614 = vld [vmem:[%s3593 + $0x147] sm:$0xff]
        %v3615 = vld [vmem:[%s3593 + $0x14f] sm:$0xff]
        %v3616 = vld [vmem:[%s3593 + $0x167] sm:$0xff]
        %v3617 = vld [vmem:[%s3593 + $0x16f] sm:$0xff]
        %v3618 = vld [vmem:[%s3593 + $0x187] sm:$0xff]
        %v3619 = vld [vmem:[%s3593 + $0x18f] sm:$0xff]
        %v3620 = vld [vmem:[%s3593 + $0x1a7] sm:$0xff]
        %v3621 = vld [vmem:[%s3593 + $0x1af] sm:$0xff]
        %v3622 = vld [vmem:[%s3593 + $0x1c7] sm:$0xff]
        %v3623 = vld [vmem:[%s3593 + $0x1cf] sm:$0xff]
        %v3624 = vld [vmem:[%s3593 + $0x1e7] sm:$0xff]
        %v3625 = vld [vmem:[%s3593 + $0x1ef] sm:$0xff]
        %s3626 = scalar_lea.vmem %s5, 192
        %v3627 = vld [vmem:[%s3626] sm:$0xff]
        %v3628 = vld [vmem:[%s3626 + $0x8] sm:$0xff]
        %v3629 = vld [vmem:[%s3626 + $0x10] sm:$0xff]
        %v3630 = vld [vmem:[%s3626 + $0x18] sm:$0xff]
        %v3632 = vsel %vm531, %v3594, 0
        %v3635 = vsel %vm531, %v3595, 0
        %v3638 = vsel %vm531, %v3596, 0
        %v3641 = vsel %vm531, %v3597, 0
        %v3644 = vsel %vm531, %v3598, 0
        %v3647 = vsel %vm531, %v3599, 0
        %v3650 = vsel %vm531, %v3600, 0
        %v3653 = vsel %vm531, %v3601, 0
        %v3656 = vsel %vm531, %v3602, 0
        %v3659 = vsel %vm531, %v3603, 0
        %v3662 = vsel %vm531, %v3604, 0
        %v3665 = vsel %vm531, %v3605, 0
        %v3668 = vsel %vm531, %v3606, 0
        %v3671 = vsel %vm531, %v3607, 0
        %v3674 = vsel %vm531, %v3608, 0
        %v3677 = vsel %vm531, %v3609, 0
        %v3680 = vsel %vm531, %v3610, 0
        %v3683 = vsel %vm531, %v3611, 0
        %v3686 = vsel %vm531, %v3612, 0
        %v3689 = vsel %vm531, %v3613, 0
        %v3692 = vsel %vm531, %v3614, 0
        %v3695 = vsel %vm531, %v3615, 0
        %v3698 = vsel %vm531, %v3616, 0
        %v3701 = vsel %vm531, %v3617, 0
        %v3704 = vsel %vm531, %v3618, 0
        %v3707 = vsel %vm531, %v3619, 0
        %v3710 = vsel %vm531, %v3620, 0
        %v3713 = vsel %vm531, %v3621, 0
        %v3716 = vsel %vm531, %v3622, 0
        %v3719 = vsel %vm531, %v3623, 0
        %v3722 = vsel %vm531, %v3624, 0
        %v3725 = vsel %vm531, %v3625, 0
        %3727 = vmatprep.subr.mxu0 0.0
        %3728 = vmatpush1.msra.mxu0 %v3627
        %3729 = vmatprep.subr.mxu0 0.0
        %3730 = vmatpush1.msra.mxu0 %v3628
        %3731 = vmatprep.subr.mxu0 0.0
        %3732 = vmatpush1.msra.mxu0 %v3629
        %3733 = vmatprep.subr.mxu0 0.0
        %3734 = vmatpush1.msra.mxu0 %v3630
        %3735 = vmatprep.subr.mxu0 0.0
        %3736 = vmatpush1.msra.mxu0 0.0
        %3737 = vmatprep.subr.mxu0 0.0
        %3738 = vmatpush1.msra.mxu0 0.0
        %3739 = vmatprep.subr.mxu0 0.0
        %3740 = vmatpush1.msra.mxu0 0.0
        %3741 = vmatprep.subr.mxu0 0.0
        %3742 = vmatpush1.msra.mxu0 0.0
        %3743 = vmatprep.subr.mxu0 0.0
        %3744 = vmatpush1.msra.mxu0 0.0
        %3745 = vmatprep.subr.mxu0 0.0
        %3746 = vmatpush1.msra.mxu0 0.0
        %3747 = vmatprep.subr.mxu0 0.0
        %3748 = vmatpush1.msra.mxu0 0.0
        %3749 = vmatprep.subr.mxu0 0.0
        %3750 = vmatpush1.msra.mxu0 0.0
        %3751 = vmatprep.subr.mxu0 0.0
        %3752 = vmatpush1.msra.mxu0 0.0
        %3753 = vmatprep.subr.mxu0 0.0
        %3754 = vmatpush1.msra.mxu0 0.0
        %3755 = vmatprep.subr.mxu0 0.0
        %3756 = vmatpush1.msra.mxu0 0.0
        %3757 = vmatprep.subr.mxu0 0.0
        %3758 = vmatpush1.msra.mxu0 0.0
        %3759 = vmatprep.subr.mxu0 0.0
        %3760 = vmatpush1.msra.mxu0 0.0
        %3761 = vmatprep.subr.mxu0 0.0
        %3762 = vmatpush1.msra.mxu0 0.0
        %3763 = vmatprep.subr.mxu0 0.0
        %3764 = vmatpush1.msra.mxu0 0.0
        %3765 = vmatprep.subr.mxu0 0.0
        %3766 = vmatpush1.msra.mxu0 0.0
        %3767 = vmatprep.subr.mxu0 0.0
        %3768 = vmatpush1.msra.mxu0 0.0
        %3769 = vmatprep.subr.mxu0 0.0
        %3770 = vmatpush1.msra.mxu0 0.0
        %3771 = vmatprep.subr.mxu0 0.0
        %3772 = vmatpush1.msra.mxu0 0.0
        %3773 = vmatprep.subr.mxu0 0.0
        %3774 = vmatpush1.msra.mxu0 0.0
        %3775 = vmatprep.subr.mxu0 0.0
        %3776 = vmatpush1.msra.mxu0 0.0
        %3777 = vmatprep.subr.mxu0 0.0
        %3778 = vmatpush1.msra.mxu0 0.0
        %3779 = vmatprep.subr.mxu0 0.0
        %3780 = vmatpush1.msra.mxu0 0.0
        %3781 = vmatprep.subr.mxu0 0.0
        %3782 = vmatpush1.msra.mxu0 0.0
        %3783 = vmatprep.subr.mxu0 0.0
        %3784 = vmatpush1.msra.mxu0 0.0
        %3785 = vmatprep.subr.mxu0 0.0
        %3786 = vmatpush1.msra.mxu0 0.0
        %3787 = vmatprep.subr.mxu0 0.0
        %3788 = vmatpush1.msra.mxu0 0.0
        %3789 = vmatprep.subr.mxu0 0.0
        %3790 = vmatpush1.msra.mxu0 0.0
        %3791 = vmatprep.mubr.f32.mxu0 0.0
        %3792 = vmatmul.mubr.f32.gmra.mrb[0].mxu0 %v3632
        %v3793 = vpop.f32.mrb[0].mxu0
        %v3794 = vadd.f32 0.0, %v3793
        %v3795 = vpop.f32.mrb[0].mxu0
        %3796 = vmatprep.mubr.f32.mxu0 0.0
        %3797 = vmatmul.mubr.f32.gmra.mrb[0].mxu0 %v3635
        %v3798 = vpop.f32.mrb[0].mxu0
        %v3799 = vadd.f32 0.0, %v3798
        %v3800 = vpop.f32.mrb[0].mxu0
        %3801 = vmatprep.mubr.f32.mxu0 0.0
        %3802 = vmatmul.mubr.f32.gmra.mrb[0].mxu0 %v3638
        %v3803 = vpop.f32.mrb[0].mxu0
        %v3804 = vadd.f32 0.0, %v3803
        %v3805 = vpop.f32.mrb[0].mxu0
        %3806 = vmatprep.mubr.f32.mxu0 0.0
        %3807 = vmatmul.mubr.f32.gmra.mrb[0].mxu0 %v3641
        %v3808 = vpop.f32.mrb[0].mxu0
        %v3809 = vadd.f32 0.0, %v3808
        %v3810 = vpop.f32.mrb[0].mxu0
        %3811 = vmatprep.mubr.f32.mxu0 0.0
        %3812 = vmatmul.mubr.f32.gmra.mrb[0].mxu0 %v3644
        %v3813 = vpop.f32.mrb[0].mxu0
        %v3814 = vadd.f32 0.0, %v3813
        %v3815 = vpop.f32.mrb[0].mxu0
        %3816 = vmatprep.mubr.f32.mxu0 0.0
        %3817 = vmatmul.mubr.f32.gmra.mrb[0].mxu0 %v3647
        %v3818 = vpop.f32.mrb[0].mxu0
        %v3819 = vadd.f32 0.0, %v3818
        %v3820 = vpop.f32.mrb[0].mxu0
        %3821 = vmatprep.mubr.f32.mxu0 0.0
        %3822 = vmatmul.mubr.f32.gmra.mrb[0].mxu0 %v3650
        %v3823 = vpop.f32.mrb[0].mxu0
        %v3824 = vadd.f32 0.0, %v3823
        %v3825 = vpop.f32.mrb[0].mxu0
        %3826 = vmatprep.mubr.f32.mxu0 0.0
        %3827 = vmatmul.mubr.f32.gmra.mrb[0].mxu0 %v3653
        %v3828 = vpop.f32.mrb[0].mxu0
        %v3829 = vadd.f32 0.0, %v3828
        %v3830 = vpop.f32.mrb[0].mxu0
        %3831 = vmatprep.mubr.f32.mxu0 0.0
        %3832 = vmatmul.mubr.f32.gmra.mrb[0].mxu0 %v3656
        %v3833 = vpop.f32.mrb[0].mxu0
        %v3834 = vadd.f32 0.0, %v3833
        %v3835 = vpop.f32.mrb[0].mxu0
        %3836 = vmatprep.mubr.f32.mxu0 0.0
        %3837 = vmatmul.mubr.f32.gmra.mrb[0].mxu0 %v3659
        %v3838 = vpop.f32.mrb[0].mxu0
        %v3839 = vadd.f32 0.0, %v3838
        %v3840 = vpop.f32.mrb[0].mxu0
        %3841 = vmatprep.mubr.f32.mxu0 0.0
        %3842 = vmatmul.mubr.f32.gmra.mrb[0].mxu0 %v3662
        %v3843 = vpop.f32.mrb[0].mxu0
        %v3844 = vadd.f32 0.0, %v3843
        %v3845 = vpop.f32.mrb[0].mxu0
        %3846 = vmatprep.mubr.f32.mxu0 0.0
        %3847 = vmatmul.mubr.f32.gmra.mrb[0].mxu0 %v3665
        %v3848 = vpop.f32.mrb[0].mxu0
        %v3849 = vadd.f32 0.0, %v3848
        %v3850 = vpop.f32.mrb[0].mxu0
        %3851 = vmatprep.mubr.f32.mxu0 0.0
        %3852 = vmatmul.mubr.f32.gmra.mrb[0].mxu0 %v3668
        %v3853 = vpop.f32.mrb[0].mxu0
        %v3854 = vadd.f32 0.0, %v3853
        %v3855 = vpop.f32.mrb[0].mxu0
        %3856 = vmatprep.mubr.f32.mxu0 0.0
        %3857 = vmatmul.mubr.f32.gmra.mrb[0].mxu0 %v3671
        %v3858 = vpop.f32.mrb[0].mxu0
        %v3859 = vadd.f32 0.0, %v3858
        %v3860 = vpop.f32.mrb[0].mxu0
        %3861 = vmatprep.mubr.f32.mxu0 0.0
        %3862 = vmatmul.mubr.f32.gmra.mrb[0].mxu0 %v3674
        %v3863 = vpop.f32.mrb[0].mxu0
        %v3864 = vadd.f32 0.0, %v3863
        %v3865 = vpop.f32.mrb[0].mxu0
        %3866 = vmatprep.mubr.f32.mxu0 0.0
        %3867 = vmatmul.mubr.f32.gmra.mrb[0].mxu0 %v3677
        %v3868 = vpop.f32.mrb[0].mxu0
        %v3869 = vadd.f32 0.0, %v3868
        %v3870 = vpop.f32.mrb[0].mxu0
        %3871 = vmatprep.mubr.f32.mxu0 0.0
        %3872 = vmatmul.mubr.f32.gmra.mrb[0].mxu0 %v3680
        %v3873 = vpop.f32.mrb[0].mxu0
        %v3874 = vadd.f32 0.0, %v3873
        %v3875 = vpop.f32.mrb[0].mxu0
        %3876 = vmatprep.mubr.f32.mxu0 0.0
        %3877 = vmatmul.mubr.f32.gmra.mrb[0].mxu0 %v3683
        %v3878 = vpop.f32.mrb[0].mxu0
        %v3879 = vadd.f32 0.0, %v3878
        %v3880 = vpop.f32.mrb[0].mxu0
        %3881 = vmatprep.mubr.f32.mxu0 0.0
        %3882 = vmatmul.mubr.f32.gmra.mrb[0].mxu0 %v3686
        %v3883 = vpop.f32.mrb[0].mxu0
        %v3884 = vadd.f32 0.0, %v3883
        %v3885 = vpop.f32.mrb[0].mxu0
        %3886 = vmatprep.mubr.f32.mxu0 0.0
        %3887 = vmatmul.mubr.f32.gmra.mrb[0].mxu0 %v3689
        %v3888 = vpop.f32.mrb[0].mxu0
        %v3889 = vadd.f32 0.0, %v3888
        %v3890 = vpop.f32.mrb[0].mxu0
        %3891 = vmatprep.mubr.f32.mxu0 0.0
        %3892 = vmatmul.mubr.f32.gmra.mrb[0].mxu0 %v3692
        %v3893 = vpop.f32.mrb[0].mxu0
        %v3894 = vadd.f32 0.0, %v3893
        %v3895 = vpop.f32.mrb[0].mxu0
        %3896 = vmatprep.mubr.f32.mxu0 0.0
        %3897 = vmatmul.mubr.f32.gmra.mrb[0].mxu0 %v3695
        %v3898 = vpop.f32.mrb[0].mxu0
        %v3899 = vadd.f32 0.0, %v3898
        %v3900 = vpop.f32.mrb[0].mxu0
        %3901 = vmatprep.mubr.f32.mxu0 0.0
        %3902 = vmatmul.mubr.f32.gmra.mrb[0].mxu0 %v3698
        %v3903 = vpop.f32.mrb[0].mxu0
        %v3904 = vadd.f32 0.0, %v3903
        %v3905 = vpop.f32.mrb[0].mxu0
        %3906 = vmatprep.mubr.f32.mxu0 0.0
        %3907 = vmatmul.mubr.f32.gmra.mrb[0].mxu0 %v3701
        %v3908 = vpop.f32.mrb[0].mxu0
        %v3909 = vadd.f32 0.0, %v3908
        %v3910 = vpop.f32.mrb[0].mxu0
        %3911 = vmatprep.mubr.f32.mxu0 0.0
        %3912 = vmatmul.mubr.f32.gmra.mrb[0].mxu0 %v3704
        %v3913 = vpop.f32.mrb[0].mxu0
        %v3914 = vadd.f32 0.0, %v3913
        %v3915 = vpop.f32.mrb[0].mxu0
        %3916 = vmatprep.mubr.f32.mxu0 0.0
        %3917 = vmatmul.mubr.f32.gmra.mrb[0].mxu0 %v3707
        %v3918 = vpop.f32.mrb[0].mxu0
        %v3919 = vadd.f32 0.0, %v3918
        %v3920 = vpop.f32.mrb[0].mxu0
        %3921 = vmatprep.mubr.f32.mxu0 0.0
        %3922 = vmatmul.mubr.f32.gmra.mrb[0].mxu0 %v3710
        %v3923 = vpop.f32.mrb[0].mxu0
        %v3924 = vadd.f32 0.0, %v3923
        %v3925 = vpop.f32.mrb[0].mxu0
        %3926 = vmatprep.mubr.f32.mxu0 0.0
        %3927 = vmatmul.mubr.f32.gmra.mrb[0].mxu0 %v3713
        %v3928 = vpop.f32.mrb[0].mxu0
        %v3929 = vadd.f32 0.0, %v3928
        %v3930 = vpop.f32.mrb[0].mxu0
        %3931 = vmatprep.mubr.f32.mxu0 0.0
        %3932 = vmatmul.mubr.f32.gmra.mrb[0].mxu0 %v3716
        %v3933 = vpop.f32.mrb[0].mxu0
        %v3934 = vadd.f32 0.0, %v3933
        %v3935 = vpop.f32.mrb[0].mxu0
        %3936 = vmatprep.mubr.f32.mxu0 0.0
        %3937 = vmatmul.mubr.f32.gmra.mrb[0].mxu0 %v3719
        %v3938 = vpop.f32.mrb[0].mxu0
        %v3939 = vadd.f32 0.0, %v3938
        %v3940 = vpop.f32.mrb[0].mxu0
        %3941 = vmatprep.mubr.f32.mxu0 0.0
        %3942 = vmatmul.mubr.f32.gmra.mrb[0].mxu0 %v3722
        %v3943 = vpop.f32.mrb[0].mxu0
        %v3944 = vadd.f32 0.0, %v3943
        %v3945 = vpop.f32.mrb[0].mxu0
        %3946 = vmatprep.mubr.f32.mxu0 0.0
        %3947 = vmatmul.mubr.f32.gmra.mrb[0].mxu0 %v3725
        %v3948 = vpop.f32.mrb[0].mxu0
        %v3949 = vadd.f32 0.0, %v3948
        %v3950 = vpop.f32.mrb[0].mxu0
        %3951 = vdwg.mxu0
        %v3952 = vadd.f32 %v3561, %v3794
        %v3953 = vadd.f32 %v3562, %v3799
        %v3954 = vadd.f32 %v3563, %v3804
        %v3955 = vadd.f32 %v3564, %v3809
        %v3956 = vadd.f32 %v3565, %v3814
        %v3957 = vadd.f32 %v3566, %v3819
        %v3958 = vadd.f32 %v3567, %v3824
        %v3959 = vadd.f32 %v3568, %v3829
        %v3960 = vadd.f32 %v3569, %v3834
        %v3961 = vadd.f32 %v3570, %v3839
        %v3962 = vadd.f32 %v3571, %v3844
        %v3963 = vadd.f32 %v3572, %v3849
        %v3964 = vadd.f32 %v3573, %v3854
        %v3965 = vadd.f32 %v3574, %v3859
        %v3966 = vadd.f32 %v3575, %v3864
        %v3967 = vadd.f32 %v3576, %v3869
        %v3968 = vadd.f32 %v3577, %v3874
        %v3969 = vadd.f32 %v3578, %v3879
        %v3970 = vadd.f32 %v3579, %v3884
        %v3971 = vadd.f32 %v3580, %v3889
        %v3972 = vadd.f32 %v3581, %v3894
        %v3973 = vadd.f32 %v3582, %v3899
        %v3974 = vadd.f32 %v3583, %v3904
        %v3975 = vadd.f32 %v3584, %v3909
        %v3976 = vadd.f32 %v3585, %v3914
        %v3977 = vadd.f32 %v3586, %v3919
        %v3978 = vadd.f32 %v3587, %v3924
        %v3979 = vadd.f32 %v3588, %v3929
        %v3980 = vadd.f32 %v3589, %v3934
        %v3981 = vadd.f32 %v3590, %v3939
        %v3982 = vadd.f32 %v3591, %v3944
        %v3983 = vadd.f32 %v3592, %v3949
        %v3984 = vld [vmem:[%s3593 + $0x8] sm:$0xff]
        %v3985 = vld [vmem:[%s3593 + $0x10] sm:$0xff]
        %v3986 = vld [vmem:[%s3593 + $0x28] sm:$0xff]
        %v3987 = vld [vmem:[%s3593 + $0x30] sm:$0xff]
        %v3988 = vld [vmem:[%s3593 + $0x48] sm:$0xff]
        %v3989 = vld [vmem:[%s3593 + $0x50] sm:$0xff]
        %v3990 = vld [vmem:[%s3593 + $0x68] sm:$0xff]
        %v3991 = vld [vmem:[%s3593 + $0x70] sm:$0xff]
        %v3992 = vld [vmem:[%s3593 + $0x88] sm:$0xff]
        %v3993 = vld [vmem:[%s3593 + $0x90] sm:$0xff]
        %v3994 = vld [vmem:[%s3593 + $0xa8] sm:$0xff]
        %v3995 = vld [vmem:[%s3593 + $0xb0] sm:$0xff]
        %v3996 = vld [vmem:[%s3593 + $0xc8] sm:$0xff]
        %v3997 = vld [vmem:[%s3593 + $0xd0] sm:$0xff]
        %v3998 = vld [vmem:[%s3593 + $0xe8] sm:$0xff]
        %v3999 = vld [vmem:[%s3593 + $0xf0] sm:$0xff]
        %v4000 = vld [vmem:[%s3593 + $0x108] sm:$0xff]
        %v4001 = vld [vmem:[%s3593 + $0x110] sm:$0xff]
        %v4002 = vld [vmem:[%s3593 + $0x128] sm:$0xff]
        %v4003 = vld [vmem:[%s3593 + $0x130] sm:$0xff]
        %v4004 = vld [vmem:[%s3593 + $0x148] sm:$0xff]
        %v4005 = vld [vmem:[%s3593 + $0x150] sm:$0xff]
        %v4006 = vld [vmem:[%s3593 + $0x168] sm:$0xff]
        %v4007 = vld [vmem:[%s3593 + $0x170] sm:$0xff]
        %v4008 = vld [vmem:[%s3593 + $0x188] sm:$0xff]
        %v4009 = vld [vmem:[%s3593 + $0x190] sm:$0xff]
        %v4010 = vld [vmem:[%s3593 + $0x1a8] sm:$0xff]
        %v4011 = vld [vmem:[%s3593 + $0x1b0] sm:$0xff]
        %v4012 = vld [vmem:[%s3593 + $0x1c8] sm:$0xff]
        %v4013 = vld [vmem:[%s3593 + $0x1d0] sm:$0xff]
        %v4014 = vld [vmem:[%s3593 + $0x1e8] sm:$0xff]
        %v4015 = vld [vmem:[%s3593 + $0x1f0] sm:$0xff]
        %s4016 = scalar_lea.vmem %s5, 224
        %v4017 = vld [vmem:[%s4016] sm:$0xff]
        %v4018 = vld [vmem:[%s4016 + $0x8] sm:$0xff]
        %v4019 = vld [vmem:[%s4016 + $0x10] sm:$0xff]
        %v4020 = vld [vmem:[%s4016 + $0x18] sm:$0xff]
        %v4022 = vsel %vm531, %v3984, 0
        %v4025 = vsel %vm531, %v3985, 0
        %v4028 = vsel %vm531, %v3986, 0
        %v4031 = vsel %vm531, %v3987, 0
        %v4034 = vsel %vm531, %v3988, 0
        %v4037 = vsel %vm531, %v3989, 0
        %v4040 = vsel %vm531, %v3990, 0
        %v4043 = vsel %vm531, %v3991, 0
        %v4046 = vsel %vm531, %v3992, 0
        %v4049 = vsel %vm531, %v3993, 0
        %v4052 = vsel %vm531, %v3994, 0
        %v4055 = vsel %vm531, %v3995, 0
        %v4058 = vsel %vm531, %v3996, 0
        %v4061 = vsel %vm531, %v3997, 0
        %v4064 = vsel %vm531, %v3998, 0
        %v4067 = vsel %vm531, %v3999, 0
        %v4070 = vsel %vm531, %v4000, 0
        %v4073 = vsel %vm531, %v4001, 0
        %v4076 = vsel %vm531, %v4002, 0
        %v4079 = vsel %vm531, %v4003, 0
        %v4082 = vsel %vm531, %v4004, 0
        %v4085 = vsel %vm531, %v4005, 0
        %v4088 = vsel %vm531, %v4006, 0
        %v4091 = vsel %vm531, %v4007, 0
        %v4094 = vsel %vm531, %v4008, 0
        %v4097 = vsel %vm531, %v4009, 0
        %v4100 = vsel %vm531, %v4010, 0
        %v4103 = vsel %vm531, %v4011, 0
        %v4106 = vsel %vm531, %v4012, 0
        %v4109 = vsel %vm531, %v4013, 0
        %v4112 = vsel %vm531, %v4014, 0
        %v4115 = vsel %vm531, %v4015, 0
        %4117 = vmatprep.subr.mxu0 0.0
        %4118 = vmatpush1.msra.mxu0 %v4017
        %4119 = vmatprep.subr.mxu0 0.0
        %4120 = vmatpush1.msra.mxu0 %v4018
        %4121 = vmatprep.subr.mxu0 0.0
        %4122 = vmatpush1.msra.mxu0 %v4019
        %4123 = vmatprep.subr.mxu0 0.0
        %4124 = vmatpush1.msra.mxu0 %v4020
        %4125 = vmatprep.subr.mxu0 0.0
        %4126 = vmatpush1.msra.mxu0 0.0
        %4127 = vmatprep.subr.mxu0 0.0
        %4128 = vmatpush1.msra.mxu0 0.0
        %4129 = vmatprep.subr.mxu0 0.0
        %4130 = vmatpush1.msra.mxu0 0.0
        %4131 = vmatprep.subr.mxu0 0.0
        %4132 = vmatpush1.msra.mxu0 0.0
        %4133 = vmatprep.subr.mxu0 0.0
        %4134 = vmatpush1.msra.mxu0 0.0
        %4135 = vmatprep.subr.mxu0 0.0
        %4136 = vmatpush1.msra.mxu0 0.0
        %4137 = vmatprep.subr.mxu0 0.0
        %4138 = vmatpush1.msra.mxu0 0.0
        %4139 = vmatprep.subr.mxu0 0.0
        %4140 = vmatpush1.msra.mxu0 0.0
        %4141 = vmatprep.subr.mxu0 0.0
        %4142 = vmatpush1.msra.mxu0 0.0
        %4143 = vmatprep.subr.mxu0 0.0
        %4144 = vmatpush1.msra.mxu0 0.0
        %4145 = vmatprep.subr.mxu0 0.0
        %4146 = vmatpush1.msra.mxu0 0.0
        %4147 = vmatprep.subr.mxu0 0.0
        %4148 = vmatpush1.msra.mxu0 0.0
        %4149 = vmatprep.subr.mxu0 0.0
        %4150 = vmatpush1.msra.mxu0 0.0
        %4151 = vmatprep.subr.mxu0 0.0
        %4152 = vmatpush1.msra.mxu0 0.0
        %4153 = vmatprep.subr.mxu0 0.0
        %4154 = vmatpush1.msra.mxu0 0.0
        %4155 = vmatprep.subr.mxu0 0.0
        %4156 = vmatpush1.msra.mxu0 0.0
        %4157 = vmatprep.subr.mxu0 0.0
        %4158 = vmatpush1.msra.mxu0 0.0
        %4159 = vmatprep.subr.mxu0 0.0
        %4160 = vmatpush1.msra.mxu0 0.0
        %4161 = vmatprep.subr.mxu0 0.0
        %4162 = vmatpush1.msra.mxu0 0.0
        %4163 = vmatprep.subr.mxu0 0.0
        %4164 = vmatpush1.msra.mxu0 0.0
        %4165 = vmatprep.subr.mxu0 0.0
        %4166 = vmatpush1.msra.mxu0 0.0
        %4167 = vmatprep.subr.mxu0 0.0
        %4168 = vmatpush1.msra.mxu0 0.0
        %4169 = vmatprep.subr.mxu0 0.0
        %4170 = vmatpush1.msra.mxu0 0.0
        %4171 = vmatprep.subr.mxu0 0.0
        %4172 = vmatpush1.msra.mxu0 0.0
        %4173 = vmatprep.subr.mxu0 0.0
        %4174 = vmatpush1.msra.mxu0 0.0
        %4175 = vmatprep.subr.mxu0 0.0
        %4176 = vmatpush1.msra.mxu0 0.0
        %4177 = vmatprep.subr.mxu0 0.0
        %4178 = vmatpush1.msra.mxu0 0.0
        %4179 = vmatprep.subr.mxu0 0.0
        %4180 = vmatpush1.msra.mxu0 0.0
        %4181 = vmatprep.mubr.f32.mxu0 0.0
        %4182 = vmatmul.mubr.f32.gmra.mrb[0].mxu0 %v4022
        %v4183 = vpop.f32.mrb[0].mxu0
        %v4184 = vadd.f32 0.0, %v4183
        %v4185 = vpop.f32.mrb[0].mxu0
        %4186 = vmatprep.mubr.f32.mxu0 0.0
        %4187 = vmatmul.mubr.f32.gmra.mrb[0].mxu0 %v4025
        %v4188 = vpop.f32.mrb[0].mxu0
        %v4189 = vadd.f32 0.0, %v4188
        %v4190 = vpop.f32.mrb[0].mxu0
        %4191 = vmatprep.mubr.f32.mxu0 0.0
        %4192 = vmatmul.mubr.f32.gmra.mrb[0].mxu0 %v4028
        %v4193 = vpop.f32.mrb[0].mxu0
        %v4194 = vadd.f32 0.0, %v4193
        %v4195 = vpop.f32.mrb[0].mxu0
        %4196 = vmatprep.mubr.f32.mxu0 0.0
        %4197 = vmatmul.mubr.f32.gmra.mrb[0].mxu0 %v4031
        %v4198 = vpop.f32.mrb[0].mxu0
        %v4199 = vadd.f32 0.0, %v4198
        %v4200 = vpop.f32.mrb[0].mxu0
        %4201 = vmatprep.mubr.f32.mxu0 0.0
        %4202 = vmatmul.mubr.f32.gmra.mrb[0].mxu0 %v4034
        %v4203 = vpop.f32.mrb[0].mxu0
        %v4204 = vadd.f32 0.0, %v4203
        %v4205 = vpop.f32.mrb[0].mxu0
        %4206 = vmatprep.mubr.f32.mxu0 0.0
        %4207 = vmatmul.mubr.f32.gmra.mrb[0].mxu0 %v4037
        %v4208 = vpop.f32.mrb[0].mxu0
        %v4209 = vadd.f32 0.0, %v4208
        %v4210 = vpop.f32.mrb[0].mxu0
        %4211 = vmatprep.mubr.f32.mxu0 0.0
        %4212 = vmatmul.mubr.f32.gmra.mrb[0].mxu0 %v4040
        %v4213 = vpop.f32.mrb[0].mxu0
        %v4214 = vadd.f32 0.0, %v4213
        %v4215 = vpop.f32.mrb[0].mxu0
        %4216 = vmatprep.mubr.f32.mxu0 0.0
        %4217 = vmatmul.mubr.f32.gmra.mrb[0].mxu0 %v4043
        %v4218 = vpop.f32.mrb[0].mxu0
        %v4219 = vadd.f32 0.0, %v4218
        %v4220 = vpop.f32.mrb[0].mxu0
        %4221 = vmatprep.mubr.f32.mxu0 0.0
        %4222 = vmatmul.mubr.f32.gmra.mrb[0].mxu0 %v4046
        %v4223 = vpop.f32.mrb[0].mxu0
        %v4224 = vadd.f32 0.0, %v4223
        %v4225 = vpop.f32.mrb[0].mxu0
        %4226 = vmatprep.mubr.f32.mxu0 0.0
        %4227 = vmatmul.mubr.f32.gmra.mrb[0].mxu0 %v4049
        %v4228 = vpop.f32.mrb[0].mxu0
        %v4229 = vadd.f32 0.0, %v4228
        %v4230 = vpop.f32.mrb[0].mxu0
        %4231 = vmatprep.mubr.f32.mxu0 0.0
        %4232 = vmatmul.mubr.f32.gmra.mrb[0].mxu0 %v4052
        %v4233 = vpop.f32.mrb[0].mxu0
        %v4234 = vadd.f32 0.0, %v4233
        %v4235 = vpop.f32.mrb[0].mxu0
        %4236 = vmatprep.mubr.f32.mxu0 0.0
        %4237 = vmatmul.mubr.f32.gmra.mrb[0].mxu0 %v4055
        %v4238 = vpop.f32.mrb[0].mxu0
        %v4239 = vadd.f32 0.0, %v4238
        %v4240 = vpop.f32.mrb[0].mxu0
        %4241 = vmatprep.mubr.f32.mxu0 0.0
        %4242 = vmatmul.mubr.f32.gmra.mrb[0].mxu0 %v4058
        %v4243 = vpop.f32.mrb[0].mxu0
        %v4244 = vadd.f32 0.0, %v4243
        %v4245 = vpop.f32.mrb[0].mxu0
        %4246 = vmatprep.mubr.f32.mxu0 0.0
        %4247 = vmatmul.mubr.f32.gmra.mrb[0].mxu0 %v4061
        %v4248 = vpop.f32.mrb[0].mxu0
        %v4249 = vadd.f32 0.0, %v4248
        %v4250 = vpop.f32.mrb[0].mxu0
        %4251 = vmatprep.mubr.f32.mxu0 0.0
        %4252 = vmatmul.mubr.f32.gmra.mrb[0].mxu0 %v4064
        %v4253 = vpop.f32.mrb[0].mxu0
        %v4254 = vadd.f32 0.0, %v4253
        %v4255 = vpop.f32.mrb[0].mxu0
        %4256 = vmatprep.mubr.f32.mxu0 0.0
        %4257 = vmatmul.mubr.f32.gmra.mrb[0].mxu0 %v4067
        %v4258 = vpop.f32.mrb[0].mxu0
        %v4259 = vadd.f32 0.0, %v4258
        %v4260 = vpop.f32.mrb[0].mxu0
        %4261 = vmatprep.mubr.f32.mxu0 0.0
        %4262 = vmatmul.mubr.f32.gmra.mrb[0].mxu0 %v4070
        %v4263 = vpop.f32.mrb[0].mxu0
        %v4264 = vadd.f32 0.0, %v4263
        %v4265 = vpop.f32.mrb[0].mxu0
        %4266 = vmatprep.mubr.f32.mxu0 0.0
        %4267 = vmatmul.mubr.f32.gmra.mrb[0].mxu0 %v4073
        %v4268 = vpop.f32.mrb[0].mxu0
        %v4269 = vadd.f32 0.0, %v4268
        %v4270 = vpop.f32.mrb[0].mxu0
        %4271 = vmatprep.mubr.f32.mxu0 0.0
        %4272 = vmatmul.mubr.f32.gmra.mrb[0].mxu0 %v4076
        %v4273 = vpop.f32.mrb[0].mxu0
        %v4274 = vadd.f32 0.0, %v4273
        %v4275 = vpop.f32.mrb[0].mxu0
        %4276 = vmatprep.mubr.f32.mxu0 0.0
        %4277 = vmatmul.mubr.f32.gmra.mrb[0].mxu0 %v4079
        %v4278 = vpop.f32.mrb[0].mxu0
        %v4279 = vadd.f32 0.0, %v4278
        %v4280 = vpop.f32.mrb[0].mxu0
        %4281 = vmatprep.mubr.f32.mxu0 0.0
        %4282 = vmatmul.mubr.f32.gmra.mrb[0].mxu0 %v4082
        %v4283 = vpop.f32.mrb[0].mxu0
        %v4284 = vadd.f32 0.0, %v4283
        %v4285 = vpop.f32.mrb[0].mxu0
        %4286 = vmatprep.mubr.f32.mxu0 0.0
        %4287 = vmatmul.mubr.f32.gmra.mrb[0].mxu0 %v4085
        %v4288 = vpop.f32.mrb[0].mxu0
        %v4289 = vadd.f32 0.0, %v4288
        %v4290 = vpop.f32.mrb[0].mxu0
        %4291 = vmatprep.mubr.f32.mxu0 0.0
        %4292 = vmatmul.mubr.f32.gmra.mrb[0].mxu0 %v4088
        %v4293 = vpop.f32.mrb[0].mxu0
        %v4294 = vadd.f32 0.0, %v4293
        %v4295 = vpop.f32.mrb[0].mxu0
        %4296 = vmatprep.mubr.f32.mxu0 0.0
        %4297 = vmatmul.mubr.f32.gmra.mrb[0].mxu0 %v4091
        %v4298 = vpop.f32.mrb[0].mxu0
        %v4299 = vadd.f32 0.0, %v4298
        %v4300 = vpop.f32.mrb[0].mxu0
        %4301 = vmatprep.mubr.f32.mxu0 0.0
        %4302 = vmatmul.mubr.f32.gmra.mrb[0].mxu0 %v4094
        %v4303 = vpop.f32.mrb[0].mxu0
        %v4304 = vadd.f32 0.0, %v4303
        %v4305 = vpop.f32.mrb[0].mxu0
        %4306 = vmatprep.mubr.f32.mxu0 0.0
        %4307 = vmatmul.mubr.f32.gmra.mrb[0].mxu0 %v4097
        %v4308 = vpop.f32.mrb[0].mxu0
        %v4309 = vadd.f32 0.0, %v4308
        %v4310 = vpop.f32.mrb[0].mxu0
        %4311 = vmatprep.mubr.f32.mxu0 0.0
        %4312 = vmatmul.mubr.f32.gmra.mrb[0].mxu0 %v4100
        %v4313 = vpop.f32.mrb[0].mxu0
        %v4314 = vadd.f32 0.0, %v4313
        %v4315 = vpop.f32.mrb[0].mxu0
        %4316 = vmatprep.mubr.f32.mxu0 0.0
        %4317 = vmatmul.mubr.f32.gmra.mrb[0].mxu0 %v4103
        %v4318 = vpop.f32.mrb[0].mxu0
        %v4319 = vadd.f32 0.0, %v4318
        %v4320 = vpop.f32.mrb[0].mxu0
        %4321 = vmatprep.mubr.f32.mxu0 0.0
        %4322 = vmatmul.mubr.f32.gmra.mrb[0].mxu0 %v4106
        %v4323 = vpop.f32.mrb[0].mxu0
        %v4324 = vadd.f32 0.0, %v4323
        %v4325 = vpop.f32.mrb[0].mxu0
        %4326 = vmatprep.mubr.f32.mxu0 0.0
        %4327 = vmatmul.mubr.f32.gmra.mrb[0].mxu0 %v4109
        %v4328 = vpop.f32.mrb[0].mxu0
        %v4329 = vadd.f32 0.0, %v4328
        %v4330 = vpop.f32.mrb[0].mxu0
        %4331 = vmatprep.mubr.f32.mxu0 0.0
        %4332 = vmatmul.mubr.f32.gmra.mrb[0].mxu0 %v4112
        %v4333 = vpop.f32.mrb[0].mxu0
        %v4334 = vadd.f32 0.0, %v4333
        %v4335 = vpop.f32.mrb[0].mxu0
        %4336 = vmatprep.mubr.f32.mxu0 0.0
        %4337 = vmatmul.mubr.f32.gmra.mrb[0].mxu0 %v4115
        %v4338 = vpop.f32.mrb[0].mxu0
        %v4339 = vadd.f32 0.0, %v4338
        %v4340 = vpop.f32.mrb[0].mxu0
        %4341 = vdwg.mxu0
        %v4342 = vadd.f32 %v3952, %v4184
        %v4343 = vadd.f32 %v3953, %v4189
        %v4344 = vadd.f32 %v3954, %v4194
        %v4345 = vadd.f32 %v3955, %v4199
        %v4346 = vadd.f32 %v3956, %v4204
        %v4347 = vadd.f32 %v3957, %v4209
        %v4348 = vadd.f32 %v3958, %v4214
        %v4349 = vadd.f32 %v3959, %v4219
        %v4350 = vadd.f32 %v3960, %v4224
        %v4351 = vadd.f32 %v3961, %v4229
        %v4352 = vadd.f32 %v3962, %v4234
        %v4353 = vadd.f32 %v3963, %v4239
        %v4354 = vadd.f32 %v3964, %v4244
        %v4355 = vadd.f32 %v3965, %v4249
        %v4356 = vadd.f32 %v3966, %v4254
        %v4357 = vadd.f32 %v3967, %v4259
        %v4358 = vadd.f32 %v3968, %v4264
        %v4359 = vadd.f32 %v3969, %v4269
        %v4360 = vadd.f32 %v3970, %v4274
        %v4361 = vadd.f32 %v3971, %v4279
        %v4362 = vadd.f32 %v3972, %v4284
        %v4363 = vadd.f32 %v3973, %v4289
        %v4364 = vadd.f32 %v3974, %v4294
        %v4365 = vadd.f32 %v3975, %v4299
        %v4366 = vadd.f32 %v3976, %v4304
        %v4367 = vadd.f32 %v3977, %v4309
        %v4368 = vadd.f32 %v3978, %v4314
        %v4369 = vadd.f32 %v3979, %v4319
        %v4370 = vadd.f32 %v3980, %v4324
        %v4371 = vadd.f32 %v3981, %v4329
        %v4372 = vadd.f32 %v3982, %v4334
        %v4373 = vadd.f32 %v3983, %v4339
        %v4374 = vld [vmem:[%s3593 + $0x9] sm:$0xff]
        %v4375 = vld [vmem:[%s3593 + $0x11] sm:$0xff]
        %v4376 = vld [vmem:[%s3593 + $0x29] sm:$0xff]
        %v4377 = vld [vmem:[%s3593 + $0x31] sm:$0xff]
        %v4378 = vld [vmem:[%s3593 + $0x49] sm:$0xff]
        %v4379 = vld [vmem:[%s3593 + $0x51] sm:$0xff]
        %v4380 = vld [vmem:[%s3593 + $0x69] sm:$0xff]
        %v4381 = vld [vmem:[%s3593 + $0x71] sm:$0xff]
        %v4382 = vld [vmem:[%s3593 + $0x89] sm:$0xff]
        %v4383 = vld [vmem:[%s3593 + $0x91] sm:$0xff]
        %v4384 = vld [vmem:[%s3593 + $0xa9] sm:$0xff]
        %v4385 = vld [vmem:[%s3593 + $0xb1] sm:$0xff]
        %v4386 = vld [vmem:[%s3593 + $0xc9] sm:$0xff]
        %v4387 = vld [vmem:[%s3593 + $0xd1] sm:$0xff]
        %v4388 = vld [vmem:[%s3593 + $0xe9] sm:$0xff]
        %v4389 = vld [vmem:[%s3593 + $0xf1] sm:$0xff]
        %v4390 = vld [vmem:[%s3593 + $0x109] sm:$0xff]
        %v4391 = vld [vmem:[%s3593 + $0x111] sm:$0xff]
        %v4392 = vld [vmem:[%s3593 + $0x129] sm:$0xff]
        %v4393 = vld [vmem:[%s3593 + $0x131] sm:$0xff]
        %v4394 = vld [vmem:[%s3593 + $0x149] sm:$0xff]
        %v4395 = vld [vmem:[%s3593 + $0x151] sm:$0xff]
        %v4396 = vld [vmem:[%s3593 + $0x169] sm:$0xff]
        %v4397 = vld [vmem:[%s3593 + $0x171] sm:$0xff]
        %v4398 = vld [vmem:[%s3593 + $0x189] sm:$0xff]
        %v4399 = vld [vmem:[%s3593 + $0x191] sm:$0xff]
        %v4400 = vld [vmem:[%s3593 + $0x1a9] sm:$0xff]
        %v4401 = vld [vmem:[%s3593 + $0x1b1] sm:$0xff]
        %v4402 = vld [vmem:[%s3593 + $0x1c9] sm:$0xff]
        %v4403 = vld [vmem:[%s3593 + $0x1d1] sm:$0xff]
        %v4404 = vld [vmem:[%s3593 + $0x1e9] sm:$0xff]
        %v4405 = vld [vmem:[%s3593 + $0x1f1] sm:$0xff]
        %s4406 = scalar_lea.vmem %s5, 256
        %v4407 = vld [vmem:[%s4406] sm:$0xff]
        %v4408 = vld [vmem:[%s4406 + $0x8] sm:$0xff]
        %v4409 = vld [vmem:[%s4406 + $0x10] sm:$0xff]
        %v4410 = vld [vmem:[%s4406 + $0x18] sm:$0xff]
        %v4412 = vsel %vm531, %v4374, 0
        %v4415 = vsel %vm531, %v4375, 0
        %v4418 = vsel %vm531, %v4376, 0
        %v4421 = vsel %vm531, %v4377, 0
        %v4424 = vsel %vm531, %v4378, 0
        %v4427 = vsel %vm531, %v4379, 0
        %v4430 = vsel %vm531, %v4380, 0
        %v4433 = vsel %vm531, %v4381, 0
        %v4436 = vsel %vm531, %v4382, 0
        %v4439 = vsel %vm531, %v4383, 0
        %v4442 = vsel %vm531, %v4384, 0
        %v4445 = vsel %vm531, %v4385, 0
        %v4448 = vsel %vm531, %v4386, 0
        %v4451 = vsel %vm531, %v4387, 0
        %v4454 = vsel %vm531, %v4388, 0
        %v4457 = vsel %vm531, %v4389, 0
        %v4460 = vsel %vm531, %v4390, 0
        %v4463 = vsel %vm531, %v4391, 0
        %v4466 = vsel %vm531, %v4392, 0
        %v4469 = vsel %vm531, %v4393, 0
        %v4472 = vsel %vm531, %v4394, 0
        %v4475 = vsel %vm531, %v4395, 0
        %v4478 = vsel %vm531, %v4396, 0
        %v4481 = vsel %vm531, %v4397, 0
        %v4484 = vsel %vm531, %v4398, 0
        %v4487 = vsel %vm531, %v4399, 0
        %v4490 = vsel %vm531, %v4400, 0
        %v4493 = vsel %vm531, %v4401, 0
        %v4496 = vsel %vm531, %v4402, 0
        %v4499 = vsel %vm531, %v4403, 0
        %v4502 = vsel %vm531, %v4404, 0
        %v4505 = vsel %vm531, %v4405, 0
        %4507 = vmatprep.subr.mxu0 0.0
        %4508 = vmatpush1.msra.mxu0 %v4407
        %4509 = vmatprep.subr.mxu0 0.0
        %4510 = vmatpush1.msra.mxu0 %v4408
        %4511 = vmatprep.subr.mxu0 0.0
        %4512 = vmatpush1.msra.mxu0 %v4409
        %4513 = vmatprep.subr.mxu0 0.0
        %4514 = vmatpush1.msra.mxu0 %v4410
        %4515 = vmatprep.subr.mxu0 0.0
        %4516 = vmatpush1.msra.mxu0 0.0
        %4517 = vmatprep.subr.mxu0 0.0
        %4518 = vmatpush1.msra.mxu0 0.0
        %4519 = vmatprep.subr.mxu0 0.0
        %4520 = vmatpush1.msra.mxu0 0.0
        %4521 = vmatprep.subr.mxu0 0.0
        %4522 = vmatpush1.msra.mxu0 0.0
        %4523 = vmatprep.subr.mxu0 0.0
        %4524 = vmatpush1.msra.mxu0 0.0
        %4525 = vmatprep.subr.mxu0 0.0
        %4526 = vmatpush1.msra.mxu0 0.0
        %4527 = vmatprep.subr.mxu0 0.0
        %4528 = vmatpush1.msra.mxu0 0.0
        %4529 = vmatprep.subr.mxu0 0.0
        %4530 = vmatpush1.msra.mxu0 0.0
        %4531 = vmatprep.subr.mxu0 0.0
        %4532 = vmatpush1.msra.mxu0 0.0
        %4533 = vmatprep.subr.mxu0 0.0
        %4534 = vmatpush1.msra.mxu0 0.0
        %4535 = vmatprep.subr.mxu0 0.0
        %4536 = vmatpush1.msra.mxu0 0.0
        %4537 = vmatprep.subr.mxu0 0.0
        %4538 = vmatpush1.msra.mxu0 0.0
        %4539 = vmatprep.subr.mxu0 0.0
        %4540 = vmatpush1.msra.mxu0 0.0
        %4541 = vmatprep.subr.mxu0 0.0
        %4542 = vmatpush1.msra.mxu0 0.0
        %4543 = vmatprep.subr.mxu0 0.0
        %4544 = vmatpush1.msra.mxu0 0.0
        %4545 = vmatprep.subr.mxu0 0.0
        %4546 = vmatpush1.msra.mxu0 0.0
        %4547 = vmatprep.subr.mxu0 0.0
        %4548 = vmatpush1.msra.mxu0 0.0
        %4549 = vmatprep.subr.mxu0 0.0
        %4550 = vmatpush1.msra.mxu0 0.0
        %4551 = vmatprep.subr.mxu0 0.0
        %4552 = vmatpush1.msra.mxu0 0.0
        %4553 = vmatprep.subr.mxu0 0.0
        %4554 = vmatpush1.msra.mxu0 0.0
        %4555 = vmatprep.subr.mxu0 0.0
        %4556 = vmatpush1.msra.mxu0 0.0
        %4557 = vmatprep.subr.mxu0 0.0
        %4558 = vmatpush1.msra.mxu0 0.0
        %4559 = vmatprep.subr.mxu0 0.0
        %4560 = vmatpush1.msra.mxu0 0.0
        %4561 = vmatprep.subr.mxu0 0.0
        %4562 = vmatpush1.msra.mxu0 0.0
        %4563 = vmatprep.subr.mxu0 0.0
        %4564 = vmatpush1.msra.mxu0 0.0
        %4565 = vmatprep.subr.mxu0 0.0
        %4566 = vmatpush1.msra.mxu0 0.0
        %4567 = vmatprep.subr.mxu0 0.0
        %4568 = vmatpush1.msra.mxu0 0.0
        %4569 = vmatprep.subr.mxu0 0.0
        %4570 = vmatpush1.msra.mxu0 0.0
        %4571 = vmatprep.mubr.f32.mxu0 0.0
        %4572 = vmatmul.mubr.f32.gmra.mrb[0].mxu0 %v4412
        %v4573 = vpop.f32.mrb[0].mxu0
        %v4574 = vadd.f32 0.0, %v4573
        %v4575 = vpop.f32.mrb[0].mxu0
        %4576 = vmatprep.mubr.f32.mxu0 0.0
        %4577 = vmatmul.mubr.f32.gmra.mrb[0].mxu0 %v4415
        %v4578 = vpop.f32.mrb[0].mxu0
        %v4579 = vadd.f32 0.0, %v4578
        %v4580 = vpop.f32.mrb[0].mxu0
        %4581 = vmatprep.mubr.f32.mxu0 0.0
        %4582 = vmatmul.mubr.f32.gmra.mrb[0].mxu0 %v4418
        %v4583 = vpop.f32.mrb[0].mxu0
        %v4584 = vadd.f32 0.0, %v4583
        %v4585 = vpop.f32.mrb[0].mxu0
        %4586 = vmatprep.mubr.f32.mxu0 0.0
        %4587 = vmatmul.mubr.f32.gmra.mrb[0].mxu0 %v4421
        %v4588 = vpop.f32.mrb[0].mxu0
        %v4589 = vadd.f32 0.0, %v4588
        %v4590 = vpop.f32.mrb[0].mxu0
        %4591 = vmatprep.mubr.f32.mxu0 0.0
        %4592 = vmatmul.mubr.f32.gmra.mrb[0].mxu0 %v4424
        %v4593 = vpop.f32.mrb[0].mxu0
        %v4594 = vadd.f32 0.0, %v4593
        %v4595 = vpop.f32.mrb[0].mxu0
        %4596 = vmatprep.mubr.f32.mxu0 0.0
        %4597 = vmatmul.mubr.f32.gmra.mrb[0].mxu0 %v4427
        %v4598 = vpop.f32.mrb[0].mxu0
        %v4599 = vadd.f32 0.0, %v4598
        %v4600 = vpop.f32.mrb[0].mxu0
        %4601 = vmatprep.mubr.f32.mxu0 0.0
        %4602 = vmatmul.mubr.f32.gmra.mrb[0].mxu0 %v4430
        %v4603 = vpop.f32.mrb[0].mxu0
        %v4604 = vadd.f32 0.0, %v4603
        %v4605 = vpop.f32.mrb[0].mxu0
        %4606 = vmatprep.mubr.f32.mxu0 0.0
        %4607 = vmatmul.mubr.f32.gmra.mrb[0].mxu0 %v4433
        %v4608 = vpop.f32.mrb[0].mxu0
        %v4609 = vadd.f32 0.0, %v4608
        %v4610 = vpop.f32.mrb[0].mxu0
        %4611 = vmatprep.mubr.f32.mxu0 0.0
        %4612 = vmatmul.mubr.f32.gmra.mrb[0].mxu0 %v4436
        %v4613 = vpop.f32.mrb[0].mxu0
        %v4614 = vadd.f32 0.0, %v4613
        %v4615 = vpop.f32.mrb[0].mxu0
        %4616 = vmatprep.mubr.f32.mxu0 0.0
        %4617 = vmatmul.mubr.f32.gmra.mrb[0].mxu0 %v4439
        %v4618 = vpop.f32.mrb[0].mxu0
        %v4619 = vadd.f32 0.0, %v4618
        %v4620 = vpop.f32.mrb[0].mxu0
        %4621 = vmatprep.mubr.f32.mxu0 0.0
        %4622 = vmatmul.mubr.f32.gmra.mrb[0].mxu0 %v4442
        %v4623 = vpop.f32.mrb[0].mxu0
        %v4624 = vadd.f32 0.0, %v4623
        %v4625 = vpop.f32.mrb[0].mxu0
        %4626 = vmatprep.mubr.f32.mxu0 0.0
        %4627 = vmatmul.mubr.f32.gmra.mrb[0].mxu0 %v4445
        %v4628 = vpop.f32.mrb[0].mxu0
        %v4629 = vadd.f32 0.0, %v4628
        %v4630 = vpop.f32.mrb[0].mxu0
        %4631 = vmatprep.mubr.f32.mxu0 0.0
        %4632 = vmatmul.mubr.f32.gmra.mrb[0].mxu0 %v4448
        %v4633 = vpop.f32.mrb[0].mxu0
        %v4634 = vadd.f32 0.0, %v4633
        %v4635 = vpop.f32.mrb[0].mxu0
        %4636 = vmatprep.mubr.f32.mxu0 0.0
        %4637 = vmatmul.mubr.f32.gmra.mrb[0].mxu0 %v4451
        %v4638 = vpop.f32.mrb[0].mxu0
        %v4639 = vadd.f32 0.0, %v4638
        %v4640 = vpop.f32.mrb[0].mxu0
        %4641 = vmatprep.mubr.f32.mxu0 0.0
        %4642 = vmatmul.mubr.f32.gmra.mrb[0].mxu0 %v4454
        %v4643 = vpop.f32.mrb[0].mxu0
        %v4644 = vadd.f32 0.0, %v4643
        %v4645 = vpop.f32.mrb[0].mxu0
        %4646 = vmatprep.mubr.f32.mxu0 0.0
        %4647 = vmatmul.mubr.f32.gmra.mrb[0].mxu0 %v4457
        %v4648 = vpop.f32.mrb[0].mxu0
        %v4649 = vadd.f32 0.0, %v4648
        %v4650 = vpop.f32.mrb[0].mxu0
        %4651 = vmatprep.mubr.f32.mxu0 0.0
        %4652 = vmatmul.mubr.f32.gmra.mrb[0].mxu0 %v4460
        %v4653 = vpop.f32.mrb[0].mxu0
        %v4654 = vadd.f32 0.0, %v4653
        %v4655 = vpop.f32.mrb[0].mxu0
        %4656 = vmatprep.mubr.f32.mxu0 0.0
        %4657 = vmatmul.mubr.f32.gmra.mrb[0].mxu0 %v4463
        %v4658 = vpop.f32.mrb[0].mxu0
        %v4659 = vadd.f32 0.0, %v4658
        %v4660 = vpop.f32.mrb[0].mxu0
        %4661 = vmatprep.mubr.f32.mxu0 0.0
        %4662 = vmatmul.mubr.f32.gmra.mrb[0].mxu0 %v4466
        %v4663 = vpop.f32.mrb[0].mxu0
        %v4664 = vadd.f32 0.0, %v4663
        %v4665 = vpop.f32.mrb[0].mxu0
        %4666 = vmatprep.mubr.f32.mxu0 0.0
        %4667 = vmatmul.mubr.f32.gmra.mrb[0].mxu0 %v4469
        %v4668 = vpop.f32.mrb[0].mxu0
        %v4669 = vadd.f32 0.0, %v4668
        %v4670 = vpop.f32.mrb[0].mxu0
        %4671 = vmatprep.mubr.f32.mxu0 0.0
        %4672 = vmatmul.mubr.f32.gmra.mrb[0].mxu0 %v4472
        %v4673 = vpop.f32.mrb[0].mxu0
        %v4674 = vadd.f32 0.0, %v4673
        %v4675 = vpop.f32.mrb[0].mxu0
        %4676 = vmatprep.mubr.f32.mxu0 0.0
        %4677 = vmatmul.mubr.f32.gmra.mrb[0].mxu0 %v4475
        %v4678 = vpop.f32.mrb[0].mxu0
        %v4679 = vadd.f32 0.0, %v4678
        %v4680 = vpop.f32.mrb[0].mxu0
        %4681 = vmatprep.mubr.f32.mxu0 0.0
        %4682 = vmatmul.mubr.f32.gmra.mrb[0].mxu0 %v4478
        %v4683 = vpop.f32.mrb[0].mxu0
        %v4684 = vadd.f32 0.0, %v4683
        %v4685 = vpop.f32.mrb[0].mxu0
        %4686 = vmatprep.mubr.f32.mxu0 0.0
        %4687 = vmatmul.mubr.f32.gmra.mrb[0].mxu0 %v4481
        %v4688 = vpop.f32.mrb[0].mxu0
        %v4689 = vadd.f32 0.0, %v4688
        %v4690 = vpop.f32.mrb[0].mxu0
        %4691 = vmatprep.mubr.f32.mxu0 0.0
        %4692 = vmatmul.mubr.f32.gmra.mrb[0].mxu0 %v4484
        %v4693 = vpop.f32.mrb[0].mxu0
        %v4694 = vadd.f32 0.0, %v4693
        %v4695 = vpop.f32.mrb[0].mxu0
        %4696 = vmatprep.mubr.f32.mxu0 0.0
        %4697 = vmatmul.mubr.f32.gmra.mrb[0].mxu0 %v4487
        %v4698 = vpop.f32.mrb[0].mxu0
        %v4699 = vadd.f32 0.0, %v4698
        %v4700 = vpop.f32.mrb[0].mxu0
        %4701 = vmatprep.mubr.f32.mxu0 0.0
        %4702 = vmatmul.mubr.f32.gmra.mrb[0].mxu0 %v4490
        %v4703 = vpop.f32.mrb[0].mxu0
        %v4704 = vadd.f32 0.0, %v4703
        %v4705 = vpop.f32.mrb[0].mxu0
        %4706 = vmatprep.mubr.f32.mxu0 0.0
        %4707 = vmatmul.mubr.f32.gmra.mrb[0].mxu0 %v4493
        %v4708 = vpop.f32.mrb[0].mxu0
        %v4709 = vadd.f32 0.0, %v4708
        %v4710 = vpop.f32.mrb[0].mxu0
        %4711 = vmatprep.mubr.f32.mxu0 0.0
        %4712 = vmatmul.mubr.f32.gmra.mrb[0].mxu0 %v4496
        %v4713 = vpop.f32.mrb[0].mxu0
        %v4714 = vadd.f32 0.0, %v4713
        %v4715 = vpop.f32.mrb[0].mxu0
        %4716 = vmatprep.mubr.f32.mxu0 0.0
        %4717 = vmatmul.mubr.f32.gmra.mrb[0].mxu0 %v4499
        %v4718 = vpop.f32.mrb[0].mxu0
        %v4719 = vadd.f32 0.0, %v4718
        %v4720 = vpop.f32.mrb[0].mxu0
        %4721 = vmatprep.mubr.f32.mxu0 0.0
        %4722 = vmatmul.mubr.f32.gmra.mrb[0].mxu0 %v4502
        %v4723 = vpop.f32.mrb[0].mxu0
        %v4724 = vadd.f32 0.0, %v4723
        %v4725 = vpop.f32.mrb[0].mxu0
        %4726 = vmatprep.mubr.f32.mxu0 0.0
        %4727 = vmatmul.mubr.f32.gmra.mrb[0].mxu0 %v4505
        %v4728 = vpop.f32.mrb[0].mxu0
        %v4729 = vadd.f32 0.0, %v4728
        %v4730 = vpop.f32.mrb[0].mxu0
        %4731 = vdwg.mxu0
        %v4732 = vadd.f32 %v4342, %v4574
        %v4733 = vadd.f32 %v4343, %v4579
        %v4734 = vadd.f32 %v4344, %v4584
        %v4735 = vadd.f32 %v4345, %v4589
        %v4736 = vadd.f32 %v4346, %v4594
        %v4737 = vadd.f32 %v4347, %v4599
        %v4738 = vadd.f32 %v4348, %v4604
        %v4739 = vadd.f32 %v4349, %v4609
        %v4740 = vadd.f32 %v4350, %v4614
        %v4741 = vadd.f32 %v4351, %v4619
        %v4742 = vadd.f32 %v4352, %v4624
        %v4743 = vadd.f32 %v4353, %v4629
        %v4744 = vadd.f32 %v4354, %v4634
        %v4745 = vadd.f32 %v4355, %v4639
        %v4746 = vadd.f32 %v4356, %v4644
        %v4747 = vadd.f32 %v4357, %v4649
        %v4748 = vadd.f32 %v4358, %v4654
        %v4749 = vadd.f32 %v4359, %v4659
        %v4750 = vadd.f32 %v4360, %v4664
        %v4751 = vadd.f32 %v4361, %v4669
        %v4752 = vadd.f32 %v4362, %v4674
        %v4753 = vadd.f32 %v4363, %v4679
        %v4754 = vadd.f32 %v4364, %v4684
        %v4755 = vadd.f32 %v4365, %v4689
        %v4756 = vadd.f32 %v4366, %v4694
        %v4757 = vadd.f32 %v4367, %v4699
        %v4758 = vadd.f32 %v4368, %v4704
        %v4759 = vadd.f32 %v4369, %v4709
        %v4760 = vadd.f32 %v4370, %v4714
        %v4761 = vadd.f32 %v4371, %v4719
        %v4762 = vadd.f32 %v4372, %v4724
        %v4763 = vadd.f32 %v4373, %v4729
        %v4764 = vld [vmem:[%s6] sm:$0x1]
        %v4766 = vlaneseq
        %v4767 = vshrl.u32 %v4766, 7
        %v4768 = vsub.s32 0, %v4767
        %v4769 = vrot.slane %v4764, %v4768
        %v4771 = vadd.f32 %v4732, %v4769
        %v4772 = vadd.f32 %v4733, %v4769
        %v4773 = vadd.f32 %v4734, %v4769
        %v4774 = vadd.f32 %v4735, %v4769
        %v4775 = vadd.f32 %v4736, %v4769
        %v4776 = vadd.f32 %v4737, %v4769
        %v4777 = vadd.f32 %v4738, %v4769
        %v4778 = vadd.f32 %v4739, %v4769
        %v4779 = vadd.f32 %v4740, %v4769
        %v4780 = vadd.f32 %v4741, %v4769
        %v4781 = vadd.f32 %v4742, %v4769
        %v4782 = vadd.f32 %v4743, %v4769
        %v4783 = vadd.f32 %v4744, %v4769
        %v4784 = vadd.f32 %v4745, %v4769
        %v4785 = vadd.f32 %v4746, %v4769
        %v4786 = vadd.f32 %v4747, %v4769
        %v4787 = vadd.f32 %v4748, %v4769
        %v4788 = vadd.f32 %v4749, %v4769
        %v4789 = vadd.f32 %v4750, %v4769
        %v4790 = vadd.f32 %v4751, %v4769
        %v4791 = vadd.f32 %v4752, %v4769
        %v4792 = vadd.f32 %v4753, %v4769
        %v4793 = vadd.f32 %v4754, %v4769
        %v4794 = vadd.f32 %v4755, %v4769
        %v4795 = vadd.f32 %v4756, %v4769
        %v4796 = vadd.f32 %v4757, %v4769
        %v4797 = vadd.f32 %v4758, %v4769
        %v4798 = vadd.f32 %v4759, %v4769
        %v4799 = vadd.f32 %v4760, %v4769
        %v4800 = vadd.f32 %v4761, %v4769
        %v4801 = vadd.f32 %v4762, %v4769
        %v4802 = vadd.f32 %v4763, %v4769
        %vm4803 = vcmp.ge.f32.partialorder %v4771, 0.0
        %vm4804 = vcmp.ge.f32.partialorder %v4772, 0.0
        %vm4805 = vcmp.ge.f32.partialorder %v4773, 0.0
        %vm4806 = vcmp.ge.f32.partialorder %v4774, 0.0
        %vm4807 = vcmp.ge.f32.partialorder %v4775, 0.0
        %vm4808 = vcmp.ge.f32.partialorder %v4776, 0.0
        %vm4809 = vcmp.ge.f32.partialorder %v4777, 0.0
        %vm4810 = vcmp.ge.f32.partialorder %v4778, 0.0
        %vm4811 = vcmp.ge.f32.partialorder %v4779, 0.0
        %vm4812 = vcmp.ge.f32.partialorder %v4780, 0.0
        %vm4813 = vcmp.ge.f32.partialorder %v4781, 0.0
        %vm4814 = vcmp.ge.f32.partialorder %v4782, 0.0
        %vm4815 = vcmp.ge.f32.partialorder %v4783, 0.0
        %vm4816 = vcmp.ge.f32.partialorder %v4784, 0.0
        %vm4817 = vcmp.ge.f32.partialorder %v4785, 0.0
        %vm4818 = vcmp.ge.f32.partialorder %v4786, 0.0
        %vm4819 = vcmp.ge.f32.partialorder %v4787, 0.0
        %vm4820 = vcmp.ge.f32.partialorder %v4788, 0.0
        %vm4821 = vcmp.ge.f32.partialorder %v4789, 0.0
        %vm4822 = vcmp.ge.f32.partialorder %v4790, 0.0
        %vm4823 = vcmp.ge.f32.partialorder %v4791, 0.0
        %vm4824 = vcmp.ge.f32.partialorder %v4792, 0.0
        %vm4825 = vcmp.ge.f32.partialorder %v4793, 0.0
        %vm4826 = vcmp.ge.f32.partialorder %v4794, 0.0
        %vm4827 = vcmp.ge.f32.partialorder %v4795, 0.0
        %vm4828 = vcmp.ge.f32.partialorder %v4796, 0.0
        %vm4829 = vcmp.ge.f32.partialorder %v4797, 0.0
        %vm4830 = vcmp.ge.f32.partialorder %v4798, 0.0
        %vm4831 = vcmp.ge.f32.partialorder %v4799, 0.0
        %vm4832 = vcmp.ge.f32.partialorder %v4800, 0.0
        %vm4833 = vcmp.ge.f32.partialorder %v4801, 0.0
        %vm4834 = vcmp.ge.f32.partialorder %v4802, 0.0
        %v4835 = vmul.f32 %v4771, 0.01
        %v4836 = vmul.f32 %v4772, 0.01
        %v4837 = vmul.f32 %v4773, 0.01
        %v4838 = vmul.f32 %v4774, 0.01
        %v4839 = vmul.f32 %v4775, 0.01
        %v4840 = vmul.f32 %v4776, 0.01
        %v4841 = vmul.f32 %v4777, 0.01
        %v4842 = vmul.f32 %v4778, 0.01
        %v4843 = vmul.f32 %v4779, 0.01
        %v4844 = vmul.f32 %v4780, 0.01
        %v4845 = vmul.f32 %v4781, 0.01
        %v4846 = vmul.f32 %v4782, 0.01
        %v4847 = vmul.f32 %v4783, 0.01
        %v4848 = vmul.f32 %v4784, 0.01
        %v4849 = vmul.f32 %v4785, 0.01
        %v4850 = vmul.f32 %v4786, 0.01
        %v4851 = vmul.f32 %v4787, 0.01
        %v4852 = vmul.f32 %v4788, 0.01
        %v4853 = vmul.f32 %v4789, 0.01
        %v4854 = vmul.f32 %v4790, 0.01
        %v4855 = vmul.f32 %v4791, 0.01
        %v4856 = vmul.f32 %v4792, 0.01
        %v4857 = vmul.f32 %v4793, 0.01
        %v4858 = vmul.f32 %v4794, 0.01
        %v4859 = vmul.f32 %v4795, 0.01
        %v4860 = vmul.f32 %v4796, 0.01
        %v4861 = vmul.f32 %v4797, 0.01
        %v4862 = vmul.f32 %v4798, 0.01
        %v4863 = vmul.f32 %v4799, 0.01
        %v4864 = vmul.f32 %v4800, 0.01
        %v4865 = vmul.f32 %v4801, 0.01
        %v4866 = vmul.f32 %v4802, 0.01
        %v4867 = vsel %vm4803, %v4771, %v4835
        %v4868 = vsel %vm4804, %v4772, %v4836
        %v4869 = vsel %vm4805, %v4773, %v4837
        %v4870 = vsel %vm4806, %v4774, %v4838
        %v4871 = vsel %vm4807, %v4775, %v4839
        %v4872 = vsel %vm4808, %v4776, %v4840
        %v4873 = vsel %vm4809, %v4777, %v4841
        %v4874 = vsel %vm4810, %v4778, %v4842
        %v4875 = vsel %vm4811, %v4779, %v4843
        %v4876 = vsel %vm4812, %v4780, %v4844
        %v4877 = vsel %vm4813, %v4781, %v4845
        %v4878 = vsel %vm4814, %v4782, %v4846
        %v4879 = vsel %vm4815, %v4783, %v4847
        %v4880 = vsel %vm4816, %v4784, %v4848
        %v4881 = vsel %vm4817, %v4785, %v4849
        %v4882 = vsel %vm4818, %v4786, %v4850
        %v4883 = vsel %vm4819, %v4787, %v4851
        %v4884 = vsel %vm4820, %v4788, %v4852
        %v4885 = vsel %vm4821, %v4789, %v4853
        %v4886 = vsel %vm4822, %v4790, %v4854
        %v4887 = vsel %vm4823, %v4791, %v4855
        %v4888 = vsel %vm4824, %v4792, %v4856
        %v4889 = vsel %vm4825, %v4793, %v4857
        %v4890 = vsel %vm4826, %v4794, %v4858
        %v4891 = vsel %vm4827, %v4795, %v4859
        %v4892 = vsel %vm4828, %v4796, %v4860
        %v4893 = vsel %vm4829, %v4797, %v4861
        %v4894 = vsel %vm4830, %v4798, %v4862
        %v4895 = vsel %vm4831, %v4799, %v4863
        %v4896 = vsel %vm4832, %v4800, %v4864
        %v4897 = vsel %vm4833, %v4801, %v4865
        %v4898 = vsel %vm4834, %v4802, %v4866
        %v4899 = vld [vmem:[%s7] sm:$0xff]
        %v4900 = vld [vmem:[%s7 + $0x8] sm:$0xff]
        %v4901 = vld [vmem:[%s7 + $0x10] sm:$0xff]
        %v4902 = vld [vmem:[%s7 + $0x18] sm:$0xff]
        %v4903 = vld [vmem:[%s8] sm:$0xff]
        %v4904 = vld [vmem:[%s8 + $0x8] sm:$0xff]
        %v4905 = vld [vmem:[%s8 + $0x10] sm:$0xff]
        %v4906 = vld [vmem:[%s8 + $0x18] sm:$0xff]
        %4907 = vmatprep.subr.mxu0 0.0
        %4908 = vmatpush1.msra.mxu0 %v4903
        %4909 = vmatprep.subr.mxu0 0.0
        %4910 = vmatpush1.msra.mxu0 %v4904
        %4911 = vmatprep.subr.mxu0 0.0
        %4912 = vmatpush1.msra.mxu0 %v4905
        %4913 = vmatprep.subr.mxu0 0.0
        %4914 = vmatpush1.msra.mxu0 %v4906
        %4915 = vmatprep.subr.mxu0 0.0
        %4916 = vmatpush1.msra.mxu0 0.0
        %4917 = vmatprep.subr.mxu0 0.0
        %4918 = vmatpush1.msra.mxu0 0.0
        %4919 = vmatprep.subr.mxu0 0.0
        %4920 = vmatpush1.msra.mxu0 0.0
        %4921 = vmatprep.subr.mxu0 0.0
        %4922 = vmatpush1.msra.mxu0 0.0
        %4923 = vmatprep.subr.mxu0 0.0
        %4924 = vmatpush1.msra.mxu0 0.0
        %4925 = vmatprep.subr.mxu0 0.0
        %4926 = vmatpush1.msra.mxu0 0.0
        %4927 = vmatprep.subr.mxu0 0.0
        %4928 = vmatpush1.msra.mxu0 0.0
        %4929 = vmatprep.subr.mxu0 0.0
        %4930 = vmatpush1.msra.mxu0 0.0
        %4931 = vmatprep.subr.mxu0 0.0
        %4932 = vmatpush1.msra.mxu0 0.0
        %4933 = vmatprep.subr.mxu0 0.0
        %4934 = vmatpush1.msra.mxu0 0.0
        %4935 = vmatprep.subr.mxu0 0.0
        %4936 = vmatpush1.msra.mxu0 0.0
        %4937 = vmatprep.subr.mxu0 0.0
        %4938 = vmatpush1.msra.mxu0 0.0
        %4939 = vmatprep.subr.mxu0 0.0
        %4940 = vmatpush1.msra.mxu0 0.0
        %4941 = vmatprep.subr.mxu0 0.0
        %4942 = vmatpush1.msra.mxu0 0.0
        %4943 = vmatprep.subr.mxu0 0.0
        %4944 = vmatpush1.msra.mxu0 0.0
        %4945 = vmatprep.subr.mxu0 0.0
        %4946 = vmatpush1.msra.mxu0 0.0
        %4947 = vmatprep.subr.mxu0 0.0
        %4948 = vmatpush1.msra.mxu0 0.0
        %4949 = vmatprep.subr.mxu0 0.0
        %4950 = vmatpush1.msra.mxu0 0.0
        %4951 = vmatprep.subr.mxu0 0.0
        %4952 = vmatpush1.msra.mxu0 0.0
        %4953 = vmatprep.subr.mxu0 0.0
        %4954 = vmatpush1.msra.mxu0 0.0
        %4955 = vmatprep.subr.mxu0 0.0
        %4956 = vmatpush1.msra.mxu0 0.0
        %4957 = vmatprep.subr.mxu0 0.0
        %4958 = vmatpush1.msra.mxu0 0.0
        %4959 = vmatprep.subr.mxu0 0.0
        %4960 = vmatpush1.msra.mxu0 0.0
        %4961 = vmatprep.subr.mxu0 0.0
        %4962 = vmatpush1.msra.mxu0 0.0
        %4963 = vmatprep.subr.mxu0 0.0
        %4964 = vmatpush1.msra.mxu0 0.0
        %4965 = vmatprep.subr.mxu0 0.0
        %4966 = vmatpush1.msra.mxu0 0.0
        %4967 = vmatprep.subr.mxu0 0.0
        %4968 = vmatpush1.msra.mxu0 0.0
        %4969 = vmatprep.subr.mxu0 0.0
        %4970 = vmatpush1.msra.mxu0 0.0
        %4971 = vmatprep.mubr.f32.mxu0 0.0
        %4972 = vmatmul.mubr.f32.gmra.mrb[0].mxu0 %v533
        %v4973 = vpop.f32.mrb[0].mxu0
        %v4974 = vadd.f32 0.0, %v4973
        %v4975 = vpop.f32.mrb[0].mxu0
        %4976 = vmatprep.mubr.f32.mxu0 0.0
        %4977 = vmatmul.mubr.f32.gmra.mrb[0].mxu0 %v536
        %v4978 = vpop.f32.mrb[0].mxu0
        %v4979 = vadd.f32 0.0, %v4978
        %v4980 = vpop.f32.mrb[0].mxu0
        %4981 = vmatprep.mubr.f32.mxu0 0.0
        %4982 = vmatmul.mubr.f32.gmra.mrb[0].mxu0 %v539
        %v4983 = vpop.f32.mrb[0].mxu0
        %v4984 = vadd.f32 0.0, %v4983
        %v4985 = vpop.f32.mrb[0].mxu0
        %4986 = vmatprep.mubr.f32.mxu0 0.0
        %4987 = vmatmul.mubr.f32.gmra.mrb[0].mxu0 %v542
        %v4988 = vpop.f32.mrb[0].mxu0
        %v4989 = vadd.f32 0.0, %v4988
        %v4990 = vpop.f32.mrb[0].mxu0
        %4991 = vmatprep.mubr.f32.mxu0 0.0
        %4992 = vmatmul.mubr.f32.gmra.mrb[0].mxu0 %v545
        %v4993 = vpop.f32.mrb[0].mxu0
        %v4994 = vadd.f32 0.0, %v4993
        %v4995 = vpop.f32.mrb[0].mxu0
        %4996 = vmatprep.mubr.f32.mxu0 0.0
        %4997 = vmatmul.mubr.f32.gmra.mrb[0].mxu0 %v548
        %v4998 = vpop.f32.mrb[0].mxu0
        %v4999 = vadd.f32 0.0, %v4998
        %v5000 = vpop.f32.mrb[0].mxu0
        %5001 = vmatprep.mubr.f32.mxu0 0.0
        %5002 = vmatmul.mubr.f32.gmra.mrb[0].mxu0 %v551
        %v5003 = vpop.f32.mrb[0].mxu0
        %v5004 = vadd.f32 0.0, %v5003
        %v5005 = vpop.f32.mrb[0].mxu0
        %5006 = vmatprep.mubr.f32.mxu0 0.0
        %5007 = vmatmul.mubr.f32.gmra.mrb[0].mxu0 %v554
        %v5008 = vpop.f32.mrb[0].mxu0
        %v5009 = vadd.f32 0.0, %v5008
        %v5010 = vpop.f32.mrb[0].mxu0
        %5011 = vmatprep.mubr.f32.mxu0 0.0
        %5012 = vmatmul.mubr.f32.gmra.mrb[0].mxu0 %v557
        %v5013 = vpop.f32.mrb[0].mxu0
        %v5014 = vadd.f32 0.0, %v5013
        %v5015 = vpop.f32.mrb[0].mxu0
        %5016 = vmatprep.mubr.f32.mxu0 0.0
        %5017 = vmatmul.mubr.f32.gmra.mrb[0].mxu0 %v560
        %v5018 = vpop.f32.mrb[0].mxu0
        %v5019 = vadd.f32 0.0, %v5018
        %v5020 = vpop.f32.mrb[0].mxu0
        %5021 = vmatprep.mubr.f32.mxu0 0.0
        %5022 = vmatmul.mubr.f32.gmra.mrb[0].mxu0 %v563
        %v5023 = vpop.f32.mrb[0].mxu0
        %v5024 = vadd.f32 0.0, %v5023
        %v5025 = vpop.f32.mrb[0].mxu0
        %5026 = vmatprep.mubr.f32.mxu0 0.0
        %5027 = vmatmul.mubr.f32.gmra.mrb[0].mxu0 %v566
        %v5028 = vpop.f32.mrb[0].mxu0
        %v5029 = vadd.f32 0.0, %v5028
        %v5030 = vpop.f32.mrb[0].mxu0
        %5031 = vmatprep.mubr.f32.mxu0 0.0
        %5032 = vmatmul.mubr.f32.gmra.mrb[0].mxu0 %v569
        %v5033 = vpop.f32.mrb[0].mxu0
        %v5034 = vadd.f32 0.0, %v5033
        %v5035 = vpop.f32.mrb[0].mxu0
        %5036 = vmatprep.mubr.f32.mxu0 0.0
        %5037 = vmatmul.mubr.f32.gmra.mrb[0].mxu0 %v572
        %v5038 = vpop.f32.mrb[0].mxu0
        %v5039 = vadd.f32 0.0, %v5038
        %v5040 = vpop.f32.mrb[0].mxu0
        %5041 = vmatprep.mubr.f32.mxu0 0.0
        %5042 = vmatmul.mubr.f32.gmra.mrb[0].mxu0 %v575
        %v5043 = vpop.f32.mrb[0].mxu0
        %v5044 = vadd.f32 0.0, %v5043
        %v5045 = vpop.f32.mrb[0].mxu0
        %5046 = vmatprep.mubr.f32.mxu0 0.0
        %5047 = vmatmul.mubr.f32.gmra.mrb[0].mxu0 %v578
        %v5048 = vpop.f32.mrb[0].mxu0
        %v5049 = vadd.f32 0.0, %v5048
        %v5050 = vpop.f32.mrb[0].mxu0
        %5051 = vmatprep.mubr.f32.mxu0 0.0
        %5052 = vmatmul.mubr.f32.gmra.mrb[0].mxu0 %v581
        %v5053 = vpop.f32.mrb[0].mxu0
        %v5054 = vadd.f32 0.0, %v5053
        %v5055 = vpop.f32.mrb[0].mxu0
        %5056 = vmatprep.mubr.f32.mxu0 0.0
        %5057 = vmatmul.mubr.f32.gmra.mrb[0].mxu0 %v584
        %v5058 = vpop.f32.mrb[0].mxu0
        %v5059 = vadd.f32 0.0, %v5058
        %v5060 = vpop.f32.mrb[0].mxu0
        %5061 = vmatprep.mubr.f32.mxu0 0.0
        %5062 = vmatmul.mubr.f32.gmra.mrb[0].mxu0 %v587
        %v5063 = vpop.f32.mrb[0].mxu0
        %v5064 = vadd.f32 0.0, %v5063
        %v5065 = vpop.f32.mrb[0].mxu0
        %5066 = vmatprep.mubr.f32.mxu0 0.0
        %5067 = vmatmul.mubr.f32.gmra.mrb[0].mxu0 %v590
        %v5068 = vpop.f32.mrb[0].mxu0
        %v5069 = vadd.f32 0.0, %v5068
        %v5070 = vpop.f32.mrb[0].mxu0
        %5071 = vmatprep.mubr.f32.mxu0 0.0
        %5072 = vmatmul.mubr.f32.gmra.mrb[0].mxu0 %v593
        %v5073 = vpop.f32.mrb[0].mxu0
        %v5074 = vadd.f32 0.0, %v5073
        %v5075 = vpop.f32.mrb[0].mxu0
        %5076 = vmatprep.mubr.f32.mxu0 0.0
        %5077 = vmatmul.mubr.f32.gmra.mrb[0].mxu0 %v596
        %v5078 = vpop.f32.mrb[0].mxu0
        %v5079 = vadd.f32 0.0, %v5078
        %v5080 = vpop.f32.mrb[0].mxu0
        %5081 = vmatprep.mubr.f32.mxu0 0.0
        %5082 = vmatmul.mubr.f32.gmra.mrb[0].mxu0 %v599
        %v5083 = vpop.f32.mrb[0].mxu0
        %v5084 = vadd.f32 0.0, %v5083
        %v5085 = vpop.f32.mrb[0].mxu0
        %5086 = vmatprep.mubr.f32.mxu0 0.0
        %5087 = vmatmul.mubr.f32.gmra.mrb[0].mxu0 %v602
        %v5088 = vpop.f32.mrb[0].mxu0
        %v5089 = vadd.f32 0.0, %v5088
        %v5090 = vpop.f32.mrb[0].mxu0
        %5091 = vmatprep.mubr.f32.mxu0 0.0
        %5092 = vmatmul.mubr.f32.gmra.mrb[0].mxu0 %v605
        %v5093 = vpop.f32.mrb[0].mxu0
        %v5094 = vadd.f32 0.0, %v5093
        %v5095 = vpop.f32.mrb[0].mxu0
        %5096 = vmatprep.mubr.f32.mxu0 0.0
        %5097 = vmatmul.mubr.f32.gmra.mrb[0].mxu0 %v608
        %v5098 = vpop.f32.mrb[0].mxu0
        %v5099 = vadd.f32 0.0, %v5098
        %v5100 = vpop.f32.mrb[0].mxu0
        %5101 = vmatprep.mubr.f32.mxu0 0.0
        %5102 = vmatmul.mubr.f32.gmra.mrb[0].mxu0 %v611
        %v5103 = vpop.f32.mrb[0].mxu0
        %v5104 = vadd.f32 0.0, %v5103
        %v5105 = vpop.f32.mrb[0].mxu0
        %5106 = vmatprep.mubr.f32.mxu0 0.0
        %5107 = vmatmul.mubr.f32.gmra.mrb[0].mxu0 %v614
        %v5108 = vpop.f32.mrb[0].mxu0
        %v5109 = vadd.f32 0.0, %v5108
        %v5110 = vpop.f32.mrb[0].mxu0
        %5111 = vmatprep.mubr.f32.mxu0 0.0
        %5112 = vmatmul.mubr.f32.gmra.mrb[0].mxu0 %v617
        %v5113 = vpop.f32.mrb[0].mxu0
        %v5114 = vadd.f32 0.0, %v5113
        %v5115 = vpop.f32.mrb[0].mxu0
        %5116 = vmatprep.mubr.f32.mxu0 0.0
        %5117 = vmatmul.mubr.f32.gmra.mrb[0].mxu0 %v620
        %v5118 = vpop.f32.mrb[0].mxu0
        %v5119 = vadd.f32 0.0, %v5118
        %v5120 = vpop.f32.mrb[0].mxu0
        %5121 = vmatprep.mubr.f32.mxu0 0.0
        %5122 = vmatmul.mubr.f32.gmra.mrb[0].mxu0 %v623
        %v5123 = vpop.f32.mrb[0].mxu0
        %v5124 = vadd.f32 0.0, %v5123
        %v5125 = vpop.f32.mrb[0].mxu0
        %5126 = vmatprep.mubr.f32.mxu0 0.0
        %5127 = vmatmul.mubr.f32.gmra.mrb[0].mxu0 %v626
        %v5128 = vpop.f32.mrb[0].mxu0
        %v5129 = vadd.f32 0.0, %v5128
        %v5130 = vpop.f32.mrb[0].mxu0
        %5131 = vdwg.mxu0
        %5132 = vmatprep.subr.mxu0 0.0
        %5133 = vmatpush1.msra.mxu0 %v4899
        %5134 = vmatprep.subr.mxu0 0.0
        %5135 = vmatpush1.msra.mxu0 %v4900
        %5136 = vmatprep.subr.mxu0 0.0
        %5137 = vmatpush1.msra.mxu0 %v4901
        %5138 = vmatprep.subr.mxu0 0.0
        %5139 = vmatpush1.msra.mxu0 %v4902
        %5140 = vmatprep.subr.mxu0 0.0
        %5141 = vmatpush1.msra.mxu0 0.0
        %5142 = vmatprep.subr.mxu0 0.0
        %5143 = vmatpush1.msra.mxu0 0.0
        %5144 = vmatprep.subr.mxu0 0.0
        %5145 = vmatpush1.msra.mxu0 0.0
        %5146 = vmatprep.subr.mxu0 0.0
        %5147 = vmatpush1.msra.mxu0 0.0
        %5148 = vmatprep.subr.mxu0 0.0
        %5149 = vmatpush1.msra.mxu0 0.0
        %5150 = vmatprep.subr.mxu0 0.0
        %5151 = vmatpush1.msra.mxu0 0.0
        %5152 = vmatprep.subr.mxu0 0.0
        %5153 = vmatpush1.msra.mxu0 0.0
        %5154 = vmatprep.subr.mxu0 0.0
        %5155 = vmatpush1.msra.mxu0 0.0
        %5156 = vmatprep.subr.mxu0 0.0
        %5157 = vmatpush1.msra.mxu0 0.0
        %5158 = vmatprep.subr.mxu0 0.0
        %5159 = vmatpush1.msra.mxu0 0.0
        %5160 = vmatprep.subr.mxu0 0.0
        %5161 = vmatpush1.msra.mxu0 0.0
        %5162 = vmatprep.subr.mxu0 0.0
        %5163 = vmatpush1.msra.mxu0 0.0
        %5164 = vmatprep.subr.mxu0 0.0
        %5165 = vmatpush1.msra.mxu0 0.0
        %5166 = vmatprep.subr.mxu0 0.0
        %5167 = vmatpush1.msra.mxu0 0.0
        %5168 = vmatprep.subr.mxu0 0.0
        %5169 = vmatpush1.msra.mxu0 0.0
        %5170 = vmatprep.subr.mxu0 0.0
        %5171 = vmatpush1.msra.mxu0 0.0
        %5172 = vmatprep.subr.mxu0 0.0
        %5173 = vmatpush1.msra.mxu0 0.0
        %5174 = vmatprep.subr.mxu0 0.0
        %5175 = vmatpush1.msra.mxu0 0.0
        %5176 = vmatprep.subr.mxu0 0.0
        %5177 = vmatpush1.msra.mxu0 0.0
        %5178 = vmatprep.subr.mxu0 0.0
        %5179 = vmatpush1.msra.mxu0 0.0
        %5180 = vmatprep.subr.mxu0 0.0
        %5181 = vmatpush1.msra.mxu0 0.0
        %5182 = vmatprep.subr.mxu0 0.0
        %5183 = vmatpush1.msra.mxu0 0.0
        %5184 = vmatprep.subr.mxu0 0.0
        %5185 = vmatpush1.msra.mxu0 0.0
        %5186 = vmatprep.subr.mxu0 0.0
        %5187 = vmatpush1.msra.mxu0 0.0
        %5188 = vmatprep.subr.mxu0 0.0
        %5189 = vmatpush1.msra.mxu0 0.0
        %5190 = vmatprep.subr.mxu0 0.0
        %5191 = vmatpush1.msra.mxu0 0.0
        %5192 = vmatprep.subr.mxu0 0.0
        %5193 = vmatpush1.msra.mxu0 0.0
        %5194 = vmatprep.subr.mxu0 0.0
        %5195 = vmatpush1.msra.mxu0 0.0
        %5196 = vmatprep.mubr.f32.mxu0 0.0
        %5197 = vmatmul.mubr.f32.gmra.mrb[0].mxu0 %v854
        %v5198 = vpop.f32.mrb[0].mxu0
        %v5199 = vadd.f32 %v4974, %v5198
        %v5200 = vpop.f32.mrb[0].mxu0
        %5201 = vmatprep.mubr.f32.mxu0 0.0
        %5202 = vmatmul.mubr.f32.gmra.mrb[0].mxu0 %v857
        %v5203 = vpop.f32.mrb[0].mxu0
        %v5204 = vadd.f32 %v4979, %v5203
        %v5205 = vpop.f32.mrb[0].mxu0
        %5206 = vmatprep.mubr.f32.mxu0 0.0
        %5207 = vmatmul.mubr.f32.gmra.mrb[0].mxu0 %v860
        %v5208 = vpop.f32.mrb[0].mxu0
        %v5209 = vadd.f32 %v4984, %v5208
        %v5210 = vpop.f32.mrb[0].mxu0
        %5211 = vmatprep.mubr.f32.mxu0 0.0
        %5212 = vmatmul.mubr.f32.gmra.mrb[0].mxu0 %v863
        %v5213 = vpop.f32.mrb[0].mxu0
        %v5214 = vadd.f32 %v4989, %v5213
        %v5215 = vpop.f32.mrb[0].mxu0
        %5216 = vmatprep.mubr.f32.mxu0 0.0
        %5217 = vmatmul.mubr.f32.gmra.mrb[0].mxu0 %v866
        %v5218 = vpop.f32.mrb[0].mxu0
        %v5219 = vadd.f32 %v4994, %v5218
        %v5220 = vpop.f32.mrb[0].mxu0
        %5221 = vmatprep.mubr.f32.mxu0 0.0
        %5222 = vmatmul.mubr.f32.gmra.mrb[0].mxu0 %v869
        %v5223 = vpop.f32.mrb[0].mxu0
        %v5224 = vadd.f32 %v4999, %v5223
        %v5225 = vpop.f32.mrb[0].mxu0
        %5226 = vmatprep.mubr.f32.mxu0 0.0
        %5227 = vmatmul.mubr.f32.gmra.mrb[0].mxu0 %v872
        %v5228 = vpop.f32.mrb[0].mxu0
        %v5229 = vadd.f32 %v5004, %v5228
        %v5230 = vpop.f32.mrb[0].mxu0
        %5231 = vmatprep.mubr.f32.mxu0 0.0
        %5232 = vmatmul.mubr.f32.gmra.mrb[0].mxu0 %v875
        %v5233 = vpop.f32.mrb[0].mxu0
        %v5234 = vadd.f32 %v5009, %v5233
        %v5235 = vpop.f32.mrb[0].mxu0
        %5236 = vmatprep.mubr.f32.mxu0 0.0
        %5237 = vmatmul.mubr.f32.gmra.mrb[0].mxu0 %v878
        %v5238 = vpop.f32.mrb[0].mxu0
        %v5239 = vadd.f32 %v5014, %v5238
        %v5240 = vpop.f32.mrb[0].mxu0
        %5241 = vmatprep.mubr.f32.mxu0 0.0
        %5242 = vmatmul.mubr.f32.gmra.mrb[0].mxu0 %v881
        %v5243 = vpop.f32.mrb[0].mxu0
        %v5244 = vadd.f32 %v5019, %v5243
        %v5245 = vpop.f32.mrb[0].mxu0
        %5246 = vmatprep.mubr.f32.mxu0 0.0
        %5247 = vmatmul.mubr.f32.gmra.mrb[0].mxu0 %v884
        %v5248 = vpop.f32.mrb[0].mxu0
        %v5249 = vadd.f32 %v5024, %v5248
        %v5250 = vpop.f32.mrb[0].mxu0
        %5251 = vmatprep.mubr.f32.mxu0 0.0
        %5252 = vmatmul.mubr.f32.gmra.mrb[0].mxu0 %v887
        %v5253 = vpop.f32.mrb[0].mxu0
        %v5254 = vadd.f32 %v5029, %v5253
        %v5255 = vpop.f32.mrb[0].mxu0
        %5256 = vmatprep.mubr.f32.mxu0 0.0
        %5257 = vmatmul.mubr.f32.gmra.mrb[0].mxu0 %v890
        %v5258 = vpop.f32.mrb[0].mxu0
        %v5259 = vadd.f32 %v5034, %v5258
        %v5260 = vpop.f32.mrb[0].mxu0
        %5261 = vmatprep.mubr.f32.mxu0 0.0
        %5262 = vmatmul.mubr.f32.gmra.mrb[0].mxu0 %v893
        %v5263 = vpop.f32.mrb[0].mxu0
        %v5264 = vadd.f32 %v5039, %v5263
        %v5265 = vpop.f32.mrb[0].mxu0
        %5266 = vmatprep.mubr.f32.mxu0 0.0
        %5267 = vmatmul.mubr.f32.gmra.mrb[0].mxu0 %v896
        %v5268 = vpop.f32.mrb[0].mxu0
        %v5269 = vadd.f32 %v5044, %v5268
        %v5270 = vpop.f32.mrb[0].mxu0
        %5271 = vmatprep.mubr.f32.mxu0 0.0
        %5272 = vmatmul.mubr.f32.gmra.mrb[0].mxu0 %v899
        %v5273 = vpop.f32.mrb[0].mxu0
        %v5274 = vadd.f32 %v5049, %v5273
        %v5275 = vpop.f32.mrb[0].mxu0
        %5276 = vmatprep.mubr.f32.mxu0 0.0
        %5277 = vmatmul.mubr.f32.gmra.mrb[0].mxu0 %v902
        %v5278 = vpop.f32.mrb[0].mxu0
        %v5279 = vadd.f32 %v5054, %v5278
        %v5280 = vpop.f32.mrb[0].mxu0
        %5281 = vmatprep.mubr.f32.mxu0 0.0
        %5282 = vmatmul.mubr.f32.gmra.mrb[0].mxu0 %v905
        %v5283 = vpop.f32.mrb[0].mxu0
        %v5284 = vadd.f32 %v5059, %v5283
        %v5285 = vpop.f32.mrb[0].mxu0
        %5286 = vmatprep.mubr.f32.mxu0 0.0
        %5287 = vmatmul.mubr.f32.gmra.mrb[0].mxu0 %v908
        %v5288 = vpop.f32.mrb[0].mxu0
        %v5289 = vadd.f32 %v5064, %v5288
        %v5290 = vpop.f32.mrb[0].mxu0
        %5291 = vmatprep.mubr.f32.mxu0 0.0
        %5292 = vmatmul.mubr.f32.gmra.mrb[0].mxu0 %v911
        %v5293 = vpop.f32.mrb[0].mxu0
        %v5294 = vadd.f32 %v5069, %v5293
        %v5295 = vpop.f32.mrb[0].mxu0
        %5296 = vmatprep.mubr.f32.mxu0 0.0
        %5297 = vmatmul.mubr.f32.gmra.mrb[0].mxu0 %v914
        %v5298 = vpop.f32.mrb[0].mxu0
        %v5299 = vadd.f32 %v5074, %v5298
        %v5300 = vpop.f32.mrb[0].mxu0
        %5301 = vmatprep.mubr.f32.mxu0 0.0
        %5302 = vmatmul.mubr.f32.gmra.mrb[0].mxu0 %v917
        %v5303 = vpop.f32.mrb[0].mxu0
        %v5304 = vadd.f32 %v5079, %v5303
        %v5305 = vpop.f32.mrb[0].mxu0
        %5306 = vmatprep.mubr.f32.mxu0 0.0
        %5307 = vmatmul.mubr.f32.gmra.mrb[0].mxu0 %v920
        %v5308 = vpop.f32.mrb[0].mxu0
        %v5309 = vadd.f32 %v5084, %v5308
        %v5310 = vpop.f32.mrb[0].mxu0
        %5311 = vmatprep.mubr.f32.mxu0 0.0
        %5312 = vmatmul.mubr.f32.gmra.mrb[0].mxu0 %v923
        %v5313 = vpop.f32.mrb[0].mxu0
        %v5314 = vadd.f32 %v5089, %v5313
        %v5315 = vpop.f32.mrb[0].mxu0
        %5316 = vmatprep.mubr.f32.mxu0 0.0
        %5317 = vmatmul.mubr.f32.gmra.mrb[0].mxu0 %v926
        %v5318 = vpop.f32.mrb[0].mxu0
        %v5319 = vadd.f32 %v5094, %v5318
        %v5320 = vpop.f32.mrb[0].mxu0
        %5321 = vmatprep.mubr.f32.mxu0 0.0
        %5322 = vmatmul.mubr.f32.gmra.mrb[0].mxu0 %v929
        %v5323 = vpop.f32.mrb[0].mxu0
        %v5324 = vadd.f32 %v5099, %v5323
        %v5325 = vpop.f32.mrb[0].mxu0
        %5326 = vmatprep.mubr.f32.mxu0 0.0
        %5327 = vmatmul.mubr.f32.gmra.mrb[0].mxu0 %v932
        %v5328 = vpop.f32.mrb[0].mxu0
        %v5329 = vadd.f32 %v5104, %v5328
        %v5330 = vpop.f32.mrb[0].mxu0
        %5331 = vmatprep.mubr.f32.mxu0 0.0
        %5332 = vmatmul.mubr.f32.gmra.mrb[0].mxu0 %v935
        %v5333 = vpop.f32.mrb[0].mxu0
        %v5334 = vadd.f32 %v5109, %v5333
        %v5335 = vpop.f32.mrb[0].mxu0
        %5336 = vmatprep.mubr.f32.mxu0 0.0
        %5337 = vmatmul.mubr.f32.gmra.mrb[0].mxu0 %v938
        %v5338 = vpop.f32.mrb[0].mxu0
        %v5339 = vadd.f32 %v5114, %v5338
        %v5340 = vpop.f32.mrb[0].mxu0
        %5341 = vmatprep.mubr.f32.mxu0 0.0
        %5342 = vmatmul.mubr.f32.gmra.mrb[0].mxu0 %v941
        %v5343 = vpop.f32.mrb[0].mxu0
        %v5344 = vadd.f32 %v5119, %v5343
        %v5345 = vpop.f32.mrb[0].mxu0
        %5346 = vmatprep.mubr.f32.mxu0 0.0
        %5347 = vmatmul.mubr.f32.gmra.mrb[0].mxu0 %v944
        %v5348 = vpop.f32.mrb[0].mxu0
        %v5349 = vadd.f32 %v5124, %v5348
        %v5350 = vpop.f32.mrb[0].mxu0
        %5351 = vmatprep.mubr.f32.mxu0 0.0
        %5352 = vmatmul.mubr.f32.gmra.mrb[0].mxu0 %v947
        %v5353 = vpop.f32.mrb[0].mxu0
        %v5354 = vadd.f32 %v5129, %v5353
        %v5355 = vpop.f32.mrb[0].mxu0
        %5356 = vdwg.mxu0
        %v5357 = vld [vmem:[%s9] sm:$0xff]
        %v5358 = vld [vmem:[%s9 + $0x8] sm:$0xff]
        %v5359 = vld [vmem:[%s9 + $0x10] sm:$0xff]
        %v5360 = vld [vmem:[%s9 + $0x18] sm:$0xff]
        %v5362 = vsel %vm531, %v4867, 0
        %v5365 = vsel %vm531, %v4868, 0
        %v5368 = vsel %vm531, %v4869, 0
        %v5371 = vsel %vm531, %v4870, 0
        %v5374 = vsel %vm531, %v4871, 0
        %v5377 = vsel %vm531, %v4872, 0
        %v5380 = vsel %vm531, %v4873, 0
        %v5383 = vsel %vm531, %v4874, 0
        %v5386 = vsel %vm531, %v4875, 0
        %v5389 = vsel %vm531, %v4876, 0
        %v5392 = vsel %vm531, %v4877, 0
        %v5395 = vsel %vm531, %v4878, 0
        %v5398 = vsel %vm531, %v4879, 0
        %v5401 = vsel %vm531, %v4880, 0
        %v5404 = vsel %vm531, %v4881, 0
        %v5407 = vsel %vm531, %v4882, 0
        %v5410 = vsel %vm531, %v4883, 0
        %v5413 = vsel %vm531, %v4884, 0
        %v5416 = vsel %vm531, %v4885, 0
        %v5419 = vsel %vm531, %v4886, 0
        %v5422 = vsel %vm531, %v4887, 0
        %v5425 = vsel %vm531, %v4888, 0
        %v5428 = vsel %vm531, %v4889, 0
        %v5431 = vsel %vm531, %v4890, 0
        %v5434 = vsel %vm531, %v4891, 0
        %v5437 = vsel %vm531, %v4892, 0
        %v5440 = vsel %vm531, %v4893, 0
        %v5443 = vsel %vm531, %v4894, 0
        %v5446 = vsel %vm531, %v4895, 0
        %v5449 = vsel %vm531, %v4896, 0
        %v5452 = vsel %vm531, %v4897, 0
        %v5455 = vsel %vm531, %v4898, 0
        %5457 = vmatprep.subr.mxu0 0.0
        %5458 = vmatpush1.msra.mxu0 %v5357
        %5459 = vmatprep.subr.mxu0 0.0
        %5460 = vmatpush1.msra.mxu0 %v5358
        %5461 = vmatprep.subr.mxu0 0.0
        %5462 = vmatpush1.msra.mxu0 %v5359
        %5463 = vmatprep.subr.mxu0 0.0
        %5464 = vmatpush1.msra.mxu0 %v5360
        %5465 = vmatprep.subr.mxu0 0.0
        %5466 = vmatpush1.msra.mxu0 0.0
        %5467 = vmatprep.subr.mxu0 0.0
        %5468 = vmatpush1.msra.mxu0 0.0
        %5469 = vmatprep.subr.mxu0 0.0
        %5470 = vmatpush1.msra.mxu0 0.0
        %5471 = vmatprep.subr.mxu0 0.0
        %5472 = vmatpush1.msra.mxu0 0.0
        %5473 = vmatprep.subr.mxu0 0.0
        %5474 = vmatpush1.msra.mxu0 0.0
        %5475 = vmatprep.subr.mxu0 0.0
        %5476 = vmatpush1.msra.mxu0 0.0
        %5477 = vmatprep.subr.mxu0 0.0
        %5478 = vmatpush1.msra.mxu0 0.0
        %5479 = vmatprep.subr.mxu0 0.0
        %5480 = vmatpush1.msra.mxu0 0.0
        %5481 = vmatprep.subr.mxu0 0.0
        %5482 = vmatpush1.msra.mxu0 0.0
        %5483 = vmatprep.subr.mxu0 0.0
        %5484 = vmatpush1.msra.mxu0 0.0
        %5485 = vmatprep.subr.mxu0 0.0
        %5486 = vmatpush1.msra.mxu0 0.0
        %5487 = vmatprep.subr.mxu0 0.0
        %5488 = vmatpush1.msra.mxu0 0.0
        %5489 = vmatprep.subr.mxu0 0.0
        %5490 = vmatpush1.msra.mxu0 0.0
        %5491 = vmatprep.subr.mxu0 0.0
        %5492 = vmatpush1.msra.mxu0 0.0
        %5493 = vmatprep.subr.mxu0 0.0
        %5494 = vmatpush1.msra.mxu0 0.0
        %5495 = vmatprep.subr.mxu0 0.0
        %5496 = vmatpush1.msra.mxu0 0.0
        %5497 = vmatprep.subr.mxu0 0.0
        %5498 = vmatpush1.msra.mxu0 0.0
        %5499 = vmatprep.subr.mxu0 0.0
        %5500 = vmatpush1.msra.mxu0 0.0
        %5501 = vmatprep.subr.mxu0 0.0
        %5502 = vmatpush1.msra.mxu0 0.0
        %5503 = vmatprep.subr.mxu0 0.0
        %5504 = vmatpush1.msra.mxu0 0.0
        %5505 = vmatprep.subr.mxu0 0.0
        %5506 = vmatpush1.msra.mxu0 0.0
        %5507 = vmatprep.subr.mxu0 0.0
        %5508 = vmatpush1.msra.mxu0 0.0
        %5509 = vmatprep.subr.mxu0 0.0
        %5510 = vmatpush1.msra.mxu0 0.0
        %5511 = vmatprep.subr.mxu0 0.0
        %5512 = vmatpush1.msra.mxu0 0.0
        %5513 = vmatprep.subr.mxu0 0.0
        %5514 = vmatpush1.msra.mxu0 0.0
        %5515 = vmatprep.subr.mxu0 0.0
        %5516 = vmatpush1.msra.mxu0 0.0
        %5517 = vmatprep.subr.mxu0 0.0
        %5518 = vmatpush1.msra.mxu0 0.0
        %5519 = vmatprep.subr.mxu0 0.0
        %5520 = vmatpush1.msra.mxu0 0.0
        %5521 = vmatprep.mubr.f32.mxu0 0.0
        %5522 = vmatmul.mubr.f32.gmra.mrb[0].mxu0 %v5362
        %v5523 = vpop.f32.mrb[0].mxu0
        %v5524 = vadd.f32 0.0, %v5523
        %v5525 = vpop.f32.mrb[0].mxu0
        %5526 = vmatprep.mubr.f32.mxu0 0.0
        %5527 = vmatmul.mubr.f32.gmra.mrb[0].mxu0 %v5365
        %v5528 = vpop.f32.mrb[0].mxu0
        %v5529 = vadd.f32 0.0, %v5528
        %v5530 = vpop.f32.mrb[0].mxu0
        %5531 = vmatprep.mubr.f32.mxu0 0.0
        %5532 = vmatmul.mubr.f32.gmra.mrb[0].mxu0 %v5368
        %v5533 = vpop.f32.mrb[0].mxu0
        %v5534 = vadd.f32 0.0, %v5533
        %v5535 = vpop.f32.mrb[0].mxu0
        %5536 = vmatprep.mubr.f32.mxu0 0.0
        %5537 = vmatmul.mubr.f32.gmra.mrb[0].mxu0 %v5371
        %v5538 = vpop.f32.mrb[0].mxu0
        %v5539 = vadd.f32 0.0, %v5538
        %v5540 = vpop.f32.mrb[0].mxu0
        %5541 = vmatprep.mubr.f32.mxu0 0.0
        %5542 = vmatmul.mubr.f32.gmra.mrb[0].mxu0 %v5374
        %v5543 = vpop.f32.mrb[0].mxu0
        %v5544 = vadd.f32 0.0, %v5543
        %v5545 = vpop.f32.mrb[0].mxu0
        %5546 = vmatprep.mubr.f32.mxu0 0.0
        %5547 = vmatmul.mubr.f32.gmra.mrb[0].mxu0 %v5377
        %v5548 = vpop.f32.mrb[0].mxu0
        %v5549 = vadd.f32 0.0, %v5548
        %v5550 = vpop.f32.mrb[0].mxu0
        %5551 = vmatprep.mubr.f32.mxu0 0.0
        %5552 = vmatmul.mubr.f32.gmra.mrb[0].mxu0 %v5380
        %v5553 = vpop.f32.mrb[0].mxu0
        %v5554 = vadd.f32 0.0, %v5553
        %v5555 = vpop.f32.mrb[0].mxu0
        %5556 = vmatprep.mubr.f32.mxu0 0.0
        %5557 = vmatmul.mubr.f32.gmra.mrb[0].mxu0 %v5383
        %v5558 = vpop.f32.mrb[0].mxu0
        %v5559 = vadd.f32 0.0, %v5558
        %v5560 = vpop.f32.mrb[0].mxu0
        %5561 = vmatprep.mubr.f32.mxu0 0.0
        %5562 = vmatmul.mubr.f32.gmra.mrb[0].mxu0 %v5386
        %v5563 = vpop.f32.mrb[0].mxu0
        %v5564 = vadd.f32 0.0, %v5563
        %v5565 = vpop.f32.mrb[0].mxu0
        %5566 = vmatprep.mubr.f32.mxu0 0.0
        %5567 = vmatmul.mubr.f32.gmra.mrb[0].mxu0 %v5389
        %v5568 = vpop.f32.mrb[0].mxu0
        %v5569 = vadd.f32 0.0, %v5568
        %v5570 = vpop.f32.mrb[0].mxu0
        %5571 = vmatprep.mubr.f32.mxu0 0.0
        %5572 = vmatmul.mubr.f32.gmra.mrb[0].mxu0 %v5392
        %v5573 = vpop.f32.mrb[0].mxu0
        %v5574 = vadd.f32 0.0, %v5573
        %v5575 = vpop.f32.mrb[0].mxu0
        %5576 = vmatprep.mubr.f32.mxu0 0.0
        %5577 = vmatmul.mubr.f32.gmra.mrb[0].mxu0 %v5395
        %v5578 = vpop.f32.mrb[0].mxu0
        %v5579 = vadd.f32 0.0, %v5578
        %v5580 = vpop.f32.mrb[0].mxu0
        %5581 = vmatprep.mubr.f32.mxu0 0.0
        %5582 = vmatmul.mubr.f32.gmra.mrb[0].mxu0 %v5398
        %v5583 = vpop.f32.mrb[0].mxu0
        %v5584 = vadd.f32 0.0, %v5583
        %v5585 = vpop.f32.mrb[0].mxu0
        %5586 = vmatprep.mubr.f32.mxu0 0.0
        %5587 = vmatmul.mubr.f32.gmra.mrb[0].mxu0 %v5401
        %v5588 = vpop.f32.mrb[0].mxu0
        %v5589 = vadd.f32 0.0, %v5588
        %v5590 = vpop.f32.mrb[0].mxu0
        %5591 = vmatprep.mubr.f32.mxu0 0.0
        %5592 = vmatmul.mubr.f32.gmra.mrb[0].mxu0 %v5404
        %v5593 = vpop.f32.mrb[0].mxu0
        %v5594 = vadd.f32 0.0, %v5593
        %v5595 = vpop.f32.mrb[0].mxu0
        %5596 = vmatprep.mubr.f32.mxu0 0.0
        %5597 = vmatmul.mubr.f32.gmra.mrb[0].mxu0 %v5407
        %v5598 = vpop.f32.mrb[0].mxu0
        %v5599 = vadd.f32 0.0, %v5598
        %v5600 = vpop.f32.mrb[0].mxu0
        %5601 = vmatprep.mubr.f32.mxu0 0.0
        %5602 = vmatmul.mubr.f32.gmra.mrb[0].mxu0 %v5410
        %v5603 = vpop.f32.mrb[0].mxu0
        %v5604 = vadd.f32 0.0, %v5603
        %v5605 = vpop.f32.mrb[0].mxu0
        %5606 = vmatprep.mubr.f32.mxu0 0.0
        %5607 = vmatmul.mubr.f32.gmra.mrb[0].mxu0 %v5413
        %v5608 = vpop.f32.mrb[0].mxu0
        %v5609 = vadd.f32 0.0, %v5608
        %v5610 = vpop.f32.mrb[0].mxu0
        %5611 = vmatprep.mubr.f32.mxu0 0.0
        %5612 = vmatmul.mubr.f32.gmra.mrb[0].mxu0 %v5416
        %v5613 = vpop.f32.mrb[0].mxu0
        %v5614 = vadd.f32 0.0, %v5613
        %v5615 = vpop.f32.mrb[0].mxu0
        %5616 = vmatprep.mubr.f32.mxu0 0.0
        %5617 = vmatmul.mubr.f32.gmra.mrb[0].mxu0 %v5419
        %v5618 = vpop.f32.mrb[0].mxu0
        %v5619 = vadd.f32 0.0, %v5618
        %v5620 = vpop.f32.mrb[0].mxu0
        %5621 = vmatprep.mubr.f32.mxu0 0.0
        %5622 = vmatmul.mubr.f32.gmra.mrb[0].mxu0 %v5422
        %v5623 = vpop.f32.mrb[0].mxu0
        %v5624 = vadd.f32 0.0, %v5623
        %v5625 = vpop.f32.mrb[0].mxu0
        %5626 = vmatprep.mubr.f32.mxu0 0.0
        %5627 = vmatmul.mubr.f32.gmra.mrb[0].mxu0 %v5425
        %v5628 = vpop.f32.mrb[0].mxu0
        %v5629 = vadd.f32 0.0, %v5628
        %v5630 = vpop.f32.mrb[0].mxu0
        %5631 = vmatprep.mubr.f32.mxu0 0.0
        %5632 = vmatmul.mubr.f32.gmra.mrb[0].mxu0 %v5428
        %v5633 = vpop.f32.mrb[0].mxu0
        %v5634 = vadd.f32 0.0, %v5633
        %v5635 = vpop.f32.mrb[0].mxu0
        %5636 = vmatprep.mubr.f32.mxu0 0.0
        %5637 = vmatmul.mubr.f32.gmra.mrb[0].mxu0 %v5431
        %v5638 = vpop.f32.mrb[0].mxu0
        %v5639 = vadd.f32 0.0, %v5638
        %v5640 = vpop.f32.mrb[0].mxu0
        %5641 = vmatprep.mubr.f32.mxu0 0.0
        %5642 = vmatmul.mubr.f32.gmra.mrb[0].mxu0 %v5434
        %v5643 = vpop.f32.mrb[0].mxu0
        %v5644 = vadd.f32 0.0, %v5643
        %v5645 = vpop.f32.mrb[0].mxu0
        %5646 = vmatprep.mubr.f32.mxu0 0.0
        %5647 = vmatmul.mubr.f32.gmra.mrb[0].mxu0 %v5437
        %v5648 = vpop.f32.mrb[0].mxu0
        %v5649 = vadd.f32 0.0, %v5648
        %v5650 = vpop.f32.mrb[0].mxu0
        %5651 = vmatprep.mubr.f32.mxu0 0.0
        %5652 = vmatmul.mubr.f32.gmra.mrb[0].mxu0 %v5440
        %v5653 = vpop.f32.mrb[0].mxu0
        %v5654 = vadd.f32 0.0, %v5653
        %v5655 = vpop.f32.mrb[0].mxu0
        %5656 = vmatprep.mubr.f32.mxu0 0.0
        %5657 = vmatmul.mubr.f32.gmra.mrb[0].mxu0 %v5443
        %v5658 = vpop.f32.mrb[0].mxu0
        %v5659 = vadd.f32 0.0, %v5658
        %v5660 = vpop.f32.mrb[0].mxu0
        %5661 = vmatprep.mubr.f32.mxu0 0.0
        %5662 = vmatmul.mubr.f32.gmra.mrb[0].mxu0 %v5446
        %v5663 = vpop.f32.mrb[0].mxu0
        %v5664 = vadd.f32 0.0, %v5663
        %v5665 = vpop.f32.mrb[0].mxu0
        %5666 = vmatprep.mubr.f32.mxu0 0.0
        %5667 = vmatmul.mubr.f32.gmra.mrb[0].mxu0 %v5449
        %v5668 = vpop.f32.mrb[0].mxu0
        %v5669 = vadd.f32 0.0, %v5668
        %v5670 = vpop.f32.mrb[0].mxu0
        %5671 = vmatprep.mubr.f32.mxu0 0.0
        %5672 = vmatmul.mubr.f32.gmra.mrb[0].mxu0 %v5452
        %v5673 = vpop.f32.mrb[0].mxu0
        %v5674 = vadd.f32 0.0, %v5673
        %v5675 = vpop.f32.mrb[0].mxu0
        %5676 = vmatprep.mubr.f32.mxu0 0.0
        %5677 = vmatmul.mubr.f32.gmra.mrb[0].mxu0 %v5455
        %v5678 = vpop.f32.mrb[0].mxu0
        %v5679 = vadd.f32 0.0, %v5678
        %v5680 = vpop.f32.mrb[0].mxu0
        %5681 = vdwg.mxu0
        %v5682 = vadd.f32 %v5199, %v5524
        %v5683 = vadd.f32 %v5204, %v5529
        %v5684 = vadd.f32 %v5209, %v5534
        %v5685 = vadd.f32 %v5214, %v5539
        %v5686 = vadd.f32 %v5219, %v5544
        %v5687 = vadd.f32 %v5224, %v5549
        %v5688 = vadd.f32 %v5229, %v5554
        %v5689 = vadd.f32 %v5234, %v5559
        %v5690 = vadd.f32 %v5239, %v5564
        %v5691 = vadd.f32 %v5244, %v5569
        %v5692 = vadd.f32 %v5249, %v5574
        %v5693 = vadd.f32 %v5254, %v5579
        %v5694 = vadd.f32 %v5259, %v5584
        %v5695 = vadd.f32 %v5264, %v5589
        %v5696 = vadd.f32 %v5269, %v5594
        %v5697 = vadd.f32 %v5274, %v5599
        %v5698 = vadd.f32 %v5279, %v5604
        %v5699 = vadd.f32 %v5284, %v5609
        %v5700 = vadd.f32 %v5289, %v5614
        %v5701 = vadd.f32 %v5294, %v5619
        %v5702 = vadd.f32 %v5299, %v5624
        %v5703 = vadd.f32 %v5304, %v5629
        %v5704 = vadd.f32 %v5309, %v5634
        %v5705 = vadd.f32 %v5314, %v5639
        %v5706 = vadd.f32 %v5319, %v5644
        %v5707 = vadd.f32 %v5324, %v5649
        %v5708 = vadd.f32 %v5329, %v5654
        %v5709 = vadd.f32 %v5334, %v5659
        %v5710 = vadd.f32 %v5339, %v5664
        %v5711 = vadd.f32 %v5344, %v5669
        %v5712 = vadd.f32 %v5349, %v5674
        %v5713 = vadd.f32 %v5354, %v5679
        %v5714 = vld [vmem:[%s10] sm:$0x1]
        %v5716 = vlaneseq
        %v5717 = vshrl.u32 %v5716, 7
        %v5718 = vsub.s32 0, %v5717
        %v5719 = vrot.slane %v5714, %v5718
        %v5721 = vadd.f32 %v5682, %v5719
        %v5722 = vadd.f32 %v5683, %v5719
        %v5723 = vadd.f32 %v5684, %v5719
        %v5724 = vadd.f32 %v5685, %v5719
        %v5725 = vadd.f32 %v5686, %v5719
        %v5726 = vadd.f32 %v5687, %v5719
        %v5727 = vadd.f32 %v5688, %v5719
        %v5728 = vadd.f32 %v5689, %v5719
        %v5729 = vadd.f32 %v5690, %v5719
        %v5730 = vadd.f32 %v5691, %v5719
        %v5731 = vadd.f32 %v5692, %v5719
        %v5732 = vadd.f32 %v5693, %v5719
        %v5733 = vadd.f32 %v5694, %v5719
        %v5734 = vadd.f32 %v5695, %v5719
        %v5735 = vadd.f32 %v5696, %v5719
        %v5736 = vadd.f32 %v5697, %v5719
        %v5737 = vadd.f32 %v5698, %v5719
        %v5738 = vadd.f32 %v5699, %v5719
        %v5739 = vadd.f32 %v5700, %v5719
        %v5740 = vadd.f32 %v5701, %v5719
        %v5741 = vadd.f32 %v5702, %v5719
        %v5742 = vadd.f32 %v5703, %v5719
        %v5743 = vadd.f32 %v5704, %v5719
        %v5744 = vadd.f32 %v5705, %v5719
        %v5745 = vadd.f32 %v5706, %v5719
        %v5746 = vadd.f32 %v5707, %v5719
        %v5747 = vadd.f32 %v5708, %v5719
        %v5748 = vadd.f32 %v5709, %v5719
        %v5749 = vadd.f32 %v5710, %v5719
        %v5750 = vadd.f32 %v5711, %v5719
        %v5751 = vadd.f32 %v5712, %v5719
        %v5752 = vadd.f32 %v5713, %v5719
        %5753 = vst.msk [vmem:[#allocation3] sm:$0xff] %vm531, 0.0
        %5754 = vst.msk [vmem:[#allocation3 + $0x8] sm:$0xff] %vm531, 0.0
        %5755 = vst.msk [vmem:[#allocation3 + $0x10] sm:$0xff] %vm531, 0.0
        %5756 = vst.msk [vmem:[#allocation3 + $0x18] sm:$0xff] %vm531, 0.0
        %5757 = vst.msk [vmem:[#allocation3 + $0x20] sm:$0xff] %vm531, 0.0
        %5758 = vst.msk [vmem:[#allocation3 + $0x28] sm:$0xff] %vm531, 0.0
        %5759 = vst.msk [vmem:[#allocation3 + $0x30] sm:$0xff] %vm531, 0.0
        %5760 = vst.msk [vmem:[#allocation3 + $0x38] sm:$0xff] %vm531, 0.0
        %5761 = vst.msk [vmem:[#allocation3 + $0x40] sm:$0xff] %vm531, 0.0
        %5762 = vst.msk [vmem:[#allocation3 + $0x48] sm:$0xff] %vm531, 0.0
        %5763 = vst.msk [vmem:[#allocation3 + $0x50] sm:$0xff] %vm531, 0.0
        %5764 = vst.msk [vmem:[#allocation3 + $0x58] sm:$0xff] %vm531, 0.0
        %5765 = vst.msk [vmem:[#allocation3 + $0x60] sm:$0xff] %vm531, 0.0
        %5766 = vst.msk [vmem:[#allocation3 + $0x68] sm:$0xff] %vm531, 0.0
        %5767 = vst.msk [vmem:[#allocation3 + $0x70] sm:$0xff] %vm531, 0.0
        %5768 = vst.msk [vmem:[#allocation3 + $0x78] sm:$0xff] %vm531, 0.0
        %5769 = vst.msk [vmem:[#allocation3 + $0x80] sm:$0xff] %vm531, 0.0
        %5770 = vst.msk [vmem:[#allocation3 + $0x88] sm:$0xff] %vm531, 0.0
        %5771 = vst.msk [vmem:[#allocation3 + $0x90] sm:$0xff] %vm531, 0.0
        %5772 = vst.msk [vmem:[#allocation3 + $0x98] sm:$0xff] %vm531, 0.0
        %5773 = vst.msk [vmem:[#allocation3 + $0xa0] sm:$0xff] %vm531, 0.0
        %5774 = vst.msk [vmem:[#allocation3 + $0xa8] sm:$0xff] %vm531, 0.0
        %5775 = vst.msk [vmem:[#allocation3 + $0xb0] sm:$0xff] %vm531, 0.0
        %5776 = vst.msk [vmem:[#allocation3 + $0xb8] sm:$0xff] %vm531, 0.0
        %5777 = vst.msk [vmem:[#allocation3 + $0xc0] sm:$0xff] %vm531, 0.0
        %5778 = vst.msk [vmem:[#allocation3 + $0xc8] sm:$0xff] %vm531, 0.0
        %5779 = vst.msk [vmem:[#allocation3 + $0xd0] sm:$0xff] %vm531, 0.0
        %5780 = vst.msk [vmem:[#allocation3 + $0xd8] sm:$0xff] %vm531, 0.0
        %5781 = vst.msk [vmem:[#allocation3 + $0xe0] sm:$0xff] %vm531, 0.0
        %5782 = vst.msk [vmem:[#allocation3 + $0xe8] sm:$0xff] %vm531, 0.0
        %5783 = vst.msk [vmem:[#allocation3 + $0xf0] sm:$0xff] %vm531, 0.0
        %5784 = vst.msk [vmem:[#allocation3 + $0xf8] sm:$0xff] %vm531, 0.0
        %5785 = vst.msk [vmem:[#allocation3 + $0x100] sm:$0xff] %vm531, 0.0
        %5786 = vst.msk [vmem:[#allocation3 + $0x108] sm:$0xff] %vm531, 0.0
        %5787 = vst.msk [vmem:[#allocation3 + $0x110] sm:$0xff] %vm531, 0.0
        %5788 = vst.msk [vmem:[#allocation3 + $0x118] sm:$0xff] %vm531, 0.0
        %5789 = vst.msk [vmem:[#allocation3 + $0x120] sm:$0xff] %vm531, 0.0
        %5790 = vst.msk [vmem:[#allocation3 + $0x128] sm:$0xff] %vm531, 0.0
        %5791 = vst.msk [vmem:[#allocation3 + $0x130] sm:$0xff] %vm531, 0.0
        %5792 = vst.msk [vmem:[#allocation3 + $0x138] sm:$0xff] %vm531, 0.0
        %5793 = vst.msk [vmem:[#allocation3 + $0x140] sm:$0xff] %vm531, 0.0
        %5794 = vst.msk [vmem:[#allocation3 + $0x148] sm:$0xff] %vm531, 0.0
        %5795 = vst.msk [vmem:[#allocation3 + $0x150] sm:$0xff] %vm531, 0.0
        %5796 = vst.msk [vmem:[#allocation3 + $0x158] sm:$0xff] %vm531, 0.0
        %5797 = vst.msk [vmem:[#allocation3 + $0x160] sm:$0xff] %vm531, 0.0
        %5798 = vst.msk [vmem:[#allocation3 + $0x168] sm:$0xff] %vm531, 0.0
        %5799 = vst.msk [vmem:[#allocation3 + $0x170] sm:$0xff] %vm531, 0.0
        %5800 = vst.msk [vmem:[#allocation3 + $0x178] sm:$0xff] %vm531, 0.0
        %5801 = vst.msk [vmem:[#allocation3 + $0x180] sm:$0xff] %vm531, 0.0
        %5802 = vst.msk [vmem:[#allocation3 + $0x188] sm:$0xff] %vm531, 0.0
        %5803 = vst.msk [vmem:[#allocation3 + $0x190] sm:$0xff] %vm531, 0.0
        %5804 = vst.msk [vmem:[#allocation3 + $0x198] sm:$0xff] %vm531, 0.0
        %5805 = vst.msk [vmem:[#allocation3 + $0x1a0] sm:$0xff] %vm531, 0.0
        %5806 = vst.msk [vmem:[#allocation3 + $0x1a8] sm:$0xff] %vm531, 0.0
        %5807 = vst.msk [vmem:[#allocation3 + $0x1b0] sm:$0xff] %vm531, 0.0
        %5808 = vst.msk [vmem:[#allocation3 + $0x1b8] sm:$0xff] %vm531, 0.0
        %5809 = vst.msk [vmem:[#allocation3 + $0x1c0] sm:$0xff] %vm531, 0.0
        %5810 = vst.msk [vmem:[#allocation3 + $0x1c8] sm:$0xff] %vm531, 0.0
        %5811 = vst.msk [vmem:[#allocation3 + $0x1d0] sm:$0xff] %vm531, 0.0
        %5812 = vst.msk [vmem:[#allocation3 + $0x1d8] sm:$0xff] %vm531, 0.0
        %5813 = vst.msk [vmem:[#allocation3 + $0x1e0] sm:$0xff] %vm531, 0.0
        %5814 = vst.msk [vmem:[#allocation3 + $0x1e8] sm:$0xff] %vm531, 0.0
        %5815 = vst.msk [vmem:[#allocation3 + $0x1f0] sm:$0xff] %vm531, 0.0
        %5816 = vst.msk [vmem:[#allocation3 + $0x1f8] sm:$0xff] %vm531, 0.0
        %5817 = vst.msk [vmem:[#allocation3 + $0x200] sm:$0xff] %vm531, 0.0
        %5818 = vst.msk [vmem:[#allocation3 + $0x208] sm:$0xff] %vm531, 0.0
        %5819 = vst.msk [vmem:[#allocation3 + $0x210] sm:$0xff] %vm531, 0.0
        %5820 = vst.msk [vmem:[#allocation3 + $0x218] sm:$0xff] %vm531, 0.0
        %5821 = vst.msk [vmem:[#allocation3 + $0x220] sm:$0xff] %vm531, 0.0
        %5822 = vst.msk [vmem:[#allocation3 + $0x228] sm:$0xff] %vm531, 0.0
        %5823 = vst.msk [vmem:[#allocation3 + $0x230] sm:$0xff] %vm531, 0.0
        %5824 = vst.msk [vmem:[#allocation3 + $0x238] sm:$0xff] %vm531, 0.0
        %s5825 = scalar_lea.vmem [#allocation3], 32
        %5826 = vst.msk [vmem:[%s5825 + $0x8] sm:$0xff] %vm531, %v5721
        %5827 = vst.msk [vmem:[%s5825 + $0x10] sm:$0xff] %vm531, %v5722
        %5828 = vst.msk [vmem:[%s5825 + $0x28] sm:$0xff] %vm531, %v5723
        %5829 = vst.msk [vmem:[%s5825 + $0x30] sm:$0xff] %vm531, %v5724
        %5830 = vst.msk [vmem:[%s5825 + $0x48] sm:$0xff] %vm531, %v5725
        %5831 = vst.msk [vmem:[%s5825 + $0x50] sm:$0xff] %vm531, %v5726
        %5832 = vst.msk [vmem:[%s5825 + $0x68] sm:$0xff] %vm531, %v5727
        %5833 = vst.msk [vmem:[%s5825 + $0x70] sm:$0xff] %vm531, %v5728
        %5834 = vst.msk [vmem:[%s5825 + $0x88] sm:$0xff] %vm531, %v5729
        %5835 = vst.msk [vmem:[%s5825 + $0x90] sm:$0xff] %vm531, %v5730
        %5836 = vst.msk [vmem:[%s5825 + $0xa8] sm:$0xff] %vm531, %v5731
        %5837 = vst.msk [vmem:[%s5825 + $0xb0] sm:$0xff] %vm531, %v5732
        %5838 = vst.msk [vmem:[%s5825 + $0xc8] sm:$0xff] %vm531, %v5733
        %5839 = vst.msk [vmem:[%s5825 + $0xd0] sm:$0xff] %vm531, %v5734
        %5840 = vst.msk [vmem:[%s5825 + $0xe8] sm:$0xff] %vm531, %v5735
        %5841 = vst.msk [vmem:[%s5825 + $0xf0] sm:$0xff] %vm531, %v5736
        %5842 = vst.msk [vmem:[%s5825 + $0x108] sm:$0xff] %vm531, %v5737
        %5843 = vst.msk [vmem:[%s5825 + $0x110] sm:$0xff] %vm531, %v5738
        %5844 = vst.msk [vmem:[%s5825 + $0x128] sm:$0xff] %vm531, %v5739
        %5845 = vst.msk [vmem:[%s5825 + $0x130] sm:$0xff] %vm531, %v5740
        %5846 = vst.msk [vmem:[%s5825 + $0x148] sm:$0xff] %vm531, %v5741
        %5847 = vst.msk [vmem:[%s5825 + $0x150] sm:$0xff] %vm531, %v5742
        %5848 = vst.msk [vmem:[%s5825 + $0x168] sm:$0xff] %vm531, %v5743
        %5849 = vst.msk [vmem:[%s5825 + $0x170] sm:$0xff] %vm531, %v5744
        %5850 = vst.msk [vmem:[%s5825 + $0x188] sm:$0xff] %vm531, %v5745
        %5851 = vst.msk [vmem:[%s5825 + $0x190] sm:$0xff] %vm531, %v5746
        %5852 = vst.msk [vmem:[%s5825 + $0x1a8] sm:$0xff] %vm531, %v5747
        %5853 = vst.msk [vmem:[%s5825 + $0x1b0] sm:$0xff] %vm531, %v5748
        %5854 = vst.msk [vmem:[%s5825 + $0x1c8] sm:$0xff] %vm531, %v5749
        %5855 = vst.msk [vmem:[%s5825 + $0x1d0] sm:$0xff] %vm531, %v5750
        %5856 = vst.msk [vmem:[%s5825 + $0x1e8] sm:$0xff] %vm531, %v5751
        %5857 = vst.msk [vmem:[%s5825 + $0x1f0] sm:$0xff] %vm531, %v5752
        %v5858 = vld [vmem:[#allocation3 + $0x7] sm:$0xff]
        %v5859 = vld [vmem:[#allocation3 + $0xf] sm:$0xff]
        %v5860 = vld [vmem:[#allocation3 + $0x27] sm:$0xff]
        %v5861 = vld [vmem:[#allocation3 + $0x2f] sm:$0xff]
        %v5862 = vld [vmem:[#allocation3 + $0x47] sm:$0xff]
        %v5863 = vld [vmem:[#allocation3 + $0x4f] sm:$0xff]
        %v5864 = vld [vmem:[#allocation3 + $0x67] sm:$0xff]
        %v5865 = vld [vmem:[#allocation3 + $0x6f] sm:$0xff]
        %v5866 = vld [vmem:[#allocation3 + $0x87] sm:$0xff]
        %v5867 = vld [vmem:[#allocation3 + $0x8f] sm:$0xff]
        %v5868 = vld [vmem:[#allocation3 + $0xa7] sm:$0xff]
        %v5869 = vld [vmem:[#allocation3 + $0xaf] sm:$0xff]
        %v5870 = vld [vmem:[#allocation3 + $0xc7] sm:$0xff]
        %v5871 = vld [vmem:[#allocation3 + $0xcf] sm:$0xff]
        %v5872 = vld [vmem:[#allocation3 + $0xe7] sm:$0xff]
        %v5873 = vld [vmem:[#allocation3 + $0xef] sm:$0xff]
        %v5874 = vld [vmem:[#allocation3 + $0x107] sm:$0xff]
        %v5875 = vld [vmem:[#allocation3 + $0x10f] sm:$0xff]
        %v5876 = vld [vmem:[#allocation3 + $0x127] sm:$0xff]
        %v5877 = vld [vmem:[#allocation3 + $0x12f] sm:$0xff]
        %v5878 = vld [vmem:[#allocation3 + $0x147] sm:$0xff]
        %v5879 = vld [vmem:[#allocation3 + $0x14f] sm:$0xff]
        %v5880 = vld [vmem:[#allocation3 + $0x167] sm:$0xff]
        %v5881 = vld [vmem:[#allocation3 + $0x16f] sm:$0xff]
        %v5882 = vld [vmem:[#allocation3 + $0x187] sm:$0xff]
        %v5883 = vld [vmem:[#allocation3 + $0x18f] sm:$0xff]
        %v5884 = vld [vmem:[#allocation3 + $0x1a7] sm:$0xff]
        %v5885 = vld [vmem:[#allocation3 + $0x1af] sm:$0xff]
        %v5886 = vld [vmem:[#allocation3 + $0x1c7] sm:$0xff]
        %v5887 = vld [vmem:[#allocation3 + $0x1cf] sm:$0xff]
        %v5888 = vld [vmem:[#allocation3 + $0x1e7] sm:$0xff]
        %v5889 = vld [vmem:[#allocation3 + $0x1ef] sm:$0xff]
        %v5890 = vld [vmem:[%s11] sm:$0xff]
        %v5891 = vld [vmem:[%s11 + $0x8] sm:$0xff]
        %v5892 = vld [vmem:[%s11 + $0x10] sm:$0xff]
        %v5893 = vld [vmem:[%s11 + $0x18] sm:$0xff]
        %v5894 = vld [vmem:[#allocation3 + $0x8] sm:$0xff]
        %v5895 = vld [vmem:[#allocation3 + $0x10] sm:$0xff]
        %v5896 = vld [vmem:[#allocation3 + $0x28] sm:$0xff]
        %v5897 = vld [vmem:[#allocation3 + $0x30] sm:$0xff]
        %v5898 = vld [vmem:[#allocation3 + $0x48] sm:$0xff]
        %v5899 = vld [vmem:[#allocation3 + $0x50] sm:$0xff]
        %v5900 = vld [vmem:[#allocation3 + $0x68] sm:$0xff]
        %v5901 = vld [vmem:[#allocation3 + $0x70] sm:$0xff]
        %v5902 = vld [vmem:[#allocation3 + $0x88] sm:$0xff]
        %v5903 = vld [vmem:[#allocation3 + $0x90] sm:$0xff]
        %v5904 = vld [vmem:[#allocation3 + $0xa8] sm:$0xff]
        %v5905 = vld [vmem:[#allocation3 + $0xb0] sm:$0xff]
        %v5906 = vld [vmem:[#allocation3 + $0xc8] sm:$0xff]
        %v5907 = vld [vmem:[#allocation3 + $0xd0] sm:$0xff]
        %v5908 = vld [vmem:[#allocation3 + $0xe8] sm:$0xff]
        %v5909 = vld [vmem:[#allocation3 + $0xf0] sm:$0xff]
        %v5910 = vld [vmem:[#allocation3 + $0x108] sm:$0xff]
        %v5911 = vld [vmem:[#allocation3 + $0x110] sm:$0xff]
        %v5912 = vld [vmem:[#allocation3 + $0x128] sm:$0xff]
        %v5913 = vld [vmem:[#allocation3 + $0x130] sm:$0xff]
        %v5914 = vld [vmem:[#allocation3 + $0x148] sm:$0xff]
        %v5915 = vld [vmem:[#allocation3 + $0x150] sm:$0xff]
        %v5916 = vld [vmem:[#allocation3 + $0x168] sm:$0xff]
        %v5917 = vld [vmem:[#allocation3 + $0x170] sm:$0xff]
        %v5918 = vld [vmem:[#allocation3 + $0x188] sm:$0xff]
        %v5919 = vld [vmem:[#allocation3 + $0x190] sm:$0xff]
        %v5920 = vld [vmem:[#allocation3 + $0x1a8] sm:$0xff]
        %v5921 = vld [vmem:[#allocation3 + $0x1b0] sm:$0xff]
        %v5922 = vld [vmem:[#allocation3 + $0x1c8] sm:$0xff]
        %v5923 = vld [vmem:[#allocation3 + $0x1d0] sm:$0xff]
        %v5924 = vld [vmem:[#allocation3 + $0x1e8] sm:$0xff]
        %v5925 = vld [vmem:[#allocation3 + $0x1f0] sm:$0xff]
        %s5926 = scalar_lea.vmem %s11, 32
        %v5927 = vld [vmem:[%s5926] sm:$0xff]
        %v5928 = vld [vmem:[%s5926 + $0x8] sm:$0xff]
        %v5929 = vld [vmem:[%s5926 + $0x10] sm:$0xff]
        %v5930 = vld [vmem:[%s5926 + $0x18] sm:$0xff]
        %v5932 = vsel %vm531, %v5894, 0
        %v5935 = vsel %vm531, %v5895, 0
        %v5938 = vsel %vm531, %v5896, 0
        %v5941 = vsel %vm531, %v5897, 0
        %v5944 = vsel %vm531, %v5898, 0
        %v5947 = vsel %vm531, %v5899, 0
        %v5950 = vsel %vm531, %v5900, 0
        %v5953 = vsel %vm531, %v5901, 0
        %v5956 = vsel %vm531, %v5902, 0
        %v5959 = vsel %vm531, %v5903, 0
        %v5962 = vsel %vm531, %v5904, 0
        %v5965 = vsel %vm531, %v5905, 0
        %v5968 = vsel %vm531, %v5906, 0
        %v5971 = vsel %vm531, %v5907, 0
        %v5974 = vsel %vm531, %v5908, 0
        %v5977 = vsel %vm531, %v5909, 0
        %v5980 = vsel %vm531, %v5910, 0
        %v5983 = vsel %vm531, %v5911, 0
        %v5986 = vsel %vm531, %v5912, 0
        %v5989 = vsel %vm531, %v5913, 0
        %v5992 = vsel %vm531, %v5914, 0
        %v5995 = vsel %vm531, %v5915, 0
        %v5998 = vsel %vm531, %v5916, 0
        %v6001 = vsel %vm531, %v5917, 0
        %v6004 = vsel %vm531, %v5918, 0
        %v6007 = vsel %vm531, %v5919, 0
        %v6010 = vsel %vm531, %v5920, 0
        %v6013 = vsel %vm531, %v5921, 0
        %v6016 = vsel %vm531, %v5922, 0
        %v6019 = vsel %vm531, %v5923, 0
        %v6022 = vsel %vm531, %v5924, 0
        %v6025 = vsel %vm531, %v5925, 0
        %6027 = vmatprep.subr.mxu0 0.0
        %6028 = vmatpush1.msra.mxu0 %v5927
        %6029 = vmatprep.subr.mxu0 0.0
        %6030 = vmatpush1.msra.mxu0 %v5928
        %6031 = vmatprep.subr.mxu0 0.0
        %6032 = vmatpush1.msra.mxu0 %v5929
        %6033 = vmatprep.subr.mxu0 0.0
        %6034 = vmatpush1.msra.mxu0 %v5930
        %6035 = vmatprep.subr.mxu0 0.0
        %6036 = vmatpush1.msra.mxu0 0.0
        %6037 = vmatprep.subr.mxu0 0.0
        %6038 = vmatpush1.msra.mxu0 0.0
        %6039 = vmatprep.subr.mxu0 0.0
        %6040 = vmatpush1.msra.mxu0 0.0
        %6041 = vmatprep.subr.mxu0 0.0
        %6042 = vmatpush1.msra.mxu0 0.0
        %6043 = vmatprep.subr.mxu0 0.0
        %6044 = vmatpush1.msra.mxu0 0.0
        %6045 = vmatprep.subr.mxu0 0.0
        %6046 = vmatpush1.msra.mxu0 0.0
        %6047 = vmatprep.subr.mxu0 0.0
        %6048 = vmatpush1.msra.mxu0 0.0
        %6049 = vmatprep.subr.mxu0 0.0
        %6050 = vmatpush1.msra.mxu0 0.0
        %6051 = vmatprep.subr.mxu0 0.0
        %6052 = vmatpush1.msra.mxu0 0.0
        %6053 = vmatprep.subr.mxu0 0.0
        %6054 = vmatpush1.msra.mxu0 0.0
        %6055 = vmatprep.subr.mxu0 0.0
        %6056 = vmatpush1.msra.mxu0 0.0
        %6057 = vmatprep.subr.mxu0 0.0
        %6058 = vmatpush1.msra.mxu0 0.0
        %6059 = vmatprep.subr.mxu0 0.0
        %6060 = vmatpush1.msra.mxu0 0.0
        %6061 = vmatprep.subr.mxu0 0.0
        %6062 = vmatpush1.msra.mxu0 0.0
        %6063 = vmatprep.subr.mxu0 0.0
        %6064 = vmatpush1.msra.mxu0 0.0
        %6065 = vmatprep.subr.mxu0 0.0
        %6066 = vmatpush1.msra.mxu0 0.0
        %6067 = vmatprep.subr.mxu0 0.0
        %6068 = vmatpush1.msra.mxu0 0.0
        %6069 = vmatprep.subr.mxu0 0.0
        %6070 = vmatpush1.msra.mxu0 0.0
        %6071 = vmatprep.subr.mxu0 0.0
        %6072 = vmatpush1.msra.mxu0 0.0
        %6073 = vmatprep.subr.mxu0 0.0
        %6074 = vmatpush1.msra.mxu0 0.0
        %6075 = vmatprep.subr.mxu0 0.0
        %6076 = vmatpush1.msra.mxu0 0.0
        %6077 = vmatprep.subr.mxu0 0.0
        %6078 = vmatpush1.msra.mxu0 0.0
        %6079 = vmatprep.subr.mxu0 0.0
        %6080 = vmatpush1.msra.mxu0 0.0
        %6081 = vmatprep.subr.mxu0 0.0
        %6082 = vmatpush1.msra.mxu0 0.0
        %6083 = vmatprep.subr.mxu0 0.0
        %6084 = vmatpush1.msra.mxu0 0.0
        %6085 = vmatprep.subr.mxu0 0.0
        %6086 = vmatpush1.msra.mxu0 0.0
        %6087 = vmatprep.subr.mxu0 0.0
        %6088 = vmatpush1.msra.mxu0 0.0
        %6089 = vmatprep.subr.mxu0 0.0
        %6090 = vmatpush1.msra.mxu0 0.0
        %6091 = vmatprep.mubr.f32.mxu0 0.0
        %6092 = vmatmul.mubr.f32.gmra.mrb[0].mxu0 %v5932
        %v6093 = vpop.f32.mrb[0].mxu0
        %v6094 = vadd.f32 0.0, %v6093
        %v6095 = vpop.f32.mrb[0].mxu0
        %6096 = vmatprep.mubr.f32.mxu0 0.0
        %6097 = vmatmul.mubr.f32.gmra.mrb[0].mxu0 %v5935
        %v6098 = vpop.f32.mrb[0].mxu0
        %v6099 = vadd.f32 0.0, %v6098
        %v6100 = vpop.f32.mrb[0].mxu0
        %6101 = vmatprep.mubr.f32.mxu0 0.0
        %6102 = vmatmul.mubr.f32.gmra.mrb[0].mxu0 %v5938
        %v6103 = vpop.f32.mrb[0].mxu0
        %v6104 = vadd.f32 0.0, %v6103
        %v6105 = vpop.f32.mrb[0].mxu0
        %6106 = vmatprep.mubr.f32.mxu0 0.0
        %6107 = vmatmul.mubr.f32.gmra.mrb[0].mxu0 %v5941
        %v6108 = vpop.f32.mrb[0].mxu0
        %v6109 = vadd.f32 0.0, %v6108
        %v6110 = vpop.f32.mrb[0].mxu0
        %6111 = vmatprep.mubr.f32.mxu0 0.0
        %6112 = vmatmul.mubr.f32.gmra.mrb[0].mxu0 %v5944
        %v6113 = vpop.f32.mrb[0].mxu0
        %v6114 = vadd.f32 0.0, %v6113
        %v6115 = vpop.f32.mrb[0].mxu0
        %6116 = vmatprep.mubr.f32.mxu0 0.0
        %6117 = vmatmul.mubr.f32.gmra.mrb[0].mxu0 %v5947
        %v6118 = vpop.f32.mrb[0].mxu0
        %v6119 = vadd.f32 0.0, %v6118
        %v6120 = vpop.f32.mrb[0].mxu0
        %6121 = vmatprep.mubr.f32.mxu0 0.0
        %6122 = vmatmul.mubr.f32.gmra.mrb[0].mxu0 %v5950
        %v6123 = vpop.f32.mrb[0].mxu0
        %v6124 = vadd.f32 0.0, %v6123
        %v6125 = vpop.f32.mrb[0].mxu0
        %6126 = vmatprep.mubr.f32.mxu0 0.0
        %6127 = vmatmul.mubr.f32.gmra.mrb[0].mxu0 %v5953
        %v6128 = vpop.f32.mrb[0].mxu0
        %v6129 = vadd.f32 0.0, %v6128
        %v6130 = vpop.f32.mrb[0].mxu0
        %6131 = vmatprep.mubr.f32.mxu0 0.0
        %6132 = vmatmul.mubr.f32.gmra.mrb[0].mxu0 %v5956
        %v6133 = vpop.f32.mrb[0].mxu0
        %v6134 = vadd.f32 0.0, %v6133
        %v6135 = vpop.f32.mrb[0].mxu0
        %6136 = vmatprep.mubr.f32.mxu0 0.0
        %6137 = vmatmul.mubr.f32.gmra.mrb[0].mxu0 %v5959
        %v6138 = vpop.f32.mrb[0].mxu0
        %v6139 = vadd.f32 0.0, %v6138
        %v6140 = vpop.f32.mrb[0].mxu0
        %6141 = vmatprep.mubr.f32.mxu0 0.0
        %6142 = vmatmul.mubr.f32.gmra.mrb[0].mxu0 %v5962
        %v6143 = vpop.f32.mrb[0].mxu0
        %v6144 = vadd.f32 0.0, %v6143
        %v6145 = vpop.f32.mrb[0].mxu0
        %6146 = vmatprep.mubr.f32.mxu0 0.0
        %6147 = vmatmul.mubr.f32.gmra.mrb[0].mxu0 %v5965
        %v6148 = vpop.f32.mrb[0].mxu0
        %v6149 = vadd.f32 0.0, %v6148
        %v6150 = vpop.f32.mrb[0].mxu0
        %6151 = vmatprep.mubr.f32.mxu0 0.0
        %6152 = vmatmul.mubr.f32.gmra.mrb[0].mxu0 %v5968
        %v6153 = vpop.f32.mrb[0].mxu0
        %v6154 = vadd.f32 0.0, %v6153
        %v6155 = vpop.f32.mrb[0].mxu0
        %6156 = vmatprep.mubr.f32.mxu0 0.0
        %6157 = vmatmul.mubr.f32.gmra.mrb[0].mxu0 %v5971
        %v6158 = vpop.f32.mrb[0].mxu0
        %v6159 = vadd.f32 0.0, %v6158
        %v6160 = vpop.f32.mrb[0].mxu0
        %6161 = vmatprep.mubr.f32.mxu0 0.0
        %6162 = vmatmul.mubr.f32.gmra.mrb[0].mxu0 %v5974
        %v6163 = vpop.f32.mrb[0].mxu0
        %v6164 = vadd.f32 0.0, %v6163
        %v6165 = vpop.f32.mrb[0].mxu0
        %6166 = vmatprep.mubr.f32.mxu0 0.0
        %6167 = vmatmul.mubr.f32.gmra.mrb[0].mxu0 %v5977
        %v6168 = vpop.f32.mrb[0].mxu0
        %v6169 = vadd.f32 0.0, %v6168
        %v6170 = vpop.f32.mrb[0].mxu0
        %6171 = vmatprep.mubr.f32.mxu0 0.0
        %6172 = vmatmul.mubr.f32.gmra.mrb[0].mxu0 %v5980
        %v6173 = vpop.f32.mrb[0].mxu0
        %v6174 = vadd.f32 0.0, %v6173
        %v6175 = vpop.f32.mrb[0].mxu0
        %6176 = vmatprep.mubr.f32.mxu0 0.0
        %6177 = vmatmul.mubr.f32.gmra.mrb[0].mxu0 %v5983
        %v6178 = vpop.f32.mrb[0].mxu0
        %v6179 = vadd.f32 0.0, %v6178
        %v6180 = vpop.f32.mrb[0].mxu0
        %6181 = vmatprep.mubr.f32.mxu0 0.0
        %6182 = vmatmul.mubr.f32.gmra.mrb[0].mxu0 %v5986
        %v6183 = vpop.f32.mrb[0].mxu0
        %v6184 = vadd.f32 0.0, %v6183
        %v6185 = vpop.f32.mrb[0].mxu0
        %6186 = vmatprep.mubr.f32.mxu0 0.0
        %6187 = vmatmul.mubr.f32.gmra.mrb[0].mxu0 %v5989
        %v6188 = vpop.f32.mrb[0].mxu0
        %v6189 = vadd.f32 0.0, %v6188
        %v6190 = vpop.f32.mrb[0].mxu0
        %6191 = vmatprep.mubr.f32.mxu0 0.0
        %6192 = vmatmul.mubr.f32.gmra.mrb[0].mxu0 %v5992
        %v6193 = vpop.f32.mrb[0].mxu0
        %v6194 = vadd.f32 0.0, %v6193
        %v6195 = vpop.f32.mrb[0].mxu0
        %6196 = vmatprep.mubr.f32.mxu0 0.0
        %6197 = vmatmul.mubr.f32.gmra.mrb[0].mxu0 %v5995
        %v6198 = vpop.f32.mrb[0].mxu0
        %v6199 = vadd.f32 0.0, %v6198
        %v6200 = vpop.f32.mrb[0].mxu0
        %6201 = vmatprep.mubr.f32.mxu0 0.0
        %6202 = vmatmul.mubr.f32.gmra.mrb[0].mxu0 %v5998
        %v6203 = vpop.f32.mrb[0].mxu0
        %v6204 = vadd.f32 0.0, %v6203
        %v6205 = vpop.f32.mrb[0].mxu0
        %6206 = vmatprep.mubr.f32.mxu0 0.0
        %6207 = vmatmul.mubr.f32.gmra.mrb[0].mxu0 %v6001
        %v6208 = vpop.f32.mrb[0].mxu0
        %v6209 = vadd.f32 0.0, %v6208
        %v6210 = vpop.f32.mrb[0].mxu0
        %6211 = vmatprep.mubr.f32.mxu0 0.0
        %6212 = vmatmul.mubr.f32.gmra.mrb[0].mxu0 %v6004
        %v6213 = vpop.f32.mrb[0].mxu0
        %v6214 = vadd.f32 0.0, %v6213
        %v6215 = vpop.f32.mrb[0].mxu0
        %6216 = vmatprep.mubr.f32.mxu0 0.0
        %6217 = vmatmul.mubr.f32.gmra.mrb[0].mxu0 %v6007
        %v6218 = vpop.f32.mrb[0].mxu0
        %v6219 = vadd.f32 0.0, %v6218
        %v6220 = vpop.f32.mrb[0].mxu0
        %6221 = vmatprep.mubr.f32.mxu0 0.0
        %6222 = vmatmul.mubr.f32.gmra.mrb[0].mxu0 %v6010
        %v6223 = vpop.f32.mrb[0].mxu0
        %v6224 = vadd.f32 0.0, %v6223
        %v6225 = vpop.f32.mrb[0].mxu0
        %6226 = vmatprep.mubr.f32.mxu0 0.0
        %6227 = vmatmul.mubr.f32.gmra.mrb[0].mxu0 %v6013
        %v6228 = vpop.f32.mrb[0].mxu0
        %v6229 = vadd.f32 0.0, %v6228
        %v6230 = vpop.f32.mrb[0].mxu0
        %6231 = vmatprep.mubr.f32.mxu0 0.0
        %6232 = vmatmul.mubr.f32.gmra.mrb[0].mxu0 %v6016
        %v6233 = vpop.f32.mrb[0].mxu0
        %v6234 = vadd.f32 0.0, %v6233
        %v6235 = vpop.f32.mrb[0].mxu0
        %6236 = vmatprep.mubr.f32.mxu0 0.0
        %6237 = vmatmul.mubr.f32.gmra.mrb[0].mxu0 %v6019
        %v6238 = vpop.f32.mrb[0].mxu0
        %v6239 = vadd.f32 0.0, %v6238
        %v6240 = vpop.f32.mrb[0].mxu0
        %6241 = vmatprep.mubr.f32.mxu0 0.0
        %6242 = vmatmul.mubr.f32.gmra.mrb[0].mxu0 %v6022
        %v6243 = vpop.f32.mrb[0].mxu0
        %v6244 = vadd.f32 0.0, %v6243
        %v6245 = vpop.f32.mrb[0].mxu0
        %6246 = vmatprep.mubr.f32.mxu0 0.0
        %6247 = vmatmul.mubr.f32.gmra.mrb[0].mxu0 %v6025
        %v6248 = vpop.f32.mrb[0].mxu0
        %v6249 = vadd.f32 0.0, %v6248
        %v6250 = vpop.f32.mrb[0].mxu0
        %6251 = vdwg.mxu0
        %v6253 = vsel %vm531, %v5858, 0
        %v6256 = vsel %vm531, %v5859, 0
        %v6259 = vsel %vm531, %v5860, 0
        %v6262 = vsel %vm531, %v5861, 0
        %v6265 = vsel %vm531, %v5862, 0
        %v6268 = vsel %vm531, %v5863, 0
        %v6271 = vsel %vm531, %v5864, 0
        %v6274 = vsel %vm531, %v5865, 0
        %v6277 = vsel %vm531, %v5866, 0
        %v6280 = vsel %vm531, %v5867, 0
        %v6283 = vsel %vm531, %v5868, 0
        %v6286 = vsel %vm531, %v5869, 0
        %v6289 = vsel %vm531, %v5870, 0
        %v6292 = vsel %vm531, %v5871, 0
        %v6295 = vsel %vm531, %v5872, 0
        %v6298 = vsel %vm531, %v5873, 0
        %v6301 = vsel %vm531, %v5874, 0
        %v6304 = vsel %vm531, %v5875, 0
        %v6307 = vsel %vm531, %v5876, 0
        %v6310 = vsel %vm531, %v5877, 0
        %v6313 = vsel %vm531, %v5878, 0
        %v6316 = vsel %vm531, %v5879, 0
        %v6319 = vsel %vm531, %v5880, 0
        %v6322 = vsel %vm531, %v5881, 0
        %v6325 = vsel %vm531, %v5882, 0
        %v6328 = vsel %vm531, %v5883, 0
        %v6331 = vsel %vm531, %v5884, 0
        %v6334 = vsel %vm531, %v5885, 0
        %v6337 = vsel %vm531, %v5886, 0
        %v6340 = vsel %vm531, %v5887, 0
        %v6343 = vsel %vm531, %v5888, 0
        %v6346 = vsel %vm531, %v5889, 0
        %6348 = vmatprep.subr.mxu0 0.0
        %6349 = vmatpush1.msra.mxu0 %v5890
        %6350 = vmatprep.subr.mxu0 0.0
        %6351 = vmatpush1.msra.mxu0 %v5891
        %6352 = vmatprep.subr.mxu0 0.0
        %6353 = vmatpush1.msra.mxu0 %v5892
        %6354 = vmatprep.subr.mxu0 0.0
        %6355 = vmatpush1.msra.mxu0 %v5893
        %6356 = vmatprep.subr.mxu0 0.0
        %6357 = vmatpush1.msra.mxu0 0.0
        %6358 = vmatprep.subr.mxu0 0.0
        %6359 = vmatpush1.msra.mxu0 0.0
        %6360 = vmatprep.subr.mxu0 0.0
        %6361 = vmatpush1.msra.mxu0 0.0
        %6362 = vmatprep.subr.mxu0 0.0
        %6363 = vmatpush1.msra.mxu0 0.0
        %6364 = vmatprep.subr.mxu0 0.0
        %6365 = vmatpush1.msra.mxu0 0.0
        %6366 = vmatprep.subr.mxu0 0.0
        %6367 = vmatpush1.msra.mxu0 0.0
        %6368 = vmatprep.subr.mxu0 0.0
        %6369 = vmatpush1.msra.mxu0 0.0
        %6370 = vmatprep.subr.mxu0 0.0
        %6371 = vmatpush1.msra.mxu0 0.0
        %6372 = vmatprep.subr.mxu0 0.0
        %6373 = vmatpush1.msra.mxu0 0.0
        %6374 = vmatprep.subr.mxu0 0.0
        %6375 = vmatpush1.msra.mxu0 0.0
        %6376 = vmatprep.subr.mxu0 0.0
        %6377 = vmatpush1.msra.mxu0 0.0
        %6378 = vmatprep.subr.mxu0 0.0
        %6379 = vmatpush1.msra.mxu0 0.0
        %6380 = vmatprep.subr.mxu0 0.0
        %6381 = vmatpush1.msra.mxu0 0.0
        %6382 = vmatprep.subr.mxu0 0.0
        %6383 = vmatpush1.msra.mxu0 0.0
        %6384 = vmatprep.subr.mxu0 0.0
        %6385 = vmatpush1.msra.mxu0 0.0
        %6386 = vmatprep.subr.mxu0 0.0
        %6387 = vmatpush1.msra.mxu0 0.0
        %6388 = vmatprep.subr.mxu0 0.0
        %6389 = vmatpush1.msra.mxu0 0.0
        %6390 = vmatprep.subr.mxu0 0.0
        %6391 = vmatpush1.msra.mxu0 0.0
        %6392 = vmatprep.subr.mxu0 0.0
        %6393 = vmatpush1.msra.mxu0 0.0
        %6394 = vmatprep.subr.mxu0 0.0
        %6395 = vmatpush1.msra.mxu0 0.0
        %6396 = vmatprep.subr.mxu0 0.0
        %6397 = vmatpush1.msra.mxu0 0.0
        %6398 = vmatprep.subr.mxu0 0.0
        %6399 = vmatpush1.msra.mxu0 0.0
        %6400 = vmatprep.subr.mxu0 0.0
        %6401 = vmatpush1.msra.mxu0 0.0
        %6402 = vmatprep.subr.mxu0 0.0
        %6403 = vmatpush1.msra.mxu0 0.0
        %6404 = vmatprep.subr.mxu0 0.0
        %6405 = vmatpush1.msra.mxu0 0.0
        %6406 = vmatprep.subr.mxu0 0.0
        %6407 = vmatpush1.msra.mxu0 0.0
        %6408 = vmatprep.subr.mxu0 0.0
        %6409 = vmatpush1.msra.mxu0 0.0
        %6410 = vmatprep.subr.mxu0 0.0
        %6411 = vmatpush1.msra.mxu0 0.0
        %6412 = vmatprep.mubr.f32.mxu0 0.0
        %6413 = vmatmul.mubr.f32.gmra.mrb[0].mxu0 %v6253
        %v6414 = vpop.f32.mrb[0].mxu0
        %v6415 = vadd.f32 %v6094, %v6414
        %v6416 = vpop.f32.mrb[0].mxu0
        %6417 = vmatprep.mubr.f32.mxu0 0.0
        %6418 = vmatmul.mubr.f32.gmra.mrb[0].mxu0 %v6256
        %v6419 = vpop.f32.mrb[0].mxu0
        %v6420 = vadd.f32 %v6099, %v6419
        %v6421 = vpop.f32.mrb[0].mxu0
        %6422 = vmatprep.mubr.f32.mxu0 0.0
        %6423 = vmatmul.mubr.f32.gmra.mrb[0].mxu0 %v6259
        %v6424 = vpop.f32.mrb[0].mxu0
        %v6425 = vadd.f32 %v6104, %v6424
        %v6426 = vpop.f32.mrb[0].mxu0
        %6427 = vmatprep.mubr.f32.mxu0 0.0
        %6428 = vmatmul.mubr.f32.gmra.mrb[0].mxu0 %v6262
        %v6429 = vpop.f32.mrb[0].mxu0
        %v6430 = vadd.f32 %v6109, %v6429
        %v6431 = vpop.f32.mrb[0].mxu0
        %6432 = vmatprep.mubr.f32.mxu0 0.0
        %6433 = vmatmul.mubr.f32.gmra.mrb[0].mxu0 %v6265
        %v6434 = vpop.f32.mrb[0].mxu0
        %v6435 = vadd.f32 %v6114, %v6434
        %v6436 = vpop.f32.mrb[0].mxu0
        %6437 = vmatprep.mubr.f32.mxu0 0.0
        %6438 = vmatmul.mubr.f32.gmra.mrb[0].mxu0 %v6268
        %v6439 = vpop.f32.mrb[0].mxu0
        %v6440 = vadd.f32 %v6119, %v6439
        %v6441 = vpop.f32.mrb[0].mxu0
        %6442 = vmatprep.mubr.f32.mxu0 0.0
        %6443 = vmatmul.mubr.f32.gmra.mrb[0].mxu0 %v6271
        %v6444 = vpop.f32.mrb[0].mxu0
        %v6445 = vadd.f32 %v6124, %v6444
        %v6446 = vpop.f32.mrb[0].mxu0
        %6447 = vmatprep.mubr.f32.mxu0 0.0
        %6448 = vmatmul.mubr.f32.gmra.mrb[0].mxu0 %v6274
        %v6449 = vpop.f32.mrb[0].mxu0
        %v6450 = vadd.f32 %v6129, %v6449
        %v6451 = vpop.f32.mrb[0].mxu0
        %6452 = vmatprep.mubr.f32.mxu0 0.0
        %6453 = vmatmul.mubr.f32.gmra.mrb[0].mxu0 %v6277
        %v6454 = vpop.f32.mrb[0].mxu0
        %v6455 = vadd.f32 %v6134, %v6454
        %v6456 = vpop.f32.mrb[0].mxu0
        %6457 = vmatprep.mubr.f32.mxu0 0.0
        %6458 = vmatmul.mubr.f32.gmra.mrb[0].mxu0 %v6280
        %v6459 = vpop.f32.mrb[0].mxu0
        %v6460 = vadd.f32 %v6139, %v6459
        %v6461 = vpop.f32.mrb[0].mxu0
        %6462 = vmatprep.mubr.f32.mxu0 0.0
        %6463 = vmatmul.mubr.f32.gmra.mrb[0].mxu0 %v6283
        %v6464 = vpop.f32.mrb[0].mxu0
        %v6465 = vadd.f32 %v6144, %v6464
        %v6466 = vpop.f32.mrb[0].mxu0
        %6467 = vmatprep.mubr.f32.mxu0 0.0
        %6468 = vmatmul.mubr.f32.gmra.mrb[0].mxu0 %v6286
        %v6469 = vpop.f32.mrb[0].mxu0
        %v6470 = vadd.f32 %v6149, %v6469
        %v6471 = vpop.f32.mrb[0].mxu0
        %6472 = vmatprep.mubr.f32.mxu0 0.0
        %6473 = vmatmul.mubr.f32.gmra.mrb[0].mxu0 %v6289
        %v6474 = vpop.f32.mrb[0].mxu0
        %v6475 = vadd.f32 %v6154, %v6474
        %v6476 = vpop.f32.mrb[0].mxu0
        %6477 = vmatprep.mubr.f32.mxu0 0.0
        %6478 = vmatmul.mubr.f32.gmra.mrb[0].mxu0 %v6292
        %v6479 = vpop.f32.mrb[0].mxu0
        %v6480 = vadd.f32 %v6159, %v6479
        %v6481 = vpop.f32.mrb[0].mxu0
        %6482 = vmatprep.mubr.f32.mxu0 0.0
        %6483 = vmatmul.mubr.f32.gmra.mrb[0].mxu0 %v6295
        %v6484 = vpop.f32.mrb[0].mxu0
        %v6485 = vadd.f32 %v6164, %v6484
        %v6486 = vpop.f32.mrb[0].mxu0
        %6487 = vmatprep.mubr.f32.mxu0 0.0
        %6488 = vmatmul.mubr.f32.gmra.mrb[0].mxu0 %v6298
        %v6489 = vpop.f32.mrb[0].mxu0
        %v6490 = vadd.f32 %v6169, %v6489
        %v6491 = vpop.f32.mrb[0].mxu0
        %6492 = vmatprep.mubr.f32.mxu0 0.0
        %6493 = vmatmul.mubr.f32.gmra.mrb[0].mxu0 %v6301
        %v6494 = vpop.f32.mrb[0].mxu0
        %v6495 = vadd.f32 %v6174, %v6494
        %v6496 = vpop.f32.mrb[0].mxu0
        %6497 = vmatprep.mubr.f32.mxu0 0.0
        %6498 = vmatmul.mubr.f32.gmra.mrb[0].mxu0 %v6304
        %v6499 = vpop.f32.mrb[0].mxu0
        %v6500 = vadd.f32 %v6179, %v6499
        %v6501 = vpop.f32.mrb[0].mxu0
        %6502 = vmatprep.mubr.f32.mxu0 0.0
        %6503 = vmatmul.mubr.f32.gmra.mrb[0].mxu0 %v6307
        %v6504 = vpop.f32.mrb[0].mxu0
        %v6505 = vadd.f32 %v6184, %v6504
        %v6506 = vpop.f32.mrb[0].mxu0
        %6507 = vmatprep.mubr.f32.mxu0 0.0
        %6508 = vmatmul.mubr.f32.gmra.mrb[0].mxu0 %v6310
        %v6509 = vpop.f32.mrb[0].mxu0
        %v6510 = vadd.f32 %v6189, %v6509
        %v6511 = vpop.f32.mrb[0].mxu0
        %6512 = vmatprep.mubr.f32.mxu0 0.0
        %6513 = vmatmul.mubr.f32.gmra.mrb[0].mxu0 %v6313
        %v6514 = vpop.f32.mrb[0].mxu0
        %v6515 = vadd.f32 %v6194, %v6514
        %v6516 = vpop.f32.mrb[0].mxu0
        %6517 = vmatprep.mubr.f32.mxu0 0.0
        %6518 = vmatmul.mubr.f32.gmra.mrb[0].mxu0 %v6316
        %v6519 = vpop.f32.mrb[0].mxu0
        %v6520 = vadd.f32 %v6199, %v6519
        %v6521 = vpop.f32.mrb[0].mxu0
        %6522 = vmatprep.mubr.f32.mxu0 0.0
        %6523 = vmatmul.mubr.f32.gmra.mrb[0].mxu0 %v6319
        %v6524 = vpop.f32.mrb[0].mxu0
        %v6525 = vadd.f32 %v6204, %v6524
        %v6526 = vpop.f32.mrb[0].mxu0
        %6527 = vmatprep.mubr.f32.mxu0 0.0
        %6528 = vmatmul.mubr.f32.gmra.mrb[0].mxu0 %v6322
        %v6529 = vpop.f32.mrb[0].mxu0
        %v6530 = vadd.f32 %v6209, %v6529
        %v6531 = vpop.f32.mrb[0].mxu0
        %6532 = vmatprep.mubr.f32.mxu0 0.0
        %6533 = vmatmul.mubr.f32.gmra.mrb[0].mxu0 %v6325
        %v6534 = vpop.f32.mrb[0].mxu0
        %v6535 = vadd.f32 %v6214, %v6534
        %v6536 = vpop.f32.mrb[0].mxu0
        %6537 = vmatprep.mubr.f32.mxu0 0.0
        %6538 = vmatmul.mubr.f32.gmra.mrb[0].mxu0 %v6328
        %v6539 = vpop.f32.mrb[0].mxu0
        %v6540 = vadd.f32 %v6219, %v6539
        %v6541 = vpop.f32.mrb[0].mxu0
        %6542 = vmatprep.mubr.f32.mxu0 0.0
        %6543 = vmatmul.mubr.f32.gmra.mrb[0].mxu0 %v6331
        %v6544 = vpop.f32.mrb[0].mxu0
        %v6545 = vadd.f32 %v6224, %v6544
        %v6546 = vpop.f32.mrb[0].mxu0
        %6547 = vmatprep.mubr.f32.mxu0 0.0
        %6548 = vmatmul.mubr.f32.gmra.mrb[0].mxu0 %v6334
        %v6549 = vpop.f32.mrb[0].mxu0
        %v6550 = vadd.f32 %v6229, %v6549
        %v6551 = vpop.f32.mrb[0].mxu0
        %6552 = vmatprep.mubr.f32.mxu0 0.0
        %6553 = vmatmul.mubr.f32.gmra.mrb[0].mxu0 %v6337
        %v6554 = vpop.f32.mrb[0].mxu0
        %v6555 = vadd.f32 %v6234, %v6554
        %v6556 = vpop.f32.mrb[0].mxu0
        %6557 = vmatprep.mubr.f32.mxu0 0.0
        %6558 = vmatmul.mubr.f32.gmra.mrb[0].mxu0 %v6340
        %v6559 = vpop.f32.mrb[0].mxu0
        %v6560 = vadd.f32 %v6239, %v6559
        %v6561 = vpop.f32.mrb[0].mxu0
        %6562 = vmatprep.mubr.f32.mxu0 0.0
        %6563 = vmatmul.mubr.f32.gmra.mrb[0].mxu0 %v6343
        %v6564 = vpop.f32.mrb[0].mxu0
        %v6565 = vadd.f32 %v6244, %v6564
        %v6566 = vpop.f32.mrb[0].mxu0
        %6567 = vmatprep.mubr.f32.mxu0 0.0
        %6568 = vmatmul.mubr.f32.gmra.mrb[0].mxu0 %v6346
        %v6569 = vpop.f32.mrb[0].mxu0
        %v6570 = vadd.f32 %v6249, %v6569
        %v6571 = vpop.f32.mrb[0].mxu0
        %6572 = vdwg.mxu0
        %v6573 = vld [vmem:[#allocation3 + $0x9] sm:$0xff]
        %v6574 = vld [vmem:[#allocation3 + $0x11] sm:$0xff]
        %v6575 = vld [vmem:[#allocation3 + $0x29] sm:$0xff]
        %v6576 = vld [vmem:[#allocation3 + $0x31] sm:$0xff]
        %v6577 = vld [vmem:[#allocation3 + $0x49] sm:$0xff]
        %v6578 = vld [vmem:[#allocation3 + $0x51] sm:$0xff]
        %v6579 = vld [vmem:[#allocation3 + $0x69] sm:$0xff]
        %v6580 = vld [vmem:[#allocation3 + $0x71] sm:$0xff]
        %v6581 = vld [vmem:[#allocation3 + $0x89] sm:$0xff]
        %v6582 = vld [vmem:[#allocation3 + $0x91] sm:$0xff]
        %v6583 = vld [vmem:[#allocation3 + $0xa9] sm:$0xff]
        %v6584 = vld [vmem:[#allocation3 + $0xb1] sm:$0xff]
        %v6585 = vld [vmem:[#allocation3 + $0xc9] sm:$0xff]
        %v6586 = vld [vmem:[#allocation3 + $0xd1] sm:$0xff]
        %v6587 = vld [vmem:[#allocation3 + $0xe9] sm:$0xff]
        %v6588 = vld [vmem:[#allocation3 + $0xf1] sm:$0xff]
        %v6589 = vld [vmem:[#allocation3 + $0x109] sm:$0xff]
        %v6590 = vld [vmem:[#allocation3 + $0x111] sm:$0xff]
        %v6591 = vld [vmem:[#allocation3 + $0x129] sm:$0xff]
        %v6592 = vld [vmem:[#allocation3 + $0x131] sm:$0xff]
        %v6593 = vld [vmem:[#allocation3 + $0x149] sm:$0xff]
        %v6594 = vld [vmem:[#allocation3 + $0x151] sm:$0xff]
        %v6595 = vld [vmem:[#allocation3 + $0x169] sm:$0xff]
        %v6596 = vld [vmem:[#allocation3 + $0x171] sm:$0xff]
        %v6597 = vld [vmem:[#allocation3 + $0x189] sm:$0xff]
        %v6598 = vld [vmem:[#allocation3 + $0x191] sm:$0xff]
        %v6599 = vld [vmem:[#allocation3 + $0x1a9] sm:$0xff]
        %v6600 = vld [vmem:[#allocation3 + $0x1b1] sm:$0xff]
        %v6601 = vld [vmem:[#allocation3 + $0x1c9] sm:$0xff]
        %v6602 = vld [vmem:[#allocation3 + $0x1d1] sm:$0xff]
        %v6603 = vld [vmem:[#allocation3 + $0x1e9] sm:$0xff]
        %v6604 = vld [vmem:[#allocation3 + $0x1f1] sm:$0xff]
        %s6605 = scalar_lea.vmem %s11, 64
        %v6606 = vld [vmem:[%s6605] sm:$0xff]
        %v6607 = vld [vmem:[%s6605 + $0x8] sm:$0xff]
        %v6608 = vld [vmem:[%s6605 + $0x10] sm:$0xff]
        %v6609 = vld [vmem:[%s6605 + $0x18] sm:$0xff]
        %v6611 = vsel %vm531, %v6573, 0
        %v6614 = vsel %vm531, %v6574, 0
        %v6617 = vsel %vm531, %v6575, 0
        %v6620 = vsel %vm531, %v6576, 0
        %v6623 = vsel %vm531, %v6577, 0
        %v6626 = vsel %vm531, %v6578, 0
        %v6629 = vsel %vm531, %v6579, 0
        %v6632 = vsel %vm531, %v6580, 0
        %v6635 = vsel %vm531, %v6581, 0
        %v6638 = vsel %vm531, %v6582, 0
        %v6641 = vsel %vm531, %v6583, 0
        %v6644 = vsel %vm531, %v6584, 0
        %v6647 = vsel %vm531, %v6585, 0
        %v6650 = vsel %vm531, %v6586, 0
        %v6653 = vsel %vm531, %v6587, 0
        %v6656 = vsel %vm531, %v6588, 0
        %v6659 = vsel %vm531, %v6589, 0
        %v6662 = vsel %vm531, %v6590, 0
        %v6665 = vsel %vm531, %v6591, 0
        %v6668 = vsel %vm531, %v6592, 0
        %v6671 = vsel %vm531, %v6593, 0
        %v6674 = vsel %vm531, %v6594, 0
        %v6677 = vsel %vm531, %v6595, 0
        %v6680 = vsel %vm531, %v6596, 0
        %v6683 = vsel %vm531, %v6597, 0
        %v6686 = vsel %vm531, %v6598, 0
        %v6689 = vsel %vm531, %v6599, 0
        %v6692 = vsel %vm531, %v6600, 0
        %v6695 = vsel %vm531, %v6601, 0
        %v6698 = vsel %vm531, %v6602, 0
        %v6701 = vsel %vm531, %v6603, 0
        %v6704 = vsel %vm531, %v6604, 0
        %6706 = vmatprep.subr.mxu0 0.0
        %6707 = vmatpush1.msra.mxu0 %v6606
        %6708 = vmatprep.subr.mxu0 0.0
        %6709 = vmatpush1.msra.mxu0 %v6607
        %6710 = vmatprep.subr.mxu0 0.0
        %6711 = vmatpush1.msra.mxu0 %v6608
        %6712 = vmatprep.subr.mxu0 0.0
        %6713 = vmatpush1.msra.mxu0 %v6609
        %6714 = vmatprep.subr.mxu0 0.0
        %6715 = vmatpush1.msra.mxu0 0.0
        %6716 = vmatprep.subr.mxu0 0.0
        %6717 = vmatpush1.msra.mxu0 0.0
        %6718 = vmatprep.subr.mxu0 0.0
        %6719 = vmatpush1.msra.mxu0 0.0
        %6720 = vmatprep.subr.mxu0 0.0
        %6721 = vmatpush1.msra.mxu0 0.0
        %6722 = vmatprep.subr.mxu0 0.0
        %6723 = vmatpush1.msra.mxu0 0.0
        %6724 = vmatprep.subr.mxu0 0.0
        %6725 = vmatpush1.msra.mxu0 0.0
        %6726 = vmatprep.subr.mxu0 0.0
        %6727 = vmatpush1.msra.mxu0 0.0
        %6728 = vmatprep.subr.mxu0 0.0
        %6729 = vmatpush1.msra.mxu0 0.0
        %6730 = vmatprep.subr.mxu0 0.0
        %6731 = vmatpush1.msra.mxu0 0.0
        %6732 = vmatprep.subr.mxu0 0.0
        %6733 = vmatpush1.msra.mxu0 0.0
        %6734 = vmatprep.subr.mxu0 0.0
        %6735 = vmatpush1.msra.mxu0 0.0
        %6736 = vmatprep.subr.mxu0 0.0
        %6737 = vmatpush1.msra.mxu0 0.0
        %6738 = vmatprep.subr.mxu0 0.0
        %6739 = vmatpush1.msra.mxu0 0.0
        %6740 = vmatprep.subr.mxu0 0.0
        %6741 = vmatpush1.msra.mxu0 0.0
        %6742 = vmatprep.subr.mxu0 0.0
        %6743 = vmatpush1.msra.mxu0 0.0
        %6744 = vmatprep.subr.mxu0 0.0
        %6745 = vmatpush1.msra.mxu0 0.0
        %6746 = vmatprep.subr.mxu0 0.0
        %6747 = vmatpush1.msra.mxu0 0.0
        %6748 = vmatprep.subr.mxu0 0.0
        %6749 = vmatpush1.msra.mxu0 0.0
        %6750 = vmatprep.subr.mxu0 0.0
        %6751 = vmatpush1.msra.mxu0 0.0
        %6752 = vmatprep.subr.mxu0 0.0
        %6753 = vmatpush1.msra.mxu0 0.0
        %6754 = vmatprep.subr.mxu0 0.0
        %6755 = vmatpush1.msra.mxu0 0.0
        %6756 = vmatprep.subr.mxu0 0.0
        %6757 = vmatpush1.msra.mxu0 0.0
        %6758 = vmatprep.subr.mxu0 0.0
        %6759 = vmatpush1.msra.mxu0 0.0
        %6760 = vmatprep.subr.mxu0 0.0
        %6761 = vmatpush1.msra.mxu0 0.0
        %6762 = vmatprep.subr.mxu0 0.0
        %6763 = vmatpush1.msra.mxu0 0.0
        %6764 = vmatprep.subr.mxu0 0.0
        %6765 = vmatpush1.msra.mxu0 0.0
        %6766 = vmatprep.subr.mxu0 0.0
        %6767 = vmatpush1.msra.mxu0 0.0
        %6768 = vmatprep.subr.mxu0 0.0
        %6769 = vmatpush1.msra.mxu0 0.0
        %6770 = vmatprep.mubr.f32.mxu0 0.0
        %6771 = vmatmul.mubr.f32.gmra.mrb[0].mxu0 %v6611
        %v6772 = vpop.f32.mrb[0].mxu0
        %v6773 = vadd.f32 0.0, %v6772
        %v6774 = vpop.f32.mrb[0].mxu0
        %6775 = vmatprep.mubr.f32.mxu0 0.0
        %6776 = vmatmul.mubr.f32.gmra.mrb[0].mxu0 %v6614
        %v6777 = vpop.f32.mrb[0].mxu0
        %v6778 = vadd.f32 0.0, %v6777
        %v6779 = vpop.f32.mrb[0].mxu0
        %6780 = vmatprep.mubr.f32.mxu0 0.0
        %6781 = vmatmul.mubr.f32.gmra.mrb[0].mxu0 %v6617
        %v6782 = vpop.f32.mrb[0].mxu0
        %v6783 = vadd.f32 0.0, %v6782
        %v6784 = vpop.f32.mrb[0].mxu0
        %6785 = vmatprep.mubr.f32.mxu0 0.0
        %6786 = vmatmul.mubr.f32.gmra.mrb[0].mxu0 %v6620
        %v6787 = vpop.f32.mrb[0].mxu0
        %v6788 = vadd.f32 0.0, %v6787
        %v6789 = vpop.f32.mrb[0].mxu0
        %6790 = vmatprep.mubr.f32.mxu0 0.0
        %6791 = vmatmul.mubr.f32.gmra.mrb[0].mxu0 %v6623
        %v6792 = vpop.f32.mrb[0].mxu0
        %v6793 = vadd.f32 0.0, %v6792
        %v6794 = vpop.f32.mrb[0].mxu0
        %6795 = vmatprep.mubr.f32.mxu0 0.0
        %6796 = vmatmul.mubr.f32.gmra.mrb[0].mxu0 %v6626
        %v6797 = vpop.f32.mrb[0].mxu0
        %v6798 = vadd.f32 0.0, %v6797
        %v6799 = vpop.f32.mrb[0].mxu0
        %6800 = vmatprep.mubr.f32.mxu0 0.0
        %6801 = vmatmul.mubr.f32.gmra.mrb[0].mxu0 %v6629
        %v6802 = vpop.f32.mrb[0].mxu0
        %v6803 = vadd.f32 0.0, %v6802
        %v6804 = vpop.f32.mrb[0].mxu0
        %6805 = vmatprep.mubr.f32.mxu0 0.0
        %6806 = vmatmul.mubr.f32.gmra.mrb[0].mxu0 %v6632
        %v6807 = vpop.f32.mrb[0].mxu0
        %v6808 = vadd.f32 0.0, %v6807
        %v6809 = vpop.f32.mrb[0].mxu0
        %6810 = vmatprep.mubr.f32.mxu0 0.0
        %6811 = vmatmul.mubr.f32.gmra.mrb[0].mxu0 %v6635
        %v6812 = vpop.f32.mrb[0].mxu0
        %v6813 = vadd.f32 0.0, %v6812
        %v6814 = vpop.f32.mrb[0].mxu0
        %6815 = vmatprep.mubr.f32.mxu0 0.0
        %6816 = vmatmul.mubr.f32.gmra.mrb[0].mxu0 %v6638
        %v6817 = vpop.f32.mrb[0].mxu0
        %v6818 = vadd.f32 0.0, %v6817
        %v6819 = vpop.f32.mrb[0].mxu0
        %6820 = vmatprep.mubr.f32.mxu0 0.0
        %6821 = vmatmul.mubr.f32.gmra.mrb[0].mxu0 %v6641
        %v6822 = vpop.f32.mrb[0].mxu0
        %v6823 = vadd.f32 0.0, %v6822
        %v6824 = vpop.f32.mrb[0].mxu0
        %6825 = vmatprep.mubr.f32.mxu0 0.0
        %6826 = vmatmul.mubr.f32.gmra.mrb[0].mxu0 %v6644
        %v6827 = vpop.f32.mrb[0].mxu0
        %v6828 = vadd.f32 0.0, %v6827
        %v6829 = vpop.f32.mrb[0].mxu0
        %6830 = vmatprep.mubr.f32.mxu0 0.0
        %6831 = vmatmul.mubr.f32.gmra.mrb[0].mxu0 %v6647
        %v6832 = vpop.f32.mrb[0].mxu0
        %v6833 = vadd.f32 0.0, %v6832
        %v6834 = vpop.f32.mrb[0].mxu0
        %6835 = vmatprep.mubr.f32.mxu0 0.0
        %6836 = vmatmul.mubr.f32.gmra.mrb[0].mxu0 %v6650
        %v6837 = vpop.f32.mrb[0].mxu0
        %v6838 = vadd.f32 0.0, %v6837
        %v6839 = vpop.f32.mrb[0].mxu0
        %6840 = vmatprep.mubr.f32.mxu0 0.0
        %6841 = vmatmul.mubr.f32.gmra.mrb[0].mxu0 %v6653
        %v6842 = vpop.f32.mrb[0].mxu0
        %v6843 = vadd.f32 0.0, %v6842
        %v6844 = vpop.f32.mrb[0].mxu0
        %6845 = vmatprep.mubr.f32.mxu0 0.0
        %6846 = vmatmul.mubr.f32.gmra.mrb[0].mxu0 %v6656
        %v6847 = vpop.f32.mrb[0].mxu0
        %v6848 = vadd.f32 0.0, %v6847
        %v6849 = vpop.f32.mrb[0].mxu0
        %6850 = vmatprep.mubr.f32.mxu0 0.0
        %6851 = vmatmul.mubr.f32.gmra.mrb[0].mxu0 %v6659
        %v6852 = vpop.f32.mrb[0].mxu0
        %v6853 = vadd.f32 0.0, %v6852
        %v6854 = vpop.f32.mrb[0].mxu0
        %6855 = vmatprep.mubr.f32.mxu0 0.0
        %6856 = vmatmul.mubr.f32.gmra.mrb[0].mxu0 %v6662
        %v6857 = vpop.f32.mrb[0].mxu0
        %v6858 = vadd.f32 0.0, %v6857
        %v6859 = vpop.f32.mrb[0].mxu0
        %6860 = vmatprep.mubr.f32.mxu0 0.0
        %6861 = vmatmul.mubr.f32.gmra.mrb[0].mxu0 %v6665
        %v6862 = vpop.f32.mrb[0].mxu0
        %v6863 = vadd.f32 0.0, %v6862
        %v6864 = vpop.f32.mrb[0].mxu0
        %6865 = vmatprep.mubr.f32.mxu0 0.0
        %6866 = vmatmul.mubr.f32.gmra.mrb[0].mxu0 %v6668
        %v6867 = vpop.f32.mrb[0].mxu0
        %v6868 = vadd.f32 0.0, %v6867
        %v6869 = vpop.f32.mrb[0].mxu0
        %6870 = vmatprep.mubr.f32.mxu0 0.0
        %6871 = vmatmul.mubr.f32.gmra.mrb[0].mxu0 %v6671
        %v6872 = vpop.f32.mrb[0].mxu0
        %v6873 = vadd.f32 0.0, %v6872
        %v6874 = vpop.f32.mrb[0].mxu0
        %6875 = vmatprep.mubr.f32.mxu0 0.0
        %6876 = vmatmul.mubr.f32.gmra.mrb[0].mxu0 %v6674
        %v6877 = vpop.f32.mrb[0].mxu0
        %v6878 = vadd.f32 0.0, %v6877
        %v6879 = vpop.f32.mrb[0].mxu0
        %6880 = vmatprep.mubr.f32.mxu0 0.0
        %6881 = vmatmul.mubr.f32.gmra.mrb[0].mxu0 %v6677
        %v6882 = vpop.f32.mrb[0].mxu0
        %v6883 = vadd.f32 0.0, %v6882
        %v6884 = vpop.f32.mrb[0].mxu0
        %6885 = vmatprep.mubr.f32.mxu0 0.0
        %6886 = vmatmul.mubr.f32.gmra.mrb[0].mxu0 %v6680
        %v6887 = vpop.f32.mrb[0].mxu0
        %v6888 = vadd.f32 0.0, %v6887
        %v6889 = vpop.f32.mrb[0].mxu0
        %6890 = vmatprep.mubr.f32.mxu0 0.0
        %6891 = vmatmul.mubr.f32.gmra.mrb[0].mxu0 %v6683
        %v6892 = vpop.f32.mrb[0].mxu0
        %v6893 = vadd.f32 0.0, %v6892
        %v6894 = vpop.f32.mrb[0].mxu0
        %6895 = vmatprep.mubr.f32.mxu0 0.0
        %6896 = vmatmul.mubr.f32.gmra.mrb[0].mxu0 %v6686
        %v6897 = vpop.f32.mrb[0].mxu0
        %v6898 = vadd.f32 0.0, %v6897
        %v6899 = vpop.f32.mrb[0].mxu0
        %6900 = vmatprep.mubr.f32.mxu0 0.0
        %6901 = vmatmul.mubr.f32.gmra.mrb[0].mxu0 %v6689
        %v6902 = vpop.f32.mrb[0].mxu0
        %v6903 = vadd.f32 0.0, %v6902
        %v6904 = vpop.f32.mrb[0].mxu0
        %6905 = vmatprep.mubr.f32.mxu0 0.0
        %6906 = vmatmul.mubr.f32.gmra.mrb[0].mxu0 %v6692
        %v6907 = vpop.f32.mrb[0].mxu0
        %v6908 = vadd.f32 0.0, %v6907
        %v6909 = vpop.f32.mrb[0].mxu0
        %6910 = vmatprep.mubr.f32.mxu0 0.0
        %6911 = vmatmul.mubr.f32.gmra.mrb[0].mxu0 %v6695
        %v6912 = vpop.f32.mrb[0].mxu0
        %v6913 = vadd.f32 0.0, %v6912
        %v6914 = vpop.f32.mrb[0].mxu0
        %6915 = vmatprep.mubr.f32.mxu0 0.0
        %6916 = vmatmul.mubr.f32.gmra.mrb[0].mxu0 %v6698
        %v6917 = vpop.f32.mrb[0].mxu0
        %v6918 = vadd.f32 0.0, %v6917
        %v6919 = vpop.f32.mrb[0].mxu0
        %6920 = vmatprep.mubr.f32.mxu0 0.0
        %6921 = vmatmul.mubr.f32.gmra.mrb[0].mxu0 %v6701
        %v6922 = vpop.f32.mrb[0].mxu0
        %v6923 = vadd.f32 0.0, %v6922
        %v6924 = vpop.f32.mrb[0].mxu0
        %6925 = vmatprep.mubr.f32.mxu0 0.0
        %6926 = vmatmul.mubr.f32.gmra.mrb[0].mxu0 %v6704
        %v6927 = vpop.f32.mrb[0].mxu0
        %v6928 = vadd.f32 0.0, %v6927
        %v6929 = vpop.f32.mrb[0].mxu0
        %6930 = vdwg.mxu0
        %v6931 = vadd.f32 %v6415, %v6773
        %v6932 = vadd.f32 %v6420, %v6778
        %v6933 = vadd.f32 %v6425, %v6783
        %v6934 = vadd.f32 %v6430, %v6788
        %v6935 = vadd.f32 %v6435, %v6793
        %v6936 = vadd.f32 %v6440, %v6798
        %v6937 = vadd.f32 %v6445, %v6803
        %v6938 = vadd.f32 %v6450, %v6808
        %v6939 = vadd.f32 %v6455, %v6813
        %v6940 = vadd.f32 %v6460, %v6818
        %v6941 = vadd.f32 %v6465, %v6823
        %v6942 = vadd.f32 %v6470, %v6828
        %v6943 = vadd.f32 %v6475, %v6833
        %v6944 = vadd.f32 %v6480, %v6838
        %v6945 = vadd.f32 %v6485, %v6843
        %v6946 = vadd.f32 %v6490, %v6848
        %v6947 = vadd.f32 %v6495, %v6853
        %v6948 = vadd.f32 %v6500, %v6858
        %v6949 = vadd.f32 %v6505, %v6863
        %v6950 = vadd.f32 %v6510, %v6868
        %v6951 = vadd.f32 %v6515, %v6873
        %v6952 = vadd.f32 %v6520, %v6878
        %v6953 = vadd.f32 %v6525, %v6883
        %v6954 = vadd.f32 %v6530, %v6888
        %v6955 = vadd.f32 %v6535, %v6893
        %v6956 = vadd.f32 %v6540, %v6898
        %v6957 = vadd.f32 %v6545, %v6903
        %v6958 = vadd.f32 %v6550, %v6908
        %v6959 = vadd.f32 %v6555, %v6913
        %v6960 = vadd.f32 %v6560, %v6918
        %v6961 = vadd.f32 %v6565, %v6923
        %v6962 = vadd.f32 %v6570, %v6928
        %v6963 = vld [vmem:[%s5825 + $0x7] sm:$0xff]
        %v6964 = vld [vmem:[%s5825 + $0xf] sm:$0xff]
        %v6965 = vld [vmem:[%s5825 + $0x27] sm:$0xff]
        %v6966 = vld [vmem:[%s5825 + $0x2f] sm:$0xff]
        %v6967 = vld [vmem:[%s5825 + $0x47] sm:$0xff]
        %v6968 = vld [vmem:[%s5825 + $0x4f] sm:$0xff]
        %v6969 = vld [vmem:[%s5825 + $0x67] sm:$0xff]
        %v6970 = vld [vmem:[%s5825 + $0x6f] sm:$0xff]
        %v6971 = vld [vmem:[%s5825 + $0x87] sm:$0xff]
        %v6972 = vld [vmem:[%s5825 + $0x8f] sm:$0xff]
        %v6973 = vld [vmem:[%s5825 + $0xa7] sm:$0xff]
        %v6974 = vld [vmem:[%s5825 + $0xaf] sm:$0xff]
        %v6975 = vld [vmem:[%s5825 + $0xc7] sm:$0xff]
        %v6976 = vld [vmem:[%s5825 + $0xcf] sm:$0xff]
        %v6977 = vld [vmem:[%s5825 + $0xe7] sm:$0xff]
        %v6978 = vld [vmem:[%s5825 + $0xef] sm:$0xff]
        %v6979 = vld [vmem:[%s5825 + $0x107] sm:$0xff]
        %v6980 = vld [vmem:[%s5825 + $0x10f] sm:$0xff]
        %v6981 = vld [vmem:[%s5825 + $0x127] sm:$0xff]
        %v6982 = vld [vmem:[%s5825 + $0x12f] sm:$0xff]
        %v6983 = vld [vmem:[%s5825 + $0x147] sm:$0xff]
        %v6984 = vld [vmem:[%s5825 + $0x14f] sm:$0xff]
        %v6985 = vld [vmem:[%s5825 + $0x167] sm:$0xff]
        %v6986 = vld [vmem:[%s5825 + $0x16f] sm:$0xff]
        %v6987 = vld [vmem:[%s5825 + $0x187] sm:$0xff]
        %v6988 = vld [vmem:[%s5825 + $0x18f] sm:$0xff]
        %v6989 = vld [vmem:[%s5825 + $0x1a7] sm:$0xff]
        %v6990 = vld [vmem:[%s5825 + $0x1af] sm:$0xff]
        %v6991 = vld [vmem:[%s5825 + $0x1c7] sm:$0xff]
        %v6992 = vld [vmem:[%s5825 + $0x1cf] sm:$0xff]
        %v6993 = vld [vmem:[%s5825 + $0x1e7] sm:$0xff]
        %v6994 = vld [vmem:[%s5825 + $0x1ef] sm:$0xff]
        %s6995 = scalar_lea.vmem %s11, 96
        %v6996 = vld [vmem:[%s6995] sm:$0xff]
        %v6997 = vld [vmem:[%s6995 + $0x8] sm:$0xff]
        %v6998 = vld [vmem:[%s6995 + $0x10] sm:$0xff]
        %v6999 = vld [vmem:[%s6995 + $0x18] sm:$0xff]
        %v7001 = vsel %vm531, %v6963, 0
        %v7004 = vsel %vm531, %v6964, 0
        %v7007 = vsel %vm531, %v6965, 0
        %v7010 = vsel %vm531, %v6966, 0
        %v7013 = vsel %vm531, %v6967, 0
        %v7016 = vsel %vm531, %v6968, 0
        %v7019 = vsel %vm531, %v6969, 0
        %v7022 = vsel %vm531, %v6970, 0
        %v7025 = vsel %vm531, %v6971, 0
        %v7028 = vsel %vm531, %v6972, 0
        %v7031 = vsel %vm531, %v6973, 0
        %v7034 = vsel %vm531, %v6974, 0
        %v7037 = vsel %vm531, %v6975, 0
        %v7040 = vsel %vm531, %v6976, 0
        %v7043 = vsel %vm531, %v6977, 0
        %v7046 = vsel %vm531, %v6978, 0
        %v7049 = vsel %vm531, %v6979, 0
        %v7052 = vsel %vm531, %v6980, 0
        %v7055 = vsel %vm531, %v6981, 0
        %v7058 = vsel %vm531, %v6982, 0
        %v7061 = vsel %vm531, %v6983, 0
        %v7064 = vsel %vm531, %v6984, 0
        %v7067 = vsel %vm531, %v6985, 0
        %v7070 = vsel %vm531, %v6986, 0
        %v7073 = vsel %vm531, %v6987, 0
        %v7076 = vsel %vm531, %v6988, 0
        %v7079 = vsel %vm531, %v6989, 0
        %v7082 = vsel %vm531, %v6990, 0
        %v7085 = vsel %vm531, %v6991, 0
        %v7088 = vsel %vm531, %v6992, 0
        %v7091 = vsel %vm531, %v6993, 0
        %v7094 = vsel %vm531, %v6994, 0
        %7096 = vmatprep.subr.mxu0 0.0
        %7097 = vmatpush1.msra.mxu0 %v6996
        %7098 = vmatprep.subr.mxu0 0.0
        %7099 = vmatpush1.msra.mxu0 %v6997
        %7100 = vmatprep.subr.mxu0 0.0
        %7101 = vmatpush1.msra.mxu0 %v6998
        %7102 = vmatprep.subr.mxu0 0.0
        %7103 = vmatpush1.msra.mxu0 %v6999
        %7104 = vmatprep.subr.mxu0 0.0
        %7105 = vmatpush1.msra.mxu0 0.0
        %7106 = vmatprep.subr.mxu0 0.0
        %7107 = vmatpush1.msra.mxu0 0.0
        %7108 = vmatprep.subr.mxu0 0.0
        %7109 = vmatpush1.msra.mxu0 0.0
        %7110 = vmatprep.subr.mxu0 0.0
        %7111 = vmatpush1.msra.mxu0 0.0
        %7112 = vmatprep.subr.mxu0 0.0
        %7113 = vmatpush1.msra.mxu0 0.0
        %7114 = vmatprep.subr.mxu0 0.0
        %7115 = vmatpush1.msra.mxu0 0.0
        %7116 = vmatprep.subr.mxu0 0.0
        %7117 = vmatpush1.msra.mxu0 0.0
        %7118 = vmatprep.subr.mxu0 0.0
        %7119 = vmatpush1.msra.mxu0 0.0
        %7120 = vmatprep.subr.mxu0 0.0
        %7121 = vmatpush1.msra.mxu0 0.0
        %7122 = vmatprep.subr.mxu0 0.0
        %7123 = vmatpush1.msra.mxu0 0.0
        %7124 = vmatprep.subr.mxu0 0.0
        %7125 = vmatpush1.msra.mxu0 0.0
        %7126 = vmatprep.subr.mxu0 0.0
        %7127 = vmatpush1.msra.mxu0 0.0
        %7128 = vmatprep.subr.mxu0 0.0
        %7129 = vmatpush1.msra.mxu0 0.0
        %7130 = vmatprep.subr.mxu0 0.0
        %7131 = vmatpush1.msra.mxu0 0.0
        %7132 = vmatprep.subr.mxu0 0.0
        %7133 = vmatpush1.msra.mxu0 0.0
        %7134 = vmatprep.subr.mxu0 0.0
        %7135 = vmatpush1.msra.mxu0 0.0
        %7136 = vmatprep.subr.mxu0 0.0
        %7137 = vmatpush1.msra.mxu0 0.0
        %7138 = vmatprep.subr.mxu0 0.0
        %7139 = vmatpush1.msra.mxu0 0.0
        %7140 = vmatprep.subr.mxu0 0.0
        %7141 = vmatpush1.msra.mxu0 0.0
        %7142 = vmatprep.subr.mxu0 0.0
        %7143 = vmatpush1.msra.mxu0 0.0
        %7144 = vmatprep.subr.mxu0 0.0
        %7145 = vmatpush1.msra.mxu0 0.0
        %7146 = vmatprep.subr.mxu0 0.0
        %7147 = vmatpush1.msra.mxu0 0.0
        %7148 = vmatprep.subr.mxu0 0.0
        %7149 = vmatpush1.msra.mxu0 0.0
        %7150 = vmatprep.subr.mxu0 0.0
        %7151 = vmatpush1.msra.mxu0 0.0
        %7152 = vmatprep.subr.mxu0 0.0
        %7153 = vmatpush1.msra.mxu0 0.0
        %7154 = vmatprep.subr.mxu0 0.0
        %7155 = vmatpush1.msra.mxu0 0.0
        %7156 = vmatprep.subr.mxu0 0.0
        %7157 = vmatpush1.msra.mxu0 0.0
        %7158 = vmatprep.subr.mxu0 0.0
        %7159 = vmatpush1.msra.mxu0 0.0
        %7160 = vmatprep.mubr.f32.mxu0 0.0
        %7161 = vmatmul.mubr.f32.gmra.mrb[0].mxu0 %v7001
        %v7162 = vpop.f32.mrb[0].mxu0
        %v7163 = vadd.f32 0.0, %v7162
        %v7164 = vpop.f32.mrb[0].mxu0
        %7165 = vmatprep.mubr.f32.mxu0 0.0
        %7166 = vmatmul.mubr.f32.gmra.mrb[0].mxu0 %v7004
        %v7167 = vpop.f32.mrb[0].mxu0
        %v7168 = vadd.f32 0.0, %v7167
        %v7169 = vpop.f32.mrb[0].mxu0
        %7170 = vmatprep.mubr.f32.mxu0 0.0
        %7171 = vmatmul.mubr.f32.gmra.mrb[0].mxu0 %v7007
        %v7172 = vpop.f32.mrb[0].mxu0
        %v7173 = vadd.f32 0.0, %v7172
        %v7174 = vpop.f32.mrb[0].mxu0
        %7175 = vmatprep.mubr.f32.mxu0 0.0
        %7176 = vmatmul.mubr.f32.gmra.mrb[0].mxu0 %v7010
        %v7177 = vpop.f32.mrb[0].mxu0
        %v7178 = vadd.f32 0.0, %v7177
        %v7179 = vpop.f32.mrb[0].mxu0
        %7180 = vmatprep.mubr.f32.mxu0 0.0
        %7181 = vmatmul.mubr.f32.gmra.mrb[0].mxu0 %v7013
        %v7182 = vpop.f32.mrb[0].mxu0
        %v7183 = vadd.f32 0.0, %v7182
        %v7184 = vpop.f32.mrb[0].mxu0
        %7185 = vmatprep.mubr.f32.mxu0 0.0
        %7186 = vmatmul.mubr.f32.gmra.mrb[0].mxu0 %v7016
        %v7187 = vpop.f32.mrb[0].mxu0
        %v7188 = vadd.f32 0.0, %v7187
        %v7189 = vpop.f32.mrb[0].mxu0
        %7190 = vmatprep.mubr.f32.mxu0 0.0
        %7191 = vmatmul.mubr.f32.gmra.mrb[0].mxu0 %v7019
        %v7192 = vpop.f32.mrb[0].mxu0
        %v7193 = vadd.f32 0.0, %v7192
        %v7194 = vpop.f32.mrb[0].mxu0
        %7195 = vmatprep.mubr.f32.mxu0 0.0
        %7196 = vmatmul.mubr.f32.gmra.mrb[0].mxu0 %v7022
        %v7197 = vpop.f32.mrb[0].mxu0
        %v7198 = vadd.f32 0.0, %v7197
        %v7199 = vpop.f32.mrb[0].mxu0
        %7200 = vmatprep.mubr.f32.mxu0 0.0
        %7201 = vmatmul.mubr.f32.gmra.mrb[0].mxu0 %v7025
        %v7202 = vpop.f32.mrb[0].mxu0
        %v7203 = vadd.f32 0.0, %v7202
        %v7204 = vpop.f32.mrb[0].mxu0
        %7205 = vmatprep.mubr.f32.mxu0 0.0
        %7206 = vmatmul.mubr.f32.gmra.mrb[0].mxu0 %v7028
        %v7207 = vpop.f32.mrb[0].mxu0
        %v7208 = vadd.f32 0.0, %v7207
        %v7209 = vpop.f32.mrb[0].mxu0
        %7210 = vmatprep.mubr.f32.mxu0 0.0
        %7211 = vmatmul.mubr.f32.gmra.mrb[0].mxu0 %v7031
        %v7212 = vpop.f32.mrb[0].mxu0
        %v7213 = vadd.f32 0.0, %v7212
        %v7214 = vpop.f32.mrb[0].mxu0
        %7215 = vmatprep.mubr.f32.mxu0 0.0
        %7216 = vmatmul.mubr.f32.gmra.mrb[0].mxu0 %v7034
        %v7217 = vpop.f32.mrb[0].mxu0
        %v7218 = vadd.f32 0.0, %v7217
        %v7219 = vpop.f32.mrb[0].mxu0
        %7220 = vmatprep.mubr.f32.mxu0 0.0
        %7221 = vmatmul.mubr.f32.gmra.mrb[0].mxu0 %v7037
        %v7222 = vpop.f32.mrb[0].mxu0
        %v7223 = vadd.f32 0.0, %v7222
        %v7224 = vpop.f32.mrb[0].mxu0
        %7225 = vmatprep.mubr.f32.mxu0 0.0
        %7226 = vmatmul.mubr.f32.gmra.mrb[0].mxu0 %v7040
        %v7227 = vpop.f32.mrb[0].mxu0
        %v7228 = vadd.f32 0.0, %v7227
        %v7229 = vpop.f32.mrb[0].mxu0
        %7230 = vmatprep.mubr.f32.mxu0 0.0
        %7231 = vmatmul.mubr.f32.gmra.mrb[0].mxu0 %v7043
        %v7232 = vpop.f32.mrb[0].mxu0
        %v7233 = vadd.f32 0.0, %v7232
        %v7234 = vpop.f32.mrb[0].mxu0
        %7235 = vmatprep.mubr.f32.mxu0 0.0
        %7236 = vmatmul.mubr.f32.gmra.mrb[0].mxu0 %v7046
        %v7237 = vpop.f32.mrb[0].mxu0
        %v7238 = vadd.f32 0.0, %v7237
        %v7239 = vpop.f32.mrb[0].mxu0
        %7240 = vmatprep.mubr.f32.mxu0 0.0
        %7241 = vmatmul.mubr.f32.gmra.mrb[0].mxu0 %v7049
        %v7242 = vpop.f32.mrb[0].mxu0
        %v7243 = vadd.f32 0.0, %v7242
        %v7244 = vpop.f32.mrb[0].mxu0
        %7245 = vmatprep.mubr.f32.mxu0 0.0
        %7246 = vmatmul.mubr.f32.gmra.mrb[0].mxu0 %v7052
        %v7247 = vpop.f32.mrb[0].mxu0
        %v7248 = vadd.f32 0.0, %v7247
        %v7249 = vpop.f32.mrb[0].mxu0
        %7250 = vmatprep.mubr.f32.mxu0 0.0
        %7251 = vmatmul.mubr.f32.gmra.mrb[0].mxu0 %v7055
        %v7252 = vpop.f32.mrb[0].mxu0
        %v7253 = vadd.f32 0.0, %v7252
        %v7254 = vpop.f32.mrb[0].mxu0
        %7255 = vmatprep.mubr.f32.mxu0 0.0
        %7256 = vmatmul.mubr.f32.gmra.mrb[0].mxu0 %v7058
        %v7257 = vpop.f32.mrb[0].mxu0
        %v7258 = vadd.f32 0.0, %v7257
        %v7259 = vpop.f32.mrb[0].mxu0
        %7260 = vmatprep.mubr.f32.mxu0 0.0
        %7261 = vmatmul.mubr.f32.gmra.mrb[0].mxu0 %v7061
        %v7262 = vpop.f32.mrb[0].mxu0
        %v7263 = vadd.f32 0.0, %v7262
        %v7264 = vpop.f32.mrb[0].mxu0
        %7265 = vmatprep.mubr.f32.mxu0 0.0
        %7266 = vmatmul.mubr.f32.gmra.mrb[0].mxu0 %v7064
        %v7267 = vpop.f32.mrb[0].mxu0
        %v7268 = vadd.f32 0.0, %v7267
        %v7269 = vpop.f32.mrb[0].mxu0
        %7270 = vmatprep.mubr.f32.mxu0 0.0
        %7271 = vmatmul.mubr.f32.gmra.mrb[0].mxu0 %v7067
        %v7272 = vpop.f32.mrb[0].mxu0
        %v7273 = vadd.f32 0.0, %v7272
        %v7274 = vpop.f32.mrb[0].mxu0
        %7275 = vmatprep.mubr.f32.mxu0 0.0
        %7276 = vmatmul.mubr.f32.gmra.mrb[0].mxu0 %v7070
        %v7277 = vpop.f32.mrb[0].mxu0
        %v7278 = vadd.f32 0.0, %v7277
        %v7279 = vpop.f32.mrb[0].mxu0
        %7280 = vmatprep.mubr.f32.mxu0 0.0
        %7281 = vmatmul.mubr.f32.gmra.mrb[0].mxu0 %v7073
        %v7282 = vpop.f32.mrb[0].mxu0
        %v7283 = vadd.f32 0.0, %v7282
        %v7284 = vpop.f32.mrb[0].mxu0
        %7285 = vmatprep.mubr.f32.mxu0 0.0
        %7286 = vmatmul.mubr.f32.gmra.mrb[0].mxu0 %v7076
        %v7287 = vpop.f32.mrb[0].mxu0
        %v7288 = vadd.f32 0.0, %v7287
        %v7289 = vpop.f32.mrb[0].mxu0
        %7290 = vmatprep.mubr.f32.mxu0 0.0
        %7291 = vmatmul.mubr.f32.gmra.mrb[0].mxu0 %v7079
        %v7292 = vpop.f32.mrb[0].mxu0
        %v7293 = vadd.f32 0.0, %v7292
        %v7294 = vpop.f32.mrb[0].mxu0
        %7295 = vmatprep.mubr.f32.mxu0 0.0
        %7296 = vmatmul.mubr.f32.gmra.mrb[0].mxu0 %v7082
        %v7297 = vpop.f32.mrb[0].mxu0
        %v7298 = vadd.f32 0.0, %v7297
        %v7299 = vpop.f32.mrb[0].mxu0
        %7300 = vmatprep.mubr.f32.mxu0 0.0
        %7301 = vmatmul.mubr.f32.gmra.mrb[0].mxu0 %v7085
        %v7302 = vpop.f32.mrb[0].mxu0
        %v7303 = vadd.f32 0.0, %v7302
        %v7304 = vpop.f32.mrb[0].mxu0
        %7305 = vmatprep.mubr.f32.mxu0 0.0
        %7306 = vmatmul.mubr.f32.gmra.mrb[0].mxu0 %v7088
        %v7307 = vpop.f32.mrb[0].mxu0
        %v7308 = vadd.f32 0.0, %v7307
        %v7309 = vpop.f32.mrb[0].mxu0
        %7310 = vmatprep.mubr.f32.mxu0 0.0
        %7311 = vmatmul.mubr.f32.gmra.mrb[0].mxu0 %v7091
        %v7312 = vpop.f32.mrb[0].mxu0
        %v7313 = vadd.f32 0.0, %v7312
        %v7314 = vpop.f32.mrb[0].mxu0
        %7315 = vmatprep.mubr.f32.mxu0 0.0
        %7316 = vmatmul.mubr.f32.gmra.mrb[0].mxu0 %v7094
        %v7317 = vpop.f32.mrb[0].mxu0
        %v7318 = vadd.f32 0.0, %v7317
        %v7319 = vpop.f32.mrb[0].mxu0
        %7320 = vdwg.mxu0
        %v7321 = vadd.f32 %v6931, %v7163
        %v7322 = vadd.f32 %v6932, %v7168
        %v7323 = vadd.f32 %v6933, %v7173
        %v7324 = vadd.f32 %v6934, %v7178
        %v7325 = vadd.f32 %v6935, %v7183
        %v7326 = vadd.f32 %v6936, %v7188
        %v7327 = vadd.f32 %v6937, %v7193
        %v7328 = vadd.f32 %v6938, %v7198
        %v7329 = vadd.f32 %v6939, %v7203
        %v7330 = vadd.f32 %v6940, %v7208
        %v7331 = vadd.f32 %v6941, %v7213
        %v7332 = vadd.f32 %v6942, %v7218
        %v7333 = vadd.f32 %v6943, %v7223
        %v7334 = vadd.f32 %v6944, %v7228
        %v7335 = vadd.f32 %v6945, %v7233
        %v7336 = vadd.f32 %v6946, %v7238
        %v7337 = vadd.f32 %v6947, %v7243
        %v7338 = vadd.f32 %v6948, %v7248
        %v7339 = vadd.f32 %v6949, %v7253
        %v7340 = vadd.f32 %v6950, %v7258
        %v7341 = vadd.f32 %v6951, %v7263
        %v7342 = vadd.f32 %v6952, %v7268
        %v7343 = vadd.f32 %v6953, %v7273
        %v7344 = vadd.f32 %v6954, %v7278
        %v7345 = vadd.f32 %v6955, %v7283
        %v7346 = vadd.f32 %v6956, %v7288
        %v7347 = vadd.f32 %v6957, %v7293
        %v7348 = vadd.f32 %v6958, %v7298
        %v7349 = vadd.f32 %v6959, %v7303
        %v7350 = vadd.f32 %v6960, %v7308
        %v7351 = vadd.f32 %v6961, %v7313
        %v7352 = vadd.f32 %v6962, %v7318
        %v7353 = vld [vmem:[%s5825 + $0x8] sm:$0xff]
        %v7354 = vld [vmem:[%s5825 + $0x10] sm:$0xff]
        %v7355 = vld [vmem:[%s5825 + $0x28] sm:$0xff]
        %v7356 = vld [vmem:[%s5825 + $0x30] sm:$0xff]
        %v7357 = vld [vmem:[%s5825 + $0x48] sm:$0xff]
        %v7358 = vld [vmem:[%s5825 + $0x50] sm:$0xff]
        %v7359 = vld [vmem:[%s5825 + $0x68] sm:$0xff]
        %v7360 = vld [vmem:[%s5825 + $0x70] sm:$0xff]
        %v7361 = vld [vmem:[%s5825 + $0x88] sm:$0xff]
        %v7362 = vld [vmem:[%s5825 + $0x90] sm:$0xff]
        %v7363 = vld [vmem:[%s5825 + $0xa8] sm:$0xff]
        %v7364 = vld [vmem:[%s5825 + $0xb0] sm:$0xff]
        %v7365 = vld [vmem:[%s5825 + $0xc8] sm:$0xff]
        %v7366 = vld [vmem:[%s5825 + $0xd0] sm:$0xff]
        %v7367 = vld [vmem:[%s5825 + $0xe8] sm:$0xff]
        %v7368 = vld [vmem:[%s5825 + $0xf0] sm:$0xff]
        %v7369 = vld [vmem:[%s5825 + $0x108] sm:$0xff]
        %v7370 = vld [vmem:[%s5825 + $0x110] sm:$0xff]
        %v7371 = vld [vmem:[%s5825 + $0x128] sm:$0xff]
        %v7372 = vld [vmem:[%s5825 + $0x130] sm:$0xff]
        %v7373 = vld [vmem:[%s5825 + $0x148] sm:$0xff]
        %v7374 = vld [vmem:[%s5825 + $0x150] sm:$0xff]
        %v7375 = vld [vmem:[%s5825 + $0x168] sm:$0xff]
        %v7376 = vld [vmem:[%s5825 + $0x170] sm:$0xff]
        %v7377 = vld [vmem:[%s5825 + $0x188] sm:$0xff]
        %v7378 = vld [vmem:[%s5825 + $0x190] sm:$0xff]
        %v7379 = vld [vmem:[%s5825 + $0x1a8] sm:$0xff]
        %v7380 = vld [vmem:[%s5825 + $0x1b0] sm:$0xff]
        %v7381 = vld [vmem:[%s5825 + $0x1c8] sm:$0xff]
        %v7382 = vld [vmem:[%s5825 + $0x1d0] sm:$0xff]
        %v7383 = vld [vmem:[%s5825 + $0x1e8] sm:$0xff]
        %v7384 = vld [vmem:[%s5825 + $0x1f0] sm:$0xff]
        %s7385 = scalar_lea.vmem %s11, 128
        %v7386 = vld [vmem:[%s7385] sm:$0xff]
        %v7387 = vld [vmem:[%s7385 + $0x8] sm:$0xff]
        %v7388 = vld [vmem:[%s7385 + $0x10] sm:$0xff]
        %v7389 = vld [vmem:[%s7385 + $0x18] sm:$0xff]
        %v7391 = vsel %vm531, %v7353, 0
        %v7394 = vsel %vm531, %v7354, 0
        %v7397 = vsel %vm531, %v7355, 0
        %v7400 = vsel %vm531, %v7356, 0
        %v7403 = vsel %vm531, %v7357, 0
        %v7406 = vsel %vm531, %v7358, 0
        %v7409 = vsel %vm531, %v7359, 0
        %v7412 = vsel %vm531, %v7360, 0
        %v7415 = vsel %vm531, %v7361, 0
        %v7418 = vsel %vm531, %v7362, 0
        %v7421 = vsel %vm531, %v7363, 0
        %v7424 = vsel %vm531, %v7364, 0
        %v7427 = vsel %vm531, %v7365, 0
        %v7430 = vsel %vm531, %v7366, 0
        %v7433 = vsel %vm531, %v7367, 0
        %v7436 = vsel %vm531, %v7368, 0
        %v7439 = vsel %vm531, %v7369, 0
        %v7442 = vsel %vm531, %v7370, 0
        %v7445 = vsel %vm531, %v7371, 0
        %v7448 = vsel %vm531, %v7372, 0
        %v7451 = vsel %vm531, %v7373, 0
        %v7454 = vsel %vm531, %v7374, 0
        %v7457 = vsel %vm531, %v7375, 0
        %v7460 = vsel %vm531, %v7376, 0
        %v7463 = vsel %vm531, %v7377, 0
        %v7466 = vsel %vm531, %v7378, 0
        %v7469 = vsel %vm531, %v7379, 0
        %v7472 = vsel %vm531, %v7380, 0
        %v7475 = vsel %vm531, %v7381, 0
        %v7478 = vsel %vm531, %v7382, 0
        %v7481 = vsel %vm531, %v7383, 0
        %v7484 = vsel %vm531, %v7384, 0
        %7486 = vmatprep.subr.mxu0 0.0
        %7487 = vmatpush1.msra.mxu0 %v7386
        %7488 = vmatprep.subr.mxu0 0.0
        %7489 = vmatpush1.msra.mxu0 %v7387
        %7490 = vmatprep.subr.mxu0 0.0
        %7491 = vmatpush1.msra.mxu0 %v7388
        %7492 = vmatprep.subr.mxu0 0.0
        %7493 = vmatpush1.msra.mxu0 %v7389
        %7494 = vmatprep.subr.mxu0 0.0
        %7495 = vmatpush1.msra.mxu0 0.0
        %7496 = vmatprep.subr.mxu0 0.0
        %7497 = vmatpush1.msra.mxu0 0.0
        %7498 = vmatprep.subr.mxu0 0.0
        %7499 = vmatpush1.msra.mxu0 0.0
        %7500 = vmatprep.subr.mxu0 0.0
        %7501 = vmatpush1.msra.mxu0 0.0
        %7502 = vmatprep.subr.mxu0 0.0
        %7503 = vmatpush1.msra.mxu0 0.0
        %7504 = vmatprep.subr.mxu0 0.0
        %7505 = vmatpush1.msra.mxu0 0.0
        %7506 = vmatprep.subr.mxu0 0.0
        %7507 = vmatpush1.msra.mxu0 0.0
        %7508 = vmatprep.subr.mxu0 0.0
        %7509 = vmatpush1.msra.mxu0 0.0
        %7510 = vmatprep.subr.mxu0 0.0
        %7511 = vmatpush1.msra.mxu0 0.0
        %7512 = vmatprep.subr.mxu0 0.0
        %7513 = vmatpush1.msra.mxu0 0.0
        %7514 = vmatprep.subr.mxu0 0.0
        %7515 = vmatpush1.msra.mxu0 0.0
        %7516 = vmatprep.subr.mxu0 0.0
        %7517 = vmatpush1.msra.mxu0 0.0
        %7518 = vmatprep.subr.mxu0 0.0
        %7519 = vmatpush1.msra.mxu0 0.0
        %7520 = vmatprep.subr.mxu0 0.0
        %7521 = vmatpush1.msra.mxu0 0.0
        %7522 = vmatprep.subr.mxu0 0.0
        %7523 = vmatpush1.msra.mxu0 0.0
        %7524 = vmatprep.subr.mxu0 0.0
        %7525 = vmatpush1.msra.mxu0 0.0
        %7526 = vmatprep.subr.mxu0 0.0
        %7527 = vmatpush1.msra.mxu0 0.0
        %7528 = vmatprep.subr.mxu0 0.0
        %7529 = vmatpush1.msra.mxu0 0.0
        %7530 = vmatprep.subr.mxu0 0.0
        %7531 = vmatpush1.msra.mxu0 0.0
        %7532 = vmatprep.subr.mxu0 0.0
        %7533 = vmatpush1.msra.mxu0 0.0
        %7534 = vmatprep.subr.mxu0 0.0
        %7535 = vmatpush1.msra.mxu0 0.0
        %7536 = vmatprep.subr.mxu0 0.0
        %7537 = vmatpush1.msra.mxu0 0.0
        %7538 = vmatprep.subr.mxu0 0.0
        %7539 = vmatpush1.msra.mxu0 0.0
        %7540 = vmatprep.subr.mxu0 0.0
        %7541 = vmatpush1.msra.mxu0 0.0
        %7542 = vmatprep.subr.mxu0 0.0
        %7543 = vmatpush1.msra.mxu0 0.0
        %7544 = vmatprep.subr.mxu0 0.0
        %7545 = vmatpush1.msra.mxu0 0.0
        %7546 = vmatprep.subr.mxu0 0.0
        %7547 = vmatpush1.msra.mxu0 0.0
        %7548 = vmatprep.subr.mxu0 0.0
        %7549 = vmatpush1.msra.mxu0 0.0
        %7550 = vmatprep.mubr.f32.mxu0 0.0
        %7551 = vmatmul.mubr.f32.gmra.mrb[0].mxu0 %v7391
        %v7552 = vpop.f32.mrb[0].mxu0
        %v7553 = vadd.f32 0.0, %v7552
        %v7554 = vpop.f32.mrb[0].mxu0
        %7555 = vmatprep.mubr.f32.mxu0 0.0
        %7556 = vmatmul.mubr.f32.gmra.mrb[0].mxu0 %v7394
        %v7557 = vpop.f32.mrb[0].mxu0
        %v7558 = vadd.f32 0.0, %v7557
        %v7559 = vpop.f32.mrb[0].mxu0
        %7560 = vmatprep.mubr.f32.mxu0 0.0
        %7561 = vmatmul.mubr.f32.gmra.mrb[0].mxu0 %v7397
        %v7562 = vpop.f32.mrb[0].mxu0
        %v7563 = vadd.f32 0.0, %v7562
        %v7564 = vpop.f32.mrb[0].mxu0
        %7565 = vmatprep.mubr.f32.mxu0 0.0
        %7566 = vmatmul.mubr.f32.gmra.mrb[0].mxu0 %v7400
        %v7567 = vpop.f32.mrb[0].mxu0
        %v7568 = vadd.f32 0.0, %v7567
        %v7569 = vpop.f32.mrb[0].mxu0
        %7570 = vmatprep.mubr.f32.mxu0 0.0
        %7571 = vmatmul.mubr.f32.gmra.mrb[0].mxu0 %v7403
        %v7572 = vpop.f32.mrb[0].mxu0
        %v7573 = vadd.f32 0.0, %v7572
        %v7574 = vpop.f32.mrb[0].mxu0
        %7575 = vmatprep.mubr.f32.mxu0 0.0
        %7576 = vmatmul.mubr.f32.gmra.mrb[0].mxu0 %v7406
        %v7577 = vpop.f32.mrb[0].mxu0
        %v7578 = vadd.f32 0.0, %v7577
        %v7579 = vpop.f32.mrb[0].mxu0
        %7580 = vmatprep.mubr.f32.mxu0 0.0
        %7581 = vmatmul.mubr.f32.gmra.mrb[0].mxu0 %v7409
        %v7582 = vpop.f32.mrb[0].mxu0
        %v7583 = vadd.f32 0.0, %v7582
        %v7584 = vpop.f32.mrb[0].mxu0
        %7585 = vmatprep.mubr.f32.mxu0 0.0
        %7586 = vmatmul.mubr.f32.gmra.mrb[0].mxu0 %v7412
        %v7587 = vpop.f32.mrb[0].mxu0
        %v7588 = vadd.f32 0.0, %v7587
        %v7589 = vpop.f32.mrb[0].mxu0
        %7590 = vmatprep.mubr.f32.mxu0 0.0
        %7591 = vmatmul.mubr.f32.gmra.mrb[0].mxu0 %v7415
        %v7592 = vpop.f32.mrb[0].mxu0
        %v7593 = vadd.f32 0.0, %v7592
        %v7594 = vpop.f32.mrb[0].mxu0
        %7595 = vmatprep.mubr.f32.mxu0 0.0
        %7596 = vmatmul.mubr.f32.gmra.mrb[0].mxu0 %v7418
        %v7597 = vpop.f32.mrb[0].mxu0
        %v7598 = vadd.f32 0.0, %v7597
        %v7599 = vpop.f32.mrb[0].mxu0
        %7600 = vmatprep.mubr.f32.mxu0 0.0
        %7601 = vmatmul.mubr.f32.gmra.mrb[0].mxu0 %v7421
        %v7602 = vpop.f32.mrb[0].mxu0
        %v7603 = vadd.f32 0.0, %v7602
        %v7604 = vpop.f32.mrb[0].mxu0
        %7605 = vmatprep.mubr.f32.mxu0 0.0
        %7606 = vmatmul.mubr.f32.gmra.mrb[0].mxu0 %v7424
        %v7607 = vpop.f32.mrb[0].mxu0
        %v7608 = vadd.f32 0.0, %v7607
        %v7609 = vpop.f32.mrb[0].mxu0
        %7610 = vmatprep.mubr.f32.mxu0 0.0
        %7611 = vmatmul.mubr.f32.gmra.mrb[0].mxu0 %v7427
        %v7612 = vpop.f32.mrb[0].mxu0
        %v7613 = vadd.f32 0.0, %v7612
        %v7614 = vpop.f32.mrb[0].mxu0
        %7615 = vmatprep.mubr.f32.mxu0 0.0
        %7616 = vmatmul.mubr.f32.gmra.mrb[0].mxu0 %v7430
        %v7617 = vpop.f32.mrb[0].mxu0
        %v7618 = vadd.f32 0.0, %v7617
        %v7619 = vpop.f32.mrb[0].mxu0
        %7620 = vmatprep.mubr.f32.mxu0 0.0
        %7621 = vmatmul.mubr.f32.gmra.mrb[0].mxu0 %v7433
        %v7622 = vpop.f32.mrb[0].mxu0
        %v7623 = vadd.f32 0.0, %v7622
        %v7624 = vpop.f32.mrb[0].mxu0
        %7625 = vmatprep.mubr.f32.mxu0 0.0
        %7626 = vmatmul.mubr.f32.gmra.mrb[0].mxu0 %v7436
        %v7627 = vpop.f32.mrb[0].mxu0
        %v7628 = vadd.f32 0.0, %v7627
        %v7629 = vpop.f32.mrb[0].mxu0
        %7630 = vmatprep.mubr.f32.mxu0 0.0
        %7631 = vmatmul.mubr.f32.gmra.mrb[0].mxu0 %v7439
        %v7632 = vpop.f32.mrb[0].mxu0
        %v7633 = vadd.f32 0.0, %v7632
        %v7634 = vpop.f32.mrb[0].mxu0
        %7635 = vmatprep.mubr.f32.mxu0 0.0
        %7636 = vmatmul.mubr.f32.gmra.mrb[0].mxu0 %v7442
        %v7637 = vpop.f32.mrb[0].mxu0
        %v7638 = vadd.f32 0.0, %v7637
        %v7639 = vpop.f32.mrb[0].mxu0
        %7640 = vmatprep.mubr.f32.mxu0 0.0
        %7641 = vmatmul.mubr.f32.gmra.mrb[0].mxu0 %v7445
        %v7642 = vpop.f32.mrb[0].mxu0
        %v7643 = vadd.f32 0.0, %v7642
        %v7644 = vpop.f32.mrb[0].mxu0
        %7645 = vmatprep.mubr.f32.mxu0 0.0
        %7646 = vmatmul.mubr.f32.gmra.mrb[0].mxu0 %v7448
        %v7647 = vpop.f32.mrb[0].mxu0
        %v7648 = vadd.f32 0.0, %v7647
        %v7649 = vpop.f32.mrb[0].mxu0
        %7650 = vmatprep.mubr.f32.mxu0 0.0
        %7651 = vmatmul.mubr.f32.gmra.mrb[0].mxu0 %v7451
        %v7652 = vpop.f32.mrb[0].mxu0
        %v7653 = vadd.f32 0.0, %v7652
        %v7654 = vpop.f32.mrb[0].mxu0
        %7655 = vmatprep.mubr.f32.mxu0 0.0
        %7656 = vmatmul.mubr.f32.gmra.mrb[0].mxu0 %v7454
        %v7657 = vpop.f32.mrb[0].mxu0
        %v7658 = vadd.f32 0.0, %v7657
        %v7659 = vpop.f32.mrb[0].mxu0
        %7660 = vmatprep.mubr.f32.mxu0 0.0
        %7661 = vmatmul.mubr.f32.gmra.mrb[0].mxu0 %v7457
        %v7662 = vpop.f32.mrb[0].mxu0
        %v7663 = vadd.f32 0.0, %v7662
        %v7664 = vpop.f32.mrb[0].mxu0
        %7665 = vmatprep.mubr.f32.mxu0 0.0
        %7666 = vmatmul.mubr.f32.gmra.mrb[0].mxu0 %v7460
        %v7667 = vpop.f32.mrb[0].mxu0
        %v7668 = vadd.f32 0.0, %v7667
        %v7669 = vpop.f32.mrb[0].mxu0
        %7670 = vmatprep.mubr.f32.mxu0 0.0
        %7671 = vmatmul.mubr.f32.gmra.mrb[0].mxu0 %v7463
        %v7672 = vpop.f32.mrb[0].mxu0
        %v7673 = vadd.f32 0.0, %v7672
        %v7674 = vpop.f32.mrb[0].mxu0
        %7675 = vmatprep.mubr.f32.mxu0 0.0
        %7676 = vmatmul.mubr.f32.gmra.mrb[0].mxu0 %v7466
        %v7677 = vpop.f32.mrb[0].mxu0
        %v7678 = vadd.f32 0.0, %v7677
        %v7679 = vpop.f32.mrb[0].mxu0
        %7680 = vmatprep.mubr.f32.mxu0 0.0
        %7681 = vmatmul.mubr.f32.gmra.mrb[0].mxu0 %v7469
        %v7682 = vpop.f32.mrb[0].mxu0
        %v7683 = vadd.f32 0.0, %v7682
        %v7684 = vpop.f32.mrb[0].mxu0
        %7685 = vmatprep.mubr.f32.mxu0 0.0
        %7686 = vmatmul.mubr.f32.gmra.mrb[0].mxu0 %v7472
        %v7687 = vpop.f32.mrb[0].mxu0
        %v7688 = vadd.f32 0.0, %v7687
        %v7689 = vpop.f32.mrb[0].mxu0
        %7690 = vmatprep.mubr.f32.mxu0 0.0
        %7691 = vmatmul.mubr.f32.gmra.mrb[0].mxu0 %v7475
        %v7692 = vpop.f32.mrb[0].mxu0
        %v7693 = vadd.f32 0.0, %v7692
        %v7694 = vpop.f32.mrb[0].mxu0
        %7695 = vmatprep.mubr.f32.mxu0 0.0
        %7696 = vmatmul.mubr.f32.gmra.mrb[0].mxu0 %v7478
        %v7697 = vpop.f32.mrb[0].mxu0
        %v7698 = vadd.f32 0.0, %v7697
        %v7699 = vpop.f32.mrb[0].mxu0
        %7700 = vmatprep.mubr.f32.mxu0 0.0
        %7701 = vmatmul.mubr.f32.gmra.mrb[0].mxu0 %v7481
        %v7702 = vpop.f32.mrb[0].mxu0
        %v7703 = vadd.f32 0.0, %v7702
        %v7704 = vpop.f32.mrb[0].mxu0
        %7705 = vmatprep.mubr.f32.mxu0 0.0
        %7706 = vmatmul.mubr.f32.gmra.mrb[0].mxu0 %v7484
        %v7707 = vpop.f32.mrb[0].mxu0
        %v7708 = vadd.f32 0.0, %v7707
        %v7709 = vpop.f32.mrb[0].mxu0
        %7710 = vdwg.mxu0
        %v7711 = vadd.f32 %v7321, %v7553
        %v7712 = vadd.f32 %v7322, %v7558
        %v7713 = vadd.f32 %v7323, %v7563
        %v7714 = vadd.f32 %v7324, %v7568
        %v7715 = vadd.f32 %v7325, %v7573
        %v7716 = vadd.f32 %v7326, %v7578
        %v7717 = vadd.f32 %v7327, %v7583
        %v7718 = vadd.f32 %v7328, %v7588
        %v7719 = vadd.f32 %v7329, %v7593
        %v7720 = vadd.f32 %v7330, %v7598
        %v7721 = vadd.f32 %v7331, %v7603
        %v7722 = vadd.f32 %v7332, %v7608
        %v7723 = vadd.f32 %v7333, %v7613
        %v7724 = vadd.f32 %v7334, %v7618
        %v7725 = vadd.f32 %v7335, %v7623
        %v7726 = vadd.f32 %v7336, %v7628
        %v7727 = vadd.f32 %v7337, %v7633
        %v7728 = vadd.f32 %v7338, %v7638
        %v7729 = vadd.f32 %v7339, %v7643
        %v7730 = vadd.f32 %v7340, %v7648
        %v7731 = vadd.f32 %v7341, %v7653
        %v7732 = vadd.f32 %v7342, %v7658
        %v7733 = vadd.f32 %v7343, %v7663
        %v7734 = vadd.f32 %v7344, %v7668
        %v7735 = vadd.f32 %v7345, %v7673
        %v7736 = vadd.f32 %v7346, %v7678
        %v7737 = vadd.f32 %v7347, %v7683
        %v7738 = vadd.f32 %v7348, %v7688
        %v7739 = vadd.f32 %v7349, %v7693
        %v7740 = vadd.f32 %v7350, %v7698
        %v7741 = vadd.f32 %v7351, %v7703
        %v7742 = vadd.f32 %v7352, %v7708
        %v7743 = vld [vmem:[%s5825 + $0x9] sm:$0xff]
        %v7744 = vld [vmem:[%s5825 + $0x11] sm:$0xff]
        %v7745 = vld [vmem:[%s5825 + $0x29] sm:$0xff]
        %v7746 = vld [vmem:[%s5825 + $0x31] sm:$0xff]
        %v7747 = vld [vmem:[%s5825 + $0x49] sm:$0xff]
        %v7748 = vld [vmem:[%s5825 + $0x51] sm:$0xff]
        %v7749 = vld [vmem:[%s5825 + $0x69] sm:$0xff]
        %v7750 = vld [vmem:[%s5825 + $0x71] sm:$0xff]
        %v7751 = vld [vmem:[%s5825 + $0x89] sm:$0xff]
        %v7752 = vld [vmem:[%s5825 + $0x91] sm:$0xff]
        %v7753 = vld [vmem:[%s5825 + $0xa9] sm:$0xff]
        %v7754 = vld [vmem:[%s5825 + $0xb1] sm:$0xff]
        %v7755 = vld [vmem:[%s5825 + $0xc9] sm:$0xff]
        %v7756 = vld [vmem:[%s5825 + $0xd1] sm:$0xff]
        %v7757 = vld [vmem:[%s5825 + $0xe9] sm:$0xff]
        %v7758 = vld [vmem:[%s5825 + $0xf1] sm:$0xff]
        %v7759 = vld [vmem:[%s5825 + $0x109] sm:$0xff]
        %v7760 = vld [vmem:[%s5825 + $0x111] sm:$0xff]
        %v7761 = vld [vmem:[%s5825 + $0x129] sm:$0xff]
        %v7762 = vld [vmem:[%s5825 + $0x131] sm:$0xff]
        %v7763 = vld [vmem:[%s5825 + $0x149] sm:$0xff]
        %v7764 = vld [vmem:[%s5825 + $0x151] sm:$0xff]
        %v7765 = vld [vmem:[%s5825 + $0x169] sm:$0xff]
        %v7766 = vld [vmem:[%s5825 + $0x171] sm:$0xff]
        %v7767 = vld [vmem:[%s5825 + $0x189] sm:$0xff]
        %v7768 = vld [vmem:[%s5825 + $0x191] sm:$0xff]
        %v7769 = vld [vmem:[%s5825 + $0x1a9] sm:$0xff]
        %v7770 = vld [vmem:[%s5825 + $0x1b1] sm:$0xff]
        %v7771 = vld [vmem:[%s5825 + $0x1c9] sm:$0xff]
        %v7772 = vld [vmem:[%s5825 + $0x1d1] sm:$0xff]
        %v7773 = vld [vmem:[%s5825 + $0x1e9] sm:$0xff]
        %v7774 = vld [vmem:[%s5825 + $0x1f1] sm:$0xff]
        %s7775 = scalar_lea.vmem %s11, 160
        %v7776 = vld [vmem:[%s7775] sm:$0xff]
        %v7777 = vld [vmem:[%s7775 + $0x8] sm:$0xff]
        %v7778 = vld [vmem:[%s7775 + $0x10] sm:$0xff]
        %v7779 = vld [vmem:[%s7775 + $0x18] sm:$0xff]
        %v7781 = vsel %vm531, %v7743, 0
        %v7784 = vsel %vm531, %v7744, 0
        %v7787 = vsel %vm531, %v7745, 0
        %v7790 = vsel %vm531, %v7746, 0
        %v7793 = vsel %vm531, %v7747, 0
        %v7796 = vsel %vm531, %v7748, 0
        %v7799 = vsel %vm531, %v7749, 0
        %v7802 = vsel %vm531, %v7750, 0
        %v7805 = vsel %vm531, %v7751, 0
        %v7808 = vsel %vm531, %v7752, 0
        %v7811 = vsel %vm531, %v7753, 0
        %v7814 = vsel %vm531, %v7754, 0
        %v7817 = vsel %vm531, %v7755, 0
        %v7820 = vsel %vm531, %v7756, 0
        %v7823 = vsel %vm531, %v7757, 0
        %v7826 = vsel %vm531, %v7758, 0
        %v7829 = vsel %vm531, %v7759, 0
        %v7832 = vsel %vm531, %v7760, 0
        %v7835 = vsel %vm531, %v7761, 0
        %v7838 = vsel %vm531, %v7762, 0
        %v7841 = vsel %vm531, %v7763, 0
        %v7844 = vsel %vm531, %v7764, 0
        %v7847 = vsel %vm531, %v7765, 0
        %v7850 = vsel %vm531, %v7766, 0
        %v7853 = vsel %vm531, %v7767, 0
        %v7856 = vsel %vm531, %v7768, 0
        %v7859 = vsel %vm531, %v7769, 0
        %v7862 = vsel %vm531, %v7770, 0
        %v7865 = vsel %vm531, %v7771, 0
        %v7868 = vsel %vm531, %v7772, 0
        %v7871 = vsel %vm531, %v7773, 0
        %v7874 = vsel %vm531, %v7774, 0
        %7876 = vmatprep.subr.mxu0 0.0
        %7877 = vmatpush1.msra.mxu0 %v7776
        %7878 = vmatprep.subr.mxu0 0.0
        %7879 = vmatpush1.msra.mxu0 %v7777
        %7880 = vmatprep.subr.mxu0 0.0
        %7881 = vmatpush1.msra.mxu0 %v7778
        %7882 = vmatprep.subr.mxu0 0.0
        %7883 = vmatpush1.msra.mxu0 %v7779
        %7884 = vmatprep.subr.mxu0 0.0
        %7885 = vmatpush1.msra.mxu0 0.0
        %7886 = vmatprep.subr.mxu0 0.0
        %7887 = vmatpush1.msra.mxu0 0.0
        %7888 = vmatprep.subr.mxu0 0.0
        %7889 = vmatpush1.msra.mxu0 0.0
        %7890 = vmatprep.subr.mxu0 0.0
        %7891 = vmatpush1.msra.mxu0 0.0
        %7892 = vmatprep.subr.mxu0 0.0
        %7893 = vmatpush1.msra.mxu0 0.0
        %7894 = vmatprep.subr.mxu0 0.0
        %7895 = vmatpush1.msra.mxu0 0.0
        %7896 = vmatprep.subr.mxu0 0.0
        %7897 = vmatpush1.msra.mxu0 0.0
        %7898 = vmatprep.subr.mxu0 0.0
        %7899 = vmatpush1.msra.mxu0 0.0
        %7900 = vmatprep.subr.mxu0 0.0
        %7901 = vmatpush1.msra.mxu0 0.0
        %7902 = vmatprep.subr.mxu0 0.0
        %7903 = vmatpush1.msra.mxu0 0.0
        %7904 = vmatprep.subr.mxu0 0.0
        %7905 = vmatpush1.msra.mxu0 0.0
        %7906 = vmatprep.subr.mxu0 0.0
        %7907 = vmatpush1.msra.mxu0 0.0
        %7908 = vmatprep.subr.mxu0 0.0
        %7909 = vmatpush1.msra.mxu0 0.0
        %7910 = vmatprep.subr.mxu0 0.0
        %7911 = vmatpush1.msra.mxu0 0.0
        %7912 = vmatprep.subr.mxu0 0.0
        %7913 = vmatpush1.msra.mxu0 0.0
        %7914 = vmatprep.subr.mxu0 0.0
        %7915 = vmatpush1.msra.mxu0 0.0
        %7916 = vmatprep.subr.mxu0 0.0
        %7917 = vmatpush1.msra.mxu0 0.0
        %7918 = vmatprep.subr.mxu0 0.0
        %7919 = vmatpush1.msra.mxu0 0.0
        %7920 = vmatprep.subr.mxu0 0.0
        %7921 = vmatpush1.msra.mxu0 0.0
        %7922 = vmatprep.subr.mxu0 0.0
        %7923 = vmatpush1.msra.mxu0 0.0
        %7924 = vmatprep.subr.mxu0 0.0
        %7925 = vmatpush1.msra.mxu0 0.0
        %7926 = vmatprep.subr.mxu0 0.0
        %7927 = vmatpush1.msra.mxu0 0.0
        %7928 = vmatprep.subr.mxu0 0.0
        %7929 = vmatpush1.msra.mxu0 0.0
        %7930 = vmatprep.subr.mxu0 0.0
        %7931 = vmatpush1.msra.mxu0 0.0
        %7932 = vmatprep.subr.mxu0 0.0
        %7933 = vmatpush1.msra.mxu0 0.0
        %7934 = vmatprep.subr.mxu0 0.0
        %7935 = vmatpush1.msra.mxu0 0.0
        %7936 = vmatprep.subr.mxu0 0.0
        %7937 = vmatpush1.msra.mxu0 0.0
        %7938 = vmatprep.subr.mxu0 0.0
        %7939 = vmatpush1.msra.mxu0 0.0
        %7940 = vmatprep.mubr.f32.mxu0 0.0
        %7941 = vmatmul.mubr.f32.gmra.mrb[0].mxu0 %v7781
        %v7942 = vpop.f32.mrb[0].mxu0
        %v7943 = vadd.f32 0.0, %v7942
        %v7944 = vpop.f32.mrb[0].mxu0
        %7945 = vmatprep.mubr.f32.mxu0 0.0
        %7946 = vmatmul.mubr.f32.gmra.mrb[0].mxu0 %v7784
        %v7947 = vpop.f32.mrb[0].mxu0
        %v7948 = vadd.f32 0.0, %v7947
        %v7949 = vpop.f32.mrb[0].mxu0
        %7950 = vmatprep.mubr.f32.mxu0 0.0
        %7951 = vmatmul.mubr.f32.gmra.mrb[0].mxu0 %v7787
        %v7952 = vpop.f32.mrb[0].mxu0
        %v7953 = vadd.f32 0.0, %v7952
        %v7954 = vpop.f32.mrb[0].mxu0
        %7955 = vmatprep.mubr.f32.mxu0 0.0
        %7956 = vmatmul.mubr.f32.gmra.mrb[0].mxu0 %v7790
        %v7957 = vpop.f32.mrb[0].mxu0
        %v7958 = vadd.f32 0.0, %v7957
        %v7959 = vpop.f32.mrb[0].mxu0
        %7960 = vmatprep.mubr.f32.mxu0 0.0
        %7961 = vmatmul.mubr.f32.gmra.mrb[0].mxu0 %v7793
        %v7962 = vpop.f32.mrb[0].mxu0
        %v7963 = vadd.f32 0.0, %v7962
        %v7964 = vpop.f32.mrb[0].mxu0
        %7965 = vmatprep.mubr.f32.mxu0 0.0
        %7966 = vmatmul.mubr.f32.gmra.mrb[0].mxu0 %v7796
        %v7967 = vpop.f32.mrb[0].mxu0
        %v7968 = vadd.f32 0.0, %v7967
        %v7969 = vpop.f32.mrb[0].mxu0
        %7970 = vmatprep.mubr.f32.mxu0 0.0
        %7971 = vmatmul.mubr.f32.gmra.mrb[0].mxu0 %v7799
        %v7972 = vpop.f32.mrb[0].mxu0
        %v7973 = vadd.f32 0.0, %v7972
        %v7974 = vpop.f32.mrb[0].mxu0
        %7975 = vmatprep.mubr.f32.mxu0 0.0
        %7976 = vmatmul.mubr.f32.gmra.mrb[0].mxu0 %v7802
        %v7977 = vpop.f32.mrb[0].mxu0
        %v7978 = vadd.f32 0.0, %v7977
        %v7979 = vpop.f32.mrb[0].mxu0
        %7980 = vmatprep.mubr.f32.mxu0 0.0
        %7981 = vmatmul.mubr.f32.gmra.mrb[0].mxu0 %v7805
        %v7982 = vpop.f32.mrb[0].mxu0
        %v7983 = vadd.f32 0.0, %v7982
        %v7984 = vpop.f32.mrb[0].mxu0
        %7985 = vmatprep.mubr.f32.mxu0 0.0
        %7986 = vmatmul.mubr.f32.gmra.mrb[0].mxu0 %v7808
        %v7987 = vpop.f32.mrb[0].mxu0
        %v7988 = vadd.f32 0.0, %v7987
        %v7989 = vpop.f32.mrb[0].mxu0
        %7990 = vmatprep.mubr.f32.mxu0 0.0
        %7991 = vmatmul.mubr.f32.gmra.mrb[0].mxu0 %v7811
        %v7992 = vpop.f32.mrb[0].mxu0
        %v7993 = vadd.f32 0.0, %v7992
        %v7994 = vpop.f32.mrb[0].mxu0
        %7995 = vmatprep.mubr.f32.mxu0 0.0
        %7996 = vmatmul.mubr.f32.gmra.mrb[0].mxu0 %v7814
        %v7997 = vpop.f32.mrb[0].mxu0
        %v7998 = vadd.f32 0.0, %v7997
        %v7999 = vpop.f32.mrb[0].mxu0
        %8000 = vmatprep.mubr.f32.mxu0 0.0
        %8001 = vmatmul.mubr.f32.gmra.mrb[0].mxu0 %v7817
        %v8002 = vpop.f32.mrb[0].mxu0
        %v8003 = vadd.f32 0.0, %v8002
        %v8004 = vpop.f32.mrb[0].mxu0
        %8005 = vmatprep.mubr.f32.mxu0 0.0
        %8006 = vmatmul.mubr.f32.gmra.mrb[0].mxu0 %v7820
        %v8007 = vpop.f32.mrb[0].mxu0
        %v8008 = vadd.f32 0.0, %v8007
        %v8009 = vpop.f32.mrb[0].mxu0
        %8010 = vmatprep.mubr.f32.mxu0 0.0
        %8011 = vmatmul.mubr.f32.gmra.mrb[0].mxu0 %v7823
        %v8012 = vpop.f32.mrb[0].mxu0
        %v8013 = vadd.f32 0.0, %v8012
        %v8014 = vpop.f32.mrb[0].mxu0
        %8015 = vmatprep.mubr.f32.mxu0 0.0
        %8016 = vmatmul.mubr.f32.gmra.mrb[0].mxu0 %v7826
        %v8017 = vpop.f32.mrb[0].mxu0
        %v8018 = vadd.f32 0.0, %v8017
        %v8019 = vpop.f32.mrb[0].mxu0
        %8020 = vmatprep.mubr.f32.mxu0 0.0
        %8021 = vmatmul.mubr.f32.gmra.mrb[0].mxu0 %v7829
        %v8022 = vpop.f32.mrb[0].mxu0
        %v8023 = vadd.f32 0.0, %v8022
        %v8024 = vpop.f32.mrb[0].mxu0
        %8025 = vmatprep.mubr.f32.mxu0 0.0
        %8026 = vmatmul.mubr.f32.gmra.mrb[0].mxu0 %v7832
        %v8027 = vpop.f32.mrb[0].mxu0
        %v8028 = vadd.f32 0.0, %v8027
        %v8029 = vpop.f32.mrb[0].mxu0
        %8030 = vmatprep.mubr.f32.mxu0 0.0
        %8031 = vmatmul.mubr.f32.gmra.mrb[0].mxu0 %v7835
        %v8032 = vpop.f32.mrb[0].mxu0
        %v8033 = vadd.f32 0.0, %v8032
        %v8034 = vpop.f32.mrb[0].mxu0
        %8035 = vmatprep.mubr.f32.mxu0 0.0
        %8036 = vmatmul.mubr.f32.gmra.mrb[0].mxu0 %v7838
        %v8037 = vpop.f32.mrb[0].mxu0
        %v8038 = vadd.f32 0.0, %v8037
        %v8039 = vpop.f32.mrb[0].mxu0
        %8040 = vmatprep.mubr.f32.mxu0 0.0
        %8041 = vmatmul.mubr.f32.gmra.mrb[0].mxu0 %v7841
        %v8042 = vpop.f32.mrb[0].mxu0
        %v8043 = vadd.f32 0.0, %v8042
        %v8044 = vpop.f32.mrb[0].mxu0
        %8045 = vmatprep.mubr.f32.mxu0 0.0
        %8046 = vmatmul.mubr.f32.gmra.mrb[0].mxu0 %v7844
        %v8047 = vpop.f32.mrb[0].mxu0
        %v8048 = vadd.f32 0.0, %v8047
        %v8049 = vpop.f32.mrb[0].mxu0
        %8050 = vmatprep.mubr.f32.mxu0 0.0
        %8051 = vmatmul.mubr.f32.gmra.mrb[0].mxu0 %v7847
        %v8052 = vpop.f32.mrb[0].mxu0
        %v8053 = vadd.f32 0.0, %v8052
        %v8054 = vpop.f32.mrb[0].mxu0
        %8055 = vmatprep.mubr.f32.mxu0 0.0
        %8056 = vmatmul.mubr.f32.gmra.mrb[0].mxu0 %v7850
        %v8057 = vpop.f32.mrb[0].mxu0
        %v8058 = vadd.f32 0.0, %v8057
        %v8059 = vpop.f32.mrb[0].mxu0
        %8060 = vmatprep.mubr.f32.mxu0 0.0
        %8061 = vmatmul.mubr.f32.gmra.mrb[0].mxu0 %v7853
        %v8062 = vpop.f32.mrb[0].mxu0
        %v8063 = vadd.f32 0.0, %v8062
        %v8064 = vpop.f32.mrb[0].mxu0
        %8065 = vmatprep.mubr.f32.mxu0 0.0
        %8066 = vmatmul.mubr.f32.gmra.mrb[0].mxu0 %v7856
        %v8067 = vpop.f32.mrb[0].mxu0
        %v8068 = vadd.f32 0.0, %v8067
        %v8069 = vpop.f32.mrb[0].mxu0
        %8070 = vmatprep.mubr.f32.mxu0 0.0
        %8071 = vmatmul.mubr.f32.gmra.mrb[0].mxu0 %v7859
        %v8072 = vpop.f32.mrb[0].mxu0
        %v8073 = vadd.f32 0.0, %v8072
        %v8074 = vpop.f32.mrb[0].mxu0
        %8075 = vmatprep.mubr.f32.mxu0 0.0
        %8076 = vmatmul.mubr.f32.gmra.mrb[0].mxu0 %v7862
        %v8077 = vpop.f32.mrb[0].mxu0
        %v8078 = vadd.f32 0.0, %v8077
        %v8079 = vpop.f32.mrb[0].mxu0
        %8080 = vmatprep.mubr.f32.mxu0 0.0
        %8081 = vmatmul.mubr.f32.gmra.mrb[0].mxu0 %v7865
        %v8082 = vpop.f32.mrb[0].mxu0
        %v8083 = vadd.f32 0.0, %v8082
        %v8084 = vpop.f32.mrb[0].mxu0
        %8085 = vmatprep.mubr.f32.mxu0 0.0
        %8086 = vmatmul.mubr.f32.gmra.mrb[0].mxu0 %v7868
        %v8087 = vpop.f32.mrb[0].mxu0
        %v8088 = vadd.f32 0.0, %v8087
        %v8089 = vpop.f32.mrb[0].mxu0
        %8090 = vmatprep.mubr.f32.mxu0 0.0
        %8091 = vmatmul.mubr.f32.gmra.mrb[0].mxu0 %v7871
        %v8092 = vpop.f32.mrb[0].mxu0
        %v8093 = vadd.f32 0.0, %v8092
        %v8094 = vpop.f32.mrb[0].mxu0
        %8095 = vmatprep.mubr.f32.mxu0 0.0
        %8096 = vmatmul.mubr.f32.gmra.mrb[0].mxu0 %v7874
        %v8097 = vpop.f32.mrb[0].mxu0
        %v8098 = vadd.f32 0.0, %v8097
        %v8099 = vpop.f32.mrb[0].mxu0
        %8100 = vdwg.mxu0
        %v8101 = vadd.f32 %v7711, %v7943
        %v8102 = vadd.f32 %v7712, %v7948
        %v8103 = vadd.f32 %v7713, %v7953
        %v8104 = vadd.f32 %v7714, %v7958
        %v8105 = vadd.f32 %v7715, %v7963
        %v8106 = vadd.f32 %v7716, %v7968
        %v8107 = vadd.f32 %v7717, %v7973
        %v8108 = vadd.f32 %v7718, %v7978
        %v8109 = vadd.f32 %v7719, %v7983
        %v8110 = vadd.f32 %v7720, %v7988
        %v8111 = vadd.f32 %v7721, %v7993
        %v8112 = vadd.f32 %v7722, %v7998
        %v8113 = vadd.f32 %v7723, %v8003
        %v8114 = vadd.f32 %v7724, %v8008
        %v8115 = vadd.f32 %v7725, %v8013
        %v8116 = vadd.f32 %v7726, %v8018
        %v8117 = vadd.f32 %v7727, %v8023
        %v8118 = vadd.f32 %v7728, %v8028
        %v8119 = vadd.f32 %v7729, %v8033
        %v8120 = vadd.f32 %v7730, %v8038
        %v8121 = vadd.f32 %v7731, %v8043
        %v8122 = vadd.f32 %v7732, %v8048
        %v8123 = vadd.f32 %v7733, %v8053
        %v8124 = vadd.f32 %v7734, %v8058
        %v8125 = vadd.f32 %v7735, %v8063
        %v8126 = vadd.f32 %v7736, %v8068
        %v8127 = vadd.f32 %v7737, %v8073
        %v8128 = vadd.f32 %v7738, %v8078
        %v8129 = vadd.f32 %v7739, %v8083
        %v8130 = vadd.f32 %v7740, %v8088
        %v8131 = vadd.f32 %v7741, %v8093
        %v8132 = vadd.f32 %v7742, %v8098
        %s8133 = scalar_lea.vmem [#allocation3], 64
        %v8134 = vld [vmem:[%s8133 + $0x7] sm:$0xff]
        %v8135 = vld [vmem:[%s8133 + $0xf] sm:$0xff]
        %v8136 = vld [vmem:[%s8133 + $0x27] sm:$0xff]
        %v8137 = vld [vmem:[%s8133 + $0x2f] sm:$0xff]
        %v8138 = vld [vmem:[%s8133 + $0x47] sm:$0xff]
        %v8139 = vld [vmem:[%s8133 + $0x4f] sm:$0xff]
        %v8140 = vld [vmem:[%s8133 + $0x67] sm:$0xff]
        %v8141 = vld [vmem:[%s8133 + $0x6f] sm:$0xff]
        %v8142 = vld [vmem:[%s8133 + $0x87] sm:$0xff]
        %v8143 = vld [vmem:[%s8133 + $0x8f] sm:$0xff]
        %v8144 = vld [vmem:[%s8133 + $0xa7] sm:$0xff]
        %v8145 = vld [vmem:[%s8133 + $0xaf] sm:$0xff]
        %v8146 = vld [vmem:[%s8133 + $0xc7] sm:$0xff]
        %v8147 = vld [vmem:[%s8133 + $0xcf] sm:$0xff]
        %v8148 = vld [vmem:[%s8133 + $0xe7] sm:$0xff]
        %v8149 = vld [vmem:[%s8133 + $0xef] sm:$0xff]
        %v8150 = vld [vmem:[%s8133 + $0x107] sm:$0xff]
        %v8151 = vld [vmem:[%s8133 + $0x10f] sm:$0xff]
        %v8152 = vld [vmem:[%s8133 + $0x127] sm:$0xff]
        %v8153 = vld [vmem:[%s8133 + $0x12f] sm:$0xff]
        %v8154 = vld [vmem:[%s8133 + $0x147] sm:$0xff]
        %v8155 = vld [vmem:[%s8133 + $0x14f] sm:$0xff]
        %v8156 = vld [vmem:[%s8133 + $0x167] sm:$0xff]
        %v8157 = vld [vmem:[%s8133 + $0x16f] sm:$0xff]
        %v8158 = vld [vmem:[%s8133 + $0x187] sm:$0xff]
        %v8159 = vld [vmem:[%s8133 + $0x18f] sm:$0xff]
        %v8160 = vld [vmem:[%s8133 + $0x1a7] sm:$0xff]
        %v8161 = vld [vmem:[%s8133 + $0x1af] sm:$0xff]
        %v8162 = vld [vmem:[%s8133 + $0x1c7] sm:$0xff]
        %v8163 = vld [vmem:[%s8133 + $0x1cf] sm:$0xff]
        %v8164 = vld [vmem:[%s8133 + $0x1e7] sm:$0xff]
        %v8165 = vld [vmem:[%s8133 + $0x1ef] sm:$0xff]
        %s8166 = scalar_lea.vmem %s11, 192
        %v8167 = vld [vmem:[%s8166] sm:$0xff]
        %v8168 = vld [vmem:[%s8166 + $0x8] sm:$0xff]
        %v8169 = vld [vmem:[%s8166 + $0x10] sm:$0xff]
        %v8170 = vld [vmem:[%s8166 + $0x18] sm:$0xff]
        %v8172 = vsel %vm531, %v8134, 0
        %v8175 = vsel %vm531, %v8135, 0
        %v8178 = vsel %vm531, %v8136, 0
        %v8181 = vsel %vm531, %v8137, 0
        %v8184 = vsel %vm531, %v8138, 0
        %v8187 = vsel %vm531, %v8139, 0
        %v8190 = vsel %vm531, %v8140, 0
        %v8193 = vsel %vm531, %v8141, 0
        %v8196 = vsel %vm531, %v8142, 0
        %v8199 = vsel %vm531, %v8143, 0
        %v8202 = vsel %vm531, %v8144, 0
        %v8205 = vsel %vm531, %v8145, 0
        %v8208 = vsel %vm531, %v8146, 0
        %v8211 = vsel %vm531, %v8147, 0
        %v8214 = vsel %vm531, %v8148, 0
        %v8217 = vsel %vm531, %v8149, 0
        %v8220 = vsel %vm531, %v8150, 0
        %v8223 = vsel %vm531, %v8151, 0
        %v8226 = vsel %vm531, %v8152, 0
        %v8229 = vsel %vm531, %v8153, 0
        %v8232 = vsel %vm531, %v8154, 0
        %v8235 = vsel %vm531, %v8155, 0
        %v8238 = vsel %vm531, %v8156, 0
        %v8241 = vsel %vm531, %v8157, 0
        %v8244 = vsel %vm531, %v8158, 0
        %v8247 = vsel %vm531, %v8159, 0
        %v8250 = vsel %vm531, %v8160, 0
        %v8253 = vsel %vm531, %v8161, 0
        %v8256 = vsel %vm531, %v8162, 0
        %v8259 = vsel %vm531, %v8163, 0
        %v8262 = vsel %vm531, %v8164, 0
        %v8265 = vsel %vm531, %v8165, 0
        %8267 = vmatprep.subr.mxu0 0.0
        %8268 = vmatpush1.msra.mxu0 %v8167
        %8269 = vmatprep.subr.mxu0 0.0
        %8270 = vmatpush1.msra.mxu0 %v8168
        %8271 = vmatprep.subr.mxu0 0.0
        %8272 = vmatpush1.msra.mxu0 %v8169
        %8273 = vmatprep.subr.mxu0 0.0
        %8274 = vmatpush1.msra.mxu0 %v8170
        %8275 = vmatprep.subr.mxu0 0.0
        %8276 = vmatpush1.msra.mxu0 0.0
        %8277 = vmatprep.subr.mxu0 0.0
        %8278 = vmatpush1.msra.mxu0 0.0
        %8279 = vmatprep.subr.mxu0 0.0
        %8280 = vmatpush1.msra.mxu0 0.0
        %8281 = vmatprep.subr.mxu0 0.0
        %8282 = vmatpush1.msra.mxu0 0.0
        %8283 = vmatprep.subr.mxu0 0.0
        %8284 = vmatpush1.msra.mxu0 0.0
        %8285 = vmatprep.subr.mxu0 0.0
        %8286 = vmatpush1.msra.mxu0 0.0
        %8287 = vmatprep.subr.mxu0 0.0
        %8288 = vmatpush1.msra.mxu0 0.0
        %8289 = vmatprep.subr.mxu0 0.0
        %8290 = vmatpush1.msra.mxu0 0.0
        %8291 = vmatprep.subr.mxu0 0.0
        %8292 = vmatpush1.msra.mxu0 0.0
        %8293 = vmatprep.subr.mxu0 0.0
        %8294 = vmatpush1.msra.mxu0 0.0
        %8295 = vmatprep.subr.mxu0 0.0
        %8296 = vmatpush1.msra.mxu0 0.0
        %8297 = vmatprep.subr.mxu0 0.0
        %8298 = vmatpush1.msra.mxu0 0.0
        %8299 = vmatprep.subr.mxu0 0.0
        %8300 = vmatpush1.msra.mxu0 0.0
        %8301 = vmatprep.subr.mxu0 0.0
        %8302 = vmatpush1.msra.mxu0 0.0
        %8303 = vmatprep.subr.mxu0 0.0
        %8304 = vmatpush1.msra.mxu0 0.0
        %8305 = vmatprep.subr.mxu0 0.0
        %8306 = vmatpush1.msra.mxu0 0.0
        %8307 = vmatprep.subr.mxu0 0.0
        %8308 = vmatpush1.msra.mxu0 0.0
        %8309 = vmatprep.subr.mxu0 0.0
        %8310 = vmatpush1.msra.mxu0 0.0
        %8311 = vmatprep.subr.mxu0 0.0
        %8312 = vmatpush1.msra.mxu0 0.0
        %8313 = vmatprep.subr.mxu0 0.0
        %8314 = vmatpush1.msra.mxu0 0.0
        %8315 = vmatprep.subr.mxu0 0.0
        %8316 = vmatpush1.msra.mxu0 0.0
        %8317 = vmatprep.subr.mxu0 0.0
        %8318 = vmatpush1.msra.mxu0 0.0
        %8319 = vmatprep.subr.mxu0 0.0
        %8320 = vmatpush1.msra.mxu0 0.0
        %8321 = vmatprep.subr.mxu0 0.0
        %8322 = vmatpush1.msra.mxu0 0.0
        %8323 = vmatprep.subr.mxu0 0.0
        %8324 = vmatpush1.msra.mxu0 0.0
        %8325 = vmatprep.subr.mxu0 0.0
        %8326 = vmatpush1.msra.mxu0 0.0
        %8327 = vmatprep.subr.mxu0 0.0
        %8328 = vmatpush1.msra.mxu0 0.0
        %8329 = vmatprep.subr.mxu0 0.0
        %8330 = vmatpush1.msra.mxu0 0.0
        %8331 = vmatprep.mubr.f32.mxu0 0.0
        %8332 = vmatmul.mubr.f32.gmra.mrb[0].mxu0 %v8172
        %v8333 = vpop.f32.mrb[0].mxu0
        %v8334 = vadd.f32 0.0, %v8333
        %v8335 = vpop.f32.mrb[0].mxu0
        %8336 = vmatprep.mubr.f32.mxu0 0.0
        %8337 = vmatmul.mubr.f32.gmra.mrb[0].mxu0 %v8175
        %v8338 = vpop.f32.mrb[0].mxu0
        %v8339 = vadd.f32 0.0, %v8338
        %v8340 = vpop.f32.mrb[0].mxu0
        %8341 = vmatprep.mubr.f32.mxu0 0.0
        %8342 = vmatmul.mubr.f32.gmra.mrb[0].mxu0 %v8178
        %v8343 = vpop.f32.mrb[0].mxu0
        %v8344 = vadd.f32 0.0, %v8343
        %v8345 = vpop.f32.mrb[0].mxu0
        %8346 = vmatprep.mubr.f32.mxu0 0.0
        %8347 = vmatmul.mubr.f32.gmra.mrb[0].mxu0 %v8181
        %v8348 = vpop.f32.mrb[0].mxu0
        %v8349 = vadd.f32 0.0, %v8348
        %v8350 = vpop.f32.mrb[0].mxu0
        %8351 = vmatprep.mubr.f32.mxu0 0.0
        %8352 = vmatmul.mubr.f32.gmra.mrb[0].mxu0 %v8184
        %v8353 = vpop.f32.mrb[0].mxu0
        %v8354 = vadd.f32 0.0, %v8353
        %v8355 = vpop.f32.mrb[0].mxu0
        %8356 = vmatprep.mubr.f32.mxu0 0.0
        %8357 = vmatmul.mubr.f32.gmra.mrb[0].mxu0 %v8187
        %v8358 = vpop.f32.mrb[0].mxu0
        %v8359 = vadd.f32 0.0, %v8358
        %v8360 = vpop.f32.mrb[0].mxu0
        %8361 = vmatprep.mubr.f32.mxu0 0.0
        %8362 = vmatmul.mubr.f32.gmra.mrb[0].mxu0 %v8190
        %v8363 = vpop.f32.mrb[0].mxu0
        %v8364 = vadd.f32 0.0, %v8363
        %v8365 = vpop.f32.mrb[0].mxu0
        %8366 = vmatprep.mubr.f32.mxu0 0.0
        %8367 = vmatmul.mubr.f32.gmra.mrb[0].mxu0 %v8193
        %v8368 = vpop.f32.mrb[0].mxu0
        %v8369 = vadd.f32 0.0, %v8368
        %v8370 = vpop.f32.mrb[0].mxu0
        %8371 = vmatprep.mubr.f32.mxu0 0.0
        %8372 = vmatmul.mubr.f32.gmra.mrb[0].mxu0 %v8196
        %v8373 = vpop.f32.mrb[0].mxu0
        %v8374 = vadd.f32 0.0, %v8373
        %v8375 = vpop.f32.mrb[0].mxu0
        %8376 = vmatprep.mubr.f32.mxu0 0.0
        %8377 = vmatmul.mubr.f32.gmra.mrb[0].mxu0 %v8199
        %v8378 = vpop.f32.mrb[0].mxu0
        %v8379 = vadd.f32 0.0, %v8378
        %v8380 = vpop.f32.mrb[0].mxu0
        %8381 = vmatprep.mubr.f32.mxu0 0.0
        %8382 = vmatmul.mubr.f32.gmra.mrb[0].mxu0 %v8202
        %v8383 = vpop.f32.mrb[0].mxu0
        %v8384 = vadd.f32 0.0, %v8383
        %v8385 = vpop.f32.mrb[0].mxu0
        %8386 = vmatprep.mubr.f32.mxu0 0.0
        %8387 = vmatmul.mubr.f32.gmra.mrb[0].mxu0 %v8205
        %v8388 = vpop.f32.mrb[0].mxu0
        %v8389 = vadd.f32 0.0, %v8388
        %v8390 = vpop.f32.mrb[0].mxu0
        %8391 = vmatprep.mubr.f32.mxu0 0.0
        %8392 = vmatmul.mubr.f32.gmra.mrb[0].mxu0 %v8208
        %v8393 = vpop.f32.mrb[0].mxu0
        %v8394 = vadd.f32 0.0, %v8393
        %v8395 = vpop.f32.mrb[0].mxu0
        %8396 = vmatprep.mubr.f32.mxu0 0.0
        %8397 = vmatmul.mubr.f32.gmra.mrb[0].mxu0 %v8211
        %v8398 = vpop.f32.mrb[0].mxu0
        %v8399 = vadd.f32 0.0, %v8398
        %v8400 = vpop.f32.mrb[0].mxu0
        %8401 = vmatprep.mubr.f32.mxu0 0.0
        %8402 = vmatmul.mubr.f32.gmra.mrb[0].mxu0 %v8214
        %v8403 = vpop.f32.mrb[0].mxu0
        %v8404 = vadd.f32 0.0, %v8403
        %v8405 = vpop.f32.mrb[0].mxu0
        %8406 = vmatprep.mubr.f32.mxu0 0.0
        %8407 = vmatmul.mubr.f32.gmra.mrb[0].mxu0 %v8217
        %v8408 = vpop.f32.mrb[0].mxu0
        %v8409 = vadd.f32 0.0, %v8408
        %v8410 = vpop.f32.mrb[0].mxu0
        %8411 = vmatprep.mubr.f32.mxu0 0.0
        %8412 = vmatmul.mubr.f32.gmra.mrb[0].mxu0 %v8220
        %v8413 = vpop.f32.mrb[0].mxu0
        %v8414 = vadd.f32 0.0, %v8413
        %v8415 = vpop.f32.mrb[0].mxu0
        %8416 = vmatprep.mubr.f32.mxu0 0.0
        %8417 = vmatmul.mubr.f32.gmra.mrb[0].mxu0 %v8223
        %v8418 = vpop.f32.mrb[0].mxu0
        %v8419 = vadd.f32 0.0, %v8418
        %v8420 = vpop.f32.mrb[0].mxu0
        %8421 = vmatprep.mubr.f32.mxu0 0.0
        %8422 = vmatmul.mubr.f32.gmra.mrb[0].mxu0 %v8226
        %v8423 = vpop.f32.mrb[0].mxu0
        %v8424 = vadd.f32 0.0, %v8423
        %v8425 = vpop.f32.mrb[0].mxu0
        %8426 = vmatprep.mubr.f32.mxu0 0.0
        %8427 = vmatmul.mubr.f32.gmra.mrb[0].mxu0 %v8229
        %v8428 = vpop.f32.mrb[0].mxu0
        %v8429 = vadd.f32 0.0, %v8428
        %v8430 = vpop.f32.mrb[0].mxu0
        %8431 = vmatprep.mubr.f32.mxu0 0.0
        %8432 = vmatmul.mubr.f32.gmra.mrb[0].mxu0 %v8232
        %v8433 = vpop.f32.mrb[0].mxu0
        %v8434 = vadd.f32 0.0, %v8433
        %v8435 = vpop.f32.mrb[0].mxu0
        %8436 = vmatprep.mubr.f32.mxu0 0.0
        %8437 = vmatmul.mubr.f32.gmra.mrb[0].mxu0 %v8235
        %v8438 = vpop.f32.mrb[0].mxu0
        %v8439 = vadd.f32 0.0, %v8438
        %v8440 = vpop.f32.mrb[0].mxu0
        %8441 = vmatprep.mubr.f32.mxu0 0.0
        %8442 = vmatmul.mubr.f32.gmra.mrb[0].mxu0 %v8238
        %v8443 = vpop.f32.mrb[0].mxu0
        %v8444 = vadd.f32 0.0, %v8443
        %v8445 = vpop.f32.mrb[0].mxu0
        %8446 = vmatprep.mubr.f32.mxu0 0.0
        %8447 = vmatmul.mubr.f32.gmra.mrb[0].mxu0 %v8241
        %v8448 = vpop.f32.mrb[0].mxu0
        %v8449 = vadd.f32 0.0, %v8448
        %v8450 = vpop.f32.mrb[0].mxu0
        %8451 = vmatprep.mubr.f32.mxu0 0.0
        %8452 = vmatmul.mubr.f32.gmra.mrb[0].mxu0 %v8244
        %v8453 = vpop.f32.mrb[0].mxu0
        %v8454 = vadd.f32 0.0, %v8453
        %v8455 = vpop.f32.mrb[0].mxu0
        %8456 = vmatprep.mubr.f32.mxu0 0.0
        %8457 = vmatmul.mubr.f32.gmra.mrb[0].mxu0 %v8247
        %v8458 = vpop.f32.mrb[0].mxu0
        %v8459 = vadd.f32 0.0, %v8458
        %v8460 = vpop.f32.mrb[0].mxu0
        %8461 = vmatprep.mubr.f32.mxu0 0.0
        %8462 = vmatmul.mubr.f32.gmra.mrb[0].mxu0 %v8250
        %v8463 = vpop.f32.mrb[0].mxu0
        %v8464 = vadd.f32 0.0, %v8463
        %v8465 = vpop.f32.mrb[0].mxu0
        %8466 = vmatprep.mubr.f32.mxu0 0.0
        %8467 = vmatmul.mubr.f32.gmra.mrb[0].mxu0 %v8253
        %v8468 = vpop.f32.mrb[0].mxu0
        %v8469 = vadd.f32 0.0, %v8468
        %v8470 = vpop.f32.mrb[0].mxu0
        %8471 = vmatprep.mubr.f32.mxu0 0.0
        %8472 = vmatmul.mubr.f32.gmra.mrb[0].mxu0 %v8256
        %v8473 = vpop.f32.mrb[0].mxu0
        %v8474 = vadd.f32 0.0, %v8473
        %v8475 = vpop.f32.mrb[0].mxu0
        %8476 = vmatprep.mubr.f32.mxu0 0.0
        %8477 = vmatmul.mubr.f32.gmra.mrb[0].mxu0 %v8259
        %v8478 = vpop.f32.mrb[0].mxu0
        %v8479 = vadd.f32 0.0, %v8478
        %v8480 = vpop.f32.mrb[0].mxu0
        %8481 = vmatprep.mubr.f32.mxu0 0.0
        %8482 = vmatmul.mubr.f32.gmra.mrb[0].mxu0 %v8262
        %v8483 = vpop.f32.mrb[0].mxu0
        %v8484 = vadd.f32 0.0, %v8483
        %v8485 = vpop.f32.mrb[0].mxu0
        %8486 = vmatprep.mubr.f32.mxu0 0.0
        %8487 = vmatmul.mubr.f32.gmra.mrb[0].mxu0 %v8265
        %v8488 = vpop.f32.mrb[0].mxu0
        %v8489 = vadd.f32 0.0, %v8488
        %v8490 = vpop.f32.mrb[0].mxu0
        %8491 = vdwg.mxu0
        %v8492 = vadd.f32 %v8101, %v8334
        %v8493 = vadd.f32 %v8102, %v8339
        %v8494 = vadd.f32 %v8103, %v8344
        %v8495 = vadd.f32 %v8104, %v8349
        %v8496 = vadd.f32 %v8105, %v8354
        %v8497 = vadd.f32 %v8106, %v8359
        %v8498 = vadd.f32 %v8107, %v8364
        %v8499 = vadd.f32 %v8108, %v8369
        %v8500 = vadd.f32 %v8109, %v8374
        %v8501 = vadd.f32 %v8110, %v8379
        %v8502 = vadd.f32 %v8111, %v8384
        %v8503 = vadd.f32 %v8112, %v8389
        %v8504 = vadd.f32 %v8113, %v8394
        %v8505 = vadd.f32 %v8114, %v8399
        %v8506 = vadd.f32 %v8115, %v8404
        %v8507 = vadd.f32 %v8116, %v8409
        %v8508 = vadd.f32 %v8117, %v8414
        %v8509 = vadd.f32 %v8118, %v8419
        %v8510 = vadd.f32 %v8119, %v8424
        %v8511 = vadd.f32 %v8120, %v8429
        %v8512 = vadd.f32 %v8121, %v8434
        %v8513 = vadd.f32 %v8122, %v8439
        %v8514 = vadd.f32 %v8123, %v8444
        %v8515 = vadd.f32 %v8124, %v8449
        %v8516 = vadd.f32 %v8125, %v8454
        %v8517 = vadd.f32 %v8126, %v8459
        %v8518 = vadd.f32 %v8127, %v8464
        %v8519 = vadd.f32 %v8128, %v8469
        %v8520 = vadd.f32 %v8129, %v8474
        %v8521 = vadd.f32 %v8130, %v8479
        %v8522 = vadd.f32 %v8131, %v8484
        %v8523 = vadd.f32 %v8132, %v8489
        %v8524 = vld [vmem:[%s8133 + $0x8] sm:$0xff]
        %v8525 = vld [vmem:[%s8133 + $0x10] sm:$0xff]
        %v8526 = vld [vmem:[%s8133 + $0x28] sm:$0xff]
        %v8527 = vld [vmem:[%s8133 + $0x30] sm:$0xff]
        %v8528 = vld [vmem:[%s8133 + $0x48] sm:$0xff]
        %v8529 = vld [vmem:[%s8133 + $0x50] sm:$0xff]
        %v8530 = vld [vmem:[%s8133 + $0x68] sm:$0xff]
        %v8531 = vld [vmem:[%s8133 + $0x70] sm:$0xff]
        %v8532 = vld [vmem:[%s8133 + $0x88] sm:$0xff]
        %v8533 = vld [vmem:[%s8133 + $0x90] sm:$0xff]
        %v8534 = vld [vmem:[%s8133 + $0xa8] sm:$0xff]
        %v8535 = vld [vmem:[%s8133 + $0xb0] sm:$0xff]
        %v8536 = vld [vmem:[%s8133 + $0xc8] sm:$0xff]
        %v8537 = vld [vmem:[%s8133 + $0xd0] sm:$0xff]
        %v8538 = vld [vmem:[%s8133 + $0xe8] sm:$0xff]
        %v8539 = vld [vmem:[%s8133 + $0xf0] sm:$0xff]
        %v8540 = vld [vmem:[%s8133 + $0x108] sm:$0xff]
        %v8541 = vld [vmem:[%s8133 + $0x110] sm:$0xff]
        %v8542 = vld [vmem:[%s8133 + $0x128] sm:$0xff]
        %v8543 = vld [vmem:[%s8133 + $0x130] sm:$0xff]
        %v8544 = vld [vmem:[%s8133 + $0x148] sm:$0xff]
        %v8545 = vld [vmem:[%s8133 + $0x150] sm:$0xff]
        %v8546 = vld [vmem:[%s8133 + $0x168] sm:$0xff]
        %v8547 = vld [vmem:[%s8133 + $0x170] sm:$0xff]
        %v8548 = vld [vmem:[%s8133 + $0x188] sm:$0xff]
        %v8549 = vld [vmem:[%s8133 + $0x190] sm:$0xff]
        %v8550 = vld [vmem:[%s8133 + $0x1a8] sm:$0xff]
        %v8551 = vld [vmem:[%s8133 + $0x1b0] sm:$0xff]
        %v8552 = vld [vmem:[%s8133 + $0x1c8] sm:$0xff]
        %v8553 = vld [vmem:[%s8133 + $0x1d0] sm:$0xff]
        %v8554 = vld [vmem:[%s8133 + $0x1e8] sm:$0xff]
        %v8555 = vld [vmem:[%s8133 + $0x1f0] sm:$0xff]
        %s8556 = scalar_lea.vmem %s11, 224
        %v8557 = vld [vmem:[%s8556] sm:$0xff]
        %v8558 = vld [vmem:[%s8556 + $0x8] sm:$0xff]
        %v8559 = vld [vmem:[%s8556 + $0x10] sm:$0xff]
        %v8560 = vld [vmem:[%s8556 + $0x18] sm:$0xff]
        %v8562 = vsel %vm531, %v8524, 0
        %v8565 = vsel %vm531, %v8525, 0
        %v8568 = vsel %vm531, %v8526, 0
        %v8571 = vsel %vm531, %v8527, 0
        %v8574 = vsel %vm531, %v8528, 0
        %v8577 = vsel %vm531, %v8529, 0
        %v8580 = vsel %vm531, %v8530, 0
        %v8583 = vsel %vm531, %v8531, 0
        %v8586 = vsel %vm531, %v8532, 0
        %v8589 = vsel %vm531, %v8533, 0
        %v8592 = vsel %vm531, %v8534, 0
        %v8595 = vsel %vm531, %v8535, 0
        %v8598 = vsel %vm531, %v8536, 0
        %v8601 = vsel %vm531, %v8537, 0
        %v8604 = vsel %vm531, %v8538, 0
        %v8607 = vsel %vm531, %v8539, 0
        %v8610 = vsel %vm531, %v8540, 0
        %v8613 = vsel %vm531, %v8541, 0
        %v8616 = vsel %vm531, %v8542, 0
        %v8619 = vsel %vm531, %v8543, 0
        %v8622 = vsel %vm531, %v8544, 0
        %v8625 = vsel %vm531, %v8545, 0
        %v8628 = vsel %vm531, %v8546, 0
        %v8631 = vsel %vm531, %v8547, 0
        %v8634 = vsel %vm531, %v8548, 0
        %v8637 = vsel %vm531, %v8549, 0
        %v8640 = vsel %vm531, %v8550, 0
        %v8643 = vsel %vm531, %v8551, 0
        %v8646 = vsel %vm531, %v8552, 0
        %v8649 = vsel %vm531, %v8553, 0
        %v8652 = vsel %vm531, %v8554, 0
        %v8655 = vsel %vm531, %v8555, 0
        %8657 = vmatprep.subr.mxu0 0.0
        %8658 = vmatpush1.msra.mxu0 %v8557
        %8659 = vmatprep.subr.mxu0 0.0
        %8660 = vmatpush1.msra.mxu0 %v8558
        %8661 = vmatprep.subr.mxu0 0.0
        %8662 = vmatpush1.msra.mxu0 %v8559
        %8663 = vmatprep.subr.mxu0 0.0
        %8664 = vmatpush1.msra.mxu0 %v8560
        %8665 = vmatprep.subr.mxu0 0.0
        %8666 = vmatpush1.msra.mxu0 0.0
        %8667 = vmatprep.subr.mxu0 0.0
        %8668 = vmatpush1.msra.mxu0 0.0
        %8669 = vmatprep.subr.mxu0 0.0
        %8670 = vmatpush1.msra.mxu0 0.0
        %8671 = vmatprep.subr.mxu0 0.0
        %8672 = vmatpush1.msra.mxu0 0.0
        %8673 = vmatprep.subr.mxu0 0.0
        %8674 = vmatpush1.msra.mxu0 0.0
        %8675 = vmatprep.subr.mxu0 0.0
        %8676 = vmatpush1.msra.mxu0 0.0
        %8677 = vmatprep.subr.mxu0 0.0
        %8678 = vmatpush1.msra.mxu0 0.0
        %8679 = vmatprep.subr.mxu0 0.0
        %8680 = vmatpush1.msra.mxu0 0.0
        %8681 = vmatprep.subr.mxu0 0.0
        %8682 = vmatpush1.msra.mxu0 0.0
        %8683 = vmatprep.subr.mxu0 0.0
        %8684 = vmatpush1.msra.mxu0 0.0
        %8685 = vmatprep.subr.mxu0 0.0
        %8686 = vmatpush1.msra.mxu0 0.0
        %8687 = vmatprep.subr.mxu0 0.0
        %8688 = vmatpush1.msra.mxu0 0.0
        %8689 = vmatprep.subr.mxu0 0.0
        %8690 = vmatpush1.msra.mxu0 0.0
        %8691 = vmatprep.subr.mxu0 0.0
        %8692 = vmatpush1.msra.mxu0 0.0
        %8693 = vmatprep.subr.mxu0 0.0
        %8694 = vmatpush1.msra.mxu0 0.0
        %8695 = vmatprep.subr.mxu0 0.0
        %8696 = vmatpush1.msra.mxu0 0.0
        %8697 = vmatprep.subr.mxu0 0.0
        %8698 = vmatpush1.msra.mxu0 0.0
        %8699 = vmatprep.subr.mxu0 0.0
        %8700 = vmatpush1.msra.mxu0 0.0
        %8701 = vmatprep.subr.mxu0 0.0
        %8702 = vmatpush1.msra.mxu0 0.0
        %8703 = vmatprep.subr.mxu0 0.0
        %8704 = vmatpush1.msra.mxu0 0.0
        %8705 = vmatprep.subr.mxu0 0.0
        %8706 = vmatpush1.msra.mxu0 0.0
        %8707 = vmatprep.subr.mxu0 0.0
        %8708 = vmatpush1.msra.mxu0 0.0
        %8709 = vmatprep.subr.mxu0 0.0
        %8710 = vmatpush1.msra.mxu0 0.0
        %8711 = vmatprep.subr.mxu0 0.0
        %8712 = vmatpush1.msra.mxu0 0.0
        %8713 = vmatprep.subr.mxu0 0.0
        %8714 = vmatpush1.msra.mxu0 0.0
        %8715 = vmatprep.subr.mxu0 0.0
        %8716 = vmatpush1.msra.mxu0 0.0
        %8717 = vmatprep.subr.mxu0 0.0
        %8718 = vmatpush1.msra.mxu0 0.0
        %8719 = vmatprep.subr.mxu0 0.0
        %8720 = vmatpush1.msra.mxu0 0.0
        %8721 = vmatprep.mubr.f32.mxu0 0.0
        %8722 = vmatmul.mubr.f32.gmra.mrb[0].mxu0 %v8562
        %v8723 = vpop.f32.mrb[0].mxu0
        %v8724 = vadd.f32 0.0, %v8723
        %v8725 = vpop.f32.mrb[0].mxu0
        %8726 = vmatprep.mubr.f32.mxu0 0.0
        %8727 = vmatmul.mubr.f32.gmra.mrb[0].mxu0 %v8565
        %v8728 = vpop.f32.mrb[0].mxu0
        %v8729 = vadd.f32 0.0, %v8728
        %v8730 = vpop.f32.mrb[0].mxu0
        %8731 = vmatprep.mubr.f32.mxu0 0.0
        %8732 = vmatmul.mubr.f32.gmra.mrb[0].mxu0 %v8568
        %v8733 = vpop.f32.mrb[0].mxu0
        %v8734 = vadd.f32 0.0, %v8733
        %v8735 = vpop.f32.mrb[0].mxu0
        %8736 = vmatprep.mubr.f32.mxu0 0.0
        %8737 = vmatmul.mubr.f32.gmra.mrb[0].mxu0 %v8571
        %v8738 = vpop.f32.mrb[0].mxu0
        %v8739 = vadd.f32 0.0, %v8738
        %v8740 = vpop.f32.mrb[0].mxu0
        %8741 = vmatprep.mubr.f32.mxu0 0.0
        %8742 = vmatmul.mubr.f32.gmra.mrb[0].mxu0 %v8574
        %v8743 = vpop.f32.mrb[0].mxu0
        %v8744 = vadd.f32 0.0, %v8743
        %v8745 = vpop.f32.mrb[0].mxu0
        %8746 = vmatprep.mubr.f32.mxu0 0.0
        %8747 = vmatmul.mubr.f32.gmra.mrb[0].mxu0 %v8577
        %v8748 = vpop.f32.mrb[0].mxu0
        %v8749 = vadd.f32 0.0, %v8748
        %v8750 = vpop.f32.mrb[0].mxu0
        %8751 = vmatprep.mubr.f32.mxu0 0.0
        %8752 = vmatmul.mubr.f32.gmra.mrb[0].mxu0 %v8580
        %v8753 = vpop.f32.mrb[0].mxu0
        %v8754 = vadd.f32 0.0, %v8753
        %v8755 = vpop.f32.mrb[0].mxu0
        %8756 = vmatprep.mubr.f32.mxu0 0.0
        %8757 = vmatmul.mubr.f32.gmra.mrb[0].mxu0 %v8583
        %v8758 = vpop.f32.mrb[0].mxu0
        %v8759 = vadd.f32 0.0, %v8758
        %v8760 = vpop.f32.mrb[0].mxu0
        %8761 = vmatprep.mubr.f32.mxu0 0.0
        %8762 = vmatmul.mubr.f32.gmra.mrb[0].mxu0 %v8586
        %v8763 = vpop.f32.mrb[0].mxu0
        %v8764 = vadd.f32 0.0, %v8763
        %v8765 = vpop.f32.mrb[0].mxu0
        %8766 = vmatprep.mubr.f32.mxu0 0.0
        %8767 = vmatmul.mubr.f32.gmra.mrb[0].mxu0 %v8589
        %v8768 = vpop.f32.mrb[0].mxu0
        %v8769 = vadd.f32 0.0, %v8768
        %v8770 = vpop.f32.mrb[0].mxu0
        %8771 = vmatprep.mubr.f32.mxu0 0.0
        %8772 = vmatmul.mubr.f32.gmra.mrb[0].mxu0 %v8592
        %v8773 = vpop.f32.mrb[0].mxu0
        %v8774 = vadd.f32 0.0, %v8773
        %v8775 = vpop.f32.mrb[0].mxu0
        %8776 = vmatprep.mubr.f32.mxu0 0.0
        %8777 = vmatmul.mubr.f32.gmra.mrb[0].mxu0 %v8595
        %v8778 = vpop.f32.mrb[0].mxu0
        %v8779 = vadd.f32 0.0, %v8778
        %v8780 = vpop.f32.mrb[0].mxu0
        %8781 = vmatprep.mubr.f32.mxu0 0.0
        %8782 = vmatmul.mubr.f32.gmra.mrb[0].mxu0 %v8598
        %v8783 = vpop.f32.mrb[0].mxu0
        %v8784 = vadd.f32 0.0, %v8783
        %v8785 = vpop.f32.mrb[0].mxu0
        %8786 = vmatprep.mubr.f32.mxu0 0.0
        %8787 = vmatmul.mubr.f32.gmra.mrb[0].mxu0 %v8601
        %v8788 = vpop.f32.mrb[0].mxu0
        %v8789 = vadd.f32 0.0, %v8788
        %v8790 = vpop.f32.mrb[0].mxu0
        %8791 = vmatprep.mubr.f32.mxu0 0.0
        %8792 = vmatmul.mubr.f32.gmra.mrb[0].mxu0 %v8604
        %v8793 = vpop.f32.mrb[0].mxu0
        %v8794 = vadd.f32 0.0, %v8793
        %v8795 = vpop.f32.mrb[0].mxu0
        %8796 = vmatprep.mubr.f32.mxu0 0.0
        %8797 = vmatmul.mubr.f32.gmra.mrb[0].mxu0 %v8607
        %v8798 = vpop.f32.mrb[0].mxu0
        %v8799 = vadd.f32 0.0, %v8798
        %v8800 = vpop.f32.mrb[0].mxu0
        %8801 = vmatprep.mubr.f32.mxu0 0.0
        %8802 = vmatmul.mubr.f32.gmra.mrb[0].mxu0 %v8610
        %v8803 = vpop.f32.mrb[0].mxu0
        %v8804 = vadd.f32 0.0, %v8803
        %v8805 = vpop.f32.mrb[0].mxu0
        %8806 = vmatprep.mubr.f32.mxu0 0.0
        %8807 = vmatmul.mubr.f32.gmra.mrb[0].mxu0 %v8613
        %v8808 = vpop.f32.mrb[0].mxu0
        %v8809 = vadd.f32 0.0, %v8808
        %v8810 = vpop.f32.mrb[0].mxu0
        %8811 = vmatprep.mubr.f32.mxu0 0.0
        %8812 = vmatmul.mubr.f32.gmra.mrb[0].mxu0 %v8616
        %v8813 = vpop.f32.mrb[0].mxu0
        %v8814 = vadd.f32 0.0, %v8813
        %v8815 = vpop.f32.mrb[0].mxu0
        %8816 = vmatprep.mubr.f32.mxu0 0.0
        %8817 = vmatmul.mubr.f32.gmra.mrb[0].mxu0 %v8619
        %v8818 = vpop.f32.mrb[0].mxu0
        %v8819 = vadd.f32 0.0, %v8818
        %v8820 = vpop.f32.mrb[0].mxu0
        %8821 = vmatprep.mubr.f32.mxu0 0.0
        %8822 = vmatmul.mubr.f32.gmra.mrb[0].mxu0 %v8622
        %v8823 = vpop.f32.mrb[0].mxu0
        %v8824 = vadd.f32 0.0, %v8823
        %v8825 = vpop.f32.mrb[0].mxu0
        %8826 = vmatprep.mubr.f32.mxu0 0.0
        %8827 = vmatmul.mubr.f32.gmra.mrb[0].mxu0 %v8625
        %v8828 = vpop.f32.mrb[0].mxu0
        %v8829 = vadd.f32 0.0, %v8828
        %v8830 = vpop.f32.mrb[0].mxu0
        %8831 = vmatprep.mubr.f32.mxu0 0.0
        %8832 = vmatmul.mubr.f32.gmra.mrb[0].mxu0 %v8628
        %v8833 = vpop.f32.mrb[0].mxu0
        %v8834 = vadd.f32 0.0, %v8833
        %v8835 = vpop.f32.mrb[0].mxu0
        %8836 = vmatprep.mubr.f32.mxu0 0.0
        %8837 = vmatmul.mubr.f32.gmra.mrb[0].mxu0 %v8631
        %v8838 = vpop.f32.mrb[0].mxu0
        %v8839 = vadd.f32 0.0, %v8838
        %v8840 = vpop.f32.mrb[0].mxu0
        %8841 = vmatprep.mubr.f32.mxu0 0.0
        %8842 = vmatmul.mubr.f32.gmra.mrb[0].mxu0 %v8634
        %v8843 = vpop.f32.mrb[0].mxu0
        %v8844 = vadd.f32 0.0, %v8843
        %v8845 = vpop.f32.mrb[0].mxu0
        %8846 = vmatprep.mubr.f32.mxu0 0.0
        %8847 = vmatmul.mubr.f32.gmra.mrb[0].mxu0 %v8637
        %v8848 = vpop.f32.mrb[0].mxu0
        %v8849 = vadd.f32 0.0, %v8848
        %v8850 = vpop.f32.mrb[0].mxu0
        %8851 = vmatprep.mubr.f32.mxu0 0.0
        %8852 = vmatmul.mubr.f32.gmra.mrb[0].mxu0 %v8640
        %v8853 = vpop.f32.mrb[0].mxu0
        %v8854 = vadd.f32 0.0, %v8853
        %v8855 = vpop.f32.mrb[0].mxu0
        %8856 = vmatprep.mubr.f32.mxu0 0.0
        %8857 = vmatmul.mubr.f32.gmra.mrb[0].mxu0 %v8643
        %v8858 = vpop.f32.mrb[0].mxu0
        %v8859 = vadd.f32 0.0, %v8858
        %v8860 = vpop.f32.mrb[0].mxu0
        %8861 = vmatprep.mubr.f32.mxu0 0.0
        %8862 = vmatmul.mubr.f32.gmra.mrb[0].mxu0 %v8646
        %v8863 = vpop.f32.mrb[0].mxu0
        %v8864 = vadd.f32 0.0, %v8863
        %v8865 = vpop.f32.mrb[0].mxu0
        %8866 = vmatprep.mubr.f32.mxu0 0.0
        %8867 = vmatmul.mubr.f32.gmra.mrb[0].mxu0 %v8649
        %v8868 = vpop.f32.mrb[0].mxu0
        %v8869 = vadd.f32 0.0, %v8868
        %v8870 = vpop.f32.mrb[0].mxu0
        %8871 = vmatprep.mubr.f32.mxu0 0.0
        %8872 = vmatmul.mubr.f32.gmra.mrb[0].mxu0 %v8652
        %v8873 = vpop.f32.mrb[0].mxu0
        %v8874 = vadd.f32 0.0, %v8873
        %v8875 = vpop.f32.mrb[0].mxu0
        %8876 = vmatprep.mubr.f32.mxu0 0.0
        %8877 = vmatmul.mubr.f32.gmra.mrb[0].mxu0 %v8655
        %v8878 = vpop.f32.mrb[0].mxu0
        %v8879 = vadd.f32 0.0, %v8878
        %v8880 = vpop.f32.mrb[0].mxu0
        %8881 = vdwg.mxu0
        %v8882 = vadd.f32 %v8492, %v8724
        %v8883 = vadd.f32 %v8493, %v8729
        %v8884 = vadd.f32 %v8494, %v8734
        %v8885 = vadd.f32 %v8495, %v8739
        %v8886 = vadd.f32 %v8496, %v8744
        %v8887 = vadd.f32 %v8497, %v8749
        %v8888 = vadd.f32 %v8498, %v8754
        %v8889 = vadd.f32 %v8499, %v8759
        %v8890 = vadd.f32 %v8500, %v8764
        %v8891 = vadd.f32 %v8501, %v8769
        %v8892 = vadd.f32 %v8502, %v8774
        %v8893 = vadd.f32 %v8503, %v8779
        %v8894 = vadd.f32 %v8504, %v8784
        %v8895 = vadd.f32 %v8505, %v8789
        %v8896 = vadd.f32 %v8506, %v8794
        %v8897 = vadd.f32 %v8507, %v8799
        %v8898 = vadd.f32 %v8508, %v8804
        %v8899 = vadd.f32 %v8509, %v8809
        %v8900 = vadd.f32 %v8510, %v8814
        %v8901 = vadd.f32 %v8511, %v8819
        %v8902 = vadd.f32 %v8512, %v8824
        %v8903 = vadd.f32 %v8513, %v8829
        %v8904 = vadd.f32 %v8514, %v8834
        %v8905 = vadd.f32 %v8515, %v8839
        %v8906 = vadd.f32 %v8516, %v8844
        %v8907 = vadd.f32 %v8517, %v8849
        %v8908 = vadd.f32 %v8518, %v8854
        %v8909 = vadd.f32 %v8519, %v8859
        %v8910 = vadd.f32 %v8520, %v8864
        %v8911 = vadd.f32 %v8521, %v8869
        %v8912 = vadd.f32 %v8522, %v8874
        %v8913 = vadd.f32 %v8523, %v8879
        %v8914 = vld [vmem:[%s8133 + $0x9] sm:$0xff]
        %v8915 = vld [vmem:[%s8133 + $0x11] sm:$0xff]
        %v8916 = vld [vmem:[%s8133 + $0x29] sm:$0xff]
        %v8917 = vld [vmem:[%s8133 + $0x31] sm:$0xff]
        %v8918 = vld [vmem:[%s8133 + $0x49] sm:$0xff]
        %v8919 = vld [vmem:[%s8133 + $0x51] sm:$0xff]
        %v8920 = vld [vmem:[%s8133 + $0x69] sm:$0xff]
        %v8921 = vld [vmem:[%s8133 + $0x71] sm:$0xff]
        %v8922 = vld [vmem:[%s8133 + $0x89] sm:$0xff]
        %v8923 = vld [vmem:[%s8133 + $0x91] sm:$0xff]
        %v8924 = vld [vmem:[%s8133 + $0xa9] sm:$0xff]
        %v8925 = vld [vmem:[%s8133 + $0xb1] sm:$0xff]
        %v8926 = vld [vmem:[%s8133 + $0xc9] sm:$0xff]
        %v8927 = vld [vmem:[%s8133 + $0xd1] sm:$0xff]
        %v8928 = vld [vmem:[%s8133 + $0xe9] sm:$0xff]
        %v8929 = vld [vmem:[%s8133 + $0xf1] sm:$0xff]
        %v8930 = vld [vmem:[%s8133 + $0x109] sm:$0xff]
        %v8931 = vld [vmem:[%s8133 + $0x111] sm:$0xff]
        %v8932 = vld [vmem:[%s8133 + $0x129] sm:$0xff]
        %v8933 = vld [vmem:[%s8133 + $0x131] sm:$0xff]
        %v8934 = vld [vmem:[%s8133 + $0x149] sm:$0xff]
        %v8935 = vld [vmem:[%s8133 + $0x151] sm:$0xff]
        %v8936 = vld [vmem:[%s8133 + $0x169] sm:$0xff]
        %v8937 = vld [vmem:[%s8133 + $0x171] sm:$0xff]
        %v8938 = vld [vmem:[%s8133 + $0x189] sm:$0xff]
        %v8939 = vld [vmem:[%s8133 + $0x191] sm:$0xff]
        %v8940 = vld [vmem:[%s8133 + $0x1a9] sm:$0xff]
        %v8941 = vld [vmem:[%s8133 + $0x1b1] sm:$0xff]
        %v8942 = vld [vmem:[%s8133 + $0x1c9] sm:$0xff]
        %v8943 = vld [vmem:[%s8133 + $0x1d1] sm:$0xff]
        %v8944 = vld [vmem:[%s8133 + $0x1e9] sm:$0xff]
        %v8945 = vld [vmem:[%s8133 + $0x1f1] sm:$0xff]
        %s8946 = scalar_lea.vmem %s11, 256
        %v8947 = vld [vmem:[%s8946] sm:$0xff]
        %v8948 = vld [vmem:[%s8946 + $0x8] sm:$0xff]
        %v8949 = vld [vmem:[%s8946 + $0x10] sm:$0xff]
        %v8950 = vld [vmem:[%s8946 + $0x18] sm:$0xff]
        %v8952 = vsel %vm531, %v8914, 0
        %v8955 = vsel %vm531, %v8915, 0
        %v8958 = vsel %vm531, %v8916, 0
        %v8961 = vsel %vm531, %v8917, 0
        %v8964 = vsel %vm531, %v8918, 0
        %v8967 = vsel %vm531, %v8919, 0
        %v8970 = vsel %vm531, %v8920, 0
        %v8973 = vsel %vm531, %v8921, 0
        %v8976 = vsel %vm531, %v8922, 0
        %v8979 = vsel %vm531, %v8923, 0
        %v8982 = vsel %vm531, %v8924, 0
        %v8985 = vsel %vm531, %v8925, 0
        %v8988 = vsel %vm531, %v8926, 0
        %v8991 = vsel %vm531, %v8927, 0
        %v8994 = vsel %vm531, %v8928, 0
        %v8997 = vsel %vm531, %v8929, 0
        %v9000 = vsel %vm531, %v8930, 0
        %v9003 = vsel %vm531, %v8931, 0
        %v9006 = vsel %vm531, %v8932, 0
        %v9009 = vsel %vm531, %v8933, 0
        %v9012 = vsel %vm531, %v8934, 0
        %v9015 = vsel %vm531, %v8935, 0
        %v9018 = vsel %vm531, %v8936, 0
        %v9021 = vsel %vm531, %v8937, 0
        %v9024 = vsel %vm531, %v8938, 0
        %v9027 = vsel %vm531, %v8939, 0
        %v9030 = vsel %vm531, %v8940, 0
        %v9033 = vsel %vm531, %v8941, 0
        %v9036 = vsel %vm531, %v8942, 0
        %v9039 = vsel %vm531, %v8943, 0
        %v9042 = vsel %vm531, %v8944, 0
        %v9045 = vsel %vm531, %v8945, 0
        %9047 = vmatprep.subr.mxu0 0.0
        %9048 = vmatpush1.msra.mxu0 %v8947
        %9049 = vmatprep.subr.mxu0 0.0
        %9050 = vmatpush1.msra.mxu0 %v8948
        %9051 = vmatprep.subr.mxu0 0.0
        %9052 = vmatpush1.msra.mxu0 %v8949
        %9053 = vmatprep.subr.mxu0 0.0
        %9054 = vmatpush1.msra.mxu0 %v8950
        %9055 = vmatprep.subr.mxu0 0.0
        %9056 = vmatpush1.msra.mxu0 0.0
        %9057 = vmatprep.subr.mxu0 0.0
        %9058 = vmatpush1.msra.mxu0 0.0
        %9059 = vmatprep.subr.mxu0 0.0
        %9060 = vmatpush1.msra.mxu0 0.0
        %9061 = vmatprep.subr.mxu0 0.0
        %9062 = vmatpush1.msra.mxu0 0.0
        %9063 = vmatprep.subr.mxu0 0.0
        %9064 = vmatpush1.msra.mxu0 0.0
        %9065 = vmatprep.subr.mxu0 0.0
        %9066 = vmatpush1.msra.mxu0 0.0
        %9067 = vmatprep.subr.mxu0 0.0
        %9068 = vmatpush1.msra.mxu0 0.0
        %9069 = vmatprep.subr.mxu0 0.0
        %9070 = vmatpush1.msra.mxu0 0.0
        %9071 = vmatprep.subr.mxu0 0.0
        %9072 = vmatpush1.msra.mxu0 0.0
        %9073 = vmatprep.subr.mxu0 0.0
        %9074 = vmatpush1.msra.mxu0 0.0
        %9075 = vmatprep.subr.mxu0 0.0
        %9076 = vmatpush1.msra.mxu0 0.0
        %9077 = vmatprep.subr.mxu0 0.0
        %9078 = vmatpush1.msra.mxu0 0.0
        %9079 = vmatprep.subr.mxu0 0.0
        %9080 = vmatpush1.msra.mxu0 0.0
        %9081 = vmatprep.subr.mxu0 0.0
        %9082 = vmatpush1.msra.mxu0 0.0
        %9083 = vmatprep.subr.mxu0 0.0
        %9084 = vmatpush1.msra.mxu0 0.0
        %9085 = vmatprep.subr.mxu0 0.0
        %9086 = vmatpush1.msra.mxu0 0.0
        %9087 = vmatprep.subr.mxu0 0.0
        %9088 = vmatpush1.msra.mxu0 0.0
        %9089 = vmatprep.subr.mxu0 0.0
        %9090 = vmatpush1.msra.mxu0 0.0
        %9091 = vmatprep.subr.mxu0 0.0
        %9092 = vmatpush1.msra.mxu0 0.0
        %9093 = vmatprep.subr.mxu0 0.0
        %9094 = vmatpush1.msra.mxu0 0.0
        %9095 = vmatprep.subr.mxu0 0.0
        %9096 = vmatpush1.msra.mxu0 0.0
        %9097 = vmatprep.subr.mxu0 0.0
        %9098 = vmatpush1.msra.mxu0 0.0
        %9099 = vmatprep.subr.mxu0 0.0
        %9100 = vmatpush1.msra.mxu0 0.0
        %9101 = vmatprep.subr.mxu0 0.0
        %9102 = vmatpush1.msra.mxu0 0.0
        %9103 = vmatprep.subr.mxu0 0.0
        %9104 = vmatpush1.msra.mxu0 0.0
        %9105 = vmatprep.subr.mxu0 0.0
        %9106 = vmatpush1.msra.mxu0 0.0
        %9107 = vmatprep.subr.mxu0 0.0
        %9108 = vmatpush1.msra.mxu0 0.0
        %9109 = vmatprep.subr.mxu0 0.0
        %9110 = vmatpush1.msra.mxu0 0.0
        %9111 = vmatprep.mubr.f32.mxu0 0.0
        %9112 = vmatmul.mubr.f32.gmra.mrb[0].mxu0 %v8952
        %v9113 = vpop.f32.mrb[0].mxu0
        %v9114 = vadd.f32 0.0, %v9113
        %v9115 = vpop.f32.mrb[0].mxu0
        %9116 = vmatprep.mubr.f32.mxu0 0.0
        %9117 = vmatmul.mubr.f32.gmra.mrb[0].mxu0 %v8955
        %v9118 = vpop.f32.mrb[0].mxu0
        %v9119 = vadd.f32 0.0, %v9118
        %v9120 = vpop.f32.mrb[0].mxu0
        %9121 = vmatprep.mubr.f32.mxu0 0.0
        %9122 = vmatmul.mubr.f32.gmra.mrb[0].mxu0 %v8958
        %v9123 = vpop.f32.mrb[0].mxu0
        %v9124 = vadd.f32 0.0, %v9123
        %v9125 = vpop.f32.mrb[0].mxu0
        %9126 = vmatprep.mubr.f32.mxu0 0.0
        %9127 = vmatmul.mubr.f32.gmra.mrb[0].mxu0 %v8961
        %v9128 = vpop.f32.mrb[0].mxu0
        %v9129 = vadd.f32 0.0, %v9128
        %v9130 = vpop.f32.mrb[0].mxu0
        %9131 = vmatprep.mubr.f32.mxu0 0.0
        %9132 = vmatmul.mubr.f32.gmra.mrb[0].mxu0 %v8964
        %v9133 = vpop.f32.mrb[0].mxu0
        %v9134 = vadd.f32 0.0, %v9133
        %v9135 = vpop.f32.mrb[0].mxu0
        %9136 = vmatprep.mubr.f32.mxu0 0.0
        %9137 = vmatmul.mubr.f32.gmra.mrb[0].mxu0 %v8967
        %v9138 = vpop.f32.mrb[0].mxu0
        %v9139 = vadd.f32 0.0, %v9138
        %v9140 = vpop.f32.mrb[0].mxu0
        %9141 = vmatprep.mubr.f32.mxu0 0.0
        %9142 = vmatmul.mubr.f32.gmra.mrb[0].mxu0 %v8970
        %v9143 = vpop.f32.mrb[0].mxu0
        %v9144 = vadd.f32 0.0, %v9143
        %v9145 = vpop.f32.mrb[0].mxu0
        %9146 = vmatprep.mubr.f32.mxu0 0.0
        %9147 = vmatmul.mubr.f32.gmra.mrb[0].mxu0 %v8973
        %v9148 = vpop.f32.mrb[0].mxu0
        %v9149 = vadd.f32 0.0, %v9148
        %v9150 = vpop.f32.mrb[0].mxu0
        %9151 = vmatprep.mubr.f32.mxu0 0.0
        %9152 = vmatmul.mubr.f32.gmra.mrb[0].mxu0 %v8976
        %v9153 = vpop.f32.mrb[0].mxu0
        %v9154 = vadd.f32 0.0, %v9153
        %v9155 = vpop.f32.mrb[0].mxu0
        %9156 = vmatprep.mubr.f32.mxu0 0.0
        %9157 = vmatmul.mubr.f32.gmra.mrb[0].mxu0 %v8979
        %v9158 = vpop.f32.mrb[0].mxu0
        %v9159 = vadd.f32 0.0, %v9158
        %v9160 = vpop.f32.mrb[0].mxu0
        %9161 = vmatprep.mubr.f32.mxu0 0.0
        %9162 = vmatmul.mubr.f32.gmra.mrb[0].mxu0 %v8982
        %v9163 = vpop.f32.mrb[0].mxu0
        %v9164 = vadd.f32 0.0, %v9163
        %v9165 = vpop.f32.mrb[0].mxu0
        %9166 = vmatprep.mubr.f32.mxu0 0.0
        %9167 = vmatmul.mubr.f32.gmra.mrb[0].mxu0 %v8985
        %v9168 = vpop.f32.mrb[0].mxu0
        %v9169 = vadd.f32 0.0, %v9168
        %v9170 = vpop.f32.mrb[0].mxu0
        %9171 = vmatprep.mubr.f32.mxu0 0.0
        %9172 = vmatmul.mubr.f32.gmra.mrb[0].mxu0 %v8988
        %v9173 = vpop.f32.mrb[0].mxu0
        %v9174 = vadd.f32 0.0, %v9173
        %v9175 = vpop.f32.mrb[0].mxu0
        %9176 = vmatprep.mubr.f32.mxu0 0.0
        %9177 = vmatmul.mubr.f32.gmra.mrb[0].mxu0 %v8991
        %v9178 = vpop.f32.mrb[0].mxu0
        %v9179 = vadd.f32 0.0, %v9178
        %v9180 = vpop.f32.mrb[0].mxu0
        %9181 = vmatprep.mubr.f32.mxu0 0.0
        %9182 = vmatmul.mubr.f32.gmra.mrb[0].mxu0 %v8994
        %v9183 = vpop.f32.mrb[0].mxu0
        %v9184 = vadd.f32 0.0, %v9183
        %v9185 = vpop.f32.mrb[0].mxu0
        %9186 = vmatprep.mubr.f32.mxu0 0.0
        %9187 = vmatmul.mubr.f32.gmra.mrb[0].mxu0 %v8997
        %v9188 = vpop.f32.mrb[0].mxu0
        %v9189 = vadd.f32 0.0, %v9188
        %v9190 = vpop.f32.mrb[0].mxu0
        %9191 = vmatprep.mubr.f32.mxu0 0.0
        %9192 = vmatmul.mubr.f32.gmra.mrb[0].mxu0 %v9000
        %v9193 = vpop.f32.mrb[0].mxu0
        %v9194 = vadd.f32 0.0, %v9193
        %v9195 = vpop.f32.mrb[0].mxu0
        %9196 = vmatprep.mubr.f32.mxu0 0.0
        %9197 = vmatmul.mubr.f32.gmra.mrb[0].mxu0 %v9003
        %v9198 = vpop.f32.mrb[0].mxu0
        %v9199 = vadd.f32 0.0, %v9198
        %v9200 = vpop.f32.mrb[0].mxu0
        %9201 = vmatprep.mubr.f32.mxu0 0.0
        %9202 = vmatmul.mubr.f32.gmra.mrb[0].mxu0 %v9006
        %v9203 = vpop.f32.mrb[0].mxu0
        %v9204 = vadd.f32 0.0, %v9203
        %v9205 = vpop.f32.mrb[0].mxu0
        %9206 = vmatprep.mubr.f32.mxu0 0.0
        %9207 = vmatmul.mubr.f32.gmra.mrb[0].mxu0 %v9009
        %v9208 = vpop.f32.mrb[0].mxu0
        %v9209 = vadd.f32 0.0, %v9208
        %v9210 = vpop.f32.mrb[0].mxu0
        %9211 = vmatprep.mubr.f32.mxu0 0.0
        %9212 = vmatmul.mubr.f32.gmra.mrb[0].mxu0 %v9012
        %v9213 = vpop.f32.mrb[0].mxu0
        %v9214 = vadd.f32 0.0, %v9213
        %v9215 = vpop.f32.mrb[0].mxu0
        %9216 = vmatprep.mubr.f32.mxu0 0.0
        %9217 = vmatmul.mubr.f32.gmra.mrb[0].mxu0 %v9015
        %v9218 = vpop.f32.mrb[0].mxu0
        %v9219 = vadd.f32 0.0, %v9218
        %v9220 = vpop.f32.mrb[0].mxu0
        %9221 = vmatprep.mubr.f32.mxu0 0.0
        %9222 = vmatmul.mubr.f32.gmra.mrb[0].mxu0 %v9018
        %v9223 = vpop.f32.mrb[0].mxu0
        %v9224 = vadd.f32 0.0, %v9223
        %v9225 = vpop.f32.mrb[0].mxu0
        %9226 = vmatprep.mubr.f32.mxu0 0.0
        %9227 = vmatmul.mubr.f32.gmra.mrb[0].mxu0 %v9021
        %v9228 = vpop.f32.mrb[0].mxu0
        %v9229 = vadd.f32 0.0, %v9228
        %v9230 = vpop.f32.mrb[0].mxu0
        %9231 = vmatprep.mubr.f32.mxu0 0.0
        %9232 = vmatmul.mubr.f32.gmra.mrb[0].mxu0 %v9024
        %v9233 = vpop.f32.mrb[0].mxu0
        %v9234 = vadd.f32 0.0, %v9233
        %v9235 = vpop.f32.mrb[0].mxu0
        %9236 = vmatprep.mubr.f32.mxu0 0.0
        %9237 = vmatmul.mubr.f32.gmra.mrb[0].mxu0 %v9027
        %v9238 = vpop.f32.mrb[0].mxu0
        %v9239 = vadd.f32 0.0, %v9238
        %v9240 = vpop.f32.mrb[0].mxu0
        %9241 = vmatprep.mubr.f32.mxu0 0.0
        %9242 = vmatmul.mubr.f32.gmra.mrb[0].mxu0 %v9030
        %v9243 = vpop.f32.mrb[0].mxu0
        %v9244 = vadd.f32 0.0, %v9243
        %v9245 = vpop.f32.mrb[0].mxu0
        %9246 = vmatprep.mubr.f32.mxu0 0.0
        %9247 = vmatmul.mubr.f32.gmra.mrb[0].mxu0 %v9033
        %v9248 = vpop.f32.mrb[0].mxu0
        %v9249 = vadd.f32 0.0, %v9248
        %v9250 = vpop.f32.mrb[0].mxu0
        %9251 = vmatprep.mubr.f32.mxu0 0.0
        %9252 = vmatmul.mubr.f32.gmra.mrb[0].mxu0 %v9036
        %v9253 = vpop.f32.mrb[0].mxu0
        %v9254 = vadd.f32 0.0, %v9253
        %v9255 = vpop.f32.mrb[0].mxu0
        %9256 = vmatprep.mubr.f32.mxu0 0.0
        %9257 = vmatmul.mubr.f32.gmra.mrb[0].mxu0 %v9039
        %v9258 = vpop.f32.mrb[0].mxu0
        %v9259 = vadd.f32 0.0, %v9258
        %v9260 = vpop.f32.mrb[0].mxu0
        %9261 = vmatprep.mubr.f32.mxu0 0.0
        %9262 = vmatmul.mubr.f32.gmra.mrb[0].mxu0 %v9042
        %v9263 = vpop.f32.mrb[0].mxu0
        %v9264 = vadd.f32 0.0, %v9263
        %v9265 = vpop.f32.mrb[0].mxu0
        %9266 = vmatprep.mubr.f32.mxu0 0.0
        %9267 = vmatmul.mubr.f32.gmra.mrb[0].mxu0 %v9045
        %v9268 = vpop.f32.mrb[0].mxu0
        %v9269 = vadd.f32 0.0, %v9268
        %v9270 = vpop.f32.mrb[0].mxu0
        %9271 = vdwg.mxu0
        %v9272 = vadd.f32 %v8882, %v9114
        %v9273 = vadd.f32 %v8883, %v9119
        %v9274 = vadd.f32 %v8884, %v9124
        %v9275 = vadd.f32 %v8885, %v9129
        %v9276 = vadd.f32 %v8886, %v9134
        %v9277 = vadd.f32 %v8887, %v9139
        %v9278 = vadd.f32 %v8888, %v9144
        %v9279 = vadd.f32 %v8889, %v9149
        %v9280 = vadd.f32 %v8890, %v9154
        %v9281 = vadd.f32 %v8891, %v9159
        %v9282 = vadd.f32 %v8892, %v9164
        %v9283 = vadd.f32 %v8893, %v9169
        %v9284 = vadd.f32 %v8894, %v9174
        %v9285 = vadd.f32 %v8895, %v9179
        %v9286 = vadd.f32 %v8896, %v9184
        %v9287 = vadd.f32 %v8897, %v9189
        %v9288 = vadd.f32 %v8898, %v9194
        %v9289 = vadd.f32 %v8899, %v9199
        %v9290 = vadd.f32 %v8900, %v9204
        %v9291 = vadd.f32 %v8901, %v9209
        %v9292 = vadd.f32 %v8902, %v9214
        %v9293 = vadd.f32 %v8903, %v9219
        %v9294 = vadd.f32 %v8904, %v9224
        %v9295 = vadd.f32 %v8905, %v9229
        %v9296 = vadd.f32 %v8906, %v9234
        %v9297 = vadd.f32 %v8907, %v9239
        %v9298 = vadd.f32 %v8908, %v9244
        %v9299 = vadd.f32 %v8909, %v9249
        %v9300 = vadd.f32 %v8910, %v9254
        %v9301 = vadd.f32 %v8911, %v9259
        %v9302 = vadd.f32 %v8912, %v9264
        %v9303 = vadd.f32 %v8913, %v9269
        %v9304 = vld [vmem:[%s12] sm:$0x1]
        %v9306 = vlaneseq
        %v9307 = vshrl.u32 %v9306, 7
        %v9308 = vsub.s32 0, %v9307
        %v9309 = vrot.slane %v9304, %v9308
        %v9311 = vadd.f32 %v9272, %v9309
        %v9312 = vadd.f32 %v9273, %v9309
        %v9313 = vadd.f32 %v9274, %v9309
        %v9314 = vadd.f32 %v9275, %v9309
        %v9315 = vadd.f32 %v9276, %v9309
        %v9316 = vadd.f32 %v9277, %v9309
        %v9317 = vadd.f32 %v9278, %v9309
        %v9318 = vadd.f32 %v9279, %v9309
        %v9319 = vadd.f32 %v9280, %v9309
        %v9320 = vadd.f32 %v9281, %v9309
        %v9321 = vadd.f32 %v9282, %v9309
        %v9322 = vadd.f32 %v9283, %v9309
        %v9323 = vadd.f32 %v9284, %v9309
        %v9324 = vadd.f32 %v9285, %v9309
        %v9325 = vadd.f32 %v9286, %v9309
        %v9326 = vadd.f32 %v9287, %v9309
        %v9327 = vadd.f32 %v9288, %v9309
        %v9328 = vadd.f32 %v9289, %v9309
        %v9329 = vadd.f32 %v9290, %v9309
        %v9330 = vadd.f32 %v9291, %v9309
        %v9331 = vadd.f32 %v9292, %v9309
        %v9332 = vadd.f32 %v9293, %v9309
        %v9333 = vadd.f32 %v9294, %v9309
        %v9334 = vadd.f32 %v9295, %v9309
        %v9335 = vadd.f32 %v9296, %v9309
        %v9336 = vadd.f32 %v9297, %v9309
        %v9337 = vadd.f32 %v9298, %v9309
        %v9338 = vadd.f32 %v9299, %v9309
        %v9339 = vadd.f32 %v9300, %v9309
        %v9340 = vadd.f32 %v9301, %v9309
        %v9341 = vadd.f32 %v9302, %v9309
        %v9342 = vadd.f32 %v9303, %v9309
        %vm9343 = vcmp.ge.f32.partialorder %v9311, 0.0
        %vm9344 = vcmp.ge.f32.partialorder %v9312, 0.0
        %vm9345 = vcmp.ge.f32.partialorder %v9313, 0.0
        %vm9346 = vcmp.ge.f32.partialorder %v9314, 0.0
        %vm9347 = vcmp.ge.f32.partialorder %v9315, 0.0
        %vm9348 = vcmp.ge.f32.partialorder %v9316, 0.0
        %vm9349 = vcmp.ge.f32.partialorder %v9317, 0.0
        %vm9350 = vcmp.ge.f32.partialorder %v9318, 0.0
        %vm9351 = vcmp.ge.f32.partialorder %v9319, 0.0
        %vm9352 = vcmp.ge.f32.partialorder %v9320, 0.0
        %vm9353 = vcmp.ge.f32.partialorder %v9321, 0.0
        %vm9354 = vcmp.ge.f32.partialorder %v9322, 0.0
        %vm9355 = vcmp.ge.f32.partialorder %v9323, 0.0
        %vm9356 = vcmp.ge.f32.partialorder %v9324, 0.0
        %vm9357 = vcmp.ge.f32.partialorder %v9325, 0.0
        %vm9358 = vcmp.ge.f32.partialorder %v9326, 0.0
        %vm9359 = vcmp.ge.f32.partialorder %v9327, 0.0
        %vm9360 = vcmp.ge.f32.partialorder %v9328, 0.0
        %vm9361 = vcmp.ge.f32.partialorder %v9329, 0.0
        %vm9362 = vcmp.ge.f32.partialorder %v9330, 0.0
        %vm9363 = vcmp.ge.f32.partialorder %v9331, 0.0
        %vm9364 = vcmp.ge.f32.partialorder %v9332, 0.0
        %vm9365 = vcmp.ge.f32.partialorder %v9333, 0.0
        %vm9366 = vcmp.ge.f32.partialorder %v9334, 0.0
        %vm9367 = vcmp.ge.f32.partialorder %v9335, 0.0
        %vm9368 = vcmp.ge.f32.partialorder %v9336, 0.0
        %vm9369 = vcmp.ge.f32.partialorder %v9337, 0.0
        %vm9370 = vcmp.ge.f32.partialorder %v9338, 0.0
        %vm9371 = vcmp.ge.f32.partialorder %v9339, 0.0
        %vm9372 = vcmp.ge.f32.partialorder %v9340, 0.0
        %vm9373 = vcmp.ge.f32.partialorder %v9341, 0.0
        %vm9374 = vcmp.ge.f32.partialorder %v9342, 0.0
        %v9375 = vmul.f32 %v9311, 0.01
        %v9376 = vmul.f32 %v9312, 0.01
        %v9377 = vmul.f32 %v9313, 0.01
        %v9378 = vmul.f32 %v9314, 0.01
        %v9379 = vmul.f32 %v9315, 0.01
        %v9380 = vmul.f32 %v9316, 0.01
        %v9381 = vmul.f32 %v9317, 0.01
        %v9382 = vmul.f32 %v9318, 0.01
        %v9383 = vmul.f32 %v9319, 0.01
        %v9384 = vmul.f32 %v9320, 0.01
        %v9385 = vmul.f32 %v9321, 0.01
        %v9386 = vmul.f32 %v9322, 0.01
        %v9387 = vmul.f32 %v9323, 0.01
        %v9388 = vmul.f32 %v9324, 0.01
        %v9389 = vmul.f32 %v9325, 0.01
        %v9390 = vmul.f32 %v9326, 0.01
        %v9391 = vmul.f32 %v9327, 0.01
        %v9392 = vmul.f32 %v9328, 0.01
        %v9393 = vmul.f32 %v9329, 0.01
        %v9394 = vmul.f32 %v9330, 0.01
        %v9395 = vmul.f32 %v9331, 0.01
        %v9396 = vmul.f32 %v9332, 0.01
        %v9397 = vmul.f32 %v9333, 0.01
        %v9398 = vmul.f32 %v9334, 0.01
        %v9399 = vmul.f32 %v9335, 0.01
        %v9400 = vmul.f32 %v9336, 0.01
        %v9401 = vmul.f32 %v9337, 0.01
        %v9402 = vmul.f32 %v9338, 0.01
        %v9403 = vmul.f32 %v9339, 0.01
        %v9404 = vmul.f32 %v9340, 0.01
        %v9405 = vmul.f32 %v9341, 0.01
        %v9406 = vmul.f32 %v9342, 0.01
        %v9407 = vsel %vm9343, %v9311, %v9375
        %v9408 = vsel %vm9344, %v9312, %v9376
        %v9409 = vsel %vm9345, %v9313, %v9377
        %v9410 = vsel %vm9346, %v9314, %v9378
        %v9411 = vsel %vm9347, %v9315, %v9379
        %v9412 = vsel %vm9348, %v9316, %v9380
        %v9413 = vsel %vm9349, %v9317, %v9381
        %v9414 = vsel %vm9350, %v9318, %v9382
        %v9415 = vsel %vm9351, %v9319, %v9383
        %v9416 = vsel %vm9352, %v9320, %v9384
        %v9417 = vsel %vm9353, %v9321, %v9385
        %v9418 = vsel %vm9354, %v9322, %v9386
        %v9419 = vsel %vm9355, %v9323, %v9387
        %v9420 = vsel %vm9356, %v9324, %v9388
        %v9421 = vsel %vm9357, %v9325, %v9389
        %v9422 = vsel %vm9358, %v9326, %v9390
        %v9423 = vsel %vm9359, %v9327, %v9391
        %v9424 = vsel %vm9360, %v9328, %v9392
        %v9425 = vsel %vm9361, %v9329, %v9393
        %v9426 = vsel %vm9362, %v9330, %v9394
        %v9427 = vsel %vm9363, %v9331, %v9395
        %v9428 = vsel %vm9364, %v9332, %v9396
        %v9429 = vsel %vm9365, %v9333, %v9397
        %v9430 = vsel %vm9366, %v9334, %v9398
        %v9431 = vsel %vm9367, %v9335, %v9399
        %v9432 = vsel %vm9368, %v9336, %v9400
        %v9433 = vsel %vm9369, %v9337, %v9401
        %v9434 = vsel %vm9370, %v9338, %v9402
        %v9435 = vsel %vm9371, %v9339, %v9403
        %v9436 = vsel %vm9372, %v9340, %v9404
        %v9437 = vsel %vm9373, %v9341, %v9405
        %v9438 = vsel %vm9374, %v9342, %v9406
        %9439 = vst.msk [vmem:[%s448] sm:$0xff] %vm531, %v9407
        %9440 = vst.msk [vmem:[%s448 + $0x8] sm:$0xff] %vm531, %v9408
        %9441 = vst.msk [vmem:[%s448 + $0x10] sm:$0xff] %vm531, %v9409
        %9442 = vst.msk [vmem:[%s448 + $0x18] sm:$0xff] %vm531, %v9410
        %9443 = vst.msk [vmem:[%s448 + $0x20] sm:$0xff] %vm531, %v9411
        %9444 = vst.msk [vmem:[%s448 + $0x28] sm:$0xff] %vm531, %v9412
        %9445 = vst.msk [vmem:[%s448 + $0x30] sm:$0xff] %vm531, %v9413
        %9446 = vst.msk [vmem:[%s448 + $0x38] sm:$0xff] %vm531, %v9414
        %9447 = vst.msk [vmem:[%s448 + $0x40] sm:$0xff] %vm531, %v9415
        %9448 = vst.msk [vmem:[%s448 + $0x48] sm:$0xff] %vm531, %v9416
        %9449 = vst.msk [vmem:[%s448 + $0x50] sm:$0xff] %vm531, %v9417
        %9450 = vst.msk [vmem:[%s448 + $0x58] sm:$0xff] %vm531, %v9418
        %9451 = vst.msk [vmem:[%s448 + $0x60] sm:$0xff] %vm531, %v9419
        %9452 = vst.msk [vmem:[%s448 + $0x68] sm:$0xff] %vm531, %v9420
        %9453 = vst.msk [vmem:[%s448 + $0x70] sm:$0xff] %vm531, %v9421
        %9454 = vst.msk [vmem:[%s448 + $0x78] sm:$0xff] %vm531, %v9422
        %9455 = vst.msk [vmem:[%s448 + $0x80] sm:$0xff] %vm531, %v9423
        %9456 = vst.msk [vmem:[%s448 + $0x88] sm:$0xff] %vm531, %v9424
        %9457 = vst.msk [vmem:[%s448 + $0x90] sm:$0xff] %vm531, %v9425
        %9458 = vst.msk [vmem:[%s448 + $0x98] sm:$0xff] %vm531, %v9426
        %9459 = vst.msk [vmem:[%s448 + $0xa0] sm:$0xff] %vm531, %v9427
        %9460 = vst.msk [vmem:[%s448 + $0xa8] sm:$0xff] %vm531, %v9428
        %9461 = vst.msk [vmem:[%s448 + $0xb0] sm:$0xff] %vm531, %v9429
        %9462 = vst.msk [vmem:[%s448 + $0xb8] sm:$0xff] %vm531, %v9430
        %9463 = vst.msk [vmem:[%s448 + $0xc0] sm:$0xff] %vm531, %v9431
        %9464 = vst.msk [vmem:[%s448 + $0xc8] sm:$0xff] %vm531, %v9432
        %9465 = vst.msk [vmem:[%s448 + $0xd0] sm:$0xff] %vm531, %v9433
        %9466 = vst.msk [vmem:[%s448 + $0xd8] sm:$0xff] %vm531, %v9434
        %9467 = vst.msk [vmem:[%s448 + $0xe0] sm:$0xff] %vm531, %v9435
        %9468 = vst.msk [vmem:[%s448 + $0xe8] sm:$0xff] %vm531, %v9436
        %9469 = vst.msk [vmem:[%s448 + $0xf0] sm:$0xff] %vm531, %v9437
        %9470 = vst.msk [vmem:[%s448 + $0xf8] sm:$0xff] %vm531, %v9438
        %s9471 = sand.u32 %s318, 1
        %s9472 = scalar_lea.sflag [#allocation5], %s9471
        %s9473 = sand.u32 %s318, 1
        %s9474 = smul.addr %s9473, 256
        %s9475 = scalar_lea.vmem [#allocation4], %s9474
        // Predicated region
        $region73: #{up_block_concat.1} parent=71 // pred_check
          %p9476 = pneg %p328
        $region74: #{up_block_concat.1} parent=71 // pred_check_branch
          %9478 = sbr.rel (%p9476) target = $region76
        $region75: #{up_block_concat.1} parent=71 // pred_region
          %s9480 = ssub.s32 4096, 4096
          %9481 = vsyncadd %s9472, %s9480
          %s9482 = smul.addr %s27, 32
          %s9483 = smul.addr %s9482, 128
          %s9484 = scalar_lea.hbm %s13, %s9483
          %s9485 = sshll.u32 %s9475, 4
          %s9486 = int_to_ptr.vmem [resolvable:$true] %s9485
          %9491 = dma.vmem_to_hbm [thread:$0]  %s9486, 4096, %s9484, %s9472, 128, 128, 8
        $region76: #{up_block_concat.1} parent=71 // pred_fallthru
          _
      $region72: #{up_block_concat.1} parent=5 // pred_fallthru
        _
      %p9492 = scmp.le.s32.totalorder 2, %s22
      // Predicated region
      $region77: #{up_block_concat.1} parent=5 // pred_check
        %p9493 = pneg %p9492
      $region78: #{up_block_concat.1} parent=5 // pred_check_branch
        %9495 = sbr.rel (%p9493) target = $region80
      $region79: #{up_block_concat.1} parent=5 // pred_region
        %s9496 = ssub.s32 %s22, 2
        // Predicated region
        $region81: #{up_block_concat.1} parent=79 // pred_check
          %p9497 = pneg %p334
        $region82: #{up_block_concat.1} parent=79 // pred_check_branch
          %9499 = sbr.rel (%p9497) target = $region84
        $region83: #{up_block_concat.1} parent=79 // pred_region
          %s9500 = sand.u32 %s319, 1
          %s9501 = scalar_lea.sflag [#allocation5], %s9500
          %s9502 = sand.u32 %s319, 1
          %s9503 = smul.addr %s9502, 256
          %s9504 = scalar_lea.vmem [#allocation4], %s9503
          %9505 = dma.done %s9501, 4096
        $region84: #{up_block_concat.1} parent=79 // pred_fallthru
          _
      $region80: #{up_block_concat.1} parent=5 // pred_fallthru
        _
    $region6: #{up_block_concat.1} parent=1 // loop_footer
      %s26 = sadd.s32 1, %s22
    $region7: #{up_block_concat.1} parent=1 // loop_footer_branch
      %21 = sbr.rel target = $region3
    $region8: #{up_block_concat.1} parent=1 // loop_exit
      _
    %9506 = vsyncpa [#allocation5], 1
    %s9507 = scalar_lea.sflag [#allocation5], 1
    %9508 = vsyncpa %s9507, 1

</llo_original>
